<compile_context>
chip_gen: v7x
topology: tpu7x:2x2x1
jax: 0.10.0
libtpu: 0.0.40
codegen_flags: <defaults>
</compile_context>

<pallas_src>
import functools
import numpy as np
import jax
import jax.numpy as jnp
from jax import lax
from jax.experimental import pallas as pl
from jax.experimental.pallas import tpu as pltpu

LN_EPS = 1e-5
_INV_SQRT2 = np.float32(1.0 / np.sqrt(2.0))
_GELU_C = np.float32(np.sqrt(2.0 / np.pi))
_GELU_K = np.float32(0.044715)


# ----------------------------------------------------------------------------
# Fused Pallas kernel: LN1 -> windowed MHA -> proj -> +res -> LN2 -> MLP -> +res
# ----------------------------------------------------------------------------
def _layernorm(x, g, b):
    mu = jnp.mean(x, axis=-1, keepdims=True)
    var = jnp.mean(jnp.square(x - mu), axis=-1, keepdims=True)
    return (x - mu) * lax.rsqrt(var + LN_EPS) * g + b


def _swin_block_kernel(x_ref, ln1_g_ref, ln1_b_ref,
                       wq_ref, wk_ref, wv_ref, bq_ref, bk_ref, bv_ref,
                       proj_w_ref, proj_b_ref, table_ref,
                       ln2_g_ref, ln2_b_ref, w1_ref, b1_ref, w2_ref, b2_ref,
                       out_ref, o_scratch, *,
                       num_heads, head_dim, windows_per_image, shifted,
                       approx_gelu):
    """One chunk of windows.

    x_ref:      [Wc, N, C]  un-normed tokens of Wc whole windows (f32)
    wq/wk/wv:   [C, C] bf16 (pre-transposed; head_dim**-0.5 folded into Wq/bq)
    proj_w:     [C, C] bf16 (pre-transposed)
    table_ref:  [nH, nW or 1, N, N] relative-position bias (+ window mask)
    w1/w2:      MLP weights bf16 (pre-transposed) [C, hid] / [hid, C]
    o_scratch:  [Wc*N, C] f32 VMEM scratch (per-head concat -> one proj matmul)
    """
    Wc, N, C = x_ref.shape
    T = Wc * N
    bf16 = jnp.bfloat16

    x = x_ref[...].reshape(T, C)                      # f32 tokens (free reshape)

    # ---- norm1 + QKV (three big-M bf16 matmuls) ----
    xn = _layernorm(x, ln1_g_ref[0], ln1_b_ref[0]).astype(bf16)
    q = (jnp.dot(xn, wq_ref[...], preferred_element_type=jnp.float32)
         + bq_ref[0]).astype(bf16).reshape(Wc, N, C)
    k = (jnp.dot(xn, wk_ref[...], preferred_element_type=jnp.float32)
         + bk_ref[0]).astype(bf16).reshape(Wc, N, C)
    v = (jnp.dot(xn, wv_ref[...], preferred_element_type=jnp.float32)
         + bv_ref[0]).astype(bf16).reshape(Wc, N, C)

    # ---- per-head attention, batched over windows; each head's output lands
    #      in its column range of the scratch, then ONE K=C proj matmul. ----
    for h in range(num_heads):
        lo = h * head_dim
        qh = q[:, :, lo:lo + head_dim]
        kh = k[:, :, lo:lo + head_dim]
        vh = v[:, :, lo:lo + head_dim]

        s = jnp.einsum('wnd,wmd->wnm', qh, kh,
                       preferred_element_type=jnp.float32)      # [Wc, N, N] f32
        bias_h = table_ref[h]                    # [nW or 1, N, N] (bias+mask fused)
        if shifted:
            bg = Wc // windows_per_image
            s = (s.reshape(bg, windows_per_image, N, N) + bias_h[None]
                 ).reshape(Wc, N, N)
        else:
            s = s + bias_h                       # broadcast over all windows

        s = s - jnp.max(s, axis=-1, keepdims=True)
        e = jnp.exp(s)
        p = (e * pl.reciprocal(jnp.sum(e, axis=-1, keepdims=True),
                               approx=True)).astype(bf16)
        oh = jnp.einsum('wnm,wmd->wnd', p, vh,
                        preferred_element_type=jnp.float32)     # [Wc, N, hd]
        o_scratch[:, lo:lo + head_dim] = oh.reshape(T, head_dim)

    attn = jnp.dot(o_scratch[...].astype(bf16), proj_w_ref[...],
                   preferred_element_type=jnp.float32) + proj_b_ref[0]
    y = x + attn                                 # attention residual (f32)

    # ---- fused norm2 + MLP (per-token -> commutes with window permutation) ----
    yn = _layernorm(y, ln2_g_ref[0], ln2_b_ref[0]).astype(bf16)
    h1 = jnp.dot(yn, w1_ref[...], preferred_element_type=jnp.float32) + b1_ref[0]
    if approx_gelu:
        # tanh-GELU: transcendental goes to the (otherwise idle) EUP slot.
        h1 = 0.5 * h1 * (1.0 + jnp.tanh(_GELU_C * (h1 + _GELU_K * h1 * h1 * h1)))
    else:
        h1 = 0.5 * h1 * (1.0 + lax.erf(h1 * _INV_SQRT2))        # exact GELU
    o2 = jnp.dot(h1.astype(bf16), w2_ref[...],
                 preferred_element_type=jnp.float32) + b2_ref[0]

    out_ref[...] = (y + o2).reshape(Wc, N, C).astype(out_ref.dtype)


# ----------------------------------------------------------------------------
# Static precompute (relative position bias, shifted-window mask)
# ----------------------------------------------------------------------------
def compute_relative_position_bias(table, window_size, num_heads):
    Wh, Ww = window_size
    coords = np.stack(np.meshgrid(np.arange(Wh), np.arange(Ww), indexing='ij'))
    coords_flat = coords.reshape(2, -1)
    rel = coords_flat[:, :, None] - coords_flat[:, None, :]     # [2, N, N]
    rel = rel.transpose(1, 2, 0).astype(np.int64)
    rel[:, :, 0] += Wh - 1
    rel[:, :, 1] += Ww - 1
    rel[:, :, 0] *= 2 * Ww - 1
    idx = rel.sum(-1).reshape(-1)
    N = Wh * Ww
    bias = table[idx].reshape(N, N, num_heads).transpose(2, 0, 1)  # [nH, N, N]
    return jnp.asarray(bias, jnp.float32)


def make_attn_mask(pH, pW, window_size, shift_size):
    ws0, ws1 = window_size
    nW = (pH // ws0) * (pW // ws1)
    N = ws0 * ws1
    if sum(shift_size) == 0:
        return jnp.zeros((nW, N, N), jnp.float32)
    img = np.zeros((pH, pW), np.float32)
    h_sl = ((0, pH - ws0), (pH - ws0, pH - shift_size[0]), (pH - shift_size[0], pH))
    w_sl = ((0, pW - ws1), (pW - ws1, pW - shift_size[1]), (pW - shift_size[1], pW))
    cnt = 0
    for hs in h_sl:
        for wsl in w_sl:
            img[hs[0]:hs[1], wsl[0]:wsl[1]] = cnt
            cnt += 1
    img = img.reshape(pH // ws0, ws0, pW // ws1, ws1).transpose(0, 2, 1, 3)
    img = img.reshape(nW, N)
    diff = img[:, None, :] - img[:, :, None]
    return jnp.asarray(np.where(diff != 0, -100.0, 0.0).astype(np.float32))


# ----------------------------------------------------------------------------
# Chunk / VMEM sizing helpers
# ----------------------------------------------------------------------------
def _vmem_budget_bytes():
    try:
        cap = pltpu.get_tpu_info().vmem_capacity_bytes
    except Exception:
        cap = 64 * 1024 * 1024          # conservative default (v7x per-TC VMEM)
    return int(min(cap * 3 // 4, 100 * 1024 * 1024))


def _pick_chunk_windows(total_windows, windows_per_image, tokens_per_window,
                        max_tokens, shifted):
    """Largest windows-per-grid-step subject to the VMEM token cap and to
    keeping >= 2 grid steps (so both v7x TensorCores get work).  Granularity
    is whole images when shifted (the attention mask is indexed per in-image
    window), single windows otherwise."""
    gran = windows_per_image if shifted else 1
    units = total_windows // gran
    min_chunks = 2 if units >= 2 else 1
    best = 1
    for cand in range(1, units + 1):
        if units % cand:
            continue
        if cand > 1 and cand * gran * tokens_per_window > max_tokens:
            break
        if cand > 1 and units // cand < min_chunks:
            break
        best = cand
    return best * gran


# ----------------------------------------------------------------------------
# Wrapper: roll + window partition, single fused pallas_call, reverse
# ----------------------------------------------------------------------------
def swin_block_forward(x, params, *, window_size, shift_size, num_heads,
                       approx_gelu=True):
    B, H, W, C = x.shape
    ws0, ws1 = window_size
    # TODO(synk): PyTorch pads when H/W are not divisible by the window; the
    # padding path is not implemented here.
    assert H % ws0 == 0 and W % ws1 == 0

    ss = list(shift_size)
    if ws0 >= H:
        ss[0] = 0
    if ws1 >= W:
        ss[1] = 0
    shifted = sum(ss) > 0

    nWh, nWw = H // ws0, W // ws1
    nW = nWh * nWw
    N = ws0 * ws1
    head_dim = C // num_heads
    hidden = params['w1'].shape[0]
    bf16 = jnp.bfloat16

    # TODO(synk): fold the cyclic shift + window partition/merge into the
    # kernel (needs an in-kernel rank-5 relayout / lane-dense reshape that
    # Mosaic may reject at small window widths); currently one fused XLA copy
    # each way, skipped entirely on the unshifted path.
    xs = jnp.roll(x, shift=(-ss[0], -ss[1]), axis=(1, 2)) if shifted else x
    xw = xs.reshape(B, nWh, ws0, nWw, ws1, C).transpose(0, 1, 3, 2, 4, 5)
    xw = xw.reshape(B * nW, N, C)

    # ---- parameter prep: pre-split/transpose, fold head_dim**-0.5, cast bf16
    scale = np.float32(head_dim ** -0.5)
    qkv_w, qkv_b = params['qkv_w'], params['qkv_b']
    wq = (qkv_w[:C] * scale).T.astype(bf16)              # [C, C]
    wk = qkv_w[C:2 * C].T.astype(bf16)
    wv = qkv_w[2 * C:].T.astype(bf16)
    bq = (qkv_b[:C] * scale).reshape(1, C)
    bk = qkv_b[C:2 * C].reshape(1, C)
    bv = qkv_b[2 * C:].reshape(1, C)
    proj_w = params['proj_w'].T.astype(bf16)             # [C, C]
    w1 = params['w1'].T.astype(bf16)                     # [C, hid]
    w2 = params['w2'].T.astype(bf16)                     # [hid, C]

    # relative-position bias (+ shifted-window mask) fused into ONE table
    rel_bias = params['rel_bias']                        # [nH, N, N]
    if shifted:
        mask = make_attn_mask(H, W, window_size, ss)     # [nW, N, N]
        table = rel_bias[:, None, :, :] + mask[None, :, :, :]   # [nH, nW, N, N]
    else:
        table = rel_bias[:, None, :, :]                  # [nH, 1, N, N]
    nW_m = table.shape[1]

    # ---- chunking derived from the VMEM budget ----
    vmem_limit = _vmem_budget_bytes()
    weight_bytes = 2 * (2 * (4 * C * C + 2 * C * hidden)        # bf16, x2 buffers
                        + int(table.size) * 4) + (1 << 16)
    per_token_bytes = 96 * C + 24 * N                    # f32/bf16 intermediates
    max_tokens = (vmem_limit - weight_bytes) // per_token_bytes
    max_tokens = int(max(N, min(max_tokens, 8192)))
    WG = _pick_chunk_windows(B * nW, nW, N, max_tokens, shifted)
    num_chunks = (B * nW) // WG

    _x_map = lambda i: (i, 0, 0)
    _c2 = lambda i: (0, 0)
    _c4 = lambda i: (0, 0, 0, 0)

    def build_and_run(weight_mode):
        def wspec(shape, index_map):
            if weight_mode is None:
                return pl.BlockSpec(shape, index_map)
            return pl.BlockSpec(shape, index_map, pipeline_mode=weight_mode)

        in_specs = [
            pl.BlockSpec((WG, N, C), _x_map),                        # x windows
            wspec((1, C), _c2), wspec((1, C), _c2),                  # ln1 g/b
            wspec((C, C), _c2), wspec((C, C), _c2), wspec((C, C), _c2),  # Wq/Wk/Wv
            wspec((1, C), _c2), wspec((1, C), _c2), wspec((1, C), _c2),  # bq/bk/bv
            wspec((C, C), _c2), wspec((1, C), _c2),                  # proj W / b
            wspec((num_heads, nW_m, N, N), _c4),                     # bias(+mask)
            wspec((1, C), _c2), wspec((1, C), _c2),                  # ln2 g/b
            wspec((C, hidden), _c2), wspec((1, hidden), _c2),        # mlp W1 / b1
            wspec((hidden, C), _c2), wspec((1, C), _c2),             # mlp W2 / b2
        ]
        fn = pl.pallas_call(
            functools.partial(_swin_block_kernel, num_heads=num_heads,
                              head_dim=head_dim, windows_per_image=nW,
                              shifted=shifted, approx_gelu=approx_gelu),
            out_shape=jax.ShapeDtypeStruct((B * nW, N, C), x.dtype),
            grid_spec=pltpu.PrefetchScalarGridSpec(
                num_scalar_prefetch=0,
                grid=(num_chunks,),
                in_specs=in_specs,
                out_specs=pl.BlockSpec((WG, N, C), _x_map),
                scratch_shapes=[pltpu.VMEM((WG * N, C), jnp.float32)]),
            compiler_params=pltpu.CompilerParams(
                dimension_semantics=("parallel",),
                vmem_limit_bytes=vmem_limit),
        )
        return fn(xw,
                  params['ln1_g'].reshape(1, C), params['ln1_b'].reshape(1, C),
                  wq, wk, wv, bq, bk, bv,
                  proj_w, params['proj_b'].reshape(1, C), table,
                  params['ln2_g'].reshape(1, C), params['ln2_b'].reshape(1, C),
                  w1, params['b1'].reshape(1, hidden),
                  w2, params['b2'].reshape(1, C))

    try:
        # Constant-index weight blocks single-buffered (frees VMEM for larger
        # activation chunks); fall back if this JAX build rejects Buffered(1)
        # on the main pallas_call pipeline.
        y_win = build_and_run(pl.Buffered(1))
    except Exception:
        y_win = build_and_run(None)

    # reverse windows / shift (y_win already holds the full block output; the
    # fused LN2+MLP is per-token so it commutes with this permutation)
    y = y_win.reshape(B, nWh, nWw, ws0, ws1, C).transpose(0, 1, 3, 2, 4, 5)
    y = y.reshape(B, H, W, C)
    if shifted:
        y = jnp.roll(y, shift=(ss[0], ss[1]), axis=(1, 2))
    return y


# ----------------------------------------------------------------------------
# Pure-JAX reference (mirrors torchvision shifted_window_attention + block)
# ----------------------------------------------------------------------------
def ref_forward(x, p, *, window_size, shift_size, num_heads):
    def layernorm(t, g, b):
        mu = t.mean(-1, keepdims=True)
        var = ((t - mu) ** 2).mean(-1, keepdims=True)
        return (t - mu) / jnp.sqrt(var + LN_EPS) * g + b

    B, H, W, C = x.shape
    ws0, ws1 = window_size
    ss = list(shift_size)
    if ws0 >= H:
        ss[0] = 0
    if ws1 >= W:
        ss[1] = 0
    xn = layernorm(x, p['ln1_g'], p['ln1_b'])
    xs = jnp.roll(xn, (-ss[0], -ss[1]), axis=(1, 2)) if sum(ss) > 0 else xn
    N = ws0 * ws1
    nW = (H // ws0) * (W // ws1)
    xw = xs.reshape(B, H // ws0, ws0, W // ws1, ws1, C).transpose(0, 1, 3, 2, 4, 5)
    xw = xw.reshape(B * nW, N, C)
    qkv = xw @ p['qkv_w'].T + p['qkv_b']
    qkv = qkv.reshape(B * nW, N, 3, num_heads, C // num_heads).transpose(2, 0, 3, 1, 4)
    q, k, v = qkv[0] * (C // num_heads) ** -0.5, qkv[1], qkv[2]
    attn = q @ jnp.swapaxes(k, -2, -1) + p['rel_bias'][None]
    if sum(ss) > 0:
        mask = make_attn_mask(H, W, window_size, ss)
        attn = attn.reshape(B, nW, num_heads, N, N) + mask[None, :, None]
        attn = attn.reshape(B * nW, num_heads, N, N)
    attn = jax.nn.softmax(attn, -1)
    o = (attn @ v).transpose(0, 2, 1, 3).reshape(B * nW, N, C)
    o = o @ p['proj_w'].T + p['proj_b']
    o = o.reshape(B, H // ws0, W // ws1, ws0, ws1, C).transpose(0, 1, 3, 2, 4, 5)
    o = o.reshape(B, H, W, C)
    if sum(ss) > 0:
        o = jnp.roll(o, (ss[0], ss[1]), axis=(1, 2))
    x = x + o
    xn = layernorm(x, p['ln2_g'], p['ln2_b'])
    h = xn @ p['w1'].T + p['b1']
    h = 0.5 * h * (1.0 + lax.erf(h / np.sqrt(2.0)))          # exact GELU reference
    return x + (h @ p['w2'].T + p['b2'])


# ----------------------------------------------------------------------------
# Deterministic parameter init (shapes per the module __init__)
# ----------------------------------------------------------------------------
def init_params(key, dim, num_heads, window_size, mlp_ratio):
    hidden = int(dim * mlp_ratio)
    ks = jax.random.split(key, 13)
    f = jnp.float32
    p = {}
    p['ln1_g'] = jnp.ones((dim,), f) + 0.05 * jax.random.normal(ks[0], (dim,), f)
    p['ln1_b'] = 0.05 * jax.random.normal(ks[1], (dim,), f)
    p['qkv_w'] = 0.05 * jax.random.normal(ks[2], (3 * dim, dim), f)
    p['qkv_b'] = 0.02 * jax.random.normal(ks[3], (3 * dim,), f)
    p['proj_w'] = 0.05 * jax.random.normal(ks[4], (dim, dim), f)
    p['proj_b'] = 0.02 * jax.random.normal(ks[5], (dim,), f)
    table = 0.02 * jax.random.normal(
        ks[6], ((2 * window_size[0] - 1) * (2 * window_size[1] - 1), num_heads), f)
    p['rel_bias'] = compute_relative_position_bias(table, window_size, num_heads)
    p['ln2_g'] = jnp.ones((dim,), f) + 0.05 * jax.random.normal(ks[7], (dim,), f)
    p['ln2_b'] = 0.05 * jax.random.normal(ks[8], (dim,), f)
    lim1 = float(np.sqrt(6.0 / (dim + hidden)))
    p['w1'] = jax.random.uniform(ks[9], (hidden, dim), f, -lim1, lim1)
    p['b1'] = 1e-6 * jax.random.normal(ks[10], (hidden,), f)
    p['w2'] = jax.random.uniform(ks[11], (dim, hidden), f, -lim1, lim1)
    p['b2'] = 1e-6 * jax.random.normal(ks[12], (dim,), f)
    return p


if __name__ == "__main__":
    DIM, NUM_HEADS = 32, 4
    WINDOW = (4, 4)
    B, H, W = 2, 8, 8

    key = jax.random.PRNGKey(0)
    kx, kp = jax.random.split(key)
    x = jax.random.normal(kx, (B, H, W, DIM), jnp.float32)
    params = init_params(kp, DIM, NUM_HEADS, WINDOW, mlp_ratio=4.0)

    # Check both the shifted (masked) and unshifted (mask never shipped)
    # paths.  Tolerance accounts for bf16 matmul operands, the tanh-GELU
    # approximation and the EUP approximate-reciprocal softmax.
    for shift in [(2, 2), (0, 0)]:
        out = swin_block_forward(x, params, window_size=WINDOW,
                                 shift_size=shift, num_heads=NUM_HEADS)
        out = jax.block_until_ready(out)
        with jax.default_matmul_precision('highest'):
            ref = jax.block_until_ready(
                ref_forward(x, params, window_size=WINDOW, shift_size=shift,
                            num_heads=NUM_HEADS))
        assert out.shape == (B, H, W, DIM)
        np.testing.assert_allclose(np.asarray(out), np.asarray(ref),
                                   rtol=2.5e-2, atol=2.5e-2)
    print("KERNEL_OK")
</pallas_src>

<mosaic_0001>
module attributes {stable_mosaic.version = 11 : i64} {
  func.func @_swin_block_kernel(%arg0: i32, %arg1: memref<4x16x32xf32, #tpu.memory_space<vmem>>, %arg2: memref<1x32xf32, #tpu.memory_space<vmem>>, %arg3: memref<1x32xf32, #tpu.memory_space<vmem>>, %arg4: memref<32x32xbf16, #tpu.memory_space<vmem>>, %arg5: memref<32x32xbf16, #tpu.memory_space<vmem>>, %arg6: memref<32x32xbf16, #tpu.memory_space<vmem>>, %arg7: memref<1x32xf32, #tpu.memory_space<vmem>>, %arg8: memref<1x32xf32, #tpu.memory_space<vmem>>, %arg9: memref<1x32xf32, #tpu.memory_space<vmem>>, %arg10: memref<32x32xbf16, #tpu.memory_space<vmem>>, %arg11: memref<1x32xf32, #tpu.memory_space<vmem>>, %arg12: memref<4x4x16x16xf32, #tpu.memory_space<vmem>>, %arg13: memref<1x32xf32, #tpu.memory_space<vmem>>, %arg14: memref<1x32xf32, #tpu.memory_space<vmem>>, %arg15: memref<32x128xbf16, #tpu.memory_space<vmem>>, %arg16: memref<1x128xf32, #tpu.memory_space<vmem>>, %arg17: memref<128x32xbf16, #tpu.memory_space<vmem>>, %arg18: memref<1x32xf32, #tpu.memory_space<vmem>>, %arg19: memref<4x16x32xf32, #tpu.memory_space<vmem>>, %arg20: memref<64x32xf32, #tpu.memory_space<vmem>>) attributes {dimension_semantics = [#tpu.dimension_semantics<parallel>], iteration_bounds = array<i64: 2>, scalar_prefetch = 0 : i64, scratch_operands = 1 : i64, tpu.core_type = #tpu.core_type<tc>, window_params = [{transform_indices = @transform_0, window_bounds = array<i64: 4, 16, 32>}, {pipeline_mode = #tpu.pipeline_mode<synchronous>, transform_indices = @transform_1, window_bounds = array<i64: 1, 32>}, {pipeline_mode = #tpu.pipeline_mode<synchronous>, transform_indices = @transform_2, window_bounds = array<i64: 1, 32>}, {pipeline_mode = #tpu.pipeline_mode<synchronous>, transform_indices = @transform_3, window_bounds = array<i64: 32, 32>}, {pipeline_mode = #tpu.pipeline_mode<synchronous>, transform_indices = @transform_4, window_bounds = array<i64: 32, 32>}, {pipeline_mode = #tpu.pipeline_mode<synchronous>, transform_indices = @transform_5, window_bounds = array<i64: 32, 32>}, {pipeline_mode = #tpu.pipeline_mode<synchronous>, transform_indices = @transform_6, window_bounds = array<i64: 1, 32>}, {pipeline_mode = #tpu.pipeline_mode<synchronous>, transform_indices = @transform_7, window_bounds = array<i64: 1, 32>}, {pipeline_mode = #tpu.pipeline_mode<synchronous>, transform_indices = @transform_8, window_bounds = array<i64: 1, 32>}, {pipeline_mode = #tpu.pipeline_mode<synchronous>, transform_indices = @transform_9, window_bounds = array<i64: 32, 32>}, {pipeline_mode = #tpu.pipeline_mode<synchronous>, transform_indices = @transform_10, window_bounds = array<i64: 1, 32>}, {pipeline_mode = #tpu.pipeline_mode<synchronous>, transform_indices = @transform_11, window_bounds = array<i64: 4, 4, 16, 16>}, {pipeline_mode = #tpu.pipeline_mode<synchronous>, transform_indices = @transform_12, window_bounds = array<i64: 1, 32>}, {pipeline_mode = #tpu.pipeline_mode<synchronous>, transform_indices = @transform_13, window_bounds = array<i64: 1, 32>}, {pipeline_mode = #tpu.pipeline_mode<synchronous>, transform_indices = @transform_14, window_bounds = array<i64: 32, 128>}, {pipeline_mode = #tpu.pipeline_mode<synchronous>, transform_indices = @transform_15, window_bounds = array<i64: 1, 128>}, {pipeline_mode = #tpu.pipeline_mode<synchronous>, transform_indices = @transform_16, window_bounds = array<i64: 128, 32>}, {pipeline_mode = #tpu.pipeline_mode<synchronous>, transform_indices = @transform_17, window_bounds = array<i64: 1, 32>}, {transform_indices = @transform_18, window_bounds = array<i64: 4, 16, 32>}]} {
    %c0 = arith.constant 0 : index
    %c0_0 = arith.constant 0 : index
    %c0_1 = arith.constant 0 : index
    %0 = vector.load %arg1[%c0, %c0_0, %c0_1] : memref<4x16x32xf32, #tpu.memory_space<vmem>>, vector<4x16x32xf32>
    %1 = vector.shape_cast %0 : vector<4x16x32xf32> to vector<64x32xf32>
    %c0_2 = arith.constant 0 : index
    %c0_3 = arith.constant 0 : index
    %2 = vector.load %arg2[%c0_2, %c0_3] : memref<1x32xf32, #tpu.memory_space<vmem>>, vector<1x32xf32>
    %3 = vector.shape_cast %2 : vector<1x32xf32> to vector<32xf32>
    %c0_4 = arith.constant 0 : index
    %c0_5 = arith.constant 0 : index
    %4 = vector.load %arg3[%c0_4, %c0_5] : memref<1x32xf32, #tpu.memory_space<vmem>>, vector<1x32xf32>
    %5 = vector.shape_cast %4 : vector<1x32xf32> to vector<32xf32>
    %cst = arith.constant dense<0.000000e+00> : vector<64xf32>
    %6 = vector.multi_reduction <add>, %1, %cst [1] : vector<64x32xf32> to vector<64xf32>
    %7 = vector.shape_cast %6 : vector<64xf32> to vector<64x1xf32>
    %cst_6 = arith.constant 3.200000e+01 : f32
    %8 = vector.broadcast %cst_6 : f32 to vector<64x1xf32>
    %9 = arith.divf %7, %8 : vector<64x1xf32>
    %10 = vector.broadcast %9 : vector<64x1xf32> to vector<64x32xf32>
    %11 = arith.subf %1, %10 : vector<64x32xf32>
    %12 = arith.mulf %11, %11 : vector<64x32xf32>
    %cst_7 = arith.constant dense<0.000000e+00> : vector<64xf32>
    %13 = vector.multi_reduction <add>, %12, %cst_7 [1] : vector<64x32xf32> to vector<64xf32>
    %14 = vector.shape_cast %13 : vector<64xf32> to vector<64x1xf32>
    %cst_8 = arith.constant 3.200000e+01 : f32
    %15 = vector.broadcast %cst_8 : f32 to vector<64x1xf32>
    %16 = arith.divf %14, %15 : vector<64x1xf32>
    %17 = vector.broadcast %9 : vector<64x1xf32> to vector<64x32xf32>
    %18 = arith.subf %1, %17 : vector<64x32xf32>
    %cst_9 = arith.constant 9.99999974E-6 : f32
    %19 = vector.broadcast %cst_9 : f32 to vector<64x1xf32>
    %20 = arith.addf %16, %19 : vector<64x1xf32>
    %21 = math.rsqrt %20 : vector<64x1xf32>
    %22 = vector.broadcast %21 : vector<64x1xf32> to vector<64x32xf32>
    %23 = arith.mulf %18, %22 : vector<64x32xf32>
    %24 = vector.shape_cast %3 : vector<32xf32> to vector<1x32xf32>
    %25 = vector.broadcast %24 : vector<1x32xf32> to vector<64x32xf32>
    %26 = arith.mulf %23, %25 : vector<64x32xf32>
    %27 = vector.shape_cast %5 : vector<32xf32> to vector<1x32xf32>
    %28 = vector.broadcast %27 : vector<1x32xf32> to vector<64x32xf32>
    %29 = arith.addf %26, %28 : vector<64x32xf32>
    %30 = arith.truncf %29 : vector<64x32xf32> to vector<64x32xbf16>
    %c0_10 = arith.constant 0 : index
    %c0_11 = arith.constant 0 : index
    %31 = vector.load %arg4[%c0_10, %c0_11] : memref<32x32xbf16, #tpu.memory_space<vmem>>, vector<32x32xbf16>
    %cst_12 = arith.constant dense<0.000000e+00> : vector<64x32xf32>
    %32 = tpu.matmul %30, %31, %cst_12 {dimension_numbers = #tpu.dot_dimension_numbers<[1], [0], [0], [1], [0, 0, 1, 1], [], []>} : vector<64x32xbf16>, vector<32x32xbf16>, vector<64x32xf32> -> vector<64x32xf32>
    %c0_13 = arith.constant 0 : index
    %c0_14 = arith.constant 0 : index
    %33 = vector.load %arg7[%c0_13, %c0_14] : memref<1x32xf32, #tpu.memory_space<vmem>>, vector<1x32xf32>
    %34 = vector.shape_cast %33 : vector<1x32xf32> to vector<32xf32>
    %35 = vector.shape_cast %34 : vector<32xf32> to vector<1x32xf32>
    %36 = vector.broadcast %35 : vector<1x32xf32> to vector<64x32xf32>
    %37 = arith.addf %32, %36 : vector<64x32xf32>
    %38 = arith.truncf %37 : vector<64x32xf32> to vector<64x32xbf16>
    %39 = vector.shape_cast %38 : vector<64x32xbf16> to vector<4x16x32xbf16>
    %c0_15 = arith.constant 0 : index
    %c0_16 = arith.constant 0 : index
    %40 = vector.load %arg5[%c0_15, %c0_16] : memref<32x32xbf16, #tpu.memory_space<vmem>>, vector<32x32xbf16>
    %cst_17 = arith.constant dense<0.000000e+00> : vector<64x32xf32>
    %41 = tpu.matmul %30, %40, %cst_17 {dimension_numbers = #tpu.dot_dimension_numbers<[1], [0], [0], [1], [0, 0, 1, 1], [], []>} : vector<64x32xbf16>, vector<32x32xbf16>, vector<64x32xf32> -> vector<64x32xf32>
    %c0_18 = arith.constant 0 : index
    %c0_19 = arith.constant 0 : index
    %42 = vector.load %arg8[%c0_18, %c0_19] : memref<1x32xf32, #tpu.memory_space<vmem>>, vector<1x32xf32>
    %43 = vector.shape_cast %42 : vector<1x32xf32> to vector<32xf32>
    %44 = vector.shape_cast %43 : vector<32xf32> to vector<1x32xf32>
    %45 = vector.broadcast %44 : vector<1x32xf32> to vector<64x32xf32>
    %46 = arith.addf %41, %45 : vector<64x32xf32>
    %47 = arith.truncf %46 : vector<64x32xf32> to vector<64x32xbf16>
    %48 = vector.shape_cast %47 : vector<64x32xbf16> to vector<4x16x32xbf16>
    %c0_20 = arith.constant 0 : index
    %c0_21 = arith.constant 0 : index
    %49 = vector.load %arg6[%c0_20, %c0_21] : memref<32x32xbf16, #tpu.memory_space<vmem>>, vector<32x32xbf16>
    %cst_22 = arith.constant dense<0.000000e+00> : vector<64x32xf32>
    %50 = tpu.matmul %30, %49, %cst_22 {dimension_numbers = #tpu.dot_dimension_numbers<[1], [0], [0], [1], [0, 0, 1, 1], [], []>} : vector<64x32xbf16>, vector<32x32xbf16>, vector<64x32xf32> -> vector<64x32xf32>
    %c0_23 = arith.constant 0 : index
    %c0_24 = arith.constant 0 : index
    %51 = vector.load %arg9[%c0_23, %c0_24] : memref<1x32xf32, #tpu.memory_space<vmem>>, vector<1x32xf32>
    %52 = vector.shape_cast %51 : vector<1x32xf32> to vector<32xf32>
    %53 = vector.shape_cast %52 : vector<32xf32> to vector<1x32xf32>
    %54 = vector.broadcast %53 : vector<1x32xf32> to vector<64x32xf32>
    %55 = arith.addf %50, %54 : vector<64x32xf32>
    %56 = arith.truncf %55 : vector<64x32xf32> to vector<64x32xbf16>
    %57 = vector.shape_cast %56 : vector<64x32xbf16> to vector<4x16x32xbf16>
    %58 = vector.extract_strided_slice %39 {offsets = [0, 0, 0], sizes = [4, 16, 8], strides = [1, 1, 1]} : vector<4x16x32xbf16> to vector<4x16x8xbf16>
    %59 = vector.extract_strided_slice %48 {offsets = [0, 0, 0], sizes = [4, 16, 8], strides = [1, 1, 1]} : vector<4x16x32xbf16> to vector<4x16x8xbf16>
    %60 = vector.extract_strided_slice %57 {offsets = [0, 0, 0], sizes = [4, 16, 8], strides = [1, 1, 1]} : vector<4x16x32xbf16> to vector<4x16x8xbf16>
    "tpu.trace_start"() <{level = 10 : i32, message = "wnd,wmd->wnm"}> : () -> ()
    %cst_25 = arith.constant dense<0.000000e+00> : vector<4x16x16xf32>
    %61 = tpu.matmul %58, %59, %cst_25 {dimension_numbers = #tpu.dot_dimension_numbers<[2], [2], [1], [1], [0, 0, 0, 1, 1, 1], [0], [0]>} : vector<4x16x8xbf16>, vector<4x16x8xbf16>, vector<4x16x16xf32> -> vector<4x16x16xf32>
    "tpu.trace_stop"() : () -> ()
    %c0_26 = arith.constant 0 : index
    %c0_27 = arith.constant 0 : index
    %c0_28 = arith.constant 0 : index
    %c0_29 = arith.constant 0 : index
    %62 = vector.load %arg12[%c0_26, %c0_27, %c0_28, %c0_29] : memref<4x4x16x16xf32, #tpu.memory_space<vmem>>, vector<1x4x16x16xf32>
    %63 = vector.shape_cast %62 : vector<1x4x16x16xf32> to vector<4x16x16xf32>
    %64 = vector.shape_cast %61 : vector<4x16x16xf32> to vector<1x4x16x16xf32>
    %65 = vector.shape_cast %63 : vector<4x16x16xf32> to vector<1x4x16x16xf32>
    %66 = arith.addf %64, %65 : vector<1x4x16x16xf32>
    %67 = vector.shape_cast %66 : vector<1x4x16x16xf32> to vector<4x16x16xf32>
    %cst_30 = arith.constant dense<0xFF800000> : vector<4x16xf32>
    %68 = vector.multi_reduction <maximumf>, %67, %cst_30 [2] : vector<4x16x16xf32> to vector<4x16xf32>
    %69 = vector.shape_cast %68 : vector<4x16xf32> to vector<4x16x1xf32>
    %70 = vector.broadcast %69 : vector<4x16x1xf32> to vector<4x16x16xf32>
    %71 = arith.subf %67, %70 : vector<4x16x16xf32>
    %72 = math.exp %71 : vector<4x16x16xf32>
    %cst_31 = arith.constant dense<0.000000e+00> : vector<4x16xf32>
    %73 = vector.multi_reduction <add>, %72, %cst_31 [2] : vector<4x16x16xf32> to vector<4x16xf32>
    %74 = vector.shape_cast %73 : vector<4x16xf32> to vector<4x16x1xf32>
    %75 = tpu.reciprocal %74 {approx = true} : vector<4x16x1xf32> -> vector<4x16x1xf32>
    %76 = vector.broadcast %75 : vector<4x16x1xf32> to vector<4x16x16xf32>
    %77 = arith.mulf %72, %76 : vector<4x16x16xf32>
    %78 = arith.truncf %77 : vector<4x16x16xf32> to vector<4x16x16xbf16>
    "tpu.trace_start"() <{level = 10 : i32, message = "wnm,wmd->wnd"}> : () -> ()
    %cst_32 = arith.constant dense<0.000000e+00> : vector<4x16x8xf32>
    %79 = tpu.matmul %78, %60, %cst_32 {dimension_numbers = #tpu.dot_dimension_numbers<[2], [1], [1], [2], [0, 0, 0, 1, 1, 2], [0], [0]>} : vector<4x16x16xbf16>, vector<4x16x8xbf16>, vector<4x16x8xf32> -> vector<4x16x8xf32>
    "tpu.trace_stop"() : () -> ()
    %80 = vector.shape_cast %79 : vector<4x16x8xf32> to vector<64x8xf32>
    %c0_33 = arith.constant 0 : index
    %c0_34 = arith.constant 0 : index
    %81 = vector.load %arg20[%c0_33, %c0_34] : memref<64x32xf32, #tpu.memory_space<vmem>>, vector<64x8xf32>
    tpu.vector_store %arg20[%c0_33, %c0_34], %80 {strides = array<i32>} : memref<64x32xf32, #tpu.memory_space<vmem>>, vector<64x8xf32>,
    %82 = vector.extract_strided_slice %39 {offsets = [0, 0, 8], sizes = [4, 16, 8], strides = [1, 1, 1]} : vector<4x16x32xbf16> to vector<4x16x8xbf16>
    %83 = vector.extract_strided_slice %48 {offsets = [0, 0, 8], sizes = [4, 16, 8], strides = [1, 1, 1]} : vector<4x16x32xbf16> to vector<4x16x8xbf16>
    %84 = vector.extract_strided_slice %57 {offsets = [0, 0, 8], sizes = [4, 16, 8], strides = [1, 1, 1]} : vector<4x16x32xbf16> to vector<4x16x8xbf16>
    "tpu.trace_start"() <{level = 10 : i32, message = "wnd,wmd->wnm"}> : () -> ()
    %cst_35 = arith.constant dense<0.000000e+00> : vector<4x16x16xf32>
    %85 = tpu.matmul %82, %83, %cst_35 {dimension_numbers = #tpu.dot_dimension_numbers<[2], [2], [1], [1], [0, 0, 0, 1, 1, 1], [0], [0]>} : vector<4x16x8xbf16>, vector<4x16x8xbf16>, vector<4x16x16xf32> -> vector<4x16x16xf32>
    "tpu.trace_stop"() : () -> ()
    %c1 = arith.constant 1 : index
    %c0_36 = arith.constant 0 : index
    %c0_37 = arith.constant 0 : index
    %c0_38 = arith.constant 0 : index
    %86 = vector.load %arg12[%c1, %c0_36, %c0_37, %c0_38] : memref<4x4x16x16xf32, #tpu.memory_space<vmem>>, vector<1x4x16x16xf32>
    %87 = vector.shape_cast %86 : vector<1x4x16x16xf32> to vector<4x16x16xf32>
    %88 = vector.shape_cast %85 : vector<4x16x16xf32> to vector<1x4x16x16xf32>
    %89 = vector.shape_cast %87 : vector<4x16x16xf32> to vector<1x4x16x16xf32>
    %90 = arith.addf %88, %89 : vector<1x4x16x16xf32>
    %91 = vector.shape_cast %90 : vector<1x4x16x16xf32> to vector<4x16x16xf32>
    %cst_39 = arith.constant dense<0xFF800000> : vector<4x16xf32>
    %92 = vector.multi_reduction <maximumf>, %91, %cst_39 [2] : vector<4x16x16xf32> to vector<4x16xf32>
    %93 = vector.shape_cast %92 : vector<4x16xf32> to vector<4x16x1xf32>
    %94 = vector.broadcast %93 : vector<4x16x1xf32> to vector<4x16x16xf32>
    %95 = arith.subf %91, %94 : vector<4x16x16xf32>
    %96 = math.exp %95 : vector<4x16x16xf32>
    %cst_40 = arith.constant dense<0.000000e+00> : vector<4x16xf32>
    %97 = vector.multi_reduction <add>, %96, %cst_40 [2] : vector<4x16x16xf32> to vector<4x16xf32>
    %98 = vector.shape_cast %97 : vector<4x16xf32> to vector<4x16x1xf32>
    %99 = tpu.reciprocal %98 {approx = true} : vector<4x16x1xf32> -> vector<4x16x1xf32>
    %100 = vector.broadcast %99 : vector<4x16x1xf32> to vector<4x16x16xf32>
    %101 = arith.mulf %96, %100 : vector<4x16x16xf32>
    %102 = arith.truncf %101 : vector<4x16x16xf32> to vector<4x16x16xbf16>
    "tpu.trace_start"() <{level = 10 : i32, message = "wnm,wmd->wnd"}> : () -> ()
    %cst_41 = arith.constant dense<0.000000e+00> : vector<4x16x8xf32>
    %103 = tpu.matmul %102, %84, %cst_41 {dimension_numbers = #tpu.dot_dimension_numbers<[2], [1], [1], [2], [0, 0, 0, 1, 1, 2], [0], [0]>} : vector<4x16x16xbf16>, vector<4x16x8xbf16>, vector<4x16x8xf32> -> vector<4x16x8xf32>
    "tpu.trace_stop"() : () -> ()
    %104 = vector.shape_cast %103 : vector<4x16x8xf32> to vector<64x8xf32>
    %c0_42 = arith.constant 0 : index
    %c8 = arith.constant 8 : index
    %105 = vector.load %arg20[%c0_42, %c8] : memref<64x32xf32, #tpu.memory_space<vmem>>, vector<64x8xf32>
    tpu.vector_store %arg20[%c0_42, %c8], %104 {strides = array<i32>} : memref<64x32xf32, #tpu.memory_space<vmem>>, vector<64x8xf32>,
    %106 = vector.extract_strided_slice %39 {offsets = [0, 0, 16], sizes = [4, 16, 8], strides = [1, 1, 1]} : vector<4x16x32xbf16> to vector<4x16x8xbf16>
    %107 = vector.extract_strided_slice %48 {offsets = [0, 0, 16], sizes = [4, 16, 8], strides = [1, 1, 1]} : vector<4x16x32xbf16> to vector<4x16x8xbf16>
    %108 = vector.extract_strided_slice %57 {offsets = [0, 0, 16], sizes = [4, 16, 8], strides = [1, 1, 1]} : vector<4x16x32xbf16> to vector<4x16x8xbf16>
    "tpu.trace_start"() <{level = 10 : i32, message = "wnd,wmd->wnm"}> : () -> ()
    %cst_43 = arith.constant dense<0.000000e+00> : vector<4x16x16xf32>
    %109 = tpu.matmul %106, %107, %cst_43 {dimension_numbers = #tpu.dot_dimension_numbers<[2], [2], [1], [1], [0, 0, 0, 1, 1, 1], [0], [0]>} : vector<4x16x8xbf16>, vector<4x16x8xbf16>, vector<4x16x16xf32> -> vector<4x16x16xf32>
    "tpu.trace_stop"() : () -> ()
    %c2 = arith.constant 2 : index
    %c0_44 = arith.constant 0 : index
    %c0_45 = arith.constant 0 : index
    %c0_46 = arith.constant 0 : index
    %110 = vector.load %arg12[%c2, %c0_44, %c0_45, %c0_46] : memref<4x4x16x16xf32, #tpu.memory_space<vmem>>, vector<1x4x16x16xf32>
    %111 = vector.shape_cast %110 : vector<1x4x16x16xf32> to vector<4x16x16xf32>
    %112 = vector.shape_cast %109 : vector<4x16x16xf32> to vector<1x4x16x16xf32>
    %113 = vector.shape_cast %111 : vector<4x16x16xf32> to vector<1x4x16x16xf32>
    %114 = arith.addf %112, %113 : vector<1x4x16x16xf32>
    %115 = vector.shape_cast %114 : vector<1x4x16x16xf32> to vector<4x16x16xf32>
    %cst_47 = arith.constant dense<0xFF800000> : vector<4x16xf32>
    %116 = vector.multi_reduction <maximumf>, %115, %cst_47 [2] : vector<4x16x16xf32> to vector<4x16xf32>
    %117 = vector.shape_cast %116 : vector<4x16xf32> to vector<4x16x1xf32>
    %118 = vector.broadcast %117 : vector<4x16x1xf32> to vector<4x16x16xf32>
    %119 = arith.subf %115, %118 : vector<4x16x16xf32>
    %120 = math.exp %119 : vector<4x16x16xf32>
    %cst_48 = arith.constant dense<0.000000e+00> : vector<4x16xf32>
    %121 = vector.multi_reduction <add>, %120, %cst_48 [2] : vector<4x16x16xf32> to vector<4x16xf32>
    %122 = vector.shape_cast %121 : vector<4x16xf32> to vector<4x16x1xf32>
    %123 = tpu.reciprocal %122 {approx = true} : vector<4x16x1xf32> -> vector<4x16x1xf32>
    %124 = vector.broadcast %123 : vector<4x16x1xf32> to vector<4x16x16xf32>
    %125 = arith.mulf %120, %124 : vector<4x16x16xf32>
    %126 = arith.truncf %125 : vector<4x16x16xf32> to vector<4x16x16xbf16>
    "tpu.trace_start"() <{level = 10 : i32, message = "wnm,wmd->wnd"}> : () -> ()
    %cst_49 = arith.constant dense<0.000000e+00> : vector<4x16x8xf32>
    %127 = tpu.matmul %126, %108, %cst_49 {dimension_numbers = #tpu.dot_dimension_numbers<[2], [1], [1], [2], [0, 0, 0, 1, 1, 2], [0], [0]>} : vector<4x16x16xbf16>, vector<4x16x8xbf16>, vector<4x16x8xf32> -> vector<4x16x8xf32>
    "tpu.trace_stop"() : () -> ()
    %128 = vector.shape_cast %127 : vector<4x16x8xf32> to vector<64x8xf32>
    %c0_50 = arith.constant 0 : index
    %c16 = arith.constant 16 : index
    %129 = vector.load %arg20[%c0_50, %c16] : memref<64x32xf32, #tpu.memory_space<vmem>>, vector<64x8xf32>
    tpu.vector_store %arg20[%c0_50, %c16], %128 {strides = array<i32>} : memref<64x32xf32, #tpu.memory_space<vmem>>, vector<64x8xf32>,
    %130 = vector.extract_strided_slice %39 {offsets = [0, 0, 24], sizes = [4, 16, 8], strides = [1, 1, 1]} : vector<4x16x32xbf16> to vector<4x16x8xbf16>
    %131 = vector.extract_strided_slice %48 {offsets = [0, 0, 24], sizes = [4, 16, 8], strides = [1, 1, 1]} : vector<4x16x32xbf16> to vector<4x16x8xbf16>
    %132 = vector.extract_strided_slice %57 {offsets = [0, 0, 24], sizes = [4, 16, 8], strides = [1, 1, 1]} : vector<4x16x32xbf16> to vector<4x16x8xbf16>
    "tpu.trace_start"() <{level = 10 : i32, message = "wnd,wmd->wnm"}> : () -> ()
    %cst_51 = arith.constant dense<0.000000e+00> : vector<4x16x16xf32>
    %133 = tpu.matmul %130, %131, %cst_51 {dimension_numbers = #tpu.dot_dimension_numbers<[2], [2], [1], [1], [0, 0, 0, 1, 1, 1], [0], [0]>} : vector<4x16x8xbf16>, vector<4x16x8xbf16>, vector<4x16x16xf32> -> vector<4x16x16xf32>
    "tpu.trace_stop"() : () -> ()
    %c3 = arith.constant 3 : index
    %c0_52 = arith.constant 0 : index
    %c0_53 = arith.constant 0 : index
    %c0_54 = arith.constant 0 : index
    %134 = vector.load %arg12[%c3, %c0_52, %c0_53, %c0_54] : memref<4x4x16x16xf32, #tpu.memory_space<vmem>>, vector<1x4x16x16xf32>
    %135 = vector.shape_cast %134 : vector<1x4x16x16xf32> to vector<4x16x16xf32>
    %136 = vector.shape_cast %133 : vector<4x16x16xf32> to vector<1x4x16x16xf32>
    %137 = vector.shape_cast %135 : vector<4x16x16xf32> to vector<1x4x16x16xf32>
    %138 = arith.addf %136, %137 : vector<1x4x16x16xf32>
    %139 = vector.shape_cast %138 : vector<1x4x16x16xf32> to vector<4x16x16xf32>
    %cst_55 = arith.constant dense<0xFF800000> : vector<4x16xf32>
    %140 = vector.multi_reduction <maximumf>, %139, %cst_55 [2] : vector<4x16x16xf32> to vector<4x16xf32>
    %141 = vector.shape_cast %140 : vector<4x16xf32> to vector<4x16x1xf32>
    %142 = vector.broadcast %141 : vector<4x16x1xf32> to vector<4x16x16xf32>
    %143 = arith.subf %139, %142 : vector<4x16x16xf32>
    %144 = math.exp %143 : vector<4x16x16xf32>
    %cst_56 = arith.constant dense<0.000000e+00> : vector<4x16xf32>
    %145 = vector.multi_reduction <add>, %144, %cst_56 [2] : vector<4x16x16xf32> to vector<4x16xf32>
    %146 = vector.shape_cast %145 : vector<4x16xf32> to vector<4x16x1xf32>
    %147 = tpu.reciprocal %146 {approx = true} : vector<4x16x1xf32> -> vector<4x16x1xf32>
    %148 = vector.broadcast %147 : vector<4x16x1xf32> to vector<4x16x16xf32>
    %149 = arith.mulf %144, %148 : vector<4x16x16xf32>
    %150 = arith.truncf %149 : vector<4x16x16xf32> to vector<4x16x16xbf16>
    "tpu.trace_start"() <{level = 10 : i32, message = "wnm,wmd->wnd"}> : () -> ()
    %cst_57 = arith.constant dense<0.000000e+00> : vector<4x16x8xf32>
    %151 = tpu.matmul %150, %132, %cst_57 {dimension_numbers = #tpu.dot_dimension_numbers<[2], [1], [1], [2], [0, 0, 0, 1, 1, 2], [0], [0]>} : vector<4x16x16xbf16>, vector<4x16x8xbf16>, vector<4x16x8xf32> -> vector<4x16x8xf32>
    "tpu.trace_stop"() : () -> ()
    %152 = vector.shape_cast %151 : vector<4x16x8xf32> to vector<64x8xf32>
    %c0_58 = arith.constant 0 : index
    %c24 = arith.constant 24 : index
    %153 = vector.load %arg20[%c0_58, %c24] : memref<64x32xf32, #tpu.memory_space<vmem>>, vector<64x8xf32>
    tpu.vector_store %arg20[%c0_58, %c24], %152 {strides = array<i32>} : memref<64x32xf32, #tpu.memory_space<vmem>>, vector<64x8xf32>,
    %c0_59 = arith.constant 0 : index
    %c0_60 = arith.constant 0 : index
    %154 = vector.load %arg20[%c0_59, %c0_60] : memref<64x32xf32, #tpu.memory_space<vmem>>, vector<64x32xf32>
    %155 = arith.truncf %154 : vector<64x32xf32> to vector<64x32xbf16>
    %c0_61 = arith.constant 0 : index
    %c0_62 = arith.constant 0 : index
    %156 = vector.load %arg10[%c0_61, %c0_62] : memref<32x32xbf16, #tpu.memory_space<vmem>>, vector<32x32xbf16>
    %cst_63 = arith.constant dense<0.000000e+00> : vector<64x32xf32>
    %157 = tpu.matmul %155, %156, %cst_63 {dimension_numbers = #tpu.dot_dimension_numbers<[1], [0], [0], [1], [0, 0, 1, 1], [], []>} : vector<64x32xbf16>, vector<32x32xbf16>, vector<64x32xf32> -> vector<64x32xf32>
    %c0_64 = arith.constant 0 : index
    %c0_65 = arith.constant 0 : index
    %158 = vector.load %arg11[%c0_64, %c0_65] : memref<1x32xf32, #tpu.memory_space<vmem>>, vector<1x32xf32>
    %159 = vector.shape_cast %158 : vector<1x32xf32> to vector<32xf32>
    %160 = vector.shape_cast %159 : vector<32xf32> to vector<1x32xf32>
    %161 = vector.broadcast %160 : vector<1x32xf32> to vector<64x32xf32>
    %162 = arith.addf %157, %161 : vector<64x32xf32>
    %163 = arith.addf %1, %162 : vector<64x32xf32>
    %c0_66 = arith.constant 0 : index
    %c0_67 = arith.constant 0 : index
    %164 = vector.load %arg13[%c0_66, %c0_67] : memref<1x32xf32, #tpu.memory_space<vmem>>, vector<1x32xf32>
    %165 = vector.shape_cast %164 : vector<1x32xf32> to vector<32xf32>
    %c0_68 = arith.constant 0 : index
    %c0_69 = arith.constant 0 : index
    %166 = vector.load %arg14[%c0_68, %c0_69] : memref<1x32xf32, #tpu.memory_space<vmem>>, vector<1x32xf32>
    %167 = vector.shape_cast %166 : vector<1x32xf32> to vector<32xf32>
    %cst_70 = arith.constant dense<0.000000e+00> : vector<64xf32>
    %168 = vector.multi_reduction <add>, %163, %cst_70 [1] : vector<64x32xf32> to vector<64xf32>
    %169 = vector.shape_cast %168 : vector<64xf32> to vector<64x1xf32>
    %cst_71 = arith.constant 3.200000e+01 : f32
    %170 = vector.broadcast %cst_71 : f32 to vector<64x1xf32>
    %171 = arith.divf %169, %170 : vector<64x1xf32>
    %172 = vector.broadcast %171 : vector<64x1xf32> to vector<64x32xf32>
    %173 = arith.subf %163, %172 : vector<64x32xf32>
    %174 = arith.mulf %173, %173 : vector<64x32xf32>
    %cst_72 = arith.constant dense<0.000000e+00> : vector<64xf32>
    %175 = vector.multi_reduction <add>, %174, %cst_72 [1] : vector<64x32xf32> to vector<64xf32>
    %176 = vector.shape_cast %175 : vector<64xf32> to vector<64x1xf32>
    %cst_73 = arith.constant 3.200000e+01 : f32
    %177 = vector.broadcast %cst_73 : f32 to vector<64x1xf32>
    %178 = arith.divf %176, %177 : vector<64x1xf32>
    %179 = vector.broadcast %171 : vector<64x1xf32> to vector<64x32xf32>
    %180 = arith.subf %163, %179 : vector<64x32xf32>
    %cst_74 = arith.constant 9.99999974E-6 : f32
    %181 = vector.broadcast %cst_74 : f32 to vector<64x1xf32>
    %182 = arith.addf %178, %181 : vector<64x1xf32>
    %183 = math.rsqrt %182 : vector<64x1xf32>
    %184 = vector.broadcast %183 : vector<64x1xf32> to vector<64x32xf32>
    %185 = arith.mulf %180, %184 : vector<64x32xf32>
    %186 = vector.shape_cast %165 : vector<32xf32> to vector<1x32xf32>
    %187 = vector.broadcast %186 : vector<1x32xf32> to vector<64x32xf32>
    %188 = arith.mulf %185, %187 : vector<64x32xf32>
    %189 = vector.shape_cast %167 : vector<32xf32> to vector<1x32xf32>
    %190 = vector.broadcast %189 : vector<1x32xf32> to vector<64x32xf32>
    %191 = arith.addf %188, %190 : vector<64x32xf32>
    %192 = arith.truncf %191 : vector<64x32xf32> to vector<64x32xbf16>
    %c0_75 = arith.constant 0 : index
    %c0_76 = arith.constant 0 : index
    %193 = vector.load %arg15[%c0_75, %c0_76] : memref<32x128xbf16, #tpu.memory_space<vmem>>, vector<32x128xbf16>
    %cst_77 = arith.constant dense<0.000000e+00> : vector<64x128xf32>
    %194 = tpu.matmul %192, %193, %cst_77 {dimension_numbers = #tpu.dot_dimension_numbers<[1], [0], [0], [1], [0, 0, 1, 1], [], []>} : vector<64x32xbf16>, vector<32x128xbf16>, vector<64x128xf32> -> vector<64x128xf32>
    %c0_78 = arith.constant 0 : index
    %c0_79 = arith.constant 0 : index
    %195 = vector.load %arg16[%c0_78, %c0_79] : memref<1x128xf32, #tpu.memory_space<vmem>>, vector<1x128xf32>
    %196 = vector.shape_cast %195 : vector<1x128xf32> to vector<128xf32>
    %197 = vector.shape_cast %196 : vector<128xf32> to vector<1x128xf32>
    %198 = vector.broadcast %197 : vector<1x128xf32> to vector<64x128xf32>
    %199 = arith.addf %194, %198 : vector<64x128xf32>
    %cst_80 = arith.constant 5.000000e-01 : f32
    %200 = vector.broadcast %cst_80 : f32 to vector<64x128xf32>
    %201 = arith.mulf %200, %199 : vector<64x128xf32>
    %cst_81 = arith.constant 4.471500e-02 : f32
    %202 = vector.broadcast %cst_81 : f32 to vector<64x128xf32>
    %203 = arith.mulf %202, %199 : vector<64x128xf32>
    %204 = arith.mulf %203, %199 : vector<64x128xf32>
    %205 = arith.mulf %204, %199 : vector<64x128xf32>
    %206 = arith.addf %199, %205 : vector<64x128xf32>
    %cst_82 = arith.constant 0.797884583 : f32
    %207 = vector.broadcast %cst_82 : f32 to vector<64x128xf32>
    %208 = arith.mulf %207, %206 : vector<64x128xf32>
    %209 = math.tanh %208 : vector<64x128xf32>
    %cst_83 = arith.constant 1.000000e+00 : f32
    %210 = vector.broadcast %cst_83 : f32 to vector<64x128xf32>
    %211 = arith.addf %210, %209 : vector<64x128xf32>
    %212 = arith.mulf %201, %211 : vector<64x128xf32>
    %213 = arith.truncf %212 : vector<64x128xf32> to vector<64x128xbf16>
    %c0_84 = arith.constant 0 : index
    %c0_85 = arith.constant 0 : index
    %214 = vector.load %arg17[%c0_84, %c0_85] : memref<128x32xbf16, #tpu.memory_space<vmem>>, vector<128x32xbf16>
    %cst_86 = arith.constant dense<0.000000e+00> : vector<64x32xf32>
    %215 = tpu.matmul %213, %214, %cst_86 {dimension_numbers = #tpu.dot_dimension_numbers<[1], [0], [0], [1], [0, 0, 1, 1], [], []>} : vector<64x128xbf16>, vector<128x32xbf16>, vector<64x32xf32> -> vector<64x32xf32>
    %c0_87 = arith.constant 0 : index
    %c0_88 = arith.constant 0 : index
    %216 = vector.load %arg18[%c0_87, %c0_88] : memref<1x32xf32, #tpu.memory_space<vmem>>, vector<1x32xf32>
    %217 = vector.shape_cast %216 : vector<1x32xf32> to vector<32xf32>
    %218 = vector.shape_cast %217 : vector<32xf32> to vector<1x32xf32>
    %219 = vector.broadcast %218 : vector<1x32xf32> to vector<64x32xf32>
    %220 = arith.addf %215, %219 : vector<64x32xf32>
    %221 = arith.addf %163, %220 : vector<64x32xf32>
    %222 = vector.shape_cast %221 : vector<64x32xf32> to vector<4x16x32xf32>
    %c0_89 = arith.constant 0 : index
    %c0_90 = arith.constant 0 : index
    %c0_91 = arith.constant 0 : index
    %223 = vector.load %arg19[%c0_89, %c0_90, %c0_91] : memref<4x16x32xf32, #tpu.memory_space<vmem>>, vector<4x16x32xf32>
    tpu.vector_store %arg19[%c0_89, %c0_90, %c0_91], %222 {strides = array<i32>} : memref<4x16x32xf32, #tpu.memory_space<vmem>>, vector<4x16x32xf32>,
    return
  }
  func.func @transform_0(%arg0: i32) -> (i32, i32, i32) {
    %c0_i32 = arith.constant 0 : i32
    %c0_i32_0 = arith.constant 0 : i32
    %c0_i32_1 = arith.constant 0 : i32
    return %arg0, %c0_i32, %c0_i32_0 : i32, i32, i32
  }
  func.func @transform_1(%arg0: i32) -> (i32, i32) {
    %c0_i32 = arith.constant 0 : i32
    %c0_i32_0 = arith.constant 0 : i32
    %c0_i32_1 = arith.constant 0 : i32
    return %c0_i32, %c0_i32_0 : i32, i32
  }
  func.func @transform_2(%arg0: i32) -> (i32, i32) {
    %c0_i32 = arith.constant 0 : i32
    %c0_i32_0 = arith.constant 0 : i32
    %c0_i32_1 = arith.constant 0 : i32
    return %c0_i32, %c0_i32_0 : i32, i32
  }
  func.func @transform_3(%arg0: i32) -> (i32, i32) {
    %c0_i32 = arith.constant 0 : i32
    %c0_i32_0 = arith.constant 0 : i32
    %c0_i32_1 = arith.constant 0 : i32
    return %c0_i32, %c0_i32_0 : i32, i32
  }
  func.func @transform_4(%arg0: i32) -> (i32, i32) {
    %c0_i32 = arith.constant 0 : i32
    %c0_i32_0 = arith.constant 0 : i32
    %c0_i32_1 = arith.constant 0 : i32
    return %c0_i32, %c0_i32_0 : i32, i32
  }
  func.func @transform_5(%arg0: i32) -> (i32, i32) {
    %c0_i32 = arith.constant 0 : i32
    %c0_i32_0 = arith.constant 0 : i32
    %c0_i32_1 = arith.constant 0 : i32
    return %c0_i32, %c0_i32_0 : i32, i32
  }
  func.func @transform_6(%arg0: i32) -> (i32, i32) {
    %c0_i32 = arith.constant 0 : i32
    %c0_i32_0 = arith.constant 0 : i32
    %c0_i32_1 = arith.constant 0 : i32
    return %c0_i32, %c0_i32_0 : i32, i32
  }
  func.func @transform_7(%arg0: i32) -> (i32, i32) {
    %c0_i32 = arith.constant 0 : i32
    %c0_i32_0 = arith.constant 0 : i32
    %c0_i32_1 = arith.constant 0 : i32
    return %c0_i32, %c0_i32_0 : i32, i32
  }
  func.func @transform_8(%arg0: i32) -> (i32, i32) {
    %c0_i32 = arith.constant 0 : i32
    %c0_i32_0 = arith.constant 0 : i32
    %c0_i32_1 = arith.constant 0 : i32
    return %c0_i32, %c0_i32_0 : i32, i32
  }
  func.func @transform_9(%arg0: i32) -> (i32, i32) {
    %c0_i32 = arith.constant 0 : i32
    %c0_i32_0 = arith.constant 0 : i32
    %c0_i32_1 = arith.constant 0 : i32
    return %c0_i32, %c0_i32_0 : i32, i32
  }
  func.func @transform_10(%arg0: i32) -> (i32, i32) {
    %c0_i32 = arith.constant 0 : i32
    %c0_i32_0 = arith.constant 0 : i32
    %c0_i32_1 = arith.constant 0 : i32
    return %c0_i32, %c0_i32_0 : i32, i32
  }
  func.func @transform_11(%arg0: i32) -> (i32, i32, i32, i32) {
    %c0_i32 = arith.constant 0 : i32
    %c0_i32_0 = arith.constant 0 : i32
    %c0_i32_1 = arith.constant 0 : i32
    %c0_i32_2 = arith.constant 0 : i32
    %c0_i32_3 = arith.constant 0 : i32
    return %c0_i32, %c0_i32_0, %c0_i32_1, %c0_i32_2 : i32, i32, i32, i32
  }
  func.func @transform_12(%arg0: i32) -> (i32, i32) {
    %c0_i32 = arith.constant 0 : i32
    %c0_i32_0 = arith.constant 0 : i32
    %c0_i32_1 = arith.constant 0 : i32
    return %c0_i32, %c0_i32_0 : i32, i32
  }
  func.func @transform_13(%arg0: i32) -> (i32, i32) {
    %c0_i32 = arith.constant 0 : i32
    %c0_i32_0 = arith.constant 0 : i32
    %c0_i32_1 = arith.constant 0 : i32
    return %c0_i32, %c0_i32_0 : i32, i32
  }
  func.func @transform_14(%arg0: i32) -> (i32, i32) {
    %c0_i32 = arith.constant 0 : i32
    %c0_i32_0 = arith.constant 0 : i32
    %c0_i32_1 = arith.constant 0 : i32
    return %c0_i32, %c0_i32_0 : i32, i32
  }
  func.func @transform_15(%arg0: i32) -> (i32, i32) {
    %c0_i32 = arith.constant 0 : i32
    %c0_i32_0 = arith.constant 0 : i32
    %c0_i32_1 = arith.constant 0 : i32
    return %c0_i32, %c0_i32_0 : i32, i32
  }
  func.func @transform_16(%arg0: i32) -> (i32, i32) {
    %c0_i32 = arith.constant 0 : i32
    %c0_i32_0 = arith.constant 0 : i32
    %c0_i32_1 = arith.constant 0 : i32
    return %c0_i32, %c0_i32_0 : i32, i32
  }
  func.func @transform_17(%arg0: i32) -> (i32, i32) {
    %c0_i32 = arith.constant 0 : i32
    %c0_i32_0 = arith.constant 0 : i32
    %c0_i32_1 = arith.constant 0 : i32
    return %c0_i32, %c0_i32_0 : i32, i32
  }
  func.func @transform_18(%arg0: i32) -> (i32, i32, i32) {
    %c0_i32 = arith.constant 0 : i32
    %c0_i32_0 = arith.constant 0 : i32
    %c0_i32_1 = arith.constant 0 : i32
    return %arg0, %c0_i32, %c0_i32_0 : i32, i32, i32
  }
}

module attributes {stable_mosaic.version = 11 : i64} {
  func.func @_swin_block_kernel(%arg0: i32, %arg1: memref<4x16x32xf32, #tpu.memory_space<vmem>>, %arg2: memref<1x32xf32, #tpu.memory_space<vmem>>, %arg3: memref<1x32xf32, #tpu.memory_space<vmem>>, %arg4: memref<32x32xbf16, #tpu.memory_space<vmem>>, %arg5: memref<32x32xbf16, #tpu.memory_space<vmem>>, %arg6: memref<32x32xbf16, #tpu.memory_space<vmem>>, %arg7: memref<1x32xf32, #tpu.memory_space<vmem>>, %arg8: memref<1x32xf32, #tpu.memory_space<vmem>>, %arg9: memref<1x32xf32, #tpu.memory_space<vmem>>, %arg10: memref<32x32xbf16, #tpu.memory_space<vmem>>, %arg11: memref<1x32xf32, #tpu.memory_space<vmem>>, %arg12: memref<4x4x16x16xf32, #tpu.memory_space<vmem>>, %arg13: memref<1x32xf32, #tpu.memory_space<vmem>>, %arg14: memref<1x32xf32, #tpu.memory_space<vmem>>, %arg15: memref<32x128xbf16, #tpu.memory_space<vmem>>, %arg16: memref<1x128xf32, #tpu.memory_space<vmem>>, %arg17: memref<128x32xbf16, #tpu.memory_space<vmem>>, %arg18: memref<1x32xf32, #tpu.memory_space<vmem>>, %arg19: memref<4x16x32xf32, #tpu.memory_space<vmem>>, %arg20: memref<64x32xf32, #tpu.memory_space<vmem>>) attributes {dimension_semantics = [#tpu.dimension_semantics<parallel>], iteration_bounds = array<i64: 2>, scalar_prefetch = 0 : i64, scratch_operands = 1 : i64, tpu.core_type = #tpu.core_type<tc>, window_params = [{transform_indices = @transform_0, window_bounds = array<i64: 4, 16, 32>}, {pipeline_mode = #tpu.pipeline_mode<synchronous>, transform_indices = @transform_1, window_bounds = array<i64: 1, 32>}, {pipeline_mode = #tpu.pipeline_mode<synchronous>, transform_indices = @transform_2, window_bounds = array<i64: 1, 32>}, {pipeline_mode = #tpu.pipeline_mode<synchronous>, transform_indices = @transform_3, window_bounds = array<i64: 32, 32>}, {pipeline_mode = #tpu.pipeline_mode<synchronous>, transform_indices = @transform_4, window_bounds = array<i64: 32, 32>}, {pipeline_mode = #tpu.pipeline_mode<synchronous>, transform_indices = @transform_5, window_bounds = array<i64: 32, 32>}, {pipeline_mode = #tpu.pipeline_mode<synchronous>, transform_indices = @transform_6, window_bounds = array<i64: 1, 32>}, {pipeline_mode = #tpu.pipeline_mode<synchronous>, transform_indices = @transform_7, window_bounds = array<i64: 1, 32>}, {pipeline_mode = #tpu.pipeline_mode<synchronous>, transform_indices = @transform_8, window_bounds = array<i64: 1, 32>}, {pipeline_mode = #tpu.pipeline_mode<synchronous>, transform_indices = @transform_9, window_bounds = array<i64: 32, 32>}, {pipeline_mode = #tpu.pipeline_mode<synchronous>, transform_indices = @transform_10, window_bounds = array<i64: 1, 32>}, {pipeline_mode = #tpu.pipeline_mode<synchronous>, transform_indices = @transform_11, window_bounds = array<i64: 4, 4, 16, 16>}, {pipeline_mode = #tpu.pipeline_mode<synchronous>, transform_indices = @transform_12, window_bounds = array<i64: 1, 32>}, {pipeline_mode = #tpu.pipeline_mode<synchronous>, transform_indices = @transform_13, window_bounds = array<i64: 1, 32>}, {pipeline_mode = #tpu.pipeline_mode<synchronous>, transform_indices = @transform_14, window_bounds = array<i64: 32, 128>}, {pipeline_mode = #tpu.pipeline_mode<synchronous>, transform_indices = @transform_15, window_bounds = array<i64: 1, 128>}, {pipeline_mode = #tpu.pipeline_mode<synchronous>, transform_indices = @transform_16, window_bounds = array<i64: 128, 32>}, {pipeline_mode = #tpu.pipeline_mode<synchronous>, transform_indices = @transform_17, window_bounds = array<i64: 1, 32>}, {transform_indices = @transform_18, window_bounds = array<i64: 4, 16, 32>}]} {
    %c0 = arith.constant 0 : index
    %c0_0 = arith.constant 0 : index
    %c0_1 = arith.constant 0 : index
    %0 = vector.load %arg1[%c0, %c0_0, %c0_1] : memref<4x16x32xf32, #tpu.memory_space<vmem>>, vector<4x16x32xf32>
    %1 = vector.shape_cast %0 : vector<4x16x32xf32> to vector<64x32xf32>
    %c0_2 = arith.constant 0 : index
    %c0_3 = arith.constant 0 : index
    %2 = vector.load %arg2[%c0_2, %c0_3] : memref<1x32xf32, #tpu.memory_space<vmem>>, vector<1x32xf32>
    %3 = vector.shape_cast %2 : vector<1x32xf32> to vector<32xf32>
    %c0_4 = arith.constant 0 : index
    %c0_5 = arith.constant 0 : index
    %4 = vector.load %arg3[%c0_4, %c0_5] : memref<1x32xf32, #tpu.memory_space<vmem>>, vector<1x32xf32>
    %5 = vector.shape_cast %4 : vector<1x32xf32> to vector<32xf32>
    %cst = arith.constant dense<0.000000e+00> : vector<64xf32>
    %6 = vector.multi_reduction <add>, %1, %cst [1] : vector<64x32xf32> to vector<64xf32>
    %7 = vector.shape_cast %6 : vector<64xf32> to vector<64x1xf32>
    %cst_6 = arith.constant 3.200000e+01 : f32
    %8 = vector.broadcast %cst_6 : f32 to vector<64x1xf32>
    %9 = arith.divf %7, %8 : vector<64x1xf32>
    %10 = vector.broadcast %9 : vector<64x1xf32> to vector<64x32xf32>
    %11 = arith.subf %1, %10 : vector<64x32xf32>
    %12 = arith.mulf %11, %11 : vector<64x32xf32>
    %cst_7 = arith.constant dense<0.000000e+00> : vector<64xf32>
    %13 = vector.multi_reduction <add>, %12, %cst_7 [1] : vector<64x32xf32> to vector<64xf32>
    %14 = vector.shape_cast %13 : vector<64xf32> to vector<64x1xf32>
    %cst_8 = arith.constant 3.200000e+01 : f32
    %15 = vector.broadcast %cst_8 : f32 to vector<64x1xf32>
    %16 = arith.divf %14, %15 : vector<64x1xf32>
    %17 = vector.broadcast %9 : vector<64x1xf32> to vector<64x32xf32>
    %18 = arith.subf %1, %17 : vector<64x32xf32>
    %cst_9 = arith.constant 9.99999974E-6 : f32
    %19 = vector.broadcast %cst_9 : f32 to vector<64x1xf32>
    %20 = arith.addf %16, %19 : vector<64x1xf32>
    %21 = math.rsqrt %20 : vector<64x1xf32>
    %22 = vector.broadcast %21 : vector<64x1xf32> to vector<64x32xf32>
    %23 = arith.mulf %18, %22 : vector<64x32xf32>
    %24 = vector.shape_cast %3 : vector<32xf32> to vector<1x32xf32>
    %25 = vector.broadcast %24 : vector<1x32xf32> to vector<64x32xf32>
    %26 = arith.mulf %23, %25 : vector<64x32xf32>
    %27 = vector.shape_cast %5 : vector<32xf32> to vector<1x32xf32>
    %28 = vector.broadcast %27 : vector<1x32xf32> to vector<64x32xf32>
    %29 = arith.addf %26, %28 : vector<64x32xf32>
    %30 = arith.truncf %29 : vector<64x32xf32> to vector<64x32xbf16>
    %c0_10 = arith.constant 0 : index
    %c0_11 = arith.constant 0 : index
    %31 = vector.load %arg4[%c0_10, %c0_11] : memref<32x32xbf16, #tpu.memory_space<vmem>>, vector<32x32xbf16>
    %cst_12 = arith.constant dense<0.000000e+00> : vector<64x32xf32>
    %32 = tpu.matmul %30, %31, %cst_12 {dimension_numbers = #tpu.dot_dimension_numbers<[1], [0], [0], [1], [0, 0, 1, 1], [], []>} : vector<64x32xbf16>, vector<32x32xbf16>, vector<64x32xf32> -> vector<64x32xf32>
    %c0_13 = arith.constant 0 : index
    %c0_14 = arith.constant 0 : index
    %33 = vector.load %arg7[%c0_13, %c0_14] : memref<1x32xf32, #tpu.memory_space<vmem>>, vector<1x32xf32>
    %34 = vector.shape_cast %33 : vector<1x32xf32> to vector<32xf32>
    %35 = vector.shape_cast %34 : vector<32xf32> to vector<1x32xf32>
    %36 = vector.broadcast %35 : vector<1x32xf32> to vector<64x32xf32>
    %37 = arith.addf %32, %36 : vector<64x32xf32>
    %38 = arith.truncf %37 : vector<64x32xf32> to vector<64x32xbf16>
    %39 = vector.shape_cast %38 : vector<64x32xbf16> to vector<4x16x32xbf16>
    %c0_15 = arith.constant 0 : index
    %c0_16 = arith.constant 0 : index
    %40 = vector.load %arg5[%c0_15, %c0_16] : memref<32x32xbf16, #tpu.memory_space<vmem>>, vector<32x32xbf16>
    %cst_17 = arith.constant dense<0.000000e+00> : vector<64x32xf32>
    %41 = tpu.matmul %30, %40, %cst_17 {dimension_numbers = #tpu.dot_dimension_numbers<[1], [0], [0], [1], [0, 0, 1, 1], [], []>} : vector<64x32xbf16>, vector<32x32xbf16>, vector<64x32xf32> -> vector<64x32xf32>
    %c0_18 = arith.constant 0 : index
    %c0_19 = arith.constant 0 : index
    %42 = vector.load %arg8[%c0_18, %c0_19] : memref<1x32xf32, #tpu.memory_space<vmem>>, vector<1x32xf32>
    %43 = vector.shape_cast %42 : vector<1x32xf32> to vector<32xf32>
    %44 = vector.shape_cast %43 : vector<32xf32> to vector<1x32xf32>
    %45 = vector.broadcast %44 : vector<1x32xf32> to vector<64x32xf32>
    %46 = arith.addf %41, %45 : vector<64x32xf32>
    %47 = arith.truncf %46 : vector<64x32xf32> to vector<64x32xbf16>
    %48 = vector.shape_cast %47 : vector<64x32xbf16> to vector<4x16x32xbf16>
    %c0_20 = arith.constant 0 : index
    %c0_21 = arith.constant 0 : index
    %49 = vector.load %arg6[%c0_20, %c0_21] : memref<32x32xbf16, #tpu.memory_space<vmem>>, vector<32x32xbf16>
    %cst_22 = arith.constant dense<0.000000e+00> : vector<64x32xf32>
    %50 = tpu.matmul %30, %49, %cst_22 {dimension_numbers = #tpu.dot_dimension_numbers<[1], [0], [0], [1], [0, 0, 1, 1], [], []>} : vector<64x32xbf16>, vector<32x32xbf16>, vector<64x32xf32> -> vector<64x32xf32>
    %c0_23 = arith.constant 0 : index
    %c0_24 = arith.constant 0 : index
    %51 = vector.load %arg9[%c0_23, %c0_24] : memref<1x32xf32, #tpu.memory_space<vmem>>, vector<1x32xf32>
    %52 = vector.shape_cast %51 : vector<1x32xf32> to vector<32xf32>
    %53 = vector.shape_cast %52 : vector<32xf32> to vector<1x32xf32>
    %54 = vector.broadcast %53 : vector<1x32xf32> to vector<64x32xf32>
    %55 = arith.addf %50, %54 : vector<64x32xf32>
    %56 = arith.truncf %55 : vector<64x32xf32> to vector<64x32xbf16>
    %57 = vector.shape_cast %56 : vector<64x32xbf16> to vector<4x16x32xbf16>
    %58 = vector.extract_strided_slice %39 {offsets = [0, 0, 0], sizes = [4, 16, 8], strides = [1, 1, 1]} : vector<4x16x32xbf16> to vector<4x16x8xbf16>
    %59 = vector.extract_strided_slice %48 {offsets = [0, 0, 0], sizes = [4, 16, 8], strides = [1, 1, 1]} : vector<4x16x32xbf16> to vector<4x16x8xbf16>
    %60 = vector.extract_strided_slice %57 {offsets = [0, 0, 0], sizes = [4, 16, 8], strides = [1, 1, 1]} : vector<4x16x32xbf16> to vector<4x16x8xbf16>
    "tpu.trace_start"() <{level = 10 : i32, message = "wnd,wmd->wnm"}> : () -> ()
    %cst_25 = arith.constant dense<0.000000e+00> : vector<4x16x16xf32>
    %61 = tpu.matmul %58, %59, %cst_25 {dimension_numbers = #tpu.dot_dimension_numbers<[2], [2], [1], [1], [0, 0, 0, 1, 1, 1], [0], [0]>} : vector<4x16x8xbf16>, vector<4x16x8xbf16>, vector<4x16x16xf32> -> vector<4x16x16xf32>
    "tpu.trace_stop"() : () -> ()
    %c0_26 = arith.constant 0 : index
    %c0_27 = arith.constant 0 : index
    %c0_28 = arith.constant 0 : index
    %c0_29 = arith.constant 0 : index
    %62 = vector.load %arg12[%c0_26, %c0_27, %c0_28, %c0_29] : memref<4x4x16x16xf32, #tpu.memory_space<vmem>>, vector<1x4x16x16xf32>
    %63 = vector.shape_cast %62 : vector<1x4x16x16xf32> to vector<4x16x16xf32>
    %64 = vector.shape_cast %61 : vector<4x16x16xf32> to vector<1x4x16x16xf32>
    %65 = vector.shape_cast %63 : vector<4x16x16xf32> to vector<1x4x16x16xf32>
    %66 = arith.addf %64, %65 : vector<1x4x16x16xf32>
    %67 = vector.shape_cast %66 : vector<1x4x16x16xf32> to vector<4x16x16xf32>
    %cst_30 = arith.constant dense<0xFF800000> : vector<4x16xf32>
    %68 = vector.multi_reduction <maximumf>, %67, %cst_30 [2] : vector<4x16x16xf32> to vector<4x16xf32>
    %69 = vector.shape_cast %68 : vector<4x16xf32> to vector<4x16x1xf32>
    %70 = vector.broadcast %69 : vector<4x16x1xf32> to vector<4x16x16xf32>
    %71 = arith.subf %67, %70 : vector<4x16x16xf32>
    %72 = math.exp %71 : vector<4x16x16xf32>
    %cst_31 = arith.constant dense<0.000000e+00> : vector<4x16xf32>
    %73 = vector.multi_reduction <add>, %72, %cst_31 [2] : vector<4x16x16xf32> to vector<4x16xf32>
    %74 = vector.shape_cast %73 : vector<4x16xf32> to vector<4x16x1xf32>
    %75 = tpu.reciprocal %74 {approx = true} : vector<4x16x1xf32> -> vector<4x16x1xf32>
    %76 = vector.broadcast %75 : vector<4x16x1xf32> to vector<4x16x16xf32>
    %77 = arith.mulf %72, %76 : vector<4x16x16xf32>
    %78 = arith.truncf %77 : vector<4x16x16xf32> to vector<4x16x16xbf16>
    "tpu.trace_start"() <{level = 10 : i32, message = "wnm,wmd->wnd"}> : () -> ()
    %cst_32 = arith.constant dense<0.000000e+00> : vector<4x16x8xf32>
    %79 = tpu.matmul %78, %60, %cst_32 {dimension_numbers = #tpu.dot_dimension_numbers<[2], [1], [1], [2], [0, 0, 0, 1, 1, 2], [0], [0]>} : vector<4x16x16xbf16>, vector<4x16x8xbf16>, vector<4x16x8xf32> -> vector<4x16x8xf32>
    "tpu.trace_stop"() : () -> ()
    %80 = vector.shape_cast %79 : vector<4x16x8xf32> to vector<64x8xf32>
    %c0_33 = arith.constant 0 : index
    %c0_34 = arith.constant 0 : index
    %81 = vector.load %arg20[%c0_33, %c0_34] : memref<64x32xf32, #tpu.memory_space<vmem>>, vector<64x8xf32>
    tpu.vector_store %arg20[%c0_33, %c0_34], %80 {strides = array<i32>} : memref<64x32xf32, #tpu.memory_space<vmem>>, vector<64x8xf32>,
    %82 = vector.extract_strided_slice %39 {offsets = [0, 0, 8], sizes = [4, 16, 8], strides = [1, 1, 1]} : vector<4x16x32xbf16> to vector<4x16x8xbf16>
    %83 = vector.extract_strided_slice %48 {offsets = [0, 0, 8], sizes = [4, 16, 8], strides = [1, 1, 1]} : vector<4x16x32xbf16> to vector<4x16x8xbf16>
    %84 = vector.extract_strided_slice %57 {offsets = [0, 0, 8], sizes = [4, 16, 8], strides = [1, 1, 1]} : vector<4x16x32xbf16> to vector<4x16x8xbf16>
    "tpu.trace_start"() <{level = 10 : i32, message = "wnd,wmd->wnm"}> : () -> ()
    %cst_35 = arith.constant dense<0.000000e+00> : vector<4x16x16xf32>
    %85 = tpu.matmul %82, %83, %cst_35 {dimension_numbers = #tpu.dot_dimension_numbers<[2], [2], [1], [1], [0, 0, 0, 1, 1, 1], [0], [0]>} : vector<4x16x8xbf16>, vector<4x16x8xbf16>, vector<4x16x16xf32> -> vector<4x16x16xf32>
    "tpu.trace_stop"() : () -> ()
    %c1 = arith.constant 1 : index
    %c0_36 = arith.constant 0 : index
    %c0_37 = arith.constant 0 : index
    %c0_38 = arith.constant 0 : index
    %86 = vector.load %arg12[%c1, %c0_36, %c0_37, %c0_38] : memref<4x4x16x16xf32, #tpu.memory_space<vmem>>, vector<1x4x16x16xf32>
    %87 = vector.shape_cast %86 : vector<1x4x16x16xf32> to vector<4x16x16xf32>
    %88 = vector.shape_cast %85 : vector<4x16x16xf32> to vector<1x4x16x16xf32>
    %89 = vector.shape_cast %87 : vector<4x16x16xf32> to vector<1x4x16x16xf32>
    %90 = arith.addf %88, %89 : vector<1x4x16x16xf32>
    %91 = vector.shape_cast %90 : vector<1x4x16x16xf32> to vector<4x16x16xf32>
    %cst_39 = arith.constant dense<0xFF800000> : vector<4x16xf32>
    %92 = vector.multi_reduction <maximumf>, %91, %cst_39 [2] : vector<4x16x16xf32> to vector<4x16xf32>
    %93 = vector.shape_cast %92 : vector<4x16xf32> to vector<4x16x1xf32>
    %94 = vector.broadcast %93 : vector<4x16x1xf32> to vector<4x16x16xf32>
    %95 = arith.subf %91, %94 : vector<4x16x16xf32>
    %96 = math.exp %95 : vector<4x16x16xf32>
    %cst_40 = arith.constant dense<0.000000e+00> : vector<4x16xf32>
    %97 = vector.multi_reduction <add>, %96, %cst_40 [2] : vector<4x16x16xf32> to vector<4x16xf32>
    %98 = vector.shape_cast %97 : vector<4x16xf32> to vector<4x16x1xf32>
    %99 = tpu.reciprocal %98 {approx = true} : vector<4x16x1xf32> -> vector<4x16x1xf32>
    %100 = vector.broadcast %99 : vector<4x16x1xf32> to vector<4x16x16xf32>
    %101 = arith.mulf %96, %100 : vector<4x16x16xf32>
    %102 = arith.truncf %101 : vector<4x16x16xf32> to vector<4x16x16xbf16>
    "tpu.trace_start"() <{level = 10 : i32, message = "wnm,wmd->wnd"}> : () -> ()
    %cst_41 = arith.constant dense<0.000000e+00> : vector<4x16x8xf32>
    %103 = tpu.matmul %102, %84, %cst_41 {dimension_numbers = #tpu.dot_dimension_numbers<[2], [1], [1], [2], [0, 0, 0, 1, 1, 2], [0], [0]>} : vector<4x16x16xbf16>, vector<4x16x8xbf16>, vector<4x16x8xf32> -> vector<4x16x8xf32>
    "tpu.trace_stop"() : () -> ()
    %104 = vector.shape_cast %103 : vector<4x16x8xf32> to vector<64x8xf32>
    %c0_42 = arith.constant 0 : index
    %c8 = arith.constant 8 : index
    %105 = vector.load %arg20[%c0_42, %c8] : memref<64x32xf32, #tpu.memory_space<vmem>>, vector<64x8xf32>
    tpu.vector_store %arg20[%c0_42, %c8], %104 {strides = array<i32>} : memref<64x32xf32, #tpu.memory_space<vmem>>, vector<64x8xf32>,
    %106 = vector.extract_strided_slice %39 {offsets = [0, 0, 16], sizes = [4, 16, 8], strides = [1, 1, 1]} : vector<4x16x32xbf16> to vector<4x16x8xbf16>
    %107 = vector.extract_strided_slice %48 {offsets = [0, 0, 16], sizes = [4, 16, 8], strides = [1, 1, 1]} : vector<4x16x32xbf16> to vector<4x16x8xbf16>
    %108 = vector.extract_strided_slice %57 {offsets = [0, 0, 16], sizes = [4, 16, 8], strides = [1, 1, 1]} : vector<4x16x32xbf16> to vector<4x16x8xbf16>
    "tpu.trace_start"() <{level = 10 : i32, message = "wnd,wmd->wnm"}> : () -> ()
    %cst_43 = arith.constant dense<0.000000e+00> : vector<4x16x16xf32>
    %109 = tpu.matmul %106, %107, %cst_43 {dimension_numbers = #tpu.dot_dimension_numbers<[2], [2], [1], [1], [0, 0, 0, 1, 1, 1], [0], [0]>} : vector<4x16x8xbf16>, vector<4x16x8xbf16>, vector<4x16x16xf32> -> vector<4x16x16xf32>
    "tpu.trace_stop"() : () -> ()
    %c2 = arith.constant 2 : index
    %c0_44 = arith.constant 0 : index
    %c0_45 = arith.constant 0 : index
    %c0_46 = arith.constant 0 : index
    %110 = vector.load %arg12[%c2, %c0_44, %c0_45, %c0_46] : memref<4x4x16x16xf32, #tpu.memory_space<vmem>>, vector<1x4x16x16xf32>
    %111 = vector.shape_cast %110 : vector<1x4x16x16xf32> to vector<4x16x16xf32>
    %112 = vector.shape_cast %109 : vector<4x16x16xf32> to vector<1x4x16x16xf32>
    %113 = vector.shape_cast %111 : vector<4x16x16xf32> to vector<1x4x16x16xf32>
    %114 = arith.addf %112, %113 : vector<1x4x16x16xf32>
    %115 = vector.shape_cast %114 : vector<1x4x16x16xf32> to vector<4x16x16xf32>
    %cst_47 = arith.constant dense<0xFF800000> : vector<4x16xf32>
    %116 = vector.multi_reduction <maximumf>, %115, %cst_47 [2] : vector<4x16x16xf32> to vector<4x16xf32>
    %117 = vector.shape_cast %116 : vector<4x16xf32> to vector<4x16x1xf32>
    %118 = vector.broadcast %117 : vector<4x16x1xf32> to vector<4x16x16xf32>
    %119 = arith.subf %115, %118 : vector<4x16x16xf32>
    %120 = math.exp %119 : vector<4x16x16xf32>
    %cst_48 = arith.constant dense<0.000000e+00> : vector<4x16xf32>
    %121 = vector.multi_reduction <add>, %120, %cst_48 [2] : vector<4x16x16xf32> to vector<4x16xf32>
    %122 = vector.shape_cast %121 : vector<4x16xf32> to vector<4x16x1xf32>
    %123 = tpu.reciprocal %122 {approx = true} : vector<4x16x1xf32> -> vector<4x16x1xf32>
    %124 = vector.broadcast %123 : vector<4x16x1xf32> to vector<4x16x16xf32>
    %125 = arith.mulf %120, %124 : vector<4x16x16xf32>
    %126 = arith.truncf %125 : vector<4x16x16xf32> to vector<4x16x16xbf16>
    "tpu.trace_start"() <{level = 10 : i32, message = "wnm,wmd->wnd"}> : () -> ()
    %cst_49 = arith.constant dense<0.000000e+00> : vector<4x16x8xf32>
    %127 = tpu.matmul %126, %108, %cst_49 {dimension_numbers = #tpu.dot_dimension_numbers<[2], [1], [1], [2], [0, 0, 0, 1, 1, 2], [0], [0]>} : vector<4x16x16xbf16>, vector<4x16x8xbf16>, vector<4x16x8xf32> -> vector<4x16x8xf32>
    "tpu.trace_stop"() : () -> ()
    %128 = vector.shape_cast %127 : vector<4x16x8xf32> to vector<64x8xf32>
    %c0_50 = arith.constant 0 : index
    %c16 = arith.constant 16 : index
    %129 = vector.load %arg20[%c0_50, %c16] : memref<64x32xf32, #tpu.memory_space<vmem>>, vector<64x8xf32>
    tpu.vector_store %arg20[%c0_50, %c16], %128 {strides = array<i32>} : memref<64x32xf32, #tpu.memory_space<vmem>>, vector<64x8xf32>,
    %130 = vector.extract_strided_slice %39 {offsets = [0, 0, 24], sizes = [4, 16, 8], strides = [1, 1, 1]} : vector<4x16x32xbf16> to vector<4x16x8xbf16>
    %131 = vector.extract_strided_slice %48 {offsets = [0, 0, 24], sizes = [4, 16, 8], strides = [1, 1, 1]} : vector<4x16x32xbf16> to vector<4x16x8xbf16>
    %132 = vector.extract_strided_slice %57 {offsets = [0, 0, 24], sizes = [4, 16, 8], strides = [1, 1, 1]} : vector<4x16x32xbf16> to vector<4x16x8xbf16>
    "tpu.trace_start"() <{level = 10 : i32, message = "wnd,wmd->wnm"}> : () -> ()
    %cst_51 = arith.constant dense<0.000000e+00> : vector<4x16x16xf32>
    %133 = tpu.matmul %130, %131, %cst_51 {dimension_numbers = #tpu.dot_dimension_numbers<[2], [2], [1], [1], [0, 0, 0, 1, 1, 1], [0], [0]>} : vector<4x16x8xbf16>, vector<4x16x8xbf16>, vector<4x16x16xf32> -> vector<4x16x16xf32>
    "tpu.trace_stop"() : () -> ()
    %c3 = arith.constant 3 : index
    %c0_52 = arith.constant 0 : index
    %c0_53 = arith.constant 0 : index
    %c0_54 = arith.constant 0 : index
    %134 = vector.load %arg12[%c3, %c0_52, %c0_53, %c0_54] : memref<4x4x16x16xf32, #tpu.memory_space<vmem>>, vector<1x4x16x16xf32>
    %135 = vector.shape_cast %134 : vector<1x4x16x16xf32> to vector<4x16x16xf32>
    %136 = vector.shape_cast %133 : vector<4x16x16xf32> to vector<1x4x16x16xf32>
    %137 = vector.shape_cast %135 : vector<4x16x16xf32> to vector<1x4x16x16xf32>
    %138 = arith.addf %136, %137 : vector<1x4x16x16xf32>
    %139 = vector.shape_cast %138 : vector<1x4x16x16xf32> to vector<4x16x16xf32>
    %cst_55 = arith.constant dense<0xFF800000> : vector<4x16xf32>
    %140 = vector.multi_reduction <maximumf>, %139, %cst_55 [2] : vector<4x16x16xf32> to vector<4x16xf32>
    %141 = vector.shape_cast %140 : vector<4x16xf32> to vector<4x16x1xf32>
    %142 = vector.broadcast %141 : vector<4x16x1xf32> to vector<4x16x16xf32>
    %143 = arith.subf %139, %142 : vector<4x16x16xf32>
    %144 = math.exp %143 : vector<4x16x16xf32>
    %cst_56 = arith.constant dense<0.000000e+00> : vector<4x16xf32>
    %145 = vector.multi_reduction <add>, %144, %cst_56 [2] : vector<4x16x16xf32> to vector<4x16xf32>
    %146 = vector.shape_cast %145 : vector<4x16xf32> to vector<4x16x1xf32>
    %147 = tpu.reciprocal %146 {approx = true} : vector<4x16x1xf32> -> vector<4x16x1xf32>
    %148 = vector.broadcast %147 : vector<4x16x1xf32> to vector<4x16x16xf32>
    %149 = arith.mulf %144, %148 : vector<4x16x16xf32>
    %150 = arith.truncf %149 : vector<4x16x16xf32> to vector<4x16x16xbf16>
    "tpu.trace_start"() <{level = 10 : i32, message = "wnm,wmd->wnd"}> : () -> ()
    %cst_57 = arith.constant dense<0.000000e+00> : vector<4x16x8xf32>
    %151 = tpu.matmul %150, %132, %cst_57 {dimension_numbers = #tpu.dot_dimension_numbers<[2], [1], [1], [2], [0, 0, 0, 1, 1, 2], [0], [0]>} : vector<4x16x16xbf16>, vector<4x16x8xbf16>, vector<4x16x8xf32> -> vector<4x16x8xf32>
    "tpu.trace_stop"() : () -> ()
    %152 = vector.shape_cast %151 : vector<4x16x8xf32> to vector<64x8xf32>
    %c0_58 = arith.constant 0 : index
    %c24 = arith.constant 24 : index
    %153 = vector.load %arg20[%c0_58, %c24] : memref<64x32xf32, #tpu.memory_space<vmem>>, vector<64x8xf32>
    tpu.vector_store %arg20[%c0_58, %c24], %152 {strides = array<i32>} : memref<64x32xf32, #tpu.memory_space<vmem>>, vector<64x8xf32>,
    %c0_59 = arith.constant 0 : index
    %c0_60 = arith.constant 0 : index
    %154 = vector.load %arg20[%c0_59, %c0_60] : memref<64x32xf32, #tpu.memory_space<vmem>>, vector<64x32xf32>
    %155 = arith.truncf %154 : vector<64x32xf32> to vector<64x32xbf16>
    %c0_61 = arith.constant 0 : index
    %c0_62 = arith.constant 0 : index
    %156 = vector.load %arg10[%c0_61, %c0_62] : memref<32x32xbf16, #tpu.memory_space<vmem>>, vector<32x32xbf16>
    %cst_63 = arith.constant dense<0.000000e+00> : vector<64x32xf32>
    %157 = tpu.matmul %155, %156, %cst_63 {dimension_numbers = #tpu.dot_dimension_numbers<[1], [0], [0], [1], [0, 0, 1, 1], [], []>} : vector<64x32xbf16>, vector<32x32xbf16>, vector<64x32xf32> -> vector<64x32xf32>
    %c0_64 = arith.constant 0 : index
    %c0_65 = arith.constant 0 : index
    %158 = vector.load %arg11[%c0_64, %c0_65] : memref<1x32xf32, #tpu.memory_space<vmem>>, vector<1x32xf32>
    %159 = vector.shape_cast %158 : vector<1x32xf32> to vector<32xf32>
    %160 = vector.shape_cast %159 : vector<32xf32> to vector<1x32xf32>
    %161 = vector.broadcast %160 : vector<1x32xf32> to vector<64x32xf32>
    %162 = arith.addf %157, %161 : vector<64x32xf32>
    %163 = arith.addf %1, %162 : vector<64x32xf32>
    %c0_66 = arith.constant 0 : index
    %c0_67 = arith.constant 0 : index
    %164 = vector.load %arg13[%c0_66, %c0_67] : memref<1x32xf32, #tpu.memory_space<vmem>>, vector<1x32xf32>
    %165 = vector.shape_cast %164 : vector<1x32xf32> to vector<32xf32>
    %c0_68 = arith.constant 0 : index
    %c0_69 = arith.constant 0 : index
    %166 = vector.load %arg14[%c0_68, %c0_69] : memref<1x32xf32, #tpu.memory_space<vmem>>, vector<1x32xf32>
    %167 = vector.shape_cast %166 : vector<1x32xf32> to vector<32xf32>
    %cst_70 = arith.constant dense<0.000000e+00> : vector<64xf32>
    %168 = vector.multi_reduction <add>, %163, %cst_70 [1] : vector<64x32xf32> to vector<64xf32>
    %169 = vector.shape_cast %168 : vector<64xf32> to vector<64x1xf32>
    %cst_71 = arith.constant 3.200000e+01 : f32
    %170 = vector.broadcast %cst_71 : f32 to vector<64x1xf32>
    %171 = arith.divf %169, %170 : vector<64x1xf32>
    %172 = vector.broadcast %171 : vector<64x1xf32> to vector<64x32xf32>
    %173 = arith.subf %163, %172 : vector<64x32xf32>
    %174 = arith.mulf %173, %173 : vector<64x32xf32>
    %cst_72 = arith.constant dense<0.000000e+00> : vector<64xf32>
    %175 = vector.multi_reduction <add>, %174, %cst_72 [1] : vector<64x32xf32> to vector<64xf32>
    %176 = vector.shape_cast %175 : vector<64xf32> to vector<64x1xf32>
    %cst_73 = arith.constant 3.200000e+01 : f32
    %177 = vector.broadcast %cst_73 : f32 to vector<64x1xf32>
    %178 = arith.divf %176, %177 : vector<64x1xf32>
    %179 = vector.broadcast %171 : vector<64x1xf32> to vector<64x32xf32>
    %180 = arith.subf %163, %179 : vector<64x32xf32>
    %cst_74 = arith.constant 9.99999974E-6 : f32
    %181 = vector.broadcast %cst_74 : f32 to vector<64x1xf32>
    %182 = arith.addf %178, %181 : vector<64x1xf32>
    %183 = math.rsqrt %182 : vector<64x1xf32>
    %184 = vector.broadcast %183 : vector<64x1xf32> to vector<64x32xf32>
    %185 = arith.mulf %180, %184 : vector<64x32xf32>
    %186 = vector.shape_cast %165 : vector<32xf32> to vector<1x32xf32>
    %187 = vector.broadcast %186 : vector<1x32xf32> to vector<64x32xf32>
    %188 = arith.mulf %185, %187 : vector<64x32xf32>
    %189 = vector.shape_cast %167 : vector<32xf32> to vector<1x32xf32>
    %190 = vector.broadcast %189 : vector<1x32xf32> to vector<64x32xf32>
    %191 = arith.addf %188, %190 : vector<64x32xf32>
    %192 = arith.truncf %191 : vector<64x32xf32> to vector<64x32xbf16>
    %c0_75 = arith.constant 0 : index
    %c0_76 = arith.constant 0 : index
    %193 = vector.load %arg15[%c0_75, %c0_76] : memref<32x128xbf16, #tpu.memory_space<vmem>>, vector<32x128xbf16>
    %cst_77 = arith.constant dense<0.000000e+00> : vector<64x128xf32>
    %194 = tpu.matmul %192, %193, %cst_77 {dimension_numbers = #tpu.dot_dimension_numbers<[1], [0], [0], [1], [0, 0, 1, 1], [], []>} : vector<64x32xbf16>, vector<32x128xbf16>, vector<64x128xf32> -> vector<64x128xf32>
    %c0_78 = arith.constant 0 : index
    %c0_79 = arith.constant 0 : index
    %195 = vector.load %arg16[%c0_78, %c0_79] : memref<1x128xf32, #tpu.memory_space<vmem>>, vector<1x128xf32>
    %196 = vector.shape_cast %195 : vector<1x128xf32> to vector<128xf32>
    %197 = vector.shape_cast %196 : vector<128xf32> to vector<1x128xf32>
    %198 = vector.broadcast %197 : vector<1x128xf32> to vector<64x128xf32>
    %199 = arith.addf %194, %198 : vector<64x128xf32>
    %cst_80 = arith.constant 5.000000e-01 : f32
    %200 = vector.broadcast %cst_80 : f32 to vector<64x128xf32>
    %201 = arith.mulf %200, %199 : vector<64x128xf32>
    %cst_81 = arith.constant 4.471500e-02 : f32
    %202 = vector.broadcast %cst_81 : f32 to vector<64x128xf32>
    %203 = arith.mulf %202, %199 : vector<64x128xf32>
    %204 = arith.mulf %203, %199 : vector<64x128xf32>
    %205 = arith.mulf %204, %199 : vector<64x128xf32>
    %206 = arith.addf %199, %205 : vector<64x128xf32>
    %cst_82 = arith.constant 0.797884583 : f32
    %207 = vector.broadcast %cst_82 : f32 to vector<64x128xf32>
    %208 = arith.mulf %207, %206 : vector<64x128xf32>
    %209 = math.tanh %208 : vector<64x128xf32>
    %cst_83 = arith.constant 1.000000e+00 : f32
    %210 = vector.broadcast %cst_83 : f32 to vector<64x128xf32>
    %211 = arith.addf %210, %209 : vector<64x128xf32>
    %212 = arith.mulf %201, %211 : vector<64x128xf32>
    %213 = arith.truncf %212 : vector<64x128xf32> to vector<64x128xbf16>
    %c0_84 = arith.constant 0 : index
    %c0_85 = arith.constant 0 : index
    %214 = vector.load %arg17[%c0_84, %c0_85] : memref<128x32xbf16, #tpu.memory_space<vmem>>, vector<128x32xbf16>
    %cst_86 = arith.constant dense<0.000000e+00> : vector<64x32xf32>
    %215 = tpu.matmul %213, %214, %cst_86 {dimension_numbers = #tpu.dot_dimension_numbers<[1], [0], [0], [1], [0, 0, 1, 1], [], []>} : vector<64x128xbf16>, vector<128x32xbf16>, vector<64x32xf32> -> vector<64x32xf32>
    %c0_87 = arith.constant 0 : index
    %c0_88 = arith.constant 0 : index
    %216 = vector.load %arg18[%c0_87, %c0_88] : memref<1x32xf32, #tpu.memory_space<vmem>>, vector<1x32xf32>
    %217 = vector.shape_cast %216 : vector<1x32xf32> to vector<32xf32>
    %218 = vector.shape_cast %217 : vector<32xf32> to vector<1x32xf32>
    %219 = vector.broadcast %218 : vector<1x32xf32> to vector<64x32xf32>
    %220 = arith.addf %215, %219 : vector<64x32xf32>
    %221 = arith.addf %163, %220 : vector<64x32xf32>
    %222 = vector.shape_cast %221 : vector<64x32xf32> to vector<4x16x32xf32>
    %c0_89 = arith.constant 0 : index
    %c0_90 = arith.constant 0 : index
    %c0_91 = arith.constant 0 : index
    %223 = vector.load %arg19[%c0_89, %c0_90, %c0_91] : memref<4x16x32xf32, #tpu.memory_space<vmem>>, vector<4x16x32xf32>
    tpu.vector_store %arg19[%c0_89, %c0_90, %c0_91], %222 {strides = array<i32>} : memref<4x16x32xf32, #tpu.memory_space<vmem>>, vector<4x16x32xf32>,
    return
  }
  func.func @transform_0(%arg0: i32) -> (i32, i32, i32) {
    %c0_i32 = arith.constant 0 : i32
    %c0_i32_0 = arith.constant 0 : i32
    %c0_i32_1 = arith.constant 0 : i32
    return %arg0, %c0_i32, %c0_i32_0 : i32, i32, i32
  }
  func.func @transform_1(%arg0: i32) -> (i32, i32) {
    %c0_i32 = arith.constant 0 : i32
    %c0_i32_0 = arith.constant 0 : i32
    %c0_i32_1 = arith.constant 0 : i32
    return %c0_i32, %c0_i32_0 : i32, i32
  }
  func.func @transform_2(%arg0: i32) -> (i32, i32) {
    %c0_i32 = arith.constant 0 : i32
    %c0_i32_0 = arith.constant 0 : i32
    %c0_i32_1 = arith.constant 0 : i32
    return %c0_i32, %c0_i32_0 : i32, i32
  }
  func.func @transform_3(%arg0: i32) -> (i32, i32) {
    %c0_i32 = arith.constant 0 : i32
    %c0_i32_0 = arith.constant 0 : i32
    %c0_i32_1 = arith.constant 0 : i32
    return %c0_i32, %c0_i32_0 : i32, i32
  }
  func.func @transform_4(%arg0: i32) -> (i32, i32) {
    %c0_i32 = arith.constant 0 : i32
    %c0_i32_0 = arith.constant 0 : i32
    %c0_i32_1 = arith.constant 0 : i32
    return %c0_i32, %c0_i32_0 : i32, i32
  }
  func.func @transform_5(%arg0: i32) -> (i32, i32) {
    %c0_i32 = arith.constant 0 : i32
    %c0_i32_0 = arith.constant 0 : i32
    %c0_i32_1 = arith.constant 0 : i32
    return %c0_i32, %c0_i32_0 : i32, i32
  }
  func.func @transform_6(%arg0: i32) -> (i32, i32) {
    %c0_i32 = arith.constant 0 : i32
    %c0_i32_0 = arith.constant 0 : i32
    %c0_i32_1 = arith.constant 0 : i32
    return %c0_i32, %c0_i32_0 : i32, i32
  }
  func.func @transform_7(%arg0: i32) -> (i32, i32) {
    %c0_i32 = arith.constant 0 : i32
    %c0_i32_0 = arith.constant 0 : i32
    %c0_i32_1 = arith.constant 0 : i32
    return %c0_i32, %c0_i32_0 : i32, i32
  }
  func.func @transform_8(%arg0: i32) -> (i32, i32) {
    %c0_i32 = arith.constant 0 : i32
    %c0_i32_0 = arith.constant 0 : i32
    %c0_i32_1 = arith.constant 0 : i32
    return %c0_i32, %c0_i32_0 : i32, i32
  }
  func.func @transform_9(%arg0: i32) -> (i32, i32) {
    %c0_i32 = arith.constant 0 : i32
    %c0_i32_0 = arith.constant 0 : i32
    %c0_i32_1 = arith.constant 0 : i32
    return %c0_i32, %c0_i32_0 : i32, i32
  }
  func.func @transform_10(%arg0: i32) -> (i32, i32) {
    %c0_i32 = arith.constant 0 : i32
    %c0_i32_0 = arith.constant 0 : i32
    %c0_i32_1 = arith.constant 0 : i32
    return %c0_i32, %c0_i32_0 : i32, i32
  }
  func.func @transform_11(%arg0: i32) -> (i32, i32, i32, i32) {
    %c0_i32 = arith.constant 0 : i32
    %c0_i32_0 = arith.constant 0 : i32
    %c0_i32_1 = arith.constant 0 : i32
    %c0_i32_2 = arith.constant 0 : i32
    %c0_i32_3 = arith.constant 0 : i32
    return %c0_i32, %c0_i32_0, %c0_i32_1, %c0_i32_2 : i32, i32, i32, i32
  }
  func.func @transform_12(%arg0: i32) -> (i32, i32) {
    %c0_i32 = arith.constant 0 : i32
    %c0_i32_0 = arith.constant 0 : i32
    %c0_i32_1 = arith.constant 0 : i32
    return %c0_i32, %c0_i32_0 : i32, i32
  }
  func.func @transform_13(%arg0: i32) -> (i32, i32) {
    %c0_i32 = arith.constant 0 : i32
    %c0_i32_0 = arith.constant 0 : i32
    %c0_i32_1 = arith.constant 0 : i32
    return %c0_i32, %c0_i32_0 : i32, i32
  }
  func.func @transform_14(%arg0: i32) -> (i32, i32) {
    %c0_i32 = arith.constant 0 : i32
    %c0_i32_0 = arith.constant 0 : i32
    %c0_i32_1 = arith.constant 0 : i32
    return %c0_i32, %c0_i32_0 : i32, i32
  }
  func.func @transform_15(%arg0: i32) -> (i32, i32) {
    %c0_i32 = arith.constant 0 : i32
    %c0_i32_0 = arith.constant 0 : i32
    %c0_i32_1 = arith.constant 0 : i32
    return %c0_i32, %c0_i32_0 : i32, i32
  }
  func.func @transform_16(%arg0: i32) -> (i32, i32) {
    %c0_i32 = arith.constant 0 : i32
    %c0_i32_0 = arith.constant 0 : i32
    %c0_i32_1 = arith.constant 0 : i32
    return %c0_i32, %c0_i32_0 : i32, i32
  }
  func.func @transform_17(%arg0: i32) -> (i32, i32) {
    %c0_i32 = arith.constant 0 : i32
    %c0_i32_0 = arith.constant 0 : i32
    %c0_i32_1 = arith.constant 0 : i32
    return %c0_i32, %c0_i32_0 : i32, i32
  }
  func.func @transform_18(%arg0: i32) -> (i32, i32, i32) {
    %c0_i32 = arith.constant 0 : i32
    %c0_i32_0 = arith.constant 0 : i32
    %c0_i32_1 = arith.constant 0 : i32
    return %arg0, %c0_i32, %c0_i32_0 : i32, i32, i32
  }
}

</mosaic_0001>

<llo_original>
// kernel: tpu_custom_call.1
$region0: #{tpu_custom_call.1}
  #allocation0 [shape = 'u32[]', space=smem, size = 0x4, offset = 0x4, fixed_abs, tag = 'smem constant byte address 0x4 - core index']
  #allocation1 [shape = 'u32[144,128]{1,0:T(1,128)}', space=vmem, size = 0x12000, scoped, tag = 'internal scratch']
  #allocation2 [shape = 'f32[64,32]{1,0:T(8,128)}', space=vmem, size = 0x8000, scoped, tag = 'scratch operand']
  %s0 = inlined_call_operand.hbm [shape: f32[8,16,32], index: 0, kind: input, shape index: {}]
  %s1 = inlined_call_operand.vmem [shape: f32[1,32], index: 1, kind: input, shape index: {}]
  %s2 = inlined_call_operand.vmem [shape: f32[1,32], index: 2, kind: input, shape index: {}]
  %s3 = inlined_call_operand.vmem [shape: bf16[32,32], index: 3, kind: input, shape index: {}]
  %s4 = inlined_call_operand.vmem [shape: bf16[32,32], index: 4, kind: input, shape index: {}]
  %s5 = inlined_call_operand.vmem [shape: bf16[32,32], index: 5, kind: input, shape index: {}]
  %s6 = inlined_call_operand.vmem [shape: f32[1,32], index: 6, kind: input, shape index: {}]
  %s7 = inlined_call_operand.vmem [shape: f32[1,32], index: 7, kind: input, shape index: {}]
  %s8 = inlined_call_operand.vmem [shape: f32[1,32], index: 8, kind: input, shape index: {}]
  %s9 = inlined_call_operand.vmem [shape: bf16[32,32], index: 9, kind: input, shape index: {}]
  %s10 = inlined_call_operand.vmem [shape: f32[1,32], index: 10, kind: input, shape index: {}]
  %s11 = inlined_call_operand.hbm [shape: f32[4,4,16,16], index: 11, kind: input, shape index: {}]
  %s12 = inlined_call_operand.vmem [shape: f32[1,32], index: 12, kind: input, shape index: {}]
  %s13 = inlined_call_operand.vmem [shape: f32[1,32], index: 13, kind: input, shape index: {}]
  %s14 = inlined_call_operand.vmem [shape: bf16[32,128], index: 14, kind: input, shape index: {}]
  %s15 = inlined_call_operand.vmem [shape: f32[1,128], index: 15, kind: input, shape index: {}]
  %s16 = inlined_call_operand.vmem [shape: bf16[128,32], index: 16, kind: input, shape index: {}]
  %s17 = inlined_call_operand.vmem [shape: f32[1,32], index: 17, kind: input, shape index: {}]
  %s18 = inlined_call_operand.hbm [shape: f32[8,16,32], index: 18, kind: output, shape index: {}]
  %s19 = sld [smem:[#allocation0]]
  $region113: #{tpu_custom_call.1} parent=0
    _
  %s21 = ssub.s32 1, %s19
  %s22 = scalar_select 0, %s21, %s19
  $region1: #{tpu_custom_call.1} parent=0
    #allocation3 [shape = 'u8[65536]{0}', space=vmem, size = 0x10000, scoped, tag = 'input window, operand 0']
    #allocation4 [shape = 's32[2]{0}', space=sflag, size = 0x8, scoped, tag = 'scoped memory for tpu_custom_call.1']
    #allocation5 [shape = 's32[2]{0}', space=sflag, size = 0x8, scoped, tag = 'scoped memory for tpu_custom_call.1']
    #allocation6 [shape = 'u8[131072]{0}', space=vmem, size = 0x20000, scoped, tag = 'input window, operand 11, single buffered']
    #allocation7 [shape = 's32[1]{0}', space=sflag, size = 0x4, scoped, tag = 'scoped memory for tpu_custom_call.1']
    #allocation8 [shape = 'u8[65536]{0}', space=vmem, size = 0x10000, scoped, tag = 'output window, operand 0']
    %23 = vsyncpa [#allocation4], 0
    %s24 = scalar_lea.sflag [#allocation4], 1
    %25 = vsyncpa %s24, 0
    %26 = vsyncpa [#allocation7], 0
    %27 = vsyncpa [#allocation5], 0
    %s28 = scalar_lea.sflag [#allocation5], 1
    %29 = vsyncpa %s28, 0
    loop: start=0, step=1, limit=4
    $region2: #{tpu_custom_call.1} parent=1 // loop_pre_header
      _
    $region3: #{tpu_custom_call.1} parent=1 // loop_header
      %s31 = sphi 0, %s35
      %p32 = scmp.ge.s32.totalorder %s31, 4
      %s41 = sphi 0, %s43
      %s44 = sphi 0, %s41
      %s45 = sphi 0, %s44
      %s61 = sphi 0, %s45
      %s65 = sphi 0, %s65
      %s67 = sphi 0, %s65
      %s68 = sphi 0, %s67
      %s82 = sphi 0, %s68
      %s86 = sphi 0, %s86
      %s88 = sphi 0, %s86
      %s89 = sphi 0, %s88
      %s103 = sphi 0, %s89
      %s107 = sphi 0, %s107
      %s109 = sphi 0, %s107
      %s110 = sphi 0, %s109
      %s124 = sphi 0, %s110
      %s128 = sphi 0, %s128
      %s130 = sphi 0, %s128
      %s131 = sphi 0, %s130
      %s145 = sphi 0, %s131
      %s149 = sphi 0, %s149
      %s151 = sphi 0, %s149
      %s152 = sphi 0, %s151
      %s166 = sphi 0, %s152
      %s170 = sphi 0, %s170
      %s172 = sphi 0, %s170
      %s173 = sphi 0, %s172
      %s187 = sphi 0, %s173
      %s191 = sphi 0, %s191
      %s193 = sphi 0, %s191
      %s194 = sphi 0, %s193
      %s208 = sphi 0, %s194
      %s212 = sphi 0, %s212
      %s214 = sphi 0, %s212
      %s215 = sphi 0, %s214
      %s229 = sphi 0, %s215
      %s233 = sphi 0, %s233
      %s235 = sphi 0, %s233
      %s236 = sphi 0, %s235
      %s250 = sphi 0, %s236
      %s254 = sphi 0, %s254
      %s256 = sphi 0, %s254
      %s257 = sphi 0, %s256
      %s271 = sphi 0, %s257
      %s275 = sphi 0, %s275
      %s277 = sphi 0, %s275
      %s278 = sphi 0, %s277
      %s292 = sphi 0, %s278
      %s296 = sphi 0, %s296
      %s298 = sphi 0, %s296
      %s299 = sphi 0, %s298
      %s313 = sphi 0, %s299
      %s317 = sphi 0, %s317
      %s319 = sphi 0, %s317
      %s320 = sphi 0, %s319
      %s334 = sphi 0, %s320
      %s338 = sphi 0, %s338
      %s340 = sphi 0, %s338
      %s341 = sphi 0, %s340
      %s355 = sphi 0, %s341
      %s359 = sphi 0, %s359
      %s361 = sphi 0, %s359
      %s362 = sphi 0, %s361
      %s376 = sphi 0, %s362
      %s380 = sphi 0, %s380
      %s382 = sphi 0, %s380
      %s383 = sphi 0, %s382
      %s397 = sphi 0, %s383
      %s401 = sphi 0, %s401
      %s403 = sphi 0, %s401
      %s404 = sphi 0, %s403
      %s418 = sphi 0, %s404
      %s424 = sphi 0, %s426
      %s427 = sphi 0, %s424
      %s428 = sphi 0, %s427
      %s444 = sphi 0, %s428
    $region4: #{tpu_custom_call.1} parent=1 // loop_header_branch
      %34 = sbr.rel (%p32) target = $region8
    $region5: #{tpu_custom_call.1} parent=1 // loop_body
      %s36 = ssub.s32 %s31, 1
      %s37 = ssub.s32 %s31, 2
      %s38 = sadd.s32 %s31, 1
      %s39 = ssub.s32 %s31, %s38
      %p40 = scmp.eq.s32.totalorder %s39, 0
      %s42 = sadd.s32 %s41, 1
      %s43 = scalar_select %p40, %s41, %s42
      %p46 = pneg %p40
      %p47 = scmp.eq.s32.totalorder %s31, 1
      %p48 = por %p46, %p47
      %p49 = scmp.ne.s32.totalorder %s41, %s44
      %p50 = scmp.eq.s32.totalorder %s31, 0
      %p51 = por %p49, %p50
      %p52 = scmp.ne.s32.totalorder %s41, %s44
      %p53 = scmp.eq.s32.totalorder %s36, 1
      %p54 = por %p52, %p53
      %p55 = scmp.ne.s32.totalorder %s44, %s45
      %p56 = scmp.eq.s32.totalorder %s36, 0
      %p57 = por %p55, %p56
      %p58 = scmp.ne.s32.totalorder %s44, %s45
      %p59 = scmp.eq.s32.totalorder %s37, 1
      %p60 = por %p58, %p59
      %p62 = scmp.ne.s32.totalorder %s45, %s61
      %p63 = scmp.eq.s32.totalorder %s37, 0
      %p64 = por %p62, %p63
      %s66 = sadd.s32 %s65, 1
      %p69 = scmp.eq.s32.totalorder %s31, 1
      %p70 = scmp.ne.s32.totalorder %s65, %s67
      %p71 = scmp.eq.s32.totalorder %s31, 0
      %p72 = por %p70, %p71
      %p73 = scmp.ne.s32.totalorder %s65, %s67
      %p74 = scmp.eq.s32.totalorder %s36, 1
      %p75 = por %p73, %p74
      %p76 = scmp.ne.s32.totalorder %s67, %s68
      %p77 = scmp.eq.s32.totalorder %s36, 0
      %p78 = por %p76, %p77
      %p79 = scmp.ne.s32.totalorder %s67, %s68
      %p80 = scmp.eq.s32.totalorder %s37, 1
      %p81 = por %p79, %p80
      %p83 = scmp.ne.s32.totalorder %s68, %s82
      %p84 = scmp.eq.s32.totalorder %s37, 0
      %p85 = por %p83, %p84
      %s87 = sadd.s32 %s86, 1
      %p90 = scmp.eq.s32.totalorder %s31, 1
      %p91 = scmp.ne.s32.totalorder %s86, %s88
      %p92 = scmp.eq.s32.totalorder %s31, 0
      %p93 = por %p91, %p92
      %p94 = scmp.ne.s32.totalorder %s86, %s88
      %p95 = scmp.eq.s32.totalorder %s36, 1
      %p96 = por %p94, %p95
      %p97 = scmp.ne.s32.totalorder %s88, %s89
      %p98 = scmp.eq.s32.totalorder %s36, 0
      %p99 = por %p97, %p98
      %p100 = scmp.ne.s32.totalorder %s88, %s89
      %p101 = scmp.eq.s32.totalorder %s37, 1
      %p102 = por %p100, %p101
      %p104 = scmp.ne.s32.totalorder %s89, %s103
      %p105 = scmp.eq.s32.totalorder %s37, 0
      %p106 = por %p104, %p105
      %s108 = sadd.s32 %s107, 1
      %p111 = scmp.eq.s32.totalorder %s31, 1
      %p112 = scmp.ne.s32.totalorder %s107, %s109
      %p113 = scmp.eq.s32.totalorder %s31, 0
      %p114 = por %p112, %p113
      %p115 = scmp.ne.s32.totalorder %s107, %s109
      %p116 = scmp.eq.s32.totalorder %s36, 1
      %p117 = por %p115, %p116
      %p118 = scmp.ne.s32.totalorder %s109, %s110
      %p119 = scmp.eq.s32.totalorder %s36, 0
      %p120 = por %p118, %p119
      %p121 = scmp.ne.s32.totalorder %s109, %s110
      %p122 = scmp.eq.s32.totalorder %s37, 1
      %p123 = por %p121, %p122
      %p125 = scmp.ne.s32.totalorder %s110, %s124
      %p126 = scmp.eq.s32.totalorder %s37, 0
      %p127 = por %p125, %p126
      %s129 = sadd.s32 %s128, 1
      %p132 = scmp.eq.s32.totalorder %s31, 1
      %p133 = scmp.ne.s32.totalorder %s128, %s130
      %p134 = scmp.eq.s32.totalorder %s31, 0
      %p135 = por %p133, %p134
      %p136 = scmp.ne.s32.totalorder %s128, %s130
      %p137 = scmp.eq.s32.totalorder %s36, 1
      %p138 = por %p136, %p137
      %p139 = scmp.ne.s32.totalorder %s130, %s131
      %p140 = scmp.eq.s32.totalorder %s36, 0
      %p141 = por %p139, %p140
      %p142 = scmp.ne.s32.totalorder %s130, %s131
      %p143 = scmp.eq.s32.totalorder %s37, 1
      %p144 = por %p142, %p143
      %p146 = scmp.ne.s32.totalorder %s131, %s145
      %p147 = scmp.eq.s32.totalorder %s37, 0
      %p148 = por %p146, %p147
      %s150 = sadd.s32 %s149, 1
      %p153 = scmp.eq.s32.totalorder %s31, 1
      %p154 = scmp.ne.s32.totalorder %s149, %s151
      %p155 = scmp.eq.s32.totalorder %s31, 0
      %p156 = por %p154, %p155
      %p157 = scmp.ne.s32.totalorder %s149, %s151
      %p158 = scmp.eq.s32.totalorder %s36, 1
      %p159 = por %p157, %p158
      %p160 = scmp.ne.s32.totalorder %s151, %s152
      %p161 = scmp.eq.s32.totalorder %s36, 0
      %p162 = por %p160, %p161
      %p163 = scmp.ne.s32.totalorder %s151, %s152
      %p164 = scmp.eq.s32.totalorder %s37, 1
      %p165 = por %p163, %p164
      %p167 = scmp.ne.s32.totalorder %s152, %s166
      %p168 = scmp.eq.s32.totalorder %s37, 0
      %p169 = por %p167, %p168
      %s171 = sadd.s32 %s170, 1
      %p174 = scmp.eq.s32.totalorder %s31, 1
      %p175 = scmp.ne.s32.totalorder %s170, %s172
      %p176 = scmp.eq.s32.totalorder %s31, 0
      %p177 = por %p175, %p176
      %p178 = scmp.ne.s32.totalorder %s170, %s172
      %p179 = scmp.eq.s32.totalorder %s36, 1
      %p180 = por %p178, %p179
      %p181 = scmp.ne.s32.totalorder %s172, %s173
      %p182 = scmp.eq.s32.totalorder %s36, 0
      %p183 = por %p181, %p182
      %p184 = scmp.ne.s32.totalorder %s172, %s173
      %p185 = scmp.eq.s32.totalorder %s37, 1
      %p186 = por %p184, %p185
      %p188 = scmp.ne.s32.totalorder %s173, %s187
      %p189 = scmp.eq.s32.totalorder %s37, 0
      %p190 = por %p188, %p189
      %s192 = sadd.s32 %s191, 1
      %p195 = scmp.eq.s32.totalorder %s31, 1
      %p196 = scmp.ne.s32.totalorder %s191, %s193
      %p197 = scmp.eq.s32.totalorder %s31, 0
      %p198 = por %p196, %p197
      %p199 = scmp.ne.s32.totalorder %s191, %s193
      %p200 = scmp.eq.s32.totalorder %s36, 1
      %p201 = por %p199, %p200
      %p202 = scmp.ne.s32.totalorder %s193, %s194
      %p203 = scmp.eq.s32.totalorder %s36, 0
      %p204 = por %p202, %p203
      %p205 = scmp.ne.s32.totalorder %s193, %s194
      %p206 = scmp.eq.s32.totalorder %s37, 1
      %p207 = por %p205, %p206
      %p209 = scmp.ne.s32.totalorder %s194, %s208
      %p210 = scmp.eq.s32.totalorder %s37, 0
      %p211 = por %p209, %p210
      %s213 = sadd.s32 %s212, 1
      %p216 = scmp.eq.s32.totalorder %s31, 1
      %p217 = scmp.ne.s32.totalorder %s212, %s214
      %p218 = scmp.eq.s32.totalorder %s31, 0
      %p219 = por %p217, %p218
      %p220 = scmp.ne.s32.totalorder %s212, %s214
      %p221 = scmp.eq.s32.totalorder %s36, 1
      %p222 = por %p220, %p221
      %p223 = scmp.ne.s32.totalorder %s214, %s215
      %p224 = scmp.eq.s32.totalorder %s36, 0
      %p225 = por %p223, %p224
      %p226 = scmp.ne.s32.totalorder %s214, %s215
      %p227 = scmp.eq.s32.totalorder %s37, 1
      %p228 = por %p226, %p227
      %p230 = scmp.ne.s32.totalorder %s215, %s229
      %p231 = scmp.eq.s32.totalorder %s37, 0
      %p232 = por %p230, %p231
      %s234 = sadd.s32 %s233, 1
      %p237 = scmp.eq.s32.totalorder %s31, 1
      %p238 = scmp.ne.s32.totalorder %s233, %s235
      %p239 = scmp.eq.s32.totalorder %s31, 0
      %p240 = por %p238, %p239
      %p241 = scmp.ne.s32.totalorder %s233, %s235
      %p242 = scmp.eq.s32.totalorder %s36, 1
      %p243 = por %p241, %p242
      %p244 = scmp.ne.s32.totalorder %s235, %s236
      %p245 = scmp.eq.s32.totalorder %s36, 0
      %p246 = por %p244, %p245
      %p247 = scmp.ne.s32.totalorder %s235, %s236
      %p248 = scmp.eq.s32.totalorder %s37, 1
      %p249 = por %p247, %p248
      %p251 = scmp.ne.s32.totalorder %s236, %s250
      %p252 = scmp.eq.s32.totalorder %s37, 0
      %p253 = por %p251, %p252
      %s255 = sadd.s32 %s254, 1
      %p258 = scmp.eq.s32.totalorder %s31, 1
      %p259 = scmp.ne.s32.totalorder %s254, %s256
      %p260 = scmp.eq.s32.totalorder %s31, 0
      %p261 = por %p259, %p260
      %p262 = scmp.ne.s32.totalorder %s254, %s256
      %p263 = scmp.eq.s32.totalorder %s36, 1
      %p264 = por %p262, %p263
      %p265 = scmp.ne.s32.totalorder %s256, %s257
      %p266 = scmp.eq.s32.totalorder %s36, 0
      %p267 = por %p265, %p266
      %p268 = scmp.ne.s32.totalorder %s256, %s257
      %p269 = scmp.eq.s32.totalorder %s37, 1
      %p270 = por %p268, %p269
      %p272 = scmp.ne.s32.totalorder %s257, %s271
      %p273 = scmp.eq.s32.totalorder %s37, 0
      %p274 = por %p272, %p273
      %s276 = sadd.s32 %s275, 1
      %p279 = scmp.eq.s32.totalorder %s31, 1
      %p280 = scmp.ne.s32.totalorder %s275, %s277
      %p281 = scmp.eq.s32.totalorder %s31, 0
      %p282 = por %p280, %p281
      %p283 = scmp.ne.s32.totalorder %s275, %s277
      %p284 = scmp.eq.s32.totalorder %s36, 1
      %p285 = por %p283, %p284
      %p286 = scmp.ne.s32.totalorder %s277, %s278
      %p287 = scmp.eq.s32.totalorder %s36, 0
      %p288 = por %p286, %p287
      %p289 = scmp.ne.s32.totalorder %s277, %s278
      %p290 = scmp.eq.s32.totalorder %s37, 1
      %p291 = por %p289, %p290
      %p293 = scmp.ne.s32.totalorder %s278, %s292
      %p294 = scmp.eq.s32.totalorder %s37, 0
      %p295 = por %p293, %p294
      %s297 = sadd.s32 %s296, 1
      %p300 = scmp.eq.s32.totalorder %s31, 1
      %p301 = scmp.ne.s32.totalorder %s296, %s298
      %p302 = scmp.eq.s32.totalorder %s31, 0
      %p303 = por %p301, %p302
      %p304 = scmp.ne.s32.totalorder %s296, %s298
      %p305 = scmp.eq.s32.totalorder %s36, 1
      %p306 = por %p304, %p305
      %p307 = scmp.ne.s32.totalorder %s298, %s299
      %p308 = scmp.eq.s32.totalorder %s36, 0
      %p309 = por %p307, %p308
      %p310 = scmp.ne.s32.totalorder %s298, %s299
      %p311 = scmp.eq.s32.totalorder %s37, 1
      %p312 = por %p310, %p311
      %p314 = scmp.ne.s32.totalorder %s299, %s313
      %p315 = scmp.eq.s32.totalorder %s37, 0
      %p316 = por %p314, %p315
      %s318 = sadd.s32 %s317, 1
      %p321 = scmp.eq.s32.totalorder %s31, 1
      %p322 = scmp.ne.s32.totalorder %s317, %s319
      %p323 = scmp.eq.s32.totalorder %s31, 0
      %p324 = por %p322, %p323
      %p325 = scmp.ne.s32.totalorder %s317, %s319
      %p326 = scmp.eq.s32.totalorder %s36, 1
      %p327 = por %p325, %p326
      %p328 = scmp.ne.s32.totalorder %s319, %s320
      %p329 = scmp.eq.s32.totalorder %s36, 0
      %p330 = por %p328, %p329
      %p331 = scmp.ne.s32.totalorder %s319, %s320
      %p332 = scmp.eq.s32.totalorder %s37, 1
      %p333 = por %p331, %p332
      %p335 = scmp.ne.s32.totalorder %s320, %s334
      %p336 = scmp.eq.s32.totalorder %s37, 0
      %p337 = por %p335, %p336
      %s339 = sadd.s32 %s338, 1
      %p342 = scmp.eq.s32.totalorder %s31, 1
      %p343 = scmp.ne.s32.totalorder %s338, %s340
      %p344 = scmp.eq.s32.totalorder %s31, 0
      %p345 = por %p343, %p344
      %p346 = scmp.ne.s32.totalorder %s338, %s340
      %p347 = scmp.eq.s32.totalorder %s36, 1
      %p348 = por %p346, %p347
      %p349 = scmp.ne.s32.totalorder %s340, %s341
      %p350 = scmp.eq.s32.totalorder %s36, 0
      %p351 = por %p349, %p350
      %p352 = scmp.ne.s32.totalorder %s340, %s341
      %p353 = scmp.eq.s32.totalorder %s37, 1
      %p354 = por %p352, %p353
      %p356 = scmp.ne.s32.totalorder %s341, %s355
      %p357 = scmp.eq.s32.totalorder %s37, 0
      %p358 = por %p356, %p357
      %s360 = sadd.s32 %s359, 1
      %p363 = scmp.eq.s32.totalorder %s31, 1
      %p364 = scmp.ne.s32.totalorder %s359, %s361
      %p365 = scmp.eq.s32.totalorder %s31, 0
      %p366 = por %p364, %p365
      %p367 = scmp.ne.s32.totalorder %s359, %s361
      %p368 = scmp.eq.s32.totalorder %s36, 1
      %p369 = por %p367, %p368
      %p370 = scmp.ne.s32.totalorder %s361, %s362
      %p371 = scmp.eq.s32.totalorder %s36, 0
      %p372 = por %p370, %p371
      %p373 = scmp.ne.s32.totalorder %s361, %s362
      %p374 = scmp.eq.s32.totalorder %s37, 1
      %p375 = por %p373, %p374
      %p377 = scmp.ne.s32.totalorder %s362, %s376
      %p378 = scmp.eq.s32.totalorder %s37, 0
      %p379 = por %p377, %p378
      %s381 = sadd.s32 %s380, 1
      %p384 = scmp.eq.s32.totalorder %s31, 1
      %p385 = scmp.ne.s32.totalorder %s380, %s382
      %p386 = scmp.eq.s32.totalorder %s31, 0
      %p387 = por %p385, %p386
      %p388 = scmp.ne.s32.totalorder %s380, %s382
      %p389 = scmp.eq.s32.totalorder %s36, 1
      %p390 = por %p388, %p389
      %p391 = scmp.ne.s32.totalorder %s382, %s383
      %p392 = scmp.eq.s32.totalorder %s36, 0
      %p393 = por %p391, %p392
      %p394 = scmp.ne.s32.totalorder %s382, %s383
      %p395 = scmp.eq.s32.totalorder %s37, 1
      %p396 = por %p394, %p395
      %p398 = scmp.ne.s32.totalorder %s383, %s397
      %p399 = scmp.eq.s32.totalorder %s37, 0
      %p400 = por %p398, %p399
      %s402 = sadd.s32 %s401, 1
      %p405 = scmp.eq.s32.totalorder %s31, 1
      %p406 = scmp.ne.s32.totalorder %s401, %s403
      %p407 = scmp.eq.s32.totalorder %s31, 0
      %p408 = por %p406, %p407
      %p409 = scmp.ne.s32.totalorder %s401, %s403
      %p410 = scmp.eq.s32.totalorder %s36, 1
      %p411 = por %p409, %p410
      %p412 = scmp.ne.s32.totalorder %s403, %s404
      %p413 = scmp.eq.s32.totalorder %s36, 0
      %p414 = por %p412, %p413
      %p415 = scmp.ne.s32.totalorder %s403, %s404
      %p416 = scmp.eq.s32.totalorder %s37, 1
      %p417 = por %p415, %p416
      %p419 = scmp.ne.s32.totalorder %s404, %s418
      %p420 = scmp.eq.s32.totalorder %s37, 0
      %p421 = por %p419, %p420
      %s422 = ssub.s32 %s31, %s38
      %p423 = scmp.eq.s32.totalorder %s422, 0
      %s425 = sadd.s32 %s424, 1
      %s426 = scalar_select %p423, %s424, %s425
      %p429 = pneg %p423
      %p430 = scmp.eq.s32.totalorder %s31, 1
      %p431 = por %p429, %p430
      %p432 = scmp.ne.s32.totalorder %s424, %s427
      %p433 = scmp.eq.s32.totalorder %s31, 0
      %p434 = por %p432, %p433
      %p435 = scmp.ne.s32.totalorder %s424, %s427
      %p436 = scmp.eq.s32.totalorder %s36, 1
      %p437 = por %p435, %p436
      %p438 = scmp.ne.s32.totalorder %s427, %s428
      %p439 = scmp.eq.s32.totalorder %s36, 0
      %p440 = por %p438, %p439
      %p441 = scmp.ne.s32.totalorder %s427, %s428
      %p442 = scmp.eq.s32.totalorder %s37, 1
      %p443 = por %p441, %p442
      %p445 = scmp.ne.s32.totalorder %s428, %s444
      %p446 = scmp.eq.s32.totalorder %s37, 0
      %p447 = por %p445, %p446
      %p448 = scmp.le.s32.totalorder 1, %s31
      %p449 = scmp.lt.s32.totalorder %s31, 3
      %p450 = pnand %p448, %p449
      %p451 = pneg %p450
      // Predicated region
      $region9: #{tpu_custom_call.1} parent=5 // pred_check
        _
      $region10: #{tpu_custom_call.1} parent=5 // pred_check_branch
        %453 = sbr.rel (%p450) target = $region12
      $region11: #{tpu_custom_call.1} parent=5 // pred_region
        %s454 = ssub.s32 %s31, 1
        // Predicated region
        $region13: #{tpu_custom_call.1} parent=11 // pred_check
          %p455 = pneg %p78
        $region14: #{tpu_custom_call.1} parent=11 // pred_check_branch
          %457 = sbr.rel (%p455) target = $region16
        $region15: #{tpu_custom_call.1} parent=11 // pred_region
          _
        $region16: #{tpu_custom_call.1} parent=11 // pred_fallthru
          _
        // Predicated region
        $region17: #{tpu_custom_call.1} parent=11 // pred_check
          %p458 = pneg %p99
        $region18: #{tpu_custom_call.1} parent=11 // pred_check_branch
          %460 = sbr.rel (%p458) target = $region20
        $region19: #{tpu_custom_call.1} parent=11 // pred_region
          _
        $region20: #{tpu_custom_call.1} parent=11 // pred_fallthru
          _
        // Predicated region
        $region21: #{tpu_custom_call.1} parent=11 // pred_check
          %p461 = pneg %p120
        $region22: #{tpu_custom_call.1} parent=11 // pred_check_branch
          %463 = sbr.rel (%p461) target = $region24
        $region23: #{tpu_custom_call.1} parent=11 // pred_region
          _
        $region24: #{tpu_custom_call.1} parent=11 // pred_fallthru
          _
        // Predicated region
        $region25: #{tpu_custom_call.1} parent=11 // pred_check
          %p464 = pneg %p141
        $region26: #{tpu_custom_call.1} parent=11 // pred_check_branch
          %466 = sbr.rel (%p464) target = $region28
        $region27: #{tpu_custom_call.1} parent=11 // pred_region
          _
        $region28: #{tpu_custom_call.1} parent=11 // pred_fallthru
          _
        // Predicated region
        $region29: #{tpu_custom_call.1} parent=11 // pred_check
          %p467 = pneg %p162
        $region30: #{tpu_custom_call.1} parent=11 // pred_check_branch
          %469 = sbr.rel (%p467) target = $region32
        $region31: #{tpu_custom_call.1} parent=11 // pred_region
          _
        $region32: #{tpu_custom_call.1} parent=11 // pred_fallthru
          _
        // Predicated region
        $region33: #{tpu_custom_call.1} parent=11 // pred_check
          %p470 = pneg %p183
        $region34: #{tpu_custom_call.1} parent=11 // pred_check_branch
          %472 = sbr.rel (%p470) target = $region36
        $region35: #{tpu_custom_call.1} parent=11 // pred_region
          _
        $region36: #{tpu_custom_call.1} parent=11 // pred_fallthru
          _
        // Predicated region
        $region37: #{tpu_custom_call.1} parent=11 // pred_check
          %p473 = pneg %p204
        $region38: #{tpu_custom_call.1} parent=11 // pred_check_branch
          %475 = sbr.rel (%p473) target = $region40
        $region39: #{tpu_custom_call.1} parent=11 // pred_region
          _
        $region40: #{tpu_custom_call.1} parent=11 // pred_fallthru
          _
        // Predicated region
        $region41: #{tpu_custom_call.1} parent=11 // pred_check
          %p476 = pneg %p225
        $region42: #{tpu_custom_call.1} parent=11 // pred_check_branch
          %478 = sbr.rel (%p476) target = $region44
        $region43: #{tpu_custom_call.1} parent=11 // pred_region
          _
        $region44: #{tpu_custom_call.1} parent=11 // pred_fallthru
          _
        // Predicated region
        $region45: #{tpu_custom_call.1} parent=11 // pred_check
          %p479 = pneg %p246
        $region46: #{tpu_custom_call.1} parent=11 // pred_check_branch
          %481 = sbr.rel (%p479) target = $region48
        $region47: #{tpu_custom_call.1} parent=11 // pred_region
          _
        $region48: #{tpu_custom_call.1} parent=11 // pred_fallthru
          _
        // Predicated region
        $region49: #{tpu_custom_call.1} parent=11 // pred_check
          %p482 = pneg %p267
        $region50: #{tpu_custom_call.1} parent=11 // pred_check_branch
          %484 = sbr.rel (%p482) target = $region52
        $region51: #{tpu_custom_call.1} parent=11 // pred_region
          _
        $region52: #{tpu_custom_call.1} parent=11 // pred_fallthru
          _
        // Predicated region
        $region53: #{tpu_custom_call.1} parent=11 // pred_check
          %p485 = pneg %p288
        $region54: #{tpu_custom_call.1} parent=11 // pred_check_branch
          %487 = sbr.rel (%p485) target = $region56
        $region55: #{tpu_custom_call.1} parent=11 // pred_region
          %s489 = ssub.s32 4096, 4096
          %490 = vsyncadd [#allocation7], %s489
          %s491 = sshll.u32 [#allocation6], 4
          %s492 = int_to_ptr.vmem [resolvable:$true] %s491
          %497 = dma.hbm_to_vmem [thread:$0]  %s11, 4096, %s492, [#allocation7], 128, 128, 8
        $region56: #{tpu_custom_call.1} parent=11 // pred_fallthru
          _
        // Predicated region
        $region57: #{tpu_custom_call.1} parent=11 // pred_check
          %p498 = pneg %p309
        $region58: #{tpu_custom_call.1} parent=11 // pred_check_branch
          %500 = sbr.rel (%p498) target = $region60
        $region59: #{tpu_custom_call.1} parent=11 // pred_region
          _
        $region60: #{tpu_custom_call.1} parent=11 // pred_fallthru
          _
        // Predicated region
        $region61: #{tpu_custom_call.1} parent=11 // pred_check
          %p501 = pneg %p330
        $region62: #{tpu_custom_call.1} parent=11 // pred_check_branch
          %503 = sbr.rel (%p501) target = $region64
        $region63: #{tpu_custom_call.1} parent=11 // pred_region
          _
        $region64: #{tpu_custom_call.1} parent=11 // pred_fallthru
          _
        // Predicated region
        $region65: #{tpu_custom_call.1} parent=11 // pred_check
          %p504 = pneg %p351
        $region66: #{tpu_custom_call.1} parent=11 // pred_check_branch
          %506 = sbr.rel (%p504) target = $region68
        $region67: #{tpu_custom_call.1} parent=11 // pred_region
          _
        $region68: #{tpu_custom_call.1} parent=11 // pred_fallthru
          _
        // Predicated region
        $region69: #{tpu_custom_call.1} parent=11 // pred_check
          %p507 = pneg %p372
        $region70: #{tpu_custom_call.1} parent=11 // pred_check_branch
          %509 = sbr.rel (%p507) target = $region72
        $region71: #{tpu_custom_call.1} parent=11 // pred_region
          _
        $region72: #{tpu_custom_call.1} parent=11 // pred_fallthru
          _
        // Predicated region
        $region73: #{tpu_custom_call.1} parent=11 // pred_check
          %p510 = pneg %p393
        $region74: #{tpu_custom_call.1} parent=11 // pred_check_branch
          %512 = sbr.rel (%p510) target = $region76
        $region75: #{tpu_custom_call.1} parent=11 // pred_region
          _
        $region76: #{tpu_custom_call.1} parent=11 // pred_fallthru
          _
        // Predicated region
        $region77: #{tpu_custom_call.1} parent=11 // pred_check
          %p513 = pneg %p414
        $region78: #{tpu_custom_call.1} parent=11 // pred_check_branch
          %515 = sbr.rel (%p513) target = $region80
        $region79: #{tpu_custom_call.1} parent=11 // pred_region
          _
        $region80: #{tpu_custom_call.1} parent=11 // pred_fallthru
          _
      $region12: #{tpu_custom_call.1} parent=5 // pred_fallthru
        _
      %p516 = scmp.lt.s32.totalorder %s31, 2
      // Predicated region
      $region81: #{tpu_custom_call.1} parent=5 // pred_check
        %p517 = pneg %p516
      $region82: #{tpu_custom_call.1} parent=5 // pred_check_branch
        %519 = sbr.rel (%p517) target = $region84
      $region83: #{tpu_custom_call.1} parent=5 // pred_region
        // Predicated region
        $region85: #{tpu_custom_call.1} parent=83 // pred_check
          %p520 = pneg %p51
        $region86: #{tpu_custom_call.1} parent=83 // pred_check_branch
          %522 = sbr.rel (%p520) target = $region88
        $region87: #{tpu_custom_call.1} parent=83 // pred_region
          %s523 = sand.u32 %s41, 1
          %s524 = scalar_lea.sflag [#allocation4], %s523
          %s525 = sand.u32 %s41, 1
          %s526 = smul.addr %s525, 64
          %s527 = scalar_lea.vmem [#allocation3], %s526
          %s528 = smul.u32 4, %s31
          %s530 = ssub.s32 1024, 1024
          %531 = vsyncadd %s524, %s530
          %s532 = smul.addr %s528, 2
          %s533 = smul.addr %s532, 128
          %s534 = scalar_lea.hbm %s0, %s533
          %s535 = sshll.u32 %s527, 4
          %s536 = int_to_ptr.vmem [resolvable:$true] %s535
          %541 = dma.hbm_to_vmem [thread:$0]  %s534, 1024, %s536, %s524, 128, 128, 8
        $region88: #{tpu_custom_call.1} parent=83 // pred_fallthru
          _
      $region84: #{tpu_custom_call.1} parent=5 // pred_fallthru
        _
      %p542 = scmp.le.s32.totalorder 1, %s31
      %p543 = scmp.lt.s32.totalorder %s31, 3
      %p544 = pnand %p542, %p543
      %p545 = pneg %p544
      // Predicated region
      $region89: #{tpu_custom_call.1} parent=5 // pred_check
        _
      $region90: #{tpu_custom_call.1} parent=5 // pred_check_branch
        %547 = sbr.rel (%p544) target = $region92
      $region91: #{tpu_custom_call.1} parent=5 // pred_region
        %s548 = ssub.s32 %s31, 1
        %s549 = sand.u32 %s44, 1
        %s550 = scalar_lea.sflag [#allocation4], %s549
        %s551 = sand.u32 %s44, 1
        %s552 = smul.addr %s551, 64
        %s553 = scalar_lea.vmem [#allocation3], %s552
        // Predicated region
        $region93: #{tpu_custom_call.1} parent=91 // pred_check
          %p554 = pneg %p57
        $region94: #{tpu_custom_call.1} parent=91 // pred_check_branch
          %556 = sbr.rel (%p554) target = $region96
        $region95: #{tpu_custom_call.1} parent=91 // pred_region
          %557 = dma.done %s550, 1024
        $region96: #{tpu_custom_call.1} parent=91 // pred_fallthru
          _
        // Predicated region
        $region97: #{tpu_custom_call.1} parent=91 // pred_check
          %p558 = pneg %p288
        $region98: #{tpu_custom_call.1} parent=91 // pred_check_branch
          %560 = sbr.rel (%p558) target = $region100
        $region99: #{tpu_custom_call.1} parent=91 // pred_region
          %561 = dma.done [#allocation7], 4096
        $region100: #{tpu_custom_call.1} parent=91 // pred_fallthru
          _
        %s562 = sand.u32 %s44, 1
        %s563 = scalar_lea.sflag [#allocation4], %s562
        %s564 = sand.u32 %s44, 1
        %s565 = smul.addr %s564, 64
        %s566 = scalar_lea.vmem [#allocation3], %s565
        %p567 = pneg %p57
        %p568 = pneg %p54
        %p569 = pneg %p78
        %p570 = pneg %p75
        %p571 = pneg %p99
        %p572 = pneg %p96
        %p573 = pneg %p120
        %p574 = pneg %p117
        %p575 = pneg %p141
        %p576 = pneg %p138
        %p577 = pneg %p162
        %p578 = pneg %p159
        %p579 = pneg %p183
        %p580 = pneg %p180
        %p581 = pneg %p204
        %p582 = pneg %p201
        %p583 = pneg %p225
        %p584 = pneg %p222
        %p585 = pneg %p246
        %p586 = pneg %p243
        %p587 = pneg %p267
        %p588 = pneg %p264
        %p589 = pneg %p288
        %p590 = pneg %p285
        %p591 = pneg %p309
        %p592 = pneg %p306
        %p593 = pneg %p330
        %p594 = pneg %p327
        %p595 = pneg %p351
        %p596 = pneg %p348
        %p597 = pneg %p372
        %p598 = pneg %p369
        %p599 = pneg %p393
        %p600 = pneg %p390
        %p601 = pneg %p414
        %p602 = pneg %p411
        %p603 = pneg %p440
        %p604 = pneg %p437
        %s605 = sand.u32 %s427, 1
        %s606 = scalar_lea.sflag [#allocation5], %s605
        %s607 = sand.u32 %s427, 1
        %s608 = smul.addr %s607, 64
        %s609 = scalar_lea.vmem [#allocation8], %s608
        %s610 = smul.u32 4, %s36
        %s611 = smul.u32 4, %s36
        %v613 = vld [vmem:[%s553] sm:$0xff]
        %v614 = vld [vmem:[%s553 + $0x8] sm:$0xff]
        %v615 = vld [vmem:[%s553 + $0x10] sm:$0xff]
        %v616 = vld [vmem:[%s553 + $0x18] sm:$0xff]
        %v617 = vld [vmem:[%s553 + $0x20] sm:$0xff]
        %v618 = vld [vmem:[%s553 + $0x28] sm:$0xff]
        %v619 = vld [vmem:[%s553 + $0x30] sm:$0xff]
        %v620 = vld [vmem:[%s553 + $0x38] sm:$0xff]
        %v621 = vld [vmem:[%s1] sm:$0x1]
        %v622 = vld [vmem:[%s2] sm:$0x1]
        %vm623 = vcmask 261120
        %v624 = vsel %vm623, %v613, 0.0
        %625 = vadd.xlane.f32.xlu0 %v624
        %v626 = vpop.xlane.xlu0 %625
        %v627 = vsel %vm623, %v614, 0.0
        %628 = vadd.xlane.f32.xlu0 %v627
        %v629 = vpop.xlane.xlu0 %628
        %v630 = vsel %vm623, %v615, 0.0
        %631 = vadd.xlane.f32.xlu0 %v630
        %v632 = vpop.xlane.xlu0 %631
        %v633 = vsel %vm623, %v616, 0.0
        %634 = vadd.xlane.f32.xlu0 %v633
        %v635 = vpop.xlane.xlu0 %634
        %v636 = vsel %vm623, %v617, 0.0
        %637 = vadd.xlane.f32.xlu0 %v636
        %v638 = vpop.xlane.xlu0 %637
        %v639 = vsel %vm623, %v618, 0.0
        %640 = vadd.xlane.f32.xlu0 %v639
        %v641 = vpop.xlane.xlu0 %640
        %v642 = vsel %vm623, %v619, 0.0
        %643 = vadd.xlane.f32.xlu0 %v642
        %v644 = vpop.xlane.xlu0 %643
        %v645 = vsel %vm623, %v620, 0.0
        %646 = vadd.xlane.f32.xlu0 %v645
        %v647 = vpop.xlane.xlu0 %646
        %v648 = vrcp.pop 32.0
        %v649 = vmul.f32 %v626, %v648
        %v650 = vmul.f32 %v629, %v648
        %v651 = vmul.f32 %v632, %v648
        %v652 = vmul.f32 %v635, %v648
        %v653 = vmul.f32 %v638, %v648
        %v654 = vmul.f32 %v641, %v648
        %v655 = vmul.f32 %v644, %v648
        %v656 = vmul.f32 %v647, %v648
        %v657 = vsub.f32 %v613, %v649
        %v658 = vsub.f32 %v614, %v650
        %v659 = vsub.f32 %v615, %v651
        %v660 = vsub.f32 %v616, %v652
        %v661 = vsub.f32 %v617, %v653
        %v662 = vsub.f32 %v618, %v654
        %v663 = vsub.f32 %v619, %v655
        %v664 = vsub.f32 %v620, %v656
        %v665 = vmul.f32 %v657, %v657
        %v666 = vmul.f32 %v658, %v658
        %v667 = vmul.f32 %v659, %v659
        %v668 = vmul.f32 %v660, %v660
        %v669 = vmul.f32 %v661, %v661
        %v670 = vmul.f32 %v662, %v662
        %v671 = vmul.f32 %v663, %v663
        %v672 = vmul.f32 %v664, %v664
        %v673 = vsel %vm623, %v665, 0.0
        %674 = vadd.xlane.f32.xlu0 %v673
        %v675 = vpop.xlane.xlu0 %674
        %v676 = vsel %vm623, %v666, 0.0
        %677 = vadd.xlane.f32.xlu0 %v676
        %v678 = vpop.xlane.xlu0 %677
        %v679 = vsel %vm623, %v667, 0.0
        %680 = vadd.xlane.f32.xlu0 %v679
        %v681 = vpop.xlane.xlu0 %680
        %v682 = vsel %vm623, %v668, 0.0
        %683 = vadd.xlane.f32.xlu0 %v682
        %v684 = vpop.xlane.xlu0 %683
        %v685 = vsel %vm623, %v669, 0.0
        %686 = vadd.xlane.f32.xlu0 %v685
        %v687 = vpop.xlane.xlu0 %686
        %v688 = vsel %vm623, %v670, 0.0
        %689 = vadd.xlane.f32.xlu0 %v688
        %v690 = vpop.xlane.xlu0 %689
        %v691 = vsel %vm623, %v671, 0.0
        %692 = vadd.xlane.f32.xlu0 %v691
        %v693 = vpop.xlane.xlu0 %692
        %v694 = vsel %vm623, %v672, 0.0
        %695 = vadd.xlane.f32.xlu0 %v694
        %v696 = vpop.xlane.xlu0 %695
        %v697 = vmul.f32 %v675, %v648
        %v698 = vmul.f32 %v678, %v648
        %v699 = vmul.f32 %v681, %v648
        %v700 = vmul.f32 %v684, %v648
        %v701 = vmul.f32 %v687, %v648
        %v702 = vmul.f32 %v690, %v648
        %v703 = vmul.f32 %v693, %v648
        %v704 = vmul.f32 %v696, %v648
        %v705 = vadd.f32 %v697, 1e-05
        %v706 = vadd.f32 %v698, 1e-05
        %v707 = vadd.f32 %v699, 1e-05
        %v708 = vadd.f32 %v700, 1e-05
        %v709 = vadd.f32 %v701, 1e-05
        %v710 = vadd.f32 %v702, 1e-05
        %v711 = vadd.f32 %v703, 1e-05
        %v712 = vadd.f32 %v704, 1e-05
        %v713 = vrsqrt.pop %v705
        %v714 = vrsqrt.pop %v706
        %v715 = vrsqrt.pop %v707
        %v716 = vrsqrt.pop %v708
        %v717 = vrsqrt.pop %v709
        %v718 = vrsqrt.pop %v710
        %v719 = vrsqrt.pop %v711
        %v720 = vrsqrt.pop %v712
        %v721 = vmul.f32 %v657, %v713
        %v722 = vmul.f32 %v658, %v714
        %v723 = vmul.f32 %v659, %v715
        %v724 = vmul.f32 %v660, %v716
        %v725 = vmul.f32 %v661, %v717
        %v726 = vmul.f32 %v662, %v718
        %v727 = vmul.f32 %v663, %v719
        %v728 = vmul.f32 %v664, %v720
        %v730 = vlaneseq
        %v731 = vshrl.u32 %v730, 7
        %v732 = vsub.s32 0, %v731
        %v733 = vrot.slane %v621, %v732
        %v735 = vmul.f32 %v721, %v733
        %v736 = vmul.f32 %v722, %v733
        %v737 = vmul.f32 %v723, %v733
        %v738 = vmul.f32 %v724, %v733
        %v739 = vmul.f32 %v725, %v733
        %v740 = vmul.f32 %v726, %v733
        %v741 = vmul.f32 %v727, %v733
        %v742 = vmul.f32 %v728, %v733
        %v744 = vlaneseq
        %v745 = vshrl.u32 %v744, 7
        %v746 = vsub.s32 0, %v745
        %v747 = vrot.slane %v622, %v746
        %v749 = vadd.f32 %v735, %v747
        %v750 = vadd.f32 %v736, %v747
        %v751 = vadd.f32 %v737, %v747
        %v752 = vadd.f32 %v738, %v747
        %v753 = vadd.f32 %v739, %v747
        %v754 = vadd.f32 %v740, %v747
        %v755 = vadd.f32 %v741, %v747
        %v756 = vadd.f32 %v742, %v747
        %v757 = vpack.c.bf16 %v750, %v749
        %v758 = vpack.c.bf16 %v752, %v751
        %v759 = vpack.c.bf16 %v754, %v753
        %v760 = vpack.c.bf16 %v756, %v755
        %v761 = vld [vmem:[%s3] sm:$0xf]
        %v762 = vld [vmem:[%s3 + $0x4] sm:$0xf]
        %v763 = vld [vmem:[%s3 + $0x8] sm:$0xf]
        %v764 = vld [vmem:[%s3 + $0xc] sm:$0xf]
        %v765 = vld [vmem:[%s6] sm:$0x1]
        %v767 = vlaneseq
        %v768 = vshrl.u32 %v767, 7
        %v769 = vsub.s32 0, %v768
        %v770 = vrot.slane %v765, %v769
        %v776 = vunpack.c.l.b16 %v761
        %v777 = vunpack.c.l.b16 %v762
        %v778 = vunpack.c.l.b16 %v763
        %v779 = vunpack.c.l.b16 %v764
        %v780 = vpack.c.b16 %v777, %v776
        %v781 = vpack.c.b16 %v779, %v778
        %v785 = vsel %vm623, %v757, 0
        %v788 = vsel %vm623, %v758, 0
        %v791 = vsel %vm623, %v759, 0
        %v794 = vsel %vm623, %v760, 0
        %796 = vmatprep.subr.bf16.mxu0 0
        %797 = vmatpush1.bf16.msra.mxu0 %v780
        %798 = vmatprep.subr.bf16.mxu0 0
        %799 = vmatpush1.bf16.msra.mxu0 %v781
        %800 = vmatprep.subr.bf16.mxu0 0
        %801 = vmatpush1.bf16.msra.mxu0 0
        %802 = vmatprep.subr.bf16.mxu0 0
        %803 = vmatpush1.bf16.msra.mxu0 0
        %804 = vmatprep.subr.bf16.mxu0 0
        %805 = vmatpush1.bf16.msra.mxu0 0
        %806 = vmatprep.subr.bf16.mxu0 0
        %807 = vmatpush1.bf16.msra.mxu0 0
        %808 = vmatprep.subr.bf16.mxu0 0
        %809 = vmatpush1.bf16.msra.mxu0 0
        %810 = vmatprep.subr.bf16.mxu0 0
        %811 = vmatpush1.bf16.msra.mxu0 0
        %812 = vmatprep.subr.bf16.mxu0 0
        %813 = vmatpush1.bf16.msra.mxu0 0
        %814 = vmatprep.subr.bf16.mxu0 0
        %815 = vmatpush1.bf16.msra.mxu0 0
        %816 = vmatprep.subr.bf16.mxu0 0
        %817 = vmatpush1.bf16.msra.mxu0 0
        %818 = vmatprep.subr.bf16.mxu0 0
        %819 = vmatpush1.bf16.msra.mxu0 0
        %820 = vmatprep.subr.bf16.mxu0 0
        %821 = vmatpush1.bf16.msra.mxu0 0
        %822 = vmatprep.subr.bf16.mxu0 0
        %823 = vmatpush1.bf16.msra.mxu0 0
        %824 = vmatprep.subr.bf16.mxu0 0
        %825 = vmatpush1.bf16.msra.mxu0 0
        %826 = vmatprep.subr.bf16.mxu0 0
        %827 = vmatpush1.bf16.msra.mxu0 0
        %828 = vmatprep.mubr.bf16.mxu0 0
        %829 = vmatmul.mubr.bf16.gmra.mrb[0].mxu0 %v785
        %v830 = vpop.f32.mrb[0].mxu0
        %v831 = vadd.f32 %v770, %v830
        %v832 = vpop.f32.mrb[0].mxu0
        %v833 = vpop.f32.mrb[0].mxu0
        %v834 = vadd.f32 %v770, %v833
        %v835 = vpop.f32.mrb[0].mxu0
        %836 = vmatprep.mubr.bf16.mxu0 0
        %837 = vmatmul.mubr.bf16.gmra.mrb[0].mxu0 %v788
        %v838 = vpop.f32.mrb[0].mxu0
        %v839 = vadd.f32 %v770, %v838
        %v840 = vpop.f32.mrb[0].mxu0
        %v841 = vpop.f32.mrb[0].mxu0
        %v842 = vadd.f32 %v770, %v841
        %v843 = vpop.f32.mrb[0].mxu0
        %844 = vmatprep.mubr.bf16.mxu0 0
        %845 = vmatmul.mubr.bf16.gmra.mrb[0].mxu0 %v791
        %v846 = vpop.f32.mrb[0].mxu0
        %v847 = vadd.f32 %v770, %v846
        %v848 = vpop.f32.mrb[0].mxu0
        %v849 = vpop.f32.mrb[0].mxu0
        %v850 = vadd.f32 %v770, %v849
        %v851 = vpop.f32.mrb[0].mxu0
        %852 = vmatprep.mubr.bf16.mxu0 0
        %853 = vmatmul.mubr.bf16.gmra.mrb[0].mxu0 %v794
        %v854 = vpop.f32.mrb[0].mxu0
        %v855 = vadd.f32 %v770, %v854
        %v856 = vpop.f32.mrb[0].mxu0
        %v857 = vpop.f32.mrb[0].mxu0
        %v858 = vadd.f32 %v770, %v857
        %v859 = vpop.f32.mrb[0].mxu0
        %860 = vdwg.mxu0
        %v861 = vpack.c.bf16 %v834, %v831
        %v862 = vpack.c.bf16 %v842, %v839
        %v863 = vpack.c.bf16 %v850, %v847
        %v864 = vpack.c.bf16 %v858, %v855
        %v865 = vld [vmem:[%s4] sm:$0xf]
        %v866 = vld [vmem:[%s4 + $0x4] sm:$0xf]
        %v867 = vld [vmem:[%s4 + $0x8] sm:$0xf]
        %v868 = vld [vmem:[%s4 + $0xc] sm:$0xf]
        %v869 = vld [vmem:[%s7] sm:$0x1]
        %v871 = vlaneseq
        %v872 = vshrl.u32 %v871, 7
        %v873 = vsub.s32 0, %v872
        %v874 = vrot.slane %v869, %v873
        %v880 = vunpack.c.l.b16 %v865
        %v881 = vunpack.c.l.b16 %v866
        %v882 = vunpack.c.l.b16 %v867
        %v883 = vunpack.c.l.b16 %v868
        %v884 = vpack.c.b16 %v881, %v880
        %v885 = vpack.c.b16 %v883, %v882
        %888 = vmatprep.subr.bf16.mxu0 0
        %889 = vmatpush1.bf16.msra.mxu0 %v884
        %890 = vmatprep.subr.bf16.mxu0 0
        %891 = vmatpush1.bf16.msra.mxu0 %v885
        %892 = vmatprep.subr.bf16.mxu0 0
        %893 = vmatpush1.bf16.msra.mxu0 0
        %894 = vmatprep.subr.bf16.mxu0 0
        %895 = vmatpush1.bf16.msra.mxu0 0
        %896 = vmatprep.subr.bf16.mxu0 0
        %897 = vmatpush1.bf16.msra.mxu0 0
        %898 = vmatprep.subr.bf16.mxu0 0
        %899 = vmatpush1.bf16.msra.mxu0 0
        %900 = vmatprep.subr.bf16.mxu0 0
        %901 = vmatpush1.bf16.msra.mxu0 0
        %902 = vmatprep.subr.bf16.mxu0 0
        %903 = vmatpush1.bf16.msra.mxu0 0
        %904 = vmatprep.subr.bf16.mxu0 0
        %905 = vmatpush1.bf16.msra.mxu0 0
        %906 = vmatprep.subr.bf16.mxu0 0
        %907 = vmatpush1.bf16.msra.mxu0 0
        %908 = vmatprep.subr.bf16.mxu0 0
        %909 = vmatpush1.bf16.msra.mxu0 0
        %910 = vmatprep.subr.bf16.mxu0 0
        %911 = vmatpush1.bf16.msra.mxu0 0
        %912 = vmatprep.subr.bf16.mxu0 0
        %913 = vmatpush1.bf16.msra.mxu0 0
        %914 = vmatprep.subr.bf16.mxu0 0
        %915 = vmatpush1.bf16.msra.mxu0 0
        %916 = vmatprep.subr.bf16.mxu0 0
        %917 = vmatpush1.bf16.msra.mxu0 0
        %918 = vmatprep.subr.bf16.mxu0 0
        %919 = vmatpush1.bf16.msra.mxu0 0
        %920 = vmatprep.mubr.bf16.mxu0 0
        %921 = vmatmul.mubr.bf16.gmra.mrb[0].mxu0 %v785
        %v922 = vpop.f32.mrb[0].mxu0
        %v923 = vadd.f32 %v874, %v922
        %v924 = vpop.f32.mrb[0].mxu0
        %v925 = vpop.f32.mrb[0].mxu0
        %v926 = vadd.f32 %v874, %v925
        %v927 = vpop.f32.mrb[0].mxu0
        %928 = vmatprep.mubr.bf16.mxu0 0
        %929 = vmatmul.mubr.bf16.gmra.mrb[0].mxu0 %v788
        %v930 = vpop.f32.mrb[0].mxu0
        %v931 = vadd.f32 %v874, %v930
        %v932 = vpop.f32.mrb[0].mxu0
        %v933 = vpop.f32.mrb[0].mxu0
        %v934 = vadd.f32 %v874, %v933
        %v935 = vpop.f32.mrb[0].mxu0
        %936 = vmatprep.mubr.bf16.mxu0 0
        %937 = vmatmul.mubr.bf16.gmra.mrb[0].mxu0 %v791
        %v938 = vpop.f32.mrb[0].mxu0
        %v939 = vadd.f32 %v874, %v938
        %v940 = vpop.f32.mrb[0].mxu0
        %v941 = vpop.f32.mrb[0].mxu0
        %v942 = vadd.f32 %v874, %v941
        %v943 = vpop.f32.mrb[0].mxu0
        %944 = vmatprep.mubr.bf16.mxu0 0
        %945 = vmatmul.mubr.bf16.gmra.mrb[0].mxu0 %v794
        %v946 = vpop.f32.mrb[0].mxu0
        %v947 = vadd.f32 %v874, %v946
        %v948 = vpop.f32.mrb[0].mxu0
        %v949 = vpop.f32.mrb[0].mxu0
        %v950 = vadd.f32 %v874, %v949
        %v951 = vpop.f32.mrb[0].mxu0
        %952 = vdwg.mxu0
        %v953 = vpack.c.bf16 %v926, %v923
        %v954 = vpack.c.bf16 %v934, %v931
        %v955 = vpack.c.bf16 %v942, %v939
        %v956 = vpack.c.bf16 %v950, %v947
        %v957 = vld [vmem:[%s5] sm:$0xf]
        %v958 = vld [vmem:[%s5 + $0x4] sm:$0xf]
        %v959 = vld [vmem:[%s5 + $0x8] sm:$0xf]
        %v960 = vld [vmem:[%s5 + $0xc] sm:$0xf]
        %v961 = vld [vmem:[%s8] sm:$0x1]
        %v963 = vlaneseq
        %v964 = vshrl.u32 %v963, 7
        %v965 = vsub.s32 0, %v964
        %v966 = vrot.slane %v961, %v965
        %v972 = vunpack.c.l.b16 %v957
        %v973 = vunpack.c.l.b16 %v958
        %v974 = vunpack.c.l.b16 %v959
        %v975 = vunpack.c.l.b16 %v960
        %v976 = vpack.c.b16 %v973, %v972
        %v977 = vpack.c.b16 %v975, %v974
        %980 = vmatprep.subr.bf16.mxu0 0
        %981 = vmatpush1.bf16.msra.mxu0 %v976
        %982 = vmatprep.subr.bf16.mxu0 0
        %983 = vmatpush1.bf16.msra.mxu0 %v977
        %984 = vmatprep.subr.bf16.mxu0 0
        %985 = vmatpush1.bf16.msra.mxu0 0
        %986 = vmatprep.subr.bf16.mxu0 0
        %987 = vmatpush1.bf16.msra.mxu0 0
        %988 = vmatprep.subr.bf16.mxu0 0
        %989 = vmatpush1.bf16.msra.mxu0 0
        %990 = vmatprep.subr.bf16.mxu0 0
        %991 = vmatpush1.bf16.msra.mxu0 0
        %992 = vmatprep.subr.bf16.mxu0 0
        %993 = vmatpush1.bf16.msra.mxu0 0
        %994 = vmatprep.subr.bf16.mxu0 0
        %995 = vmatpush1.bf16.msra.mxu0 0
        %996 = vmatprep.subr.bf16.mxu0 0
        %997 = vmatpush1.bf16.msra.mxu0 0
        %998 = vmatprep.subr.bf16.mxu0 0
        %999 = vmatpush1.bf16.msra.mxu0 0
        %1000 = vmatprep.subr.bf16.mxu0 0
        %1001 = vmatpush1.bf16.msra.mxu0 0
        %1002 = vmatprep.subr.bf16.mxu0 0
        %1003 = vmatpush1.bf16.msra.mxu0 0
        %1004 = vmatprep.subr.bf16.mxu0 0
        %1005 = vmatpush1.bf16.msra.mxu0 0
        %1006 = vmatprep.subr.bf16.mxu0 0
        %1007 = vmatpush1.bf16.msra.mxu0 0
        %1008 = vmatprep.subr.bf16.mxu0 0
        %1009 = vmatpush1.bf16.msra.mxu0 0
        %1010 = vmatprep.subr.bf16.mxu0 0
        %1011 = vmatpush1.bf16.msra.mxu0 0
        %1012 = vmatprep.mubr.bf16.mxu0 0
        %1013 = vmatmul.mubr.bf16.gmra.mrb[0].mxu0 %v785
        %v1014 = vpop.f32.mrb[0].mxu0
        %v1015 = vadd.f32 %v966, %v1014
        %v1016 = vpop.f32.mrb[0].mxu0
        %v1017 = vpop.f32.mrb[0].mxu0
        %v1018 = vadd.f32 %v966, %v1017
        %v1019 = vpop.f32.mrb[0].mxu0
        %1020 = vmatprep.mubr.bf16.mxu0 0
        %1021 = vmatmul.mubr.bf16.gmra.mrb[0].mxu0 %v788
        %v1022 = vpop.f32.mrb[0].mxu0
        %v1023 = vadd.f32 %v966, %v1022
        %v1024 = vpop.f32.mrb[0].mxu0
        %v1025 = vpop.f32.mrb[0].mxu0
        %v1026 = vadd.f32 %v966, %v1025
        %v1027 = vpop.f32.mrb[0].mxu0
        %1028 = vmatprep.mubr.bf16.mxu0 0
        %1029 = vmatmul.mubr.bf16.gmra.mrb[0].mxu0 %v791
        %v1030 = vpop.f32.mrb[0].mxu0
        %v1031 = vadd.f32 %v966, %v1030
        %v1032 = vpop.f32.mrb[0].mxu0
        %v1033 = vpop.f32.mrb[0].mxu0
        %v1034 = vadd.f32 %v966, %v1033
        %v1035 = vpop.f32.mrb[0].mxu0
        %1036 = vmatprep.mubr.bf16.mxu0 0
        %1037 = vmatmul.mubr.bf16.gmra.mrb[0].mxu0 %v794
        %v1038 = vpop.f32.mrb[0].mxu0
        %v1039 = vadd.f32 %v966, %v1038
        %v1040 = vpop.f32.mrb[0].mxu0
        %v1041 = vpop.f32.mrb[0].mxu0
        %v1042 = vadd.f32 %v966, %v1041
        %v1043 = vpop.f32.mrb[0].mxu0
        %1044 = vdwg.mxu0
        %v1045 = vpack.c.bf16 %v1018, %v1015
        %v1046 = vpack.c.bf16 %v1026, %v1023
        %v1047 = vpack.c.bf16 %v1034, %v1031
        %v1048 = vpack.c.bf16 %v1042, %v1039
        %vm1049 = vcmask 64512
        %v1051 = vsel %vm1049, %v861, 0
        %v1054 = vsel %vm1049, %v953, 0
        %1056 = vmatprep.subr.bf16.mxu0 0
        %1057 = vmatpush1.bf16.xpose.msra.mxu0 %v1054
        %1058 = vmatprep.subr.bf16.mxu0 0
        %1059 = vmatpush1.bf16.xpose.msra.mxu0 0
        %1060 = vmatprep.subr.bf16.mxu0 0
        %1061 = vmatpush1.bf16.xpose.msra.mxu0 0
        %1062 = vmatprep.subr.bf16.mxu0 0
        %1063 = vmatpush1.bf16.xpose.msra.mxu0 0
        %1064 = vmatprep.subr.bf16.mxu0 0
        %1065 = vmatpush1.bf16.xpose.msra.mxu0 0
        %1066 = vmatprep.subr.bf16.mxu0 0
        %1067 = vmatpush1.bf16.xpose.msra.mxu0 0
        %1068 = vmatprep.subr.bf16.mxu0 0
        %1069 = vmatpush1.bf16.xpose.msra.mxu0 0
        %1070 = vmatprep.subr.bf16.mxu0 0
        %1071 = vmatpush1.bf16.xpose.msra.mxu0 0
        %1072 = vmatprep.subr.bf16.mxu0 0
        %1073 = vmatpush1.bf16.xpose.msra.mxu0 0
        %1074 = vmatprep.subr.bf16.mxu0 0
        %1075 = vmatpush1.bf16.xpose.msra.mxu0 0
        %1076 = vmatprep.subr.bf16.mxu0 0
        %1077 = vmatpush1.bf16.xpose.msra.mxu0 0
        %1078 = vmatprep.subr.bf16.mxu0 0
        %1079 = vmatpush1.bf16.xpose.msra.mxu0 0
        %1080 = vmatprep.subr.bf16.mxu0 0
        %1081 = vmatpush1.bf16.xpose.msra.mxu0 0
        %1082 = vmatprep.subr.bf16.mxu0 0
        %1083 = vmatpush1.bf16.xpose.msra.mxu0 0
        %1084 = vmatprep.subr.bf16.mxu0 0
        %1085 = vmatpush1.bf16.xpose.msra.mxu0 0
        %1086 = vmatprep.subr.bf16.mxu0 0
        %1087 = vmatpush1.bf16.xpose.msra.mxu0 0
        %1088 = vmatprep.mubr.bf16.mxu0 0
        %1089 = vmatmul.mubr.bf16.gmra.mrb[0].mxu0 %v1051
        %v1090 = vpop.f32.mrb[0].mxu0
        %v1091 = vadd.f32 0.0, %v1090
        %v1092 = vpop.f32.mrb[0].mxu0
        %v1093 = vpop.f32.mrb[0].mxu0
        %v1094 = vadd.f32 0.0, %v1093
        %v1095 = vpop.f32.mrb[0].mxu0
        %1096 = vdwg.mxu0
        %v1098 = vsel %vm1049, %v862, 0
        %v1101 = vsel %vm1049, %v954, 0
        %1103 = vmatprep.subr.bf16.mxu0 0
        %1104 = vmatpush1.bf16.xpose.msra.mxu0 %v1101
        %1105 = vmatprep.subr.bf16.mxu0 0
        %1106 = vmatpush1.bf16.xpose.msra.mxu0 0
        %1107 = vmatprep.subr.bf16.mxu0 0
        %1108 = vmatpush1.bf16.xpose.msra.mxu0 0
        %1109 = vmatprep.subr.bf16.mxu0 0
        %1110 = vmatpush1.bf16.xpose.msra.mxu0 0
        %1111 = vmatprep.subr.bf16.mxu0 0
        %1112 = vmatpush1.bf16.xpose.msra.mxu0 0
        %1113 = vmatprep.subr.bf16.mxu0 0
        %1114 = vmatpush1.bf16.xpose.msra.mxu0 0
        %1115 = vmatprep.subr.bf16.mxu0 0
        %1116 = vmatpush1.bf16.xpose.msra.mxu0 0
        %1117 = vmatprep.subr.bf16.mxu0 0
        %1118 = vmatpush1.bf16.xpose.msra.mxu0 0
        %1119 = vmatprep.subr.bf16.mxu0 0
        %1120 = vmatpush1.bf16.xpose.msra.mxu0 0
        %1121 = vmatprep.subr.bf16.mxu0 0
        %1122 = vmatpush1.bf16.xpose.msra.mxu0 0
        %1123 = vmatprep.subr.bf16.mxu0 0
        %1124 = vmatpush1.bf16.xpose.msra.mxu0 0
        %1125 = vmatprep.subr.bf16.mxu0 0
        %1126 = vmatpush1.bf16.xpose.msra.mxu0 0
        %1127 = vmatprep.subr.bf16.mxu0 0
        %1128 = vmatpush1.bf16.xpose.msra.mxu0 0
        %1129 = vmatprep.subr.bf16.mxu0 0
        %1130 = vmatpush1.bf16.xpose.msra.mxu0 0
        %1131 = vmatprep.subr.bf16.mxu0 0
        %1132 = vmatpush1.bf16.xpose.msra.mxu0 0
        %1133 = vmatprep.subr.bf16.mxu0 0
        %1134 = vmatpush1.bf16.xpose.msra.mxu0 0
        %1135 = vmatprep.mubr.bf16.mxu0 0
        %1136 = vmatmul.mubr.bf16.gmra.mrb[0].mxu0 %v1098
        %v1137 = vpop.f32.mrb[0].mxu0
        %v1138 = vadd.f32 0.0, %v1137
        %v1139 = vpop.f32.mrb[0].mxu0
        %v1140 = vpop.f32.mrb[0].mxu0
        %v1141 = vadd.f32 0.0, %v1140
        %v1142 = vpop.f32.mrb[0].mxu0
        %1143 = vdwg.mxu0
        %v1145 = vsel %vm1049, %v863, 0
        %v1148 = vsel %vm1049, %v955, 0
        %1150 = vmatprep.subr.bf16.mxu0 0
        %1151 = vmatpush1.bf16.xpose.msra.mxu0 %v1148
        %1152 = vmatprep.subr.bf16.mxu0 0
        %1153 = vmatpush1.bf16.xpose.msra.mxu0 0
        %1154 = vmatprep.subr.bf16.mxu0 0
        %1155 = vmatpush1.bf16.xpose.msra.mxu0 0
        %1156 = vmatprep.subr.bf16.mxu0 0
        %1157 = vmatpush1.bf16.xpose.msra.mxu0 0
        %1158 = vmatprep.subr.bf16.mxu0 0
        %1159 = vmatpush1.bf16.xpose.msra.mxu0 0
        %1160 = vmatprep.subr.bf16.mxu0 0
        %1161 = vmatpush1.bf16.xpose.msra.mxu0 0
        %1162 = vmatprep.subr.bf16.mxu0 0
        %1163 = vmatpush1.bf16.xpose.msra.mxu0 0
        %1164 = vmatprep.subr.bf16.mxu0 0
        %1165 = vmatpush1.bf16.xpose.msra.mxu0 0
        %1166 = vmatprep.subr.bf16.mxu0 0
        %1167 = vmatpush1.bf16.xpose.msra.mxu0 0
        %1168 = vmatprep.subr.bf16.mxu0 0
        %1169 = vmatpush1.bf16.xpose.msra.mxu0 0
        %1170 = vmatprep.subr.bf16.mxu0 0
        %1171 = vmatpush1.bf16.xpose.msra.mxu0 0
        %1172 = vmatprep.subr.bf16.mxu0 0
        %1173 = vmatpush1.bf16.xpose.msra.mxu0 0
        %1174 = vmatprep.subr.bf16.mxu0 0
        %1175 = vmatpush1.bf16.xpose.msra.mxu0 0
        %1176 = vmatprep.subr.bf16.mxu0 0
        %1177 = vmatpush1.bf16.xpose.msra.mxu0 0
        %1178 = vmatprep.subr.bf16.mxu0 0
        %1179 = vmatpush1.bf16.xpose.msra.mxu0 0
        %1180 = vmatprep.subr.bf16.mxu0 0
        %1181 = vmatpush1.bf16.xpose.msra.mxu0 0
        %1182 = vmatprep.mubr.bf16.mxu0 0
        %1183 = vmatmul.mubr.bf16.gmra.mrb[0].mxu0 %v1145
        %v1184 = vpop.f32.mrb[0].mxu0
        %v1185 = vadd.f32 0.0, %v1184
        %v1186 = vpop.f32.mrb[0].mxu0
        %v1187 = vpop.f32.mrb[0].mxu0
        %v1188 = vadd.f32 0.0, %v1187
        %v1189 = vpop.f32.mrb[0].mxu0
        %1190 = vdwg.mxu0
        %v1192 = vsel %vm1049, %v864, 0
        %v1195 = vsel %vm1049, %v956, 0
        %1197 = vmatprep.subr.bf16.mxu0 0
        %1198 = vmatpush1.bf16.xpose.msra.mxu0 %v1195
        %1199 = vmatprep.subr.bf16.mxu0 0
        %1200 = vmatpush1.bf16.xpose.msra.mxu0 0
        %1201 = vmatprep.subr.bf16.mxu0 0
        %1202 = vmatpush1.bf16.xpose.msra.mxu0 0
        %1203 = vmatprep.subr.bf16.mxu0 0
        %1204 = vmatpush1.bf16.xpose.msra.mxu0 0
        %1205 = vmatprep.subr.bf16.mxu0 0
        %1206 = vmatpush1.bf16.xpose.msra.mxu0 0
        %1207 = vmatprep.subr.bf16.mxu0 0
        %1208 = vmatpush1.bf16.xpose.msra.mxu0 0
        %1209 = vmatprep.subr.bf16.mxu0 0
        %1210 = vmatpush1.bf16.xpose.msra.mxu0 0
        %1211 = vmatprep.subr.bf16.mxu0 0
        %1212 = vmatpush1.bf16.xpose.msra.mxu0 0
        %1213 = vmatprep.subr.bf16.mxu0 0
        %1214 = vmatpush1.bf16.xpose.msra.mxu0 0
        %1215 = vmatprep.subr.bf16.mxu0 0
        %1216 = vmatpush1.bf16.xpose.msra.mxu0 0
        %1217 = vmatprep.subr.bf16.mxu0 0
        %1218 = vmatpush1.bf16.xpose.msra.mxu0 0
        %1219 = vmatprep.subr.bf16.mxu0 0
        %1220 = vmatpush1.bf16.xpose.msra.mxu0 0
        %1221 = vmatprep.subr.bf16.mxu0 0
        %1222 = vmatpush1.bf16.xpose.msra.mxu0 0
        %1223 = vmatprep.subr.bf16.mxu0 0
        %1224 = vmatpush1.bf16.xpose.msra.mxu0 0
        %1225 = vmatprep.subr.bf16.mxu0 0
        %1226 = vmatpush1.bf16.xpose.msra.mxu0 0
        %1227 = vmatprep.subr.bf16.mxu0 0
        %1228 = vmatpush1.bf16.xpose.msra.mxu0 0
        %1229 = vmatprep.mubr.bf16.mxu0 0
        %1230 = vmatmul.mubr.bf16.gmra.mrb[0].mxu0 %v1192
        %v1231 = vpop.f32.mrb[0].mxu0
        %v1232 = vadd.f32 0.0, %v1231
        %v1233 = vpop.f32.mrb[0].mxu0
        %v1234 = vpop.f32.mrb[0].mxu0
        %v1235 = vadd.f32 0.0, %v1234
        %v1236 = vpop.f32.mrb[0].mxu0
        %1237 = vdwg.mxu0
        %v1238 = vld [vmem:[#allocation6] sm:$0xff]
        %v1239 = vld [vmem:[#allocation6 + $0x8] sm:$0xff]
        %v1240 = vld [vmem:[#allocation6 + $0x10] sm:$0xff]
        %v1241 = vld [vmem:[#allocation6 + $0x18] sm:$0xff]
        %v1242 = vld [vmem:[#allocation6 + $0x20] sm:$0xff]
        %v1243 = vld [vmem:[#allocation6 + $0x28] sm:$0xff]
        %v1244 = vld [vmem:[#allocation6 + $0x30] sm:$0xff]
        %v1245 = vld [vmem:[#allocation6 + $0x38] sm:$0xff]
        %v1246 = vadd.f32 %v1091, %v1238
        %v1247 = vadd.f32 %v1094, %v1239
        %v1248 = vadd.f32 %v1138, %v1240
        %v1249 = vadd.f32 %v1141, %v1241
        %v1250 = vadd.f32 %v1185, %v1242
        %v1251 = vadd.f32 %v1188, %v1243
        %v1252 = vadd.f32 %v1232, %v1244
        %v1253 = vadd.f32 %v1235, %v1245
        %vm1254 = vcmask 130048
        %v1255 = vsel %vm1254, %v1246, -inf
        %1256 = vmax.xlane.f32.xlu0 %v1255
        %v1257 = vpop.xlane.xlu0 %1256
        %v1258 = vsel %vm1254, %v1247, -inf
        %1259 = vmax.xlane.f32.xlu0 %v1258
        %v1260 = vpop.xlane.xlu0 %1259
        %v1261 = vsel %vm1254, %v1248, -inf
        %1262 = vmax.xlane.f32.xlu0 %v1261
        %v1263 = vpop.xlane.xlu0 %1262
        %v1264 = vsel %vm1254, %v1249, -inf
        %1265 = vmax.xlane.f32.xlu0 %v1264
        %v1266 = vpop.xlane.xlu0 %1265
        %v1267 = vsel %vm1254, %v1250, -inf
        %1268 = vmax.xlane.f32.xlu0 %v1267
        %v1269 = vpop.xlane.xlu0 %1268
        %v1270 = vsel %vm1254, %v1251, -inf
        %1271 = vmax.xlane.f32.xlu0 %v1270
        %v1272 = vpop.xlane.xlu0 %1271
        %v1273 = vsel %vm1254, %v1252, -inf
        %1274 = vmax.xlane.f32.xlu0 %v1273
        %v1275 = vpop.xlane.xlu0 %1274
        %v1276 = vsel %vm1254, %v1253, -inf
        %1277 = vmax.xlane.f32.xlu0 %v1276
        %v1278 = vpop.xlane.xlu0 %1277
        %v1279 = vsub.f32 %v1246, %v1257
        %v1280 = vsub.f32 %v1247, %v1260
        %v1281 = vsub.f32 %v1248, %v1263
        %v1282 = vsub.f32 %v1249, %v1266
        %v1283 = vsub.f32 %v1250, %v1269
        %v1284 = vsub.f32 %v1251, %v1272
        %v1285 = vsub.f32 %v1252, %v1275
        %v1286 = vsub.f32 %v1253, %v1278
        %v1287 = vmul.f32 %v1279, 1.442695
        %v1288 = vpow.pop %v1287
        %v1289 = vmul.f32 %v1280, 1.442695
        %v1290 = vpow.pop %v1289
        %v1291 = vmul.f32 %v1281, 1.442695
        %v1292 = vpow.pop %v1291
        %v1293 = vmul.f32 %v1282, 1.442695
        %v1294 = vpow.pop %v1293
        %v1295 = vmul.f32 %v1283, 1.442695
        %v1296 = vpow.pop %v1295
        %v1297 = vmul.f32 %v1284, 1.442695
        %v1298 = vpow.pop %v1297
        %v1299 = vmul.f32 %v1285, 1.442695
        %v1300 = vpow.pop %v1299
        %v1301 = vmul.f32 %v1286, 1.442695
        %v1302 = vpow.pop %v1301
        %v1303 = vsel %vm1254, %v1288, 0.0
        %1304 = vadd.xlane.f32.xlu0 %v1303
        %v1305 = vpop.xlane.xlu0 %1304
        %v1306 = vsel %vm1254, %v1290, 0.0
        %1307 = vadd.xlane.f32.xlu0 %v1306
        %v1308 = vpop.xlane.xlu0 %1307
        %v1309 = vsel %vm1254, %v1292, 0.0
        %1310 = vadd.xlane.f32.xlu0 %v1309
        %v1311 = vpop.xlane.xlu0 %1310
        %v1312 = vsel %vm1254, %v1294, 0.0
        %1313 = vadd.xlane.f32.xlu0 %v1312
        %v1314 = vpop.xlane.xlu0 %1313
        %v1315 = vsel %vm1254, %v1296, 0.0
        %1316 = vadd.xlane.f32.xlu0 %v1315
        %v1317 = vpop.xlane.xlu0 %1316
        %v1318 = vsel %vm1254, %v1298, 0.0
        %1319 = vadd.xlane.f32.xlu0 %v1318
        %v1320 = vpop.xlane.xlu0 %1319
        %v1321 = vsel %vm1254, %v1300, 0.0
        %1322 = vadd.xlane.f32.xlu0 %v1321
        %v1323 = vpop.xlane.xlu0 %1322
        %v1324 = vsel %vm1254, %v1302, 0.0
        %1325 = vadd.xlane.f32.xlu0 %v1324
        %v1326 = vpop.xlane.xlu0 %1325
        %v1327 = vrcp.pop %v1305
        %v1328 = vrcp.pop %v1308
        %v1329 = vrcp.pop %v1311
        %v1330 = vrcp.pop %v1314
        %v1331 = vrcp.pop %v1317
        %v1332 = vrcp.pop %v1320
        %v1333 = vrcp.pop %v1323
        %v1334 = vrcp.pop %v1326
        %v1335 = vmul.f32 %v1288, %v1327
        %v1336 = vmul.f32 %v1290, %v1328
        %v1337 = vmul.f32 %v1292, %v1329
        %v1338 = vmul.f32 %v1294, %v1330
        %v1339 = vmul.f32 %v1296, %v1331
        %v1340 = vmul.f32 %v1298, %v1332
        %v1341 = vmul.f32 %v1300, %v1333
        %v1342 = vmul.f32 %v1302, %v1334
        %v1343 = vpack.c.bf16 %v1336, %v1335
        %v1344 = vpack.c.bf16 %v1338, %v1337
        %v1345 = vpack.c.bf16 %v1340, %v1339
        %v1346 = vpack.c.bf16 %v1342, %v1341
        %v1348 = vsel %vm1254, %v1343, 0
        %1350 = vmatprep.subr.bf16.mxu0 0
        %1351 = vmatpush1.bf16.msra.mxu0 %v1045
        %1352 = vmatprep.subr.bf16.mxu0 0
        %1353 = vmatpush1.bf16.msra.mxu0 0
        %1354 = vmatprep.subr.bf16.mxu0 0
        %1355 = vmatpush1.bf16.msra.mxu0 0
        %1356 = vmatprep.subr.bf16.mxu0 0
        %1357 = vmatpush1.bf16.msra.mxu0 0
        %1358 = vmatprep.subr.bf16.mxu0 0
        %1359 = vmatpush1.bf16.msra.mxu0 0
        %1360 = vmatprep.subr.bf16.mxu0 0
        %1361 = vmatpush1.bf16.msra.mxu0 0
        %1362 = vmatprep.subr.bf16.mxu0 0
        %1363 = vmatpush1.bf16.msra.mxu0 0
        %1364 = vmatprep.subr.bf16.mxu0 0
        %1365 = vmatpush1.bf16.msra.mxu0 0
        %1366 = vmatprep.subr.bf16.mxu0 0
        %1367 = vmatpush1.bf16.msra.mxu0 0
        %1368 = vmatprep.subr.bf16.mxu0 0
        %1369 = vmatpush1.bf16.msra.mxu0 0
        %1370 = vmatprep.subr.bf16.mxu0 0
        %1371 = vmatpush1.bf16.msra.mxu0 0
        %1372 = vmatprep.subr.bf16.mxu0 0
        %1373 = vmatpush1.bf16.msra.mxu0 0
        %1374 = vmatprep.subr.bf16.mxu0 0
        %1375 = vmatpush1.bf16.msra.mxu0 0
        %1376 = vmatprep.subr.bf16.mxu0 0
        %1377 = vmatpush1.bf16.msra.mxu0 0
        %1378 = vmatprep.subr.bf16.mxu0 0
        %1379 = vmatpush1.bf16.msra.mxu0 0
        %1380 = vmatprep.subr.bf16.mxu0 0
        %1381 = vmatpush1.bf16.msra.mxu0 0
        %1382 = vmatprep.mubr.bf16.mxu0 0
        %1383 = vmatmul.mubr.bf16.gmra.mrb[0].mxu0 %v1348
        %v1384 = vpop.f32.mrb[0].mxu0
        %v1385 = vadd.f32 0.0, %v1384
        %v1386 = vpop.f32.mrb[0].mxu0
        %v1387 = vpop.f32.mrb[0].mxu0
        %v1388 = vadd.f32 0.0, %v1387
        %v1389 = vpop.f32.mrb[0].mxu0
        %1390 = vdwg.mxu0
        %v1392 = vsel %vm1254, %v1344, 0
        %1394 = vmatprep.subr.bf16.mxu0 0
        %1395 = vmatpush1.bf16.msra.mxu0 %v1046
        %1396 = vmatprep.subr.bf16.mxu0 0
        %1397 = vmatpush1.bf16.msra.mxu0 0
        %1398 = vmatprep.subr.bf16.mxu0 0
        %1399 = vmatpush1.bf16.msra.mxu0 0
        %1400 = vmatprep.subr.bf16.mxu0 0
        %1401 = vmatpush1.bf16.msra.mxu0 0
        %1402 = vmatprep.subr.bf16.mxu0 0
        %1403 = vmatpush1.bf16.msra.mxu0 0
        %1404 = vmatprep.subr.bf16.mxu0 0
        %1405 = vmatpush1.bf16.msra.mxu0 0
        %1406 = vmatprep.subr.bf16.mxu0 0
        %1407 = vmatpush1.bf16.msra.mxu0 0
        %1408 = vmatprep.subr.bf16.mxu0 0
        %1409 = vmatpush1.bf16.msra.mxu0 0
        %1410 = vmatprep.subr.bf16.mxu0 0
        %1411 = vmatpush1.bf16.msra.mxu0 0
        %1412 = vmatprep.subr.bf16.mxu0 0
        %1413 = vmatpush1.bf16.msra.mxu0 0
        %1414 = vmatprep.subr.bf16.mxu0 0
        %1415 = vmatpush1.bf16.msra.mxu0 0
        %1416 = vmatprep.subr.bf16.mxu0 0
        %1417 = vmatpush1.bf16.msra.mxu0 0
        %1418 = vmatprep.subr.bf16.mxu0 0
        %1419 = vmatpush1.bf16.msra.mxu0 0
        %1420 = vmatprep.subr.bf16.mxu0 0
        %1421 = vmatpush1.bf16.msra.mxu0 0
        %1422 = vmatprep.subr.bf16.mxu0 0
        %1423 = vmatpush1.bf16.msra.mxu0 0
        %1424 = vmatprep.subr.bf16.mxu0 0
        %1425 = vmatpush1.bf16.msra.mxu0 0
        %1426 = vmatprep.mubr.bf16.mxu0 0
        %1427 = vmatmul.mubr.bf16.gmra.mrb[0].mxu0 %v1392
        %v1428 = vpop.f32.mrb[0].mxu0
        %v1429 = vadd.f32 0.0, %v1428
        %v1430 = vpop.f32.mrb[0].mxu0
        %v1431 = vpop.f32.mrb[0].mxu0
        %v1432 = vadd.f32 0.0, %v1431
        %v1433 = vpop.f32.mrb[0].mxu0
        %1434 = vdwg.mxu0
        %v1436 = vsel %vm1254, %v1345, 0
        %1438 = vmatprep.subr.bf16.mxu0 0
        %1439 = vmatpush1.bf16.msra.mxu0 %v1047
        %1440 = vmatprep.subr.bf16.mxu0 0
        %1441 = vmatpush1.bf16.msra.mxu0 0
        %1442 = vmatprep.subr.bf16.mxu0 0
        %1443 = vmatpush1.bf16.msra.mxu0 0
        %1444 = vmatprep.subr.bf16.mxu0 0
        %1445 = vmatpush1.bf16.msra.mxu0 0
        %1446 = vmatprep.subr.bf16.mxu0 0
        %1447 = vmatpush1.bf16.msra.mxu0 0
        %1448 = vmatprep.subr.bf16.mxu0 0
        %1449 = vmatpush1.bf16.msra.mxu0 0
        %1450 = vmatprep.subr.bf16.mxu0 0
        %1451 = vmatpush1.bf16.msra.mxu0 0
        %1452 = vmatprep.subr.bf16.mxu0 0
        %1453 = vmatpush1.bf16.msra.mxu0 0
        %1454 = vmatprep.subr.bf16.mxu0 0
        %1455 = vmatpush1.bf16.msra.mxu0 0
        %1456 = vmatprep.subr.bf16.mxu0 0
        %1457 = vmatpush1.bf16.msra.mxu0 0
        %1458 = vmatprep.subr.bf16.mxu0 0
        %1459 = vmatpush1.bf16.msra.mxu0 0
        %1460 = vmatprep.subr.bf16.mxu0 0
        %1461 = vmatpush1.bf16.msra.mxu0 0
        %1462 = vmatprep.subr.bf16.mxu0 0
        %1463 = vmatpush1.bf16.msra.mxu0 0
        %1464 = vmatprep.subr.bf16.mxu0 0
        %1465 = vmatpush1.bf16.msra.mxu0 0
        %1466 = vmatprep.subr.bf16.mxu0 0
        %1467 = vmatpush1.bf16.msra.mxu0 0
        %1468 = vmatprep.subr.bf16.mxu0 0
        %1469 = vmatpush1.bf16.msra.mxu0 0
        %1470 = vmatprep.mubr.bf16.mxu0 0
        %1471 = vmatmul.mubr.bf16.gmra.mrb[0].mxu0 %v1436
        %v1472 = vpop.f32.mrb[0].mxu0
        %v1473 = vadd.f32 0.0, %v1472
        %v1474 = vpop.f32.mrb[0].mxu0
        %v1475 = vpop.f32.mrb[0].mxu0
        %v1476 = vadd.f32 0.0, %v1475
        %v1477 = vpop.f32.mrb[0].mxu0
        %1478 = vdwg.mxu0
        %v1480 = vsel %vm1254, %v1346, 0
        %1482 = vmatprep.subr.bf16.mxu0 0
        %1483 = vmatpush1.bf16.msra.mxu0 %v1048
        %1484 = vmatprep.subr.bf16.mxu0 0
        %1485 = vmatpush1.bf16.msra.mxu0 0
        %1486 = vmatprep.subr.bf16.mxu0 0
        %1487 = vmatpush1.bf16.msra.mxu0 0
        %1488 = vmatprep.subr.bf16.mxu0 0
        %1489 = vmatpush1.bf16.msra.mxu0 0
        %1490 = vmatprep.subr.bf16.mxu0 0
        %1491 = vmatpush1.bf16.msra.mxu0 0
        %1492 = vmatprep.subr.bf16.mxu0 0
        %1493 = vmatpush1.bf16.msra.mxu0 0
        %1494 = vmatprep.subr.bf16.mxu0 0
        %1495 = vmatpush1.bf16.msra.mxu0 0
        %1496 = vmatprep.subr.bf16.mxu0 0
        %1497 = vmatpush1.bf16.msra.mxu0 0
        %1498 = vmatprep.subr.bf16.mxu0 0
        %1499 = vmatpush1.bf16.msra.mxu0 0
        %1500 = vmatprep.subr.bf16.mxu0 0
        %1501 = vmatpush1.bf16.msra.mxu0 0
        %1502 = vmatprep.subr.bf16.mxu0 0
        %1503 = vmatpush1.bf16.msra.mxu0 0
        %1504 = vmatprep.subr.bf16.mxu0 0
        %1505 = vmatpush1.bf16.msra.mxu0 0
        %1506 = vmatprep.subr.bf16.mxu0 0
        %1507 = vmatpush1.bf16.msra.mxu0 0
        %1508 = vmatprep.subr.bf16.mxu0 0
        %1509 = vmatpush1.bf16.msra.mxu0 0
        %1510 = vmatprep.subr.bf16.mxu0 0
        %1511 = vmatpush1.bf16.msra.mxu0 0
        %1512 = vmatprep.subr.bf16.mxu0 0
        %1513 = vmatpush1.bf16.msra.mxu0 0
        %1514 = vmatprep.mubr.bf16.mxu0 0
        %1515 = vmatmul.mubr.bf16.gmra.mrb[0].mxu0 %v1480
        %v1516 = vpop.f32.mrb[0].mxu0
        %v1517 = vadd.f32 0.0, %v1516
        %v1518 = vpop.f32.mrb[0].mxu0
        %v1519 = vpop.f32.mrb[0].mxu0
        %v1520 = vadd.f32 0.0, %v1519
        %v1521 = vpop.f32.mrb[0].mxu0
        %1522 = vdwg.mxu0
        %1523 = vst.msk [vmem:[#allocation2] sm:$0xff] %vm1049, %v1385
        %1524 = vst.msk [vmem:[#allocation2 + $0x8] sm:$0xff] %vm1049, %v1388
        %1525 = vst.msk [vmem:[#allocation2 + $0x10] sm:$0xff] %vm1049, %v1429
        %1526 = vst.msk [vmem:[#allocation2 + $0x18] sm:$0xff] %vm1049, %v1432
        %1527 = vst.msk [vmem:[#allocation2 + $0x20] sm:$0xff] %vm1049, %v1473
        %1528 = vst.msk [vmem:[#allocation2 + $0x28] sm:$0xff] %vm1049, %v1476
        %1529 = vst.msk [vmem:[#allocation2 + $0x30] sm:$0xff] %vm1049, %v1517
        %1530 = vst.msk [vmem:[#allocation2 + $0x38] sm:$0xff] %vm1049, %v1520
        %1532 = vrot.lane.b32.xlu0 %v861, 120
        %v1533 = vpop.permute.xlu0 %1532
        %1535 = vrot.lane.b32.xlu0 %v953, 120
        %v1536 = vpop.permute.xlu0 %1535
        %v1538 = vsel %vm1049, %v1533, 0
        %v1541 = vsel %vm1049, %v1536, 0
        %1543 = vmatprep.subr.bf16.mxu0 0
        %1544 = vmatpush1.bf16.xpose.msra.mxu0 %v1541
        %1545 = vmatprep.subr.bf16.mxu0 0
        %1546 = vmatpush1.bf16.xpose.msra.mxu0 0
        %1547 = vmatprep.subr.bf16.mxu0 0
        %1548 = vmatpush1.bf16.xpose.msra.mxu0 0
        %1549 = vmatprep.subr.bf16.mxu0 0
        %1550 = vmatpush1.bf16.xpose.msra.mxu0 0
        %1551 = vmatprep.subr.bf16.mxu0 0
        %1552 = vmatpush1.bf16.xpose.msra.mxu0 0
        %1553 = vmatprep.subr.bf16.mxu0 0
        %1554 = vmatpush1.bf16.xpose.msra.mxu0 0
        %1555 = vmatprep.subr.bf16.mxu0 0
        %1556 = vmatpush1.bf16.xpose.msra.mxu0 0
        %1557 = vmatprep.subr.bf16.mxu0 0
        %1558 = vmatpush1.bf16.xpose.msra.mxu0 0
        %1559 = vmatprep.subr.bf16.mxu0 0
        %1560 = vmatpush1.bf16.xpose.msra.mxu0 0
        %1561 = vmatprep.subr.bf16.mxu0 0
        %1562 = vmatpush1.bf16.xpose.msra.mxu0 0
        %1563 = vmatprep.subr.bf16.mxu0 0
        %1564 = vmatpush1.bf16.xpose.msra.mxu0 0
        %1565 = vmatprep.subr.bf16.mxu0 0
        %1566 = vmatpush1.bf16.xpose.msra.mxu0 0
        %1567 = vmatprep.subr.bf16.mxu0 0
        %1568 = vmatpush1.bf16.xpose.msra.mxu0 0
        %1569 = vmatprep.subr.bf16.mxu0 0
        %1570 = vmatpush1.bf16.xpose.msra.mxu0 0
        %1571 = vmatprep.subr.bf16.mxu0 0
        %1572 = vmatpush1.bf16.xpose.msra.mxu0 0
        %1573 = vmatprep.subr.bf16.mxu0 0
        %1574 = vmatpush1.bf16.xpose.msra.mxu0 0
        %1575 = vmatprep.mubr.bf16.mxu0 0
        %1576 = vmatmul.mubr.bf16.gmra.mrb[0].mxu0 %v1538
        %v1577 = vpop.f32.mrb[0].mxu0
        %v1578 = vadd.f32 0.0, %v1577
        %v1579 = vpop.f32.mrb[0].mxu0
        %v1580 = vpop.f32.mrb[0].mxu0
        %v1581 = vadd.f32 0.0, %v1580
        %v1582 = vpop.f32.mrb[0].mxu0
        %1583 = vdwg.mxu0
        %1585 = vrot.lane.b32.xlu0 %v862, 120
        %v1586 = vpop.permute.xlu0 %1585
        %1588 = vrot.lane.b32.xlu0 %v954, 120
        %v1589 = vpop.permute.xlu0 %1588
        %v1591 = vsel %vm1049, %v1586, 0
        %v1594 = vsel %vm1049, %v1589, 0
        %1596 = vmatprep.subr.bf16.mxu0 0
        %1597 = vmatpush1.bf16.xpose.msra.mxu0 %v1594
        %1598 = vmatprep.subr.bf16.mxu0 0
        %1599 = vmatpush1.bf16.xpose.msra.mxu0 0
        %1600 = vmatprep.subr.bf16.mxu0 0
        %1601 = vmatpush1.bf16.xpose.msra.mxu0 0
        %1602 = vmatprep.subr.bf16.mxu0 0
        %1603 = vmatpush1.bf16.xpose.msra.mxu0 0
        %1604 = vmatprep.subr.bf16.mxu0 0
        %1605 = vmatpush1.bf16.xpose.msra.mxu0 0
        %1606 = vmatprep.subr.bf16.mxu0 0
        %1607 = vmatpush1.bf16.xpose.msra.mxu0 0
        %1608 = vmatprep.subr.bf16.mxu0 0
        %1609 = vmatpush1.bf16.xpose.msra.mxu0 0
        %1610 = vmatprep.subr.bf16.mxu0 0
        %1611 = vmatpush1.bf16.xpose.msra.mxu0 0
        %1612 = vmatprep.subr.bf16.mxu0 0
        %1613 = vmatpush1.bf16.xpose.msra.mxu0 0
        %1614 = vmatprep.subr.bf16.mxu0 0
        %1615 = vmatpush1.bf16.xpose.msra.mxu0 0
        %1616 = vmatprep.subr.bf16.mxu0 0
        %1617 = vmatpush1.bf16.xpose.msra.mxu0 0
        %1618 = vmatprep.subr.bf16.mxu0 0
        %1619 = vmatpush1.bf16.xpose.msra.mxu0 0
        %1620 = vmatprep.subr.bf16.mxu0 0
        %1621 = vmatpush1.bf16.xpose.msra.mxu0 0
        %1622 = vmatprep.subr.bf16.mxu0 0
        %1623 = vmatpush1.bf16.xpose.msra.mxu0 0
        %1624 = vmatprep.subr.bf16.mxu0 0
        %1625 = vmatpush1.bf16.xpose.msra.mxu0 0
        %1626 = vmatprep.subr.bf16.mxu0 0
        %1627 = vmatpush1.bf16.xpose.msra.mxu0 0
        %1628 = vmatprep.mubr.bf16.mxu0 0
        %1629 = vmatmul.mubr.bf16.gmra.mrb[0].mxu0 %v1591
        %v1630 = vpop.f32.mrb[0].mxu0
        %v1631 = vadd.f32 0.0, %v1630
        %v1632 = vpop.f32.mrb[0].mxu0
        %v1633 = vpop.f32.mrb[0].mxu0
        %v1634 = vadd.f32 0.0, %v1633
        %v1635 = vpop.f32.mrb[0].mxu0
        %1636 = vdwg.mxu0
        %1638 = vrot.lane.b32.xlu0 %v863, 120
        %v1639 = vpop.permute.xlu0 %1638
        %1641 = vrot.lane.b32.xlu0 %v955, 120
        %v1642 = vpop.permute.xlu0 %1641
        %v1644 = vsel %vm1049, %v1639, 0
        %v1647 = vsel %vm1049, %v1642, 0
        %1649 = vmatprep.subr.bf16.mxu0 0
        %1650 = vmatpush1.bf16.xpose.msra.mxu0 %v1647
        %1651 = vmatprep.subr.bf16.mxu0 0
        %1652 = vmatpush1.bf16.xpose.msra.mxu0 0
        %1653 = vmatprep.subr.bf16.mxu0 0
        %1654 = vmatpush1.bf16.xpose.msra.mxu0 0
        %1655 = vmatprep.subr.bf16.mxu0 0
        %1656 = vmatpush1.bf16.xpose.msra.mxu0 0
        %1657 = vmatprep.subr.bf16.mxu0 0
        %1658 = vmatpush1.bf16.xpose.msra.mxu0 0
        %1659 = vmatprep.subr.bf16.mxu0 0
        %1660 = vmatpush1.bf16.xpose.msra.mxu0 0
        %1661 = vmatprep.subr.bf16.mxu0 0
        %1662 = vmatpush1.bf16.xpose.msra.mxu0 0
        %1663 = vmatprep.subr.bf16.mxu0 0
        %1664 = vmatpush1.bf16.xpose.msra.mxu0 0
        %1665 = vmatprep.subr.bf16.mxu0 0
        %1666 = vmatpush1.bf16.xpose.msra.mxu0 0
        %1667 = vmatprep.subr.bf16.mxu0 0
        %1668 = vmatpush1.bf16.xpose.msra.mxu0 0
        %1669 = vmatprep.subr.bf16.mxu0 0
        %1670 = vmatpush1.bf16.xpose.msra.mxu0 0
        %1671 = vmatprep.subr.bf16.mxu0 0
        %1672 = vmatpush1.bf16.xpose.msra.mxu0 0
        %1673 = vmatprep.subr.bf16.mxu0 0
        %1674 = vmatpush1.bf16.xpose.msra.mxu0 0
        %1675 = vmatprep.subr.bf16.mxu0 0
        %1676 = vmatpush1.bf16.xpose.msra.mxu0 0
        %1677 = vmatprep.subr.bf16.mxu0 0
        %1678 = vmatpush1.bf16.xpose.msra.mxu0 0
        %1679 = vmatprep.subr.bf16.mxu0 0
        %1680 = vmatpush1.bf16.xpose.msra.mxu0 0
        %1681 = vmatprep.mubr.bf16.mxu0 0
        %1682 = vmatmul.mubr.bf16.gmra.mrb[0].mxu0 %v1644
        %v1683 = vpop.f32.mrb[0].mxu0
        %v1684 = vadd.f32 0.0, %v1683
        %v1685 = vpop.f32.mrb[0].mxu0
        %v1686 = vpop.f32.mrb[0].mxu0
        %v1687 = vadd.f32 0.0, %v1686
        %v1688 = vpop.f32.mrb[0].mxu0
        %1689 = vdwg.mxu0
        %1691 = vrot.lane.b32.xlu0 %v864, 120
        %v1692 = vpop.permute.xlu0 %1691
        %1694 = vrot.lane.b32.xlu0 %v956, 120
        %v1695 = vpop.permute.xlu0 %1694
        %v1697 = vsel %vm1049, %v1692, 0
        %v1700 = vsel %vm1049, %v1695, 0
        %1702 = vmatprep.subr.bf16.mxu0 0
        %1703 = vmatpush1.bf16.xpose.msra.mxu0 %v1700
        %1704 = vmatprep.subr.bf16.mxu0 0
        %1705 = vmatpush1.bf16.xpose.msra.mxu0 0
        %1706 = vmatprep.subr.bf16.mxu0 0
        %1707 = vmatpush1.bf16.xpose.msra.mxu0 0
        %1708 = vmatprep.subr.bf16.mxu0 0
        %1709 = vmatpush1.bf16.xpose.msra.mxu0 0
        %1710 = vmatprep.subr.bf16.mxu0 0
        %1711 = vmatpush1.bf16.xpose.msra.mxu0 0
        %1712 = vmatprep.subr.bf16.mxu0 0
        %1713 = vmatpush1.bf16.xpose.msra.mxu0 0
        %1714 = vmatprep.subr.bf16.mxu0 0
        %1715 = vmatpush1.bf16.xpose.msra.mxu0 0
        %1716 = vmatprep.subr.bf16.mxu0 0
        %1717 = vmatpush1.bf16.xpose.msra.mxu0 0
        %1718 = vmatprep.subr.bf16.mxu0 0
        %1719 = vmatpush1.bf16.xpose.msra.mxu0 0
        %1720 = vmatprep.subr.bf16.mxu0 0
        %1721 = vmatpush1.bf16.xpose.msra.mxu0 0
        %1722 = vmatprep.subr.bf16.mxu0 0
        %1723 = vmatpush1.bf16.xpose.msra.mxu0 0
        %1724 = vmatprep.subr.bf16.mxu0 0
        %1725 = vmatpush1.bf16.xpose.msra.mxu0 0
        %1726 = vmatprep.subr.bf16.mxu0 0
        %1727 = vmatpush1.bf16.xpose.msra.mxu0 0
        %1728 = vmatprep.subr.bf16.mxu0 0
        %1729 = vmatpush1.bf16.xpose.msra.mxu0 0
        %1730 = vmatprep.subr.bf16.mxu0 0
        %1731 = vmatpush1.bf16.xpose.msra.mxu0 0
        %1732 = vmatprep.subr.bf16.mxu0 0
        %1733 = vmatpush1.bf16.xpose.msra.mxu0 0
        %1734 = vmatprep.mubr.bf16.mxu0 0
        %1735 = vmatmul.mubr.bf16.gmra.mrb[0].mxu0 %v1697
        %v1736 = vpop.f32.mrb[0].mxu0
        %v1737 = vadd.f32 0.0, %v1736
        %v1738 = vpop.f32.mrb[0].mxu0
        %v1739 = vpop.f32.mrb[0].mxu0
        %v1740 = vadd.f32 0.0, %v1739
        %v1741 = vpop.f32.mrb[0].mxu0
        %1742 = vdwg.mxu0
        %s1743 = scalar_lea.vmem [#allocation6], 64
        %v1744 = vld [vmem:[%s1743] sm:$0xff]
        %v1745 = vld [vmem:[%s1743 + $0x8] sm:$0xff]
        %v1746 = vld [vmem:[%s1743 + $0x10] sm:$0xff]
        %v1747 = vld [vmem:[%s1743 + $0x18] sm:$0xff]
        %v1748 = vld [vmem:[%s1743 + $0x20] sm:$0xff]
        %v1749 = vld [vmem:[%s1743 + $0x28] sm:$0xff]
        %v1750 = vld [vmem:[%s1743 + $0x30] sm:$0xff]
        %v1751 = vld [vmem:[%s1743 + $0x38] sm:$0xff]
        %v1752 = vadd.f32 %v1578, %v1744
        %v1753 = vadd.f32 %v1581, %v1745
        %v1754 = vadd.f32 %v1631, %v1746
        %v1755 = vadd.f32 %v1634, %v1747
        %v1756 = vadd.f32 %v1684, %v1748
        %v1757 = vadd.f32 %v1687, %v1749
        %v1758 = vadd.f32 %v1737, %v1750
        %v1759 = vadd.f32 %v1740, %v1751
        %v1760 = vsel %vm1254, %v1752, -inf
        %1761 = vmax.xlane.f32.xlu0 %v1760
        %v1762 = vpop.xlane.xlu0 %1761
        %v1763 = vsel %vm1254, %v1753, -inf
        %1764 = vmax.xlane.f32.xlu0 %v1763
        %v1765 = vpop.xlane.xlu0 %1764
        %v1766 = vsel %vm1254, %v1754, -inf
        %1767 = vmax.xlane.f32.xlu0 %v1766
        %v1768 = vpop.xlane.xlu0 %1767
        %v1769 = vsel %vm1254, %v1755, -inf
        %1770 = vmax.xlane.f32.xlu0 %v1769
        %v1771 = vpop.xlane.xlu0 %1770
        %v1772 = vsel %vm1254, %v1756, -inf
        %1773 = vmax.xlane.f32.xlu0 %v1772
        %v1774 = vpop.xlane.xlu0 %1773
        %v1775 = vsel %vm1254, %v1757, -inf
        %1776 = vmax.xlane.f32.xlu0 %v1775
        %v1777 = vpop.xlane.xlu0 %1776
        %v1778 = vsel %vm1254, %v1758, -inf
        %1779 = vmax.xlane.f32.xlu0 %v1778
        %v1780 = vpop.xlane.xlu0 %1779
        %v1781 = vsel %vm1254, %v1759, -inf
        %1782 = vmax.xlane.f32.xlu0 %v1781
        %v1783 = vpop.xlane.xlu0 %1782
        %v1784 = vsub.f32 %v1752, %v1762
        %v1785 = vsub.f32 %v1753, %v1765
        %v1786 = vsub.f32 %v1754, %v1768
        %v1787 = vsub.f32 %v1755, %v1771
        %v1788 = vsub.f32 %v1756, %v1774
        %v1789 = vsub.f32 %v1757, %v1777
        %v1790 = vsub.f32 %v1758, %v1780
        %v1791 = vsub.f32 %v1759, %v1783
        %v1792 = vmul.f32 %v1784, 1.442695
        %v1793 = vpow.pop %v1792
        %v1794 = vmul.f32 %v1785, 1.442695
        %v1795 = vpow.pop %v1794
        %v1796 = vmul.f32 %v1786, 1.442695
        %v1797 = vpow.pop %v1796
        %v1798 = vmul.f32 %v1787, 1.442695
        %v1799 = vpow.pop %v1798
        %v1800 = vmul.f32 %v1788, 1.442695
        %v1801 = vpow.pop %v1800
        %v1802 = vmul.f32 %v1789, 1.442695
        %v1803 = vpow.pop %v1802
        %v1804 = vmul.f32 %v1790, 1.442695
        %v1805 = vpow.pop %v1804
        %v1806 = vmul.f32 %v1791, 1.442695
        %v1807 = vpow.pop %v1806
        %v1808 = vsel %vm1254, %v1793, 0.0
        %1809 = vadd.xlane.f32.xlu0 %v1808
        %v1810 = vpop.xlane.xlu0 %1809
        %v1811 = vsel %vm1254, %v1795, 0.0
        %1812 = vadd.xlane.f32.xlu0 %v1811
        %v1813 = vpop.xlane.xlu0 %1812
        %v1814 = vsel %vm1254, %v1797, 0.0
        %1815 = vadd.xlane.f32.xlu0 %v1814
        %v1816 = vpop.xlane.xlu0 %1815
        %v1817 = vsel %vm1254, %v1799, 0.0
        %1818 = vadd.xlane.f32.xlu0 %v1817
        %v1819 = vpop.xlane.xlu0 %1818
        %v1820 = vsel %vm1254, %v1801, 0.0
        %1821 = vadd.xlane.f32.xlu0 %v1820
        %v1822 = vpop.xlane.xlu0 %1821
        %v1823 = vsel %vm1254, %v1803, 0.0
        %1824 = vadd.xlane.f32.xlu0 %v1823
        %v1825 = vpop.xlane.xlu0 %1824
        %v1826 = vsel %vm1254, %v1805, 0.0
        %1827 = vadd.xlane.f32.xlu0 %v1826
        %v1828 = vpop.xlane.xlu0 %1827
        %v1829 = vsel %vm1254, %v1807, 0.0
        %1830 = vadd.xlane.f32.xlu0 %v1829
        %v1831 = vpop.xlane.xlu0 %1830
        %v1832 = vrcp.pop %v1810
        %v1833 = vrcp.pop %v1813
        %v1834 = vrcp.pop %v1816
        %v1835 = vrcp.pop %v1819
        %v1836 = vrcp.pop %v1822
        %v1837 = vrcp.pop %v1825
        %v1838 = vrcp.pop %v1828
        %v1839 = vrcp.pop %v1831
        %v1840 = vmul.f32 %v1793, %v1832
        %v1841 = vmul.f32 %v1795, %v1833
        %v1842 = vmul.f32 %v1797, %v1834
        %v1843 = vmul.f32 %v1799, %v1835
        %v1844 = vmul.f32 %v1801, %v1836
        %v1845 = vmul.f32 %v1803, %v1837
        %v1846 = vmul.f32 %v1805, %v1838
        %v1847 = vmul.f32 %v1807, %v1839
        %v1848 = vpack.c.bf16 %v1841, %v1840
        %v1849 = vpack.c.bf16 %v1843, %v1842
        %v1850 = vpack.c.bf16 %v1845, %v1844
        %v1851 = vpack.c.bf16 %v1847, %v1846
        %1853 = vrot.lane.b32.xlu0 %v1045, 120
        %v1854 = vpop.permute.xlu0 %1853
        %v1857 = vsel %vm1254, %v1848, 0
        %1859 = vmatprep.subr.bf16.mxu0 0
        %1860 = vmatpush1.bf16.msra.mxu0 %v1854
        %1861 = vmatprep.subr.bf16.mxu0 0
        %1862 = vmatpush1.bf16.msra.mxu0 0
        %1863 = vmatprep.subr.bf16.mxu0 0
        %1864 = vmatpush1.bf16.msra.mxu0 0
        %1865 = vmatprep.subr.bf16.mxu0 0
        %1866 = vmatpush1.bf16.msra.mxu0 0
        %1867 = vmatprep.subr.bf16.mxu0 0
        %1868 = vmatpush1.bf16.msra.mxu0 0
        %1869 = vmatprep.subr.bf16.mxu0 0
        %1870 = vmatpush1.bf16.msra.mxu0 0
        %1871 = vmatprep.subr.bf16.mxu0 0
        %1872 = vmatpush1.bf16.msra.mxu0 0
        %1873 = vmatprep.subr.bf16.mxu0 0
        %1874 = vmatpush1.bf16.msra.mxu0 0
        %1875 = vmatprep.subr.bf16.mxu0 0
        %1876 = vmatpush1.bf16.msra.mxu0 0
        %1877 = vmatprep.subr.bf16.mxu0 0
        %1878 = vmatpush1.bf16.msra.mxu0 0
        %1879 = vmatprep.subr.bf16.mxu0 0
        %1880 = vmatpush1.bf16.msra.mxu0 0
        %1881 = vmatprep.subr.bf16.mxu0 0
        %1882 = vmatpush1.bf16.msra.mxu0 0
        %1883 = vmatprep.subr.bf16.mxu0 0
        %1884 = vmatpush1.bf16.msra.mxu0 0
        %1885 = vmatprep.subr.bf16.mxu0 0
        %1886 = vmatpush1.bf16.msra.mxu0 0
        %1887 = vmatprep.subr.bf16.mxu0 0
        %1888 = vmatpush1.bf16.msra.mxu0 0
        %1889 = vmatprep.subr.bf16.mxu0 0
        %1890 = vmatpush1.bf16.msra.mxu0 0
        %1891 = vmatprep.mubr.bf16.mxu0 0
        %1892 = vmatmul.mubr.bf16.gmra.mrb[0].mxu0 %v1857
        %v1893 = vpop.f32.mrb[0].mxu0
        %v1894 = vadd.f32 0.0, %v1893
        %v1895 = vpop.f32.mrb[0].mxu0
        %v1896 = vpop.f32.mrb[0].mxu0
        %v1897 = vadd.f32 0.0, %v1896
        %v1898 = vpop.f32.mrb[0].mxu0
        %1899 = vdwg.mxu0
        %1901 = vrot.lane.b32.xlu0 %v1046, 120
        %v1902 = vpop.permute.xlu0 %1901
        %v1905 = vsel %vm1254, %v1849, 0
        %1907 = vmatprep.subr.bf16.mxu0 0
        %1908 = vmatpush1.bf16.msra.mxu0 %v1902
        %1909 = vmatprep.subr.bf16.mxu0 0
        %1910 = vmatpush1.bf16.msra.mxu0 0
        %1911 = vmatprep.subr.bf16.mxu0 0
        %1912 = vmatpush1.bf16.msra.mxu0 0
        %1913 = vmatprep.subr.bf16.mxu0 0
        %1914 = vmatpush1.bf16.msra.mxu0 0
        %1915 = vmatprep.subr.bf16.mxu0 0
        %1916 = vmatpush1.bf16.msra.mxu0 0
        %1917 = vmatprep.subr.bf16.mxu0 0
        %1918 = vmatpush1.bf16.msra.mxu0 0
        %1919 = vmatprep.subr.bf16.mxu0 0
        %1920 = vmatpush1.bf16.msra.mxu0 0
        %1921 = vmatprep.subr.bf16.mxu0 0
        %1922 = vmatpush1.bf16.msra.mxu0 0
        %1923 = vmatprep.subr.bf16.mxu0 0
        %1924 = vmatpush1.bf16.msra.mxu0 0
        %1925 = vmatprep.subr.bf16.mxu0 0
        %1926 = vmatpush1.bf16.msra.mxu0 0
        %1927 = vmatprep.subr.bf16.mxu0 0
        %1928 = vmatpush1.bf16.msra.mxu0 0
        %1929 = vmatprep.subr.bf16.mxu0 0
        %1930 = vmatpush1.bf16.msra.mxu0 0
        %1931 = vmatprep.subr.bf16.mxu0 0
        %1932 = vmatpush1.bf16.msra.mxu0 0
        %1933 = vmatprep.subr.bf16.mxu0 0
        %1934 = vmatpush1.bf16.msra.mxu0 0
        %1935 = vmatprep.subr.bf16.mxu0 0
        %1936 = vmatpush1.bf16.msra.mxu0 0
        %1937 = vmatprep.subr.bf16.mxu0 0
        %1938 = vmatpush1.bf16.msra.mxu0 0
        %1939 = vmatprep.mubr.bf16.mxu0 0
        %1940 = vmatmul.mubr.bf16.gmra.mrb[0].mxu0 %v1905
        %v1941 = vpop.f32.mrb[0].mxu0
        %v1942 = vadd.f32 0.0, %v1941
        %v1943 = vpop.f32.mrb[0].mxu0
        %v1944 = vpop.f32.mrb[0].mxu0
        %v1945 = vadd.f32 0.0, %v1944
        %v1946 = vpop.f32.mrb[0].mxu0
        %1947 = vdwg.mxu0
        %1949 = vrot.lane.b32.xlu0 %v1047, 120
        %v1950 = vpop.permute.xlu0 %1949
        %v1953 = vsel %vm1254, %v1850, 0
        %1955 = vmatprep.subr.bf16.mxu0 0
        %1956 = vmatpush1.bf16.msra.mxu0 %v1950
        %1957 = vmatprep.subr.bf16.mxu0 0
        %1958 = vmatpush1.bf16.msra.mxu0 0
        %1959 = vmatprep.subr.bf16.mxu0 0
        %1960 = vmatpush1.bf16.msra.mxu0 0
        %1961 = vmatprep.subr.bf16.mxu0 0
        %1962 = vmatpush1.bf16.msra.mxu0 0
        %1963 = vmatprep.subr.bf16.mxu0 0
        %1964 = vmatpush1.bf16.msra.mxu0 0
        %1965 = vmatprep.subr.bf16.mxu0 0
        %1966 = vmatpush1.bf16.msra.mxu0 0
        %1967 = vmatprep.subr.bf16.mxu0 0
        %1968 = vmatpush1.bf16.msra.mxu0 0
        %1969 = vmatprep.subr.bf16.mxu0 0
        %1970 = vmatpush1.bf16.msra.mxu0 0
        %1971 = vmatprep.subr.bf16.mxu0 0
        %1972 = vmatpush1.bf16.msra.mxu0 0
        %1973 = vmatprep.subr.bf16.mxu0 0
        %1974 = vmatpush1.bf16.msra.mxu0 0
        %1975 = vmatprep.subr.bf16.mxu0 0
        %1976 = vmatpush1.bf16.msra.mxu0 0
        %1977 = vmatprep.subr.bf16.mxu0 0
        %1978 = vmatpush1.bf16.msra.mxu0 0
        %1979 = vmatprep.subr.bf16.mxu0 0
        %1980 = vmatpush1.bf16.msra.mxu0 0
        %1981 = vmatprep.subr.bf16.mxu0 0
        %1982 = vmatpush1.bf16.msra.mxu0 0
        %1983 = vmatprep.subr.bf16.mxu0 0
        %1984 = vmatpush1.bf16.msra.mxu0 0
        %1985 = vmatprep.subr.bf16.mxu0 0
        %1986 = vmatpush1.bf16.msra.mxu0 0
        %1987 = vmatprep.mubr.bf16.mxu0 0
        %1988 = vmatmul.mubr.bf16.gmra.mrb[0].mxu0 %v1953
        %v1989 = vpop.f32.mrb[0].mxu0
        %v1990 = vadd.f32 0.0, %v1989
        %v1991 = vpop.f32.mrb[0].mxu0
        %v1992 = vpop.f32.mrb[0].mxu0
        %v1993 = vadd.f32 0.0, %v1992
        %v1994 = vpop.f32.mrb[0].mxu0
        %1995 = vdwg.mxu0
        %1997 = vrot.lane.b32.xlu0 %v1048, 120
        %v1998 = vpop.permute.xlu0 %1997
        %v2001 = vsel %vm1254, %v1851, 0
        %2003 = vmatprep.subr.bf16.mxu0 0
        %2004 = vmatpush1.bf16.msra.mxu0 %v1998
        %2005 = vmatprep.subr.bf16.mxu0 0
        %2006 = vmatpush1.bf16.msra.mxu0 0
        %2007 = vmatprep.subr.bf16.mxu0 0
        %2008 = vmatpush1.bf16.msra.mxu0 0
        %2009 = vmatprep.subr.bf16.mxu0 0
        %2010 = vmatpush1.bf16.msra.mxu0 0
        %2011 = vmatprep.subr.bf16.mxu0 0
        %2012 = vmatpush1.bf16.msra.mxu0 0
        %2013 = vmatprep.subr.bf16.mxu0 0
        %2014 = vmatpush1.bf16.msra.mxu0 0
        %2015 = vmatprep.subr.bf16.mxu0 0
        %2016 = vmatpush1.bf16.msra.mxu0 0
        %2017 = vmatprep.subr.bf16.mxu0 0
        %2018 = vmatpush1.bf16.msra.mxu0 0
        %2019 = vmatprep.subr.bf16.mxu0 0
        %2020 = vmatpush1.bf16.msra.mxu0 0
        %2021 = vmatprep.subr.bf16.mxu0 0
        %2022 = vmatpush1.bf16.msra.mxu0 0
        %2023 = vmatprep.subr.bf16.mxu0 0
        %2024 = vmatpush1.bf16.msra.mxu0 0
        %2025 = vmatprep.subr.bf16.mxu0 0
        %2026 = vmatpush1.bf16.msra.mxu0 0
        %2027 = vmatprep.subr.bf16.mxu0 0
        %2028 = vmatpush1.bf16.msra.mxu0 0
        %2029 = vmatprep.subr.bf16.mxu0 0
        %2030 = vmatpush1.bf16.msra.mxu0 0
        %2031 = vmatprep.subr.bf16.mxu0 0
        %2032 = vmatpush1.bf16.msra.mxu0 0
        %2033 = vmatprep.subr.bf16.mxu0 0
        %2034 = vmatpush1.bf16.msra.mxu0 0
        %2035 = vmatprep.mubr.bf16.mxu0 0
        %2036 = vmatmul.mubr.bf16.gmra.mrb[0].mxu0 %v2001
        %v2037 = vpop.f32.mrb[0].mxu0
        %v2038 = vadd.f32 0.0, %v2037
        %v2039 = vpop.f32.mrb[0].mxu0
        %v2040 = vpop.f32.mrb[0].mxu0
        %v2041 = vadd.f32 0.0, %v2040
        %v2042 = vpop.f32.mrb[0].mxu0
        %2043 = vdwg.mxu0
        %2052 = vrot.lane.b32.xlu0 %v1894, 8
        %v2053 = vpop.permute.xlu0 %2052
        %2054 = vrot.lane.b32.xlu0 %v1897, 8
        %v2055 = vpop.permute.xlu0 %2054
        %2056 = vrot.lane.b32.xlu0 %v1942, 8
        %v2057 = vpop.permute.xlu0 %2056
        %2058 = vrot.lane.b32.xlu0 %v1945, 8
        %v2059 = vpop.permute.xlu0 %2058
        %2060 = vrot.lane.b32.xlu0 %v1990, 8
        %v2061 = vpop.permute.xlu0 %2060
        %2062 = vrot.lane.b32.xlu0 %v1993, 8
        %v2063 = vpop.permute.xlu0 %2062
        %2064 = vrot.lane.b32.xlu0 %v2038, 8
        %v2065 = vpop.permute.xlu0 %2064
        %2066 = vrot.lane.b32.xlu0 %v2041, 8
        %v2067 = vpop.permute.xlu0 %2066
        %vm2076 = vcmask 130112
        %2077 = vst.msk [vmem:[#allocation2] sm:$0xff] %vm2076, %v2053
        %2078 = vst.msk [vmem:[#allocation2 + $0x8] sm:$0xff] %vm2076, %v2055
        %2079 = vst.msk [vmem:[#allocation2 + $0x10] sm:$0xff] %vm2076, %v2057
        %2080 = vst.msk [vmem:[#allocation2 + $0x18] sm:$0xff] %vm2076, %v2059
        %2081 = vst.msk [vmem:[#allocation2 + $0x20] sm:$0xff] %vm2076, %v2061
        %2082 = vst.msk [vmem:[#allocation2 + $0x28] sm:$0xff] %vm2076, %v2063
        %2083 = vst.msk [vmem:[#allocation2 + $0x30] sm:$0xff] %vm2076, %v2065
        %2084 = vst.msk [vmem:[#allocation2 + $0x38] sm:$0xff] %vm2076, %v2067
        %2085 = vrot.lane.b32.xlu0 %v861, 112
        %v2086 = vpop.permute.xlu0 %2085
        %2087 = vrot.lane.b32.xlu0 %v953, 112
        %v2088 = vpop.permute.xlu0 %2087
        %v2090 = vsel %vm1049, %v2086, 0
        %v2093 = vsel %vm1049, %v2088, 0
        %2095 = vmatprep.subr.bf16.mxu0 0
        %2096 = vmatpush1.bf16.xpose.msra.mxu0 %v2093
        %2097 = vmatprep.subr.bf16.mxu0 0
        %2098 = vmatpush1.bf16.xpose.msra.mxu0 0
        %2099 = vmatprep.subr.bf16.mxu0 0
        %2100 = vmatpush1.bf16.xpose.msra.mxu0 0
        %2101 = vmatprep.subr.bf16.mxu0 0
        %2102 = vmatpush1.bf16.xpose.msra.mxu0 0
        %2103 = vmatprep.subr.bf16.mxu0 0
        %2104 = vmatpush1.bf16.xpose.msra.mxu0 0
        %2105 = vmatprep.subr.bf16.mxu0 0
        %2106 = vmatpush1.bf16.xpose.msra.mxu0 0
        %2107 = vmatprep.subr.bf16.mxu0 0
        %2108 = vmatpush1.bf16.xpose.msra.mxu0 0
        %2109 = vmatprep.subr.bf16.mxu0 0
        %2110 = vmatpush1.bf16.xpose.msra.mxu0 0
        %2111 = vmatprep.subr.bf16.mxu0 0
        %2112 = vmatpush1.bf16.xpose.msra.mxu0 0
        %2113 = vmatprep.subr.bf16.mxu0 0
        %2114 = vmatpush1.bf16.xpose.msra.mxu0 0
        %2115 = vmatprep.subr.bf16.mxu0 0
        %2116 = vmatpush1.bf16.xpose.msra.mxu0 0
        %2117 = vmatprep.subr.bf16.mxu0 0
        %2118 = vmatpush1.bf16.xpose.msra.mxu0 0
        %2119 = vmatprep.subr.bf16.mxu0 0
        %2120 = vmatpush1.bf16.xpose.msra.mxu0 0
        %2121 = vmatprep.subr.bf16.mxu0 0
        %2122 = vmatpush1.bf16.xpose.msra.mxu0 0
        %2123 = vmatprep.subr.bf16.mxu0 0
        %2124 = vmatpush1.bf16.xpose.msra.mxu0 0
        %2125 = vmatprep.subr.bf16.mxu0 0
        %2126 = vmatpush1.bf16.xpose.msra.mxu0 0
        %2127 = vmatprep.mubr.bf16.mxu0 0
        %2128 = vmatmul.mubr.bf16.gmra.mrb[0].mxu0 %v2090
        %v2129 = vpop.f32.mrb[0].mxu0
        %v2130 = vadd.f32 0.0, %v2129
        %v2131 = vpop.f32.mrb[0].mxu0
        %v2132 = vpop.f32.mrb[0].mxu0
        %v2133 = vadd.f32 0.0, %v2132
        %v2134 = vpop.f32.mrb[0].mxu0
        %2135 = vdwg.mxu0
        %2136 = vrot.lane.b32.xlu0 %v862, 112
        %v2137 = vpop.permute.xlu0 %2136
        %2138 = vrot.lane.b32.xlu0 %v954, 112
        %v2139 = vpop.permute.xlu0 %2138
        %v2141 = vsel %vm1049, %v2137, 0
        %v2144 = vsel %vm1049, %v2139, 0
        %2146 = vmatprep.subr.bf16.mxu0 0
        %2147 = vmatpush1.bf16.xpose.msra.mxu0 %v2144
        %2148 = vmatprep.subr.bf16.mxu0 0
        %2149 = vmatpush1.bf16.xpose.msra.mxu0 0
        %2150 = vmatprep.subr.bf16.mxu0 0
        %2151 = vmatpush1.bf16.xpose.msra.mxu0 0
        %2152 = vmatprep.subr.bf16.mxu0 0
        %2153 = vmatpush1.bf16.xpose.msra.mxu0 0
        %2154 = vmatprep.subr.bf16.mxu0 0
        %2155 = vmatpush1.bf16.xpose.msra.mxu0 0
        %2156 = vmatprep.subr.bf16.mxu0 0
        %2157 = vmatpush1.bf16.xpose.msra.mxu0 0
        %2158 = vmatprep.subr.bf16.mxu0 0
        %2159 = vmatpush1.bf16.xpose.msra.mxu0 0
        %2160 = vmatprep.subr.bf16.mxu0 0
        %2161 = vmatpush1.bf16.xpose.msra.mxu0 0
        %2162 = vmatprep.subr.bf16.mxu0 0
        %2163 = vmatpush1.bf16.xpose.msra.mxu0 0
        %2164 = vmatprep.subr.bf16.mxu0 0
        %2165 = vmatpush1.bf16.xpose.msra.mxu0 0
        %2166 = vmatprep.subr.bf16.mxu0 0
        %2167 = vmatpush1.bf16.xpose.msra.mxu0 0
        %2168 = vmatprep.subr.bf16.mxu0 0
        %2169 = vmatpush1.bf16.xpose.msra.mxu0 0
        %2170 = vmatprep.subr.bf16.mxu0 0
        %2171 = vmatpush1.bf16.xpose.msra.mxu0 0
        %2172 = vmatprep.subr.bf16.mxu0 0
        %2173 = vmatpush1.bf16.xpose.msra.mxu0 0
        %2174 = vmatprep.subr.bf16.mxu0 0
        %2175 = vmatpush1.bf16.xpose.msra.mxu0 0
        %2176 = vmatprep.subr.bf16.mxu0 0
        %2177 = vmatpush1.bf16.xpose.msra.mxu0 0
        %2178 = vmatprep.mubr.bf16.mxu0 0
        %2179 = vmatmul.mubr.bf16.gmra.mrb[0].mxu0 %v2141
        %v2180 = vpop.f32.mrb[0].mxu0
        %v2181 = vadd.f32 0.0, %v2180
        %v2182 = vpop.f32.mrb[0].mxu0
        %v2183 = vpop.f32.mrb[0].mxu0
        %v2184 = vadd.f32 0.0, %v2183
        %v2185 = vpop.f32.mrb[0].mxu0
        %2186 = vdwg.mxu0
        %2187 = vrot.lane.b32.xlu0 %v863, 112
        %v2188 = vpop.permute.xlu0 %2187
        %2189 = vrot.lane.b32.xlu0 %v955, 112
        %v2190 = vpop.permute.xlu0 %2189
        %v2192 = vsel %vm1049, %v2188, 0
        %v2195 = vsel %vm1049, %v2190, 0
        %2197 = vmatprep.subr.bf16.mxu0 0
        %2198 = vmatpush1.bf16.xpose.msra.mxu0 %v2195
        %2199 = vmatprep.subr.bf16.mxu0 0
        %2200 = vmatpush1.bf16.xpose.msra.mxu0 0
        %2201 = vmatprep.subr.bf16.mxu0 0
        %2202 = vmatpush1.bf16.xpose.msra.mxu0 0
        %2203 = vmatprep.subr.bf16.mxu0 0
        %2204 = vmatpush1.bf16.xpose.msra.mxu0 0
        %2205 = vmatprep.subr.bf16.mxu0 0
        %2206 = vmatpush1.bf16.xpose.msra.mxu0 0
        %2207 = vmatprep.subr.bf16.mxu0 0
        %2208 = vmatpush1.bf16.xpose.msra.mxu0 0
        %2209 = vmatprep.subr.bf16.mxu0 0
        %2210 = vmatpush1.bf16.xpose.msra.mxu0 0
        %2211 = vmatprep.subr.bf16.mxu0 0
        %2212 = vmatpush1.bf16.xpose.msra.mxu0 0
        %2213 = vmatprep.subr.bf16.mxu0 0
        %2214 = vmatpush1.bf16.xpose.msra.mxu0 0
        %2215 = vmatprep.subr.bf16.mxu0 0
        %2216 = vmatpush1.bf16.xpose.msra.mxu0 0
        %2217 = vmatprep.subr.bf16.mxu0 0
        %2218 = vmatpush1.bf16.xpose.msra.mxu0 0
        %2219 = vmatprep.subr.bf16.mxu0 0
        %2220 = vmatpush1.bf16.xpose.msra.mxu0 0
        %2221 = vmatprep.subr.bf16.mxu0 0
        %2222 = vmatpush1.bf16.xpose.msra.mxu0 0
        %2223 = vmatprep.subr.bf16.mxu0 0
        %2224 = vmatpush1.bf16.xpose.msra.mxu0 0
        %2225 = vmatprep.subr.bf16.mxu0 0
        %2226 = vmatpush1.bf16.xpose.msra.mxu0 0
        %2227 = vmatprep.subr.bf16.mxu0 0
        %2228 = vmatpush1.bf16.xpose.msra.mxu0 0
        %2229 = vmatprep.mubr.bf16.mxu0 0
        %2230 = vmatmul.mubr.bf16.gmra.mrb[0].mxu0 %v2192
        %v2231 = vpop.f32.mrb[0].mxu0
        %v2232 = vadd.f32 0.0, %v2231
        %v2233 = vpop.f32.mrb[0].mxu0
        %v2234 = vpop.f32.mrb[0].mxu0
        %v2235 = vadd.f32 0.0, %v2234
        %v2236 = vpop.f32.mrb[0].mxu0
        %2237 = vdwg.mxu0
        %2238 = vrot.lane.b32.xlu0 %v864, 112
        %v2239 = vpop.permute.xlu0 %2238
        %2240 = vrot.lane.b32.xlu0 %v956, 112
        %v2241 = vpop.permute.xlu0 %2240
        %v2243 = vsel %vm1049, %v2239, 0
        %v2246 = vsel %vm1049, %v2241, 0
        %2248 = vmatprep.subr.bf16.mxu0 0
        %2249 = vmatpush1.bf16.xpose.msra.mxu0 %v2246
        %2250 = vmatprep.subr.bf16.mxu0 0
        %2251 = vmatpush1.bf16.xpose.msra.mxu0 0
        %2252 = vmatprep.subr.bf16.mxu0 0
        %2253 = vmatpush1.bf16.xpose.msra.mxu0 0
        %2254 = vmatprep.subr.bf16.mxu0 0
        %2255 = vmatpush1.bf16.xpose.msra.mxu0 0
        %2256 = vmatprep.subr.bf16.mxu0 0
        %2257 = vmatpush1.bf16.xpose.msra.mxu0 0
        %2258 = vmatprep.subr.bf16.mxu0 0
        %2259 = vmatpush1.bf16.xpose.msra.mxu0 0
        %2260 = vmatprep.subr.bf16.mxu0 0
        %2261 = vmatpush1.bf16.xpose.msra.mxu0 0
        %2262 = vmatprep.subr.bf16.mxu0 0
        %2263 = vmatpush1.bf16.xpose.msra.mxu0 0
        %2264 = vmatprep.subr.bf16.mxu0 0
        %2265 = vmatpush1.bf16.xpose.msra.mxu0 0
        %2266 = vmatprep.subr.bf16.mxu0 0
        %2267 = vmatpush1.bf16.xpose.msra.mxu0 0
        %2268 = vmatprep.subr.bf16.mxu0 0
        %2269 = vmatpush1.bf16.xpose.msra.mxu0 0
        %2270 = vmatprep.subr.bf16.mxu0 0
        %2271 = vmatpush1.bf16.xpose.msra.mxu0 0
        %2272 = vmatprep.subr.bf16.mxu0 0
        %2273 = vmatpush1.bf16.xpose.msra.mxu0 0
        %2274 = vmatprep.subr.bf16.mxu0 0
        %2275 = vmatpush1.bf16.xpose.msra.mxu0 0
        %2276 = vmatprep.subr.bf16.mxu0 0
        %2277 = vmatpush1.bf16.xpose.msra.mxu0 0
        %2278 = vmatprep.subr.bf16.mxu0 0
        %2279 = vmatpush1.bf16.xpose.msra.mxu0 0
        %2280 = vmatprep.mubr.bf16.mxu0 0
        %2281 = vmatmul.mubr.bf16.gmra.mrb[0].mxu0 %v2243
        %v2282 = vpop.f32.mrb[0].mxu0
        %v2283 = vadd.f32 0.0, %v2282
        %v2284 = vpop.f32.mrb[0].mxu0
        %v2285 = vpop.f32.mrb[0].mxu0
        %v2286 = vadd.f32 0.0, %v2285
        %v2287 = vpop.f32.mrb[0].mxu0
        %2288 = vdwg.mxu0
        %s2289 = scalar_lea.vmem [#allocation6], 128
        %v2290 = vld [vmem:[%s2289] sm:$0xff]
        %v2291 = vld [vmem:[%s2289 + $0x8] sm:$0xff]
        %v2292 = vld [vmem:[%s2289 + $0x10] sm:$0xff]
        %v2293 = vld [vmem:[%s2289 + $0x18] sm:$0xff]
        %v2294 = vld [vmem:[%s2289 + $0x20] sm:$0xff]
        %v2295 = vld [vmem:[%s2289 + $0x28] sm:$0xff]
        %v2296 = vld [vmem:[%s2289 + $0x30] sm:$0xff]
        %v2297 = vld [vmem:[%s2289 + $0x38] sm:$0xff]
        %v2298 = vadd.f32 %v2130, %v2290
        %v2299 = vadd.f32 %v2133, %v2291
        %v2300 = vadd.f32 %v2181, %v2292
        %v2301 = vadd.f32 %v2184, %v2293
        %v2302 = vadd.f32 %v2232, %v2294
        %v2303 = vadd.f32 %v2235, %v2295
        %v2304 = vadd.f32 %v2283, %v2296
        %v2305 = vadd.f32 %v2286, %v2297
        %v2306 = vsel %vm1254, %v2298, -inf
        %2307 = vmax.xlane.f32.xlu0 %v2306
        %v2308 = vpop.xlane.xlu0 %2307
        %v2309 = vsel %vm1254, %v2299, -inf
        %2310 = vmax.xlane.f32.xlu0 %v2309
        %v2311 = vpop.xlane.xlu0 %2310
        %v2312 = vsel %vm1254, %v2300, -inf
        %2313 = vmax.xlane.f32.xlu0 %v2312
        %v2314 = vpop.xlane.xlu0 %2313
        %v2315 = vsel %vm1254, %v2301, -inf
        %2316 = vmax.xlane.f32.xlu0 %v2315
        %v2317 = vpop.xlane.xlu0 %2316
        %v2318 = vsel %vm1254, %v2302, -inf
        %2319 = vmax.xlane.f32.xlu0 %v2318
        %v2320 = vpop.xlane.xlu0 %2319
        %v2321 = vsel %vm1254, %v2303, -inf
        %2322 = vmax.xlane.f32.xlu0 %v2321
        %v2323 = vpop.xlane.xlu0 %2322
        %v2324 = vsel %vm1254, %v2304, -inf
        %2325 = vmax.xlane.f32.xlu0 %v2324
        %v2326 = vpop.xlane.xlu0 %2325
        %v2327 = vsel %vm1254, %v2305, -inf
        %2328 = vmax.xlane.f32.xlu0 %v2327
        %v2329 = vpop.xlane.xlu0 %2328
        %v2330 = vsub.f32 %v2298, %v2308
        %v2331 = vsub.f32 %v2299, %v2311
        %v2332 = vsub.f32 %v2300, %v2314
        %v2333 = vsub.f32 %v2301, %v2317
        %v2334 = vsub.f32 %v2302, %v2320
        %v2335 = vsub.f32 %v2303, %v2323
        %v2336 = vsub.f32 %v2304, %v2326
        %v2337 = vsub.f32 %v2305, %v2329
        %v2338 = vmul.f32 %v2330, 1.442695
        %v2339 = vpow.pop %v2338
        %v2340 = vmul.f32 %v2331, 1.442695
        %v2341 = vpow.pop %v2340
        %v2342 = vmul.f32 %v2332, 1.442695
        %v2343 = vpow.pop %v2342
        %v2344 = vmul.f32 %v2333, 1.442695
        %v2345 = vpow.pop %v2344
        %v2346 = vmul.f32 %v2334, 1.442695
        %v2347 = vpow.pop %v2346
        %v2348 = vmul.f32 %v2335, 1.442695
        %v2349 = vpow.pop %v2348
        %v2350 = vmul.f32 %v2336, 1.442695
        %v2351 = vpow.pop %v2350
        %v2352 = vmul.f32 %v2337, 1.442695
        %v2353 = vpow.pop %v2352
        %v2354 = vsel %vm1254, %v2339, 0.0
        %2355 = vadd.xlane.f32.xlu0 %v2354
        %v2356 = vpop.xlane.xlu0 %2355
        %v2357 = vsel %vm1254, %v2341, 0.0
        %2358 = vadd.xlane.f32.xlu0 %v2357
        %v2359 = vpop.xlane.xlu0 %2358
        %v2360 = vsel %vm1254, %v2343, 0.0
        %2361 = vadd.xlane.f32.xlu0 %v2360
        %v2362 = vpop.xlane.xlu0 %2361
        %v2363 = vsel %vm1254, %v2345, 0.0
        %2364 = vadd.xlane.f32.xlu0 %v2363
        %v2365 = vpop.xlane.xlu0 %2364
        %v2366 = vsel %vm1254, %v2347, 0.0
        %2367 = vadd.xlane.f32.xlu0 %v2366
        %v2368 = vpop.xlane.xlu0 %2367
        %v2369 = vsel %vm1254, %v2349, 0.0
        %2370 = vadd.xlane.f32.xlu0 %v2369
        %v2371 = vpop.xlane.xlu0 %2370
        %v2372 = vsel %vm1254, %v2351, 0.0
        %2373 = vadd.xlane.f32.xlu0 %v2372
        %v2374 = vpop.xlane.xlu0 %2373
        %v2375 = vsel %vm1254, %v2353, 0.0
        %2376 = vadd.xlane.f32.xlu0 %v2375
        %v2377 = vpop.xlane.xlu0 %2376
        %v2378 = vrcp.pop %v2356
        %v2379 = vrcp.pop %v2359
        %v2380 = vrcp.pop %v2362
        %v2381 = vrcp.pop %v2365
        %v2382 = vrcp.pop %v2368
        %v2383 = vrcp.pop %v2371
        %v2384 = vrcp.pop %v2374
        %v2385 = vrcp.pop %v2377
        %v2386 = vmul.f32 %v2339, %v2378
        %v2387 = vmul.f32 %v2341, %v2379
        %v2388 = vmul.f32 %v2343, %v2380
        %v2389 = vmul.f32 %v2345, %v2381
        %v2390 = vmul.f32 %v2347, %v2382
        %v2391 = vmul.f32 %v2349, %v2383
        %v2392 = vmul.f32 %v2351, %v2384
        %v2393 = vmul.f32 %v2353, %v2385
        %v2394 = vpack.c.bf16 %v2387, %v2386
        %v2395 = vpack.c.bf16 %v2389, %v2388
        %v2396 = vpack.c.bf16 %v2391, %v2390
        %v2397 = vpack.c.bf16 %v2393, %v2392
        %2398 = vrot.lane.b32.xlu0 %v1045, 112
        %v2399 = vpop.permute.xlu0 %2398
        %v2402 = vsel %vm1254, %v2394, 0
        %2404 = vmatprep.subr.bf16.mxu0 0
        %2405 = vmatpush1.bf16.msra.mxu0 %v2399
        %2406 = vmatprep.subr.bf16.mxu0 0
        %2407 = vmatpush1.bf16.msra.mxu0 0
        %2408 = vmatprep.subr.bf16.mxu0 0
        %2409 = vmatpush1.bf16.msra.mxu0 0
        %2410 = vmatprep.subr.bf16.mxu0 0
        %2411 = vmatpush1.bf16.msra.mxu0 0
        %2412 = vmatprep.subr.bf16.mxu0 0
        %2413 = vmatpush1.bf16.msra.mxu0 0
        %2414 = vmatprep.subr.bf16.mxu0 0
        %2415 = vmatpush1.bf16.msra.mxu0 0
        %2416 = vmatprep.subr.bf16.mxu0 0
        %2417 = vmatpush1.bf16.msra.mxu0 0
        %2418 = vmatprep.subr.bf16.mxu0 0
        %2419 = vmatpush1.bf16.msra.mxu0 0
        %2420 = vmatprep.subr.bf16.mxu0 0
        %2421 = vmatpush1.bf16.msra.mxu0 0
        %2422 = vmatprep.subr.bf16.mxu0 0
        %2423 = vmatpush1.bf16.msra.mxu0 0
        %2424 = vmatprep.subr.bf16.mxu0 0
        %2425 = vmatpush1.bf16.msra.mxu0 0
        %2426 = vmatprep.subr.bf16.mxu0 0
        %2427 = vmatpush1.bf16.msra.mxu0 0
        %2428 = vmatprep.subr.bf16.mxu0 0
        %2429 = vmatpush1.bf16.msra.mxu0 0
        %2430 = vmatprep.subr.bf16.mxu0 0
        %2431 = vmatpush1.bf16.msra.mxu0 0
        %2432 = vmatprep.subr.bf16.mxu0 0
        %2433 = vmatpush1.bf16.msra.mxu0 0
        %2434 = vmatprep.subr.bf16.mxu0 0
        %2435 = vmatpush1.bf16.msra.mxu0 0
        %2436 = vmatprep.mubr.bf16.mxu0 0
        %2437 = vmatmul.mubr.bf16.gmra.mrb[0].mxu0 %v2402
        %v2438 = vpop.f32.mrb[0].mxu0
        %v2439 = vadd.f32 0.0, %v2438
        %v2440 = vpop.f32.mrb[0].mxu0
        %v2441 = vpop.f32.mrb[0].mxu0
        %v2442 = vadd.f32 0.0, %v2441
        %v2443 = vpop.f32.mrb[0].mxu0
        %2444 = vdwg.mxu0
        %2445 = vrot.lane.b32.xlu0 %v1046, 112
        %v2446 = vpop.permute.xlu0 %2445
        %v2449 = vsel %vm1254, %v2395, 0
        %2451 = vmatprep.subr.bf16.mxu0 0
        %2452 = vmatpush1.bf16.msra.mxu0 %v2446
        %2453 = vmatprep.subr.bf16.mxu0 0
        %2454 = vmatpush1.bf16.msra.mxu0 0
        %2455 = vmatprep.subr.bf16.mxu0 0
        %2456 = vmatpush1.bf16.msra.mxu0 0
        %2457 = vmatprep.subr.bf16.mxu0 0
        %2458 = vmatpush1.bf16.msra.mxu0 0
        %2459 = vmatprep.subr.bf16.mxu0 0
        %2460 = vmatpush1.bf16.msra.mxu0 0
        %2461 = vmatprep.subr.bf16.mxu0 0
        %2462 = vmatpush1.bf16.msra.mxu0 0
        %2463 = vmatprep.subr.bf16.mxu0 0
        %2464 = vmatpush1.bf16.msra.mxu0 0
        %2465 = vmatprep.subr.bf16.mxu0 0
        %2466 = vmatpush1.bf16.msra.mxu0 0
        %2467 = vmatprep.subr.bf16.mxu0 0
        %2468 = vmatpush1.bf16.msra.mxu0 0
        %2469 = vmatprep.subr.bf16.mxu0 0
        %2470 = vmatpush1.bf16.msra.mxu0 0
        %2471 = vmatprep.subr.bf16.mxu0 0
        %2472 = vmatpush1.bf16.msra.mxu0 0
        %2473 = vmatprep.subr.bf16.mxu0 0
        %2474 = vmatpush1.bf16.msra.mxu0 0
        %2475 = vmatprep.subr.bf16.mxu0 0
        %2476 = vmatpush1.bf16.msra.mxu0 0
        %2477 = vmatprep.subr.bf16.mxu0 0
        %2478 = vmatpush1.bf16.msra.mxu0 0
        %2479 = vmatprep.subr.bf16.mxu0 0
        %2480 = vmatpush1.bf16.msra.mxu0 0
        %2481 = vmatprep.subr.bf16.mxu0 0
        %2482 = vmatpush1.bf16.msra.mxu0 0
        %2483 = vmatprep.mubr.bf16.mxu0 0
        %2484 = vmatmul.mubr.bf16.gmra.mrb[0].mxu0 %v2449
        %v2485 = vpop.f32.mrb[0].mxu0
        %v2486 = vadd.f32 0.0, %v2485
        %v2487 = vpop.f32.mrb[0].mxu0
        %v2488 = vpop.f32.mrb[0].mxu0
        %v2489 = vadd.f32 0.0, %v2488
        %v2490 = vpop.f32.mrb[0].mxu0
        %2491 = vdwg.mxu0
        %2492 = vrot.lane.b32.xlu0 %v1047, 112
        %v2493 = vpop.permute.xlu0 %2492
        %v2496 = vsel %vm1254, %v2396, 0
        %2498 = vmatprep.subr.bf16.mxu0 0
        %2499 = vmatpush1.bf16.msra.mxu0 %v2493
        %2500 = vmatprep.subr.bf16.mxu0 0
        %2501 = vmatpush1.bf16.msra.mxu0 0
        %2502 = vmatprep.subr.bf16.mxu0 0
        %2503 = vmatpush1.bf16.msra.mxu0 0
        %2504 = vmatprep.subr.bf16.mxu0 0
        %2505 = vmatpush1.bf16.msra.mxu0 0
        %2506 = vmatprep.subr.bf16.mxu0 0
        %2507 = vmatpush1.bf16.msra.mxu0 0
        %2508 = vmatprep.subr.bf16.mxu0 0
        %2509 = vmatpush1.bf16.msra.mxu0 0
        %2510 = vmatprep.subr.bf16.mxu0 0
        %2511 = vmatpush1.bf16.msra.mxu0 0
        %2512 = vmatprep.subr.bf16.mxu0 0
        %2513 = vmatpush1.bf16.msra.mxu0 0
        %2514 = vmatprep.subr.bf16.mxu0 0
        %2515 = vmatpush1.bf16.msra.mxu0 0
        %2516 = vmatprep.subr.bf16.mxu0 0
        %2517 = vmatpush1.bf16.msra.mxu0 0
        %2518 = vmatprep.subr.bf16.mxu0 0
        %2519 = vmatpush1.bf16.msra.mxu0 0
        %2520 = vmatprep.subr.bf16.mxu0 0
        %2521 = vmatpush1.bf16.msra.mxu0 0
        %2522 = vmatprep.subr.bf16.mxu0 0
        %2523 = vmatpush1.bf16.msra.mxu0 0
        %2524 = vmatprep.subr.bf16.mxu0 0
        %2525 = vmatpush1.bf16.msra.mxu0 0
        %2526 = vmatprep.subr.bf16.mxu0 0
        %2527 = vmatpush1.bf16.msra.mxu0 0
        %2528 = vmatprep.subr.bf16.mxu0 0
        %2529 = vmatpush1.bf16.msra.mxu0 0
        %2530 = vmatprep.mubr.bf16.mxu0 0
        %2531 = vmatmul.mubr.bf16.gmra.mrb[0].mxu0 %v2496
        %v2532 = vpop.f32.mrb[0].mxu0
        %v2533 = vadd.f32 0.0, %v2532
        %v2534 = vpop.f32.mrb[0].mxu0
        %v2535 = vpop.f32.mrb[0].mxu0
        %v2536 = vadd.f32 0.0, %v2535
        %v2537 = vpop.f32.mrb[0].mxu0
        %2538 = vdwg.mxu0
        %2539 = vrot.lane.b32.xlu0 %v1048, 112
        %v2540 = vpop.permute.xlu0 %2539
        %v2543 = vsel %vm1254, %v2397, 0
        %2545 = vmatprep.subr.bf16.mxu0 0
        %2546 = vmatpush1.bf16.msra.mxu0 %v2540
        %2547 = vmatprep.subr.bf16.mxu0 0
        %2548 = vmatpush1.bf16.msra.mxu0 0
        %2549 = vmatprep.subr.bf16.mxu0 0
        %2550 = vmatpush1.bf16.msra.mxu0 0
        %2551 = vmatprep.subr.bf16.mxu0 0
        %2552 = vmatpush1.bf16.msra.mxu0 0
        %2553 = vmatprep.subr.bf16.mxu0 0
        %2554 = vmatpush1.bf16.msra.mxu0 0
        %2555 = vmatprep.subr.bf16.mxu0 0
        %2556 = vmatpush1.bf16.msra.mxu0 0
        %2557 = vmatprep.subr.bf16.mxu0 0
        %2558 = vmatpush1.bf16.msra.mxu0 0
        %2559 = vmatprep.subr.bf16.mxu0 0
        %2560 = vmatpush1.bf16.msra.mxu0 0
        %2561 = vmatprep.subr.bf16.mxu0 0
        %2562 = vmatpush1.bf16.msra.mxu0 0
        %2563 = vmatprep.subr.bf16.mxu0 0
        %2564 = vmatpush1.bf16.msra.mxu0 0
        %2565 = vmatprep.subr.bf16.mxu0 0
        %2566 = vmatpush1.bf16.msra.mxu0 0
        %2567 = vmatprep.subr.bf16.mxu0 0
        %2568 = vmatpush1.bf16.msra.mxu0 0
        %2569 = vmatprep.subr.bf16.mxu0 0
        %2570 = vmatpush1.bf16.msra.mxu0 0
        %2571 = vmatprep.subr.bf16.mxu0 0
        %2572 = vmatpush1.bf16.msra.mxu0 0
        %2573 = vmatprep.subr.bf16.mxu0 0
        %2574 = vmatpush1.bf16.msra.mxu0 0
        %2575 = vmatprep.subr.bf16.mxu0 0
        %2576 = vmatpush1.bf16.msra.mxu0 0
        %2577 = vmatprep.mubr.bf16.mxu0 0
        %2578 = vmatmul.mubr.bf16.gmra.mrb[0].mxu0 %v2543
        %v2579 = vpop.f32.mrb[0].mxu0
        %v2580 = vadd.f32 0.0, %v2579
        %v2581 = vpop.f32.mrb[0].mxu0
        %v2582 = vpop.f32.mrb[0].mxu0
        %v2583 = vadd.f32 0.0, %v2582
        %v2584 = vpop.f32.mrb[0].mxu0
        %2585 = vdwg.mxu0
        %2594 = vrot.lane.b32.xlu0 %v2439, 16
        %v2595 = vpop.permute.xlu0 %2594
        %2596 = vrot.lane.b32.xlu0 %v2442, 16
        %v2597 = vpop.permute.xlu0 %2596
        %2598 = vrot.lane.b32.xlu0 %v2486, 16
        %v2599 = vpop.permute.xlu0 %2598
        %2600 = vrot.lane.b32.xlu0 %v2489, 16
        %v2601 = vpop.permute.xlu0 %2600
        %2602 = vrot.lane.b32.xlu0 %v2533, 16
        %v2603 = vpop.permute.xlu0 %2602
        %2604 = vrot.lane.b32.xlu0 %v2536, 16
        %v2605 = vpop.permute.xlu0 %2604
        %2606 = vrot.lane.b32.xlu0 %v2580, 16
        %v2607 = vpop.permute.xlu0 %2606
        %2608 = vrot.lane.b32.xlu0 %v2583, 16
        %v2609 = vpop.permute.xlu0 %2608
        %vm2618 = vcmask 195712
        %2619 = vst.msk [vmem:[#allocation2] sm:$0xff] %vm2618, %v2595
        %2620 = vst.msk [vmem:[#allocation2 + $0x8] sm:$0xff] %vm2618, %v2597
        %2621 = vst.msk [vmem:[#allocation2 + $0x10] sm:$0xff] %vm2618, %v2599
        %2622 = vst.msk [vmem:[#allocation2 + $0x18] sm:$0xff] %vm2618, %v2601
        %2623 = vst.msk [vmem:[#allocation2 + $0x20] sm:$0xff] %vm2618, %v2603
        %2624 = vst.msk [vmem:[#allocation2 + $0x28] sm:$0xff] %vm2618, %v2605
        %2625 = vst.msk [vmem:[#allocation2 + $0x30] sm:$0xff] %vm2618, %v2607
        %2626 = vst.msk [vmem:[#allocation2 + $0x38] sm:$0xff] %vm2618, %v2609
        %2627 = vrot.lane.b32.xlu0 %v861, 104
        %v2628 = vpop.permute.xlu0 %2627
        %2629 = vrot.lane.b32.xlu0 %v953, 104
        %v2630 = vpop.permute.xlu0 %2629
        %v2632 = vsel %vm1049, %v2628, 0
        %v2635 = vsel %vm1049, %v2630, 0
        %2637 = vmatprep.subr.bf16.mxu0 0
        %2638 = vmatpush1.bf16.xpose.msra.mxu0 %v2635
        %2639 = vmatprep.subr.bf16.mxu0 0
        %2640 = vmatpush1.bf16.xpose.msra.mxu0 0
        %2641 = vmatprep.subr.bf16.mxu0 0
        %2642 = vmatpush1.bf16.xpose.msra.mxu0 0
        %2643 = vmatprep.subr.bf16.mxu0 0
        %2644 = vmatpush1.bf16.xpose.msra.mxu0 0
        %2645 = vmatprep.subr.bf16.mxu0 0
        %2646 = vmatpush1.bf16.xpose.msra.mxu0 0
        %2647 = vmatprep.subr.bf16.mxu0 0
        %2648 = vmatpush1.bf16.xpose.msra.mxu0 0
        %2649 = vmatprep.subr.bf16.mxu0 0
        %2650 = vmatpush1.bf16.xpose.msra.mxu0 0
        %2651 = vmatprep.subr.bf16.mxu0 0
        %2652 = vmatpush1.bf16.xpose.msra.mxu0 0
        %2653 = vmatprep.subr.bf16.mxu0 0
        %2654 = vmatpush1.bf16.xpose.msra.mxu0 0
        %2655 = vmatprep.subr.bf16.mxu0 0
        %2656 = vmatpush1.bf16.xpose.msra.mxu0 0
        %2657 = vmatprep.subr.bf16.mxu0 0
        %2658 = vmatpush1.bf16.xpose.msra.mxu0 0
        %2659 = vmatprep.subr.bf16.mxu0 0
        %2660 = vmatpush1.bf16.xpose.msra.mxu0 0
        %2661 = vmatprep.subr.bf16.mxu0 0
        %2662 = vmatpush1.bf16.xpose.msra.mxu0 0
        %2663 = vmatprep.subr.bf16.mxu0 0
        %2664 = vmatpush1.bf16.xpose.msra.mxu0 0
        %2665 = vmatprep.subr.bf16.mxu0 0
        %2666 = vmatpush1.bf16.xpose.msra.mxu0 0
        %2667 = vmatprep.subr.bf16.mxu0 0
        %2668 = vmatpush1.bf16.xpose.msra.mxu0 0
        %2669 = vmatprep.mubr.bf16.mxu0 0
        %2670 = vmatmul.mubr.bf16.gmra.mrb[0].mxu0 %v2632
        %v2671 = vpop.f32.mrb[0].mxu0
        %v2672 = vadd.f32 0.0, %v2671
        %v2673 = vpop.f32.mrb[0].mxu0
        %v2674 = vpop.f32.mrb[0].mxu0
        %v2675 = vadd.f32 0.0, %v2674
        %v2676 = vpop.f32.mrb[0].mxu0
        %2677 = vdwg.mxu0
        %2678 = vrot.lane.b32.xlu0 %v862, 104
        %v2679 = vpop.permute.xlu0 %2678
        %2680 = vrot.lane.b32.xlu0 %v954, 104
        %v2681 = vpop.permute.xlu0 %2680
        %v2683 = vsel %vm1049, %v2679, 0
        %v2686 = vsel %vm1049, %v2681, 0
        %2688 = vmatprep.subr.bf16.mxu0 0
        %2689 = vmatpush1.bf16.xpose.msra.mxu0 %v2686
        %2690 = vmatprep.subr.bf16.mxu0 0
        %2691 = vmatpush1.bf16.xpose.msra.mxu0 0
        %2692 = vmatprep.subr.bf16.mxu0 0
        %2693 = vmatpush1.bf16.xpose.msra.mxu0 0
        %2694 = vmatprep.subr.bf16.mxu0 0
        %2695 = vmatpush1.bf16.xpose.msra.mxu0 0
        %2696 = vmatprep.subr.bf16.mxu0 0
        %2697 = vmatpush1.bf16.xpose.msra.mxu0 0
        %2698 = vmatprep.subr.bf16.mxu0 0
        %2699 = vmatpush1.bf16.xpose.msra.mxu0 0
        %2700 = vmatprep.subr.bf16.mxu0 0
        %2701 = vmatpush1.bf16.xpose.msra.mxu0 0
        %2702 = vmatprep.subr.bf16.mxu0 0
        %2703 = vmatpush1.bf16.xpose.msra.mxu0 0
        %2704 = vmatprep.subr.bf16.mxu0 0
        %2705 = vmatpush1.bf16.xpose.msra.mxu0 0
        %2706 = vmatprep.subr.bf16.mxu0 0
        %2707 = vmatpush1.bf16.xpose.msra.mxu0 0
        %2708 = vmatprep.subr.bf16.mxu0 0
        %2709 = vmatpush1.bf16.xpose.msra.mxu0 0
        %2710 = vmatprep.subr.bf16.mxu0 0
        %2711 = vmatpush1.bf16.xpose.msra.mxu0 0
        %2712 = vmatprep.subr.bf16.mxu0 0
        %2713 = vmatpush1.bf16.xpose.msra.mxu0 0
        %2714 = vmatprep.subr.bf16.mxu0 0
        %2715 = vmatpush1.bf16.xpose.msra.mxu0 0
        %2716 = vmatprep.subr.bf16.mxu0 0
        %2717 = vmatpush1.bf16.xpose.msra.mxu0 0
        %2718 = vmatprep.subr.bf16.mxu0 0
        %2719 = vmatpush1.bf16.xpose.msra.mxu0 0
        %2720 = vmatprep.mubr.bf16.mxu0 0
        %2721 = vmatmul.mubr.bf16.gmra.mrb[0].mxu0 %v2683
        %v2722 = vpop.f32.mrb[0].mxu0
        %v2723 = vadd.f32 0.0, %v2722
        %v2724 = vpop.f32.mrb[0].mxu0
        %v2725 = vpop.f32.mrb[0].mxu0
        %v2726 = vadd.f32 0.0, %v2725
        %v2727 = vpop.f32.mrb[0].mxu0
        %2728 = vdwg.mxu0
        %2729 = vrot.lane.b32.xlu0 %v863, 104
        %v2730 = vpop.permute.xlu0 %2729
        %2731 = vrot.lane.b32.xlu0 %v955, 104
        %v2732 = vpop.permute.xlu0 %2731
        %v2734 = vsel %vm1049, %v2730, 0
        %v2737 = vsel %vm1049, %v2732, 0
        %2739 = vmatprep.subr.bf16.mxu0 0
        %2740 = vmatpush1.bf16.xpose.msra.mxu0 %v2737
        %2741 = vmatprep.subr.bf16.mxu0 0
        %2742 = vmatpush1.bf16.xpose.msra.mxu0 0
        %2743 = vmatprep.subr.bf16.mxu0 0
        %2744 = vmatpush1.bf16.xpose.msra.mxu0 0
        %2745 = vmatprep.subr.bf16.mxu0 0
        %2746 = vmatpush1.bf16.xpose.msra.mxu0 0
        %2747 = vmatprep.subr.bf16.mxu0 0
        %2748 = vmatpush1.bf16.xpose.msra.mxu0 0
        %2749 = vmatprep.subr.bf16.mxu0 0
        %2750 = vmatpush1.bf16.xpose.msra.mxu0 0
        %2751 = vmatprep.subr.bf16.mxu0 0
        %2752 = vmatpush1.bf16.xpose.msra.mxu0 0
        %2753 = vmatprep.subr.bf16.mxu0 0
        %2754 = vmatpush1.bf16.xpose.msra.mxu0 0
        %2755 = vmatprep.subr.bf16.mxu0 0
        %2756 = vmatpush1.bf16.xpose.msra.mxu0 0
        %2757 = vmatprep.subr.bf16.mxu0 0
        %2758 = vmatpush1.bf16.xpose.msra.mxu0 0
        %2759 = vmatprep.subr.bf16.mxu0 0
        %2760 = vmatpush1.bf16.xpose.msra.mxu0 0
        %2761 = vmatprep.subr.bf16.mxu0 0
        %2762 = vmatpush1.bf16.xpose.msra.mxu0 0
        %2763 = vmatprep.subr.bf16.mxu0 0
        %2764 = vmatpush1.bf16.xpose.msra.mxu0 0
        %2765 = vmatprep.subr.bf16.mxu0 0
        %2766 = vmatpush1.bf16.xpose.msra.mxu0 0
        %2767 = vmatprep.subr.bf16.mxu0 0
        %2768 = vmatpush1.bf16.xpose.msra.mxu0 0
        %2769 = vmatprep.subr.bf16.mxu0 0
        %2770 = vmatpush1.bf16.xpose.msra.mxu0 0
        %2771 = vmatprep.mubr.bf16.mxu0 0
        %2772 = vmatmul.mubr.bf16.gmra.mrb[0].mxu0 %v2734
        %v2773 = vpop.f32.mrb[0].mxu0
        %v2774 = vadd.f32 0.0, %v2773
        %v2775 = vpop.f32.mrb[0].mxu0
        %v2776 = vpop.f32.mrb[0].mxu0
        %v2777 = vadd.f32 0.0, %v2776
        %v2778 = vpop.f32.mrb[0].mxu0
        %2779 = vdwg.mxu0
        %2780 = vrot.lane.b32.xlu0 %v864, 104
        %v2781 = vpop.permute.xlu0 %2780
        %2782 = vrot.lane.b32.xlu0 %v956, 104
        %v2783 = vpop.permute.xlu0 %2782
        %v2785 = vsel %vm1049, %v2781, 0
        %v2788 = vsel %vm1049, %v2783, 0
        %2790 = vmatprep.subr.bf16.mxu0 0
        %2791 = vmatpush1.bf16.xpose.msra.mxu0 %v2788
        %2792 = vmatprep.subr.bf16.mxu0 0
        %2793 = vmatpush1.bf16.xpose.msra.mxu0 0
        %2794 = vmatprep.subr.bf16.mxu0 0
        %2795 = vmatpush1.bf16.xpose.msra.mxu0 0
        %2796 = vmatprep.subr.bf16.mxu0 0
        %2797 = vmatpush1.bf16.xpose.msra.mxu0 0
        %2798 = vmatprep.subr.bf16.mxu0 0
        %2799 = vmatpush1.bf16.xpose.msra.mxu0 0
        %2800 = vmatprep.subr.bf16.mxu0 0
        %2801 = vmatpush1.bf16.xpose.msra.mxu0 0
        %2802 = vmatprep.subr.bf16.mxu0 0
        %2803 = vmatpush1.bf16.xpose.msra.mxu0 0
        %2804 = vmatprep.subr.bf16.mxu0 0
        %2805 = vmatpush1.bf16.xpose.msra.mxu0 0
        %2806 = vmatprep.subr.bf16.mxu0 0
        %2807 = vmatpush1.bf16.xpose.msra.mxu0 0
        %2808 = vmatprep.subr.bf16.mxu0 0
        %2809 = vmatpush1.bf16.xpose.msra.mxu0 0
        %2810 = vmatprep.subr.bf16.mxu0 0
        %2811 = vmatpush1.bf16.xpose.msra.mxu0 0
        %2812 = vmatprep.subr.bf16.mxu0 0
        %2813 = vmatpush1.bf16.xpose.msra.mxu0 0
        %2814 = vmatprep.subr.bf16.mxu0 0
        %2815 = vmatpush1.bf16.xpose.msra.mxu0 0
        %2816 = vmatprep.subr.bf16.mxu0 0
        %2817 = vmatpush1.bf16.xpose.msra.mxu0 0
        %2818 = vmatprep.subr.bf16.mxu0 0
        %2819 = vmatpush1.bf16.xpose.msra.mxu0 0
        %2820 = vmatprep.subr.bf16.mxu0 0
        %2821 = vmatpush1.bf16.xpose.msra.mxu0 0
        %2822 = vmatprep.mubr.bf16.mxu0 0
        %2823 = vmatmul.mubr.bf16.gmra.mrb[0].mxu0 %v2785
        %v2824 = vpop.f32.mrb[0].mxu0
        %v2825 = vadd.f32 0.0, %v2824
        %v2826 = vpop.f32.mrb[0].mxu0
        %v2827 = vpop.f32.mrb[0].mxu0
        %v2828 = vadd.f32 0.0, %v2827
        %v2829 = vpop.f32.mrb[0].mxu0
        %2830 = vdwg.mxu0
        %s2831 = scalar_lea.vmem [#allocation6], 192
        %v2832 = vld [vmem:[%s2831] sm:$0xff]
        %v2833 = vld [vmem:[%s2831 + $0x8] sm:$0xff]
        %v2834 = vld [vmem:[%s2831 + $0x10] sm:$0xff]
        %v2835 = vld [vmem:[%s2831 + $0x18] sm:$0xff]
        %v2836 = vld [vmem:[%s2831 + $0x20] sm:$0xff]
        %v2837 = vld [vmem:[%s2831 + $0x28] sm:$0xff]
        %v2838 = vld [vmem:[%s2831 + $0x30] sm:$0xff]
        %v2839 = vld [vmem:[%s2831 + $0x38] sm:$0xff]
        %v2840 = vadd.f32 %v2672, %v2832
        %v2841 = vadd.f32 %v2675, %v2833
        %v2842 = vadd.f32 %v2723, %v2834
        %v2843 = vadd.f32 %v2726, %v2835
        %v2844 = vadd.f32 %v2774, %v2836
        %v2845 = vadd.f32 %v2777, %v2837
        %v2846 = vadd.f32 %v2825, %v2838
        %v2847 = vadd.f32 %v2828, %v2839
        %v2848 = vsel %vm1254, %v2840, -inf
        %2849 = vmax.xlane.f32.xlu0 %v2848
        %v2850 = vpop.xlane.xlu0 %2849
        %v2851 = vsel %vm1254, %v2841, -inf
        %2852 = vmax.xlane.f32.xlu0 %v2851
        %v2853 = vpop.xlane.xlu0 %2852
        %v2854 = vsel %vm1254, %v2842, -inf
        %2855 = vmax.xlane.f32.xlu0 %v2854
        %v2856 = vpop.xlane.xlu0 %2855
        %v2857 = vsel %vm1254, %v2843, -inf
        %2858 = vmax.xlane.f32.xlu0 %v2857
        %v2859 = vpop.xlane.xlu0 %2858
        %v2860 = vsel %vm1254, %v2844, -inf
        %2861 = vmax.xlane.f32.xlu0 %v2860
        %v2862 = vpop.xlane.xlu0 %2861
        %v2863 = vsel %vm1254, %v2845, -inf
        %2864 = vmax.xlane.f32.xlu0 %v2863
        %v2865 = vpop.xlane.xlu0 %2864
        %v2866 = vsel %vm1254, %v2846, -inf
        %2867 = vmax.xlane.f32.xlu0 %v2866
        %v2868 = vpop.xlane.xlu0 %2867
        %v2869 = vsel %vm1254, %v2847, -inf
        %2870 = vmax.xlane.f32.xlu0 %v2869
        %v2871 = vpop.xlane.xlu0 %2870
        %v2872 = vsub.f32 %v2840, %v2850
        %v2873 = vsub.f32 %v2841, %v2853
        %v2874 = vsub.f32 %v2842, %v2856
        %v2875 = vsub.f32 %v2843, %v2859
        %v2876 = vsub.f32 %v2844, %v2862
        %v2877 = vsub.f32 %v2845, %v2865
        %v2878 = vsub.f32 %v2846, %v2868
        %v2879 = vsub.f32 %v2847, %v2871
        %v2880 = vmul.f32 %v2872, 1.442695
        %v2881 = vpow.pop %v2880
        %v2882 = vmul.f32 %v2873, 1.442695
        %v2883 = vpow.pop %v2882
        %v2884 = vmul.f32 %v2874, 1.442695
        %v2885 = vpow.pop %v2884
        %v2886 = vmul.f32 %v2875, 1.442695
        %v2887 = vpow.pop %v2886
        %v2888 = vmul.f32 %v2876, 1.442695
        %v2889 = vpow.pop %v2888
        %v2890 = vmul.f32 %v2877, 1.442695
        %v2891 = vpow.pop %v2890
        %v2892 = vmul.f32 %v2878, 1.442695
        %v2893 = vpow.pop %v2892
        %v2894 = vmul.f32 %v2879, 1.442695
        %v2895 = vpow.pop %v2894
        %v2896 = vsel %vm1254, %v2881, 0.0
        %2897 = vadd.xlane.f32.xlu0 %v2896
        %v2898 = vpop.xlane.xlu0 %2897
        %v2899 = vsel %vm1254, %v2883, 0.0
        %2900 = vadd.xlane.f32.xlu0 %v2899
        %v2901 = vpop.xlane.xlu0 %2900
        %v2902 = vsel %vm1254, %v2885, 0.0
        %2903 = vadd.xlane.f32.xlu0 %v2902
        %v2904 = vpop.xlane.xlu0 %2903
        %v2905 = vsel %vm1254, %v2887, 0.0
        %2906 = vadd.xlane.f32.xlu0 %v2905
        %v2907 = vpop.xlane.xlu0 %2906
        %v2908 = vsel %vm1254, %v2889, 0.0
        %2909 = vadd.xlane.f32.xlu0 %v2908
        %v2910 = vpop.xlane.xlu0 %2909
        %v2911 = vsel %vm1254, %v2891, 0.0
        %2912 = vadd.xlane.f32.xlu0 %v2911
        %v2913 = vpop.xlane.xlu0 %2912
        %v2914 = vsel %vm1254, %v2893, 0.0
        %2915 = vadd.xlane.f32.xlu0 %v2914
        %v2916 = vpop.xlane.xlu0 %2915
        %v2917 = vsel %vm1254, %v2895, 0.0
        %2918 = vadd.xlane.f32.xlu0 %v2917
        %v2919 = vpop.xlane.xlu0 %2918
        %v2920 = vrcp.pop %v2898
        %v2921 = vrcp.pop %v2901
        %v2922 = vrcp.pop %v2904
        %v2923 = vrcp.pop %v2907
        %v2924 = vrcp.pop %v2910
        %v2925 = vrcp.pop %v2913
        %v2926 = vrcp.pop %v2916
        %v2927 = vrcp.pop %v2919
        %v2928 = vmul.f32 %v2881, %v2920
        %v2929 = vmul.f32 %v2883, %v2921
        %v2930 = vmul.f32 %v2885, %v2922
        %v2931 = vmul.f32 %v2887, %v2923
        %v2932 = vmul.f32 %v2889, %v2924
        %v2933 = vmul.f32 %v2891, %v2925
        %v2934 = vmul.f32 %v2893, %v2926
        %v2935 = vmul.f32 %v2895, %v2927
        %v2936 = vpack.c.bf16 %v2929, %v2928
        %v2937 = vpack.c.bf16 %v2931, %v2930
        %v2938 = vpack.c.bf16 %v2933, %v2932
        %v2939 = vpack.c.bf16 %v2935, %v2934
        %2940 = vrot.lane.b32.xlu0 %v1045, 104
        %v2941 = vpop.permute.xlu0 %2940
        %v2944 = vsel %vm1254, %v2936, 0
        %2946 = vmatprep.subr.bf16.mxu0 0
        %2947 = vmatpush1.bf16.msra.mxu0 %v2941
        %2948 = vmatprep.subr.bf16.mxu0 0
        %2949 = vmatpush1.bf16.msra.mxu0 0
        %2950 = vmatprep.subr.bf16.mxu0 0
        %2951 = vmatpush1.bf16.msra.mxu0 0
        %2952 = vmatprep.subr.bf16.mxu0 0
        %2953 = vmatpush1.bf16.msra.mxu0 0
        %2954 = vmatprep.subr.bf16.mxu0 0
        %2955 = vmatpush1.bf16.msra.mxu0 0
        %2956 = vmatprep.subr.bf16.mxu0 0
        %2957 = vmatpush1.bf16.msra.mxu0 0
        %2958 = vmatprep.subr.bf16.mxu0 0
        %2959 = vmatpush1.bf16.msra.mxu0 0
        %2960 = vmatprep.subr.bf16.mxu0 0
        %2961 = vmatpush1.bf16.msra.mxu0 0
        %2962 = vmatprep.subr.bf16.mxu0 0
        %2963 = vmatpush1.bf16.msra.mxu0 0
        %2964 = vmatprep.subr.bf16.mxu0 0
        %2965 = vmatpush1.bf16.msra.mxu0 0
        %2966 = vmatprep.subr.bf16.mxu0 0
        %2967 = vmatpush1.bf16.msra.mxu0 0
        %2968 = vmatprep.subr.bf16.mxu0 0
        %2969 = vmatpush1.bf16.msra.mxu0 0
        %2970 = vmatprep.subr.bf16.mxu0 0
        %2971 = vmatpush1.bf16.msra.mxu0 0
        %2972 = vmatprep.subr.bf16.mxu0 0
        %2973 = vmatpush1.bf16.msra.mxu0 0
        %2974 = vmatprep.subr.bf16.mxu0 0
        %2975 = vmatpush1.bf16.msra.mxu0 0
        %2976 = vmatprep.subr.bf16.mxu0 0
        %2977 = vmatpush1.bf16.msra.mxu0 0
        %2978 = vmatprep.mubr.bf16.mxu0 0
        %2979 = vmatmul.mubr.bf16.gmra.mrb[0].mxu0 %v2944
        %v2980 = vpop.f32.mrb[0].mxu0
        %v2981 = vadd.f32 0.0, %v2980
        %v2982 = vpop.f32.mrb[0].mxu0
        %v2983 = vpop.f32.mrb[0].mxu0
        %v2984 = vadd.f32 0.0, %v2983
        %v2985 = vpop.f32.mrb[0].mxu0
        %2986 = vdwg.mxu0
        %2987 = vrot.lane.b32.xlu0 %v1046, 104
        %v2988 = vpop.permute.xlu0 %2987
        %v2991 = vsel %vm1254, %v2937, 0
        %2993 = vmatprep.subr.bf16.mxu0 0
        %2994 = vmatpush1.bf16.msra.mxu0 %v2988
        %2995 = vmatprep.subr.bf16.mxu0 0
        %2996 = vmatpush1.bf16.msra.mxu0 0
        %2997 = vmatprep.subr.bf16.mxu0 0
        %2998 = vmatpush1.bf16.msra.mxu0 0
        %2999 = vmatprep.subr.bf16.mxu0 0
        %3000 = vmatpush1.bf16.msra.mxu0 0
        %3001 = vmatprep.subr.bf16.mxu0 0
        %3002 = vmatpush1.bf16.msra.mxu0 0
        %3003 = vmatprep.subr.bf16.mxu0 0
        %3004 = vmatpush1.bf16.msra.mxu0 0
        %3005 = vmatprep.subr.bf16.mxu0 0
        %3006 = vmatpush1.bf16.msra.mxu0 0
        %3007 = vmatprep.subr.bf16.mxu0 0
        %3008 = vmatpush1.bf16.msra.mxu0 0
        %3009 = vmatprep.subr.bf16.mxu0 0
        %3010 = vmatpush1.bf16.msra.mxu0 0
        %3011 = vmatprep.subr.bf16.mxu0 0
        %3012 = vmatpush1.bf16.msra.mxu0 0
        %3013 = vmatprep.subr.bf16.mxu0 0
        %3014 = vmatpush1.bf16.msra.mxu0 0
        %3015 = vmatprep.subr.bf16.mxu0 0
        %3016 = vmatpush1.bf16.msra.mxu0 0
        %3017 = vmatprep.subr.bf16.mxu0 0
        %3018 = vmatpush1.bf16.msra.mxu0 0
        %3019 = vmatprep.subr.bf16.mxu0 0
        %3020 = vmatpush1.bf16.msra.mxu0 0
        %3021 = vmatprep.subr.bf16.mxu0 0
        %3022 = vmatpush1.bf16.msra.mxu0 0
        %3023 = vmatprep.subr.bf16.mxu0 0
        %3024 = vmatpush1.bf16.msra.mxu0 0
        %3025 = vmatprep.mubr.bf16.mxu0 0
        %3026 = vmatmul.mubr.bf16.gmra.mrb[0].mxu0 %v2991
        %v3027 = vpop.f32.mrb[0].mxu0
        %v3028 = vadd.f32 0.0, %v3027
        %v3029 = vpop.f32.mrb[0].mxu0
        %v3030 = vpop.f32.mrb[0].mxu0
        %v3031 = vadd.f32 0.0, %v3030
        %v3032 = vpop.f32.mrb[0].mxu0
        %3033 = vdwg.mxu0
        %3034 = vrot.lane.b32.xlu0 %v1047, 104
        %v3035 = vpop.permute.xlu0 %3034
        %v3038 = vsel %vm1254, %v2938, 0
        %3040 = vmatprep.subr.bf16.mxu0 0
        %3041 = vmatpush1.bf16.msra.mxu0 %v3035
        %3042 = vmatprep.subr.bf16.mxu0 0
        %3043 = vmatpush1.bf16.msra.mxu0 0
        %3044 = vmatprep.subr.bf16.mxu0 0
        %3045 = vmatpush1.bf16.msra.mxu0 0
        %3046 = vmatprep.subr.bf16.mxu0 0
        %3047 = vmatpush1.bf16.msra.mxu0 0
        %3048 = vmatprep.subr.bf16.mxu0 0
        %3049 = vmatpush1.bf16.msra.mxu0 0
        %3050 = vmatprep.subr.bf16.mxu0 0
        %3051 = vmatpush1.bf16.msra.mxu0 0
        %3052 = vmatprep.subr.bf16.mxu0 0
        %3053 = vmatpush1.bf16.msra.mxu0 0
        %3054 = vmatprep.subr.bf16.mxu0 0
        %3055 = vmatpush1.bf16.msra.mxu0 0
        %3056 = vmatprep.subr.bf16.mxu0 0
        %3057 = vmatpush1.bf16.msra.mxu0 0
        %3058 = vmatprep.subr.bf16.mxu0 0
        %3059 = vmatpush1.bf16.msra.mxu0 0
        %3060 = vmatprep.subr.bf16.mxu0 0
        %3061 = vmatpush1.bf16.msra.mxu0 0
        %3062 = vmatprep.subr.bf16.mxu0 0
        %3063 = vmatpush1.bf16.msra.mxu0 0
        %3064 = vmatprep.subr.bf16.mxu0 0
        %3065 = vmatpush1.bf16.msra.mxu0 0
        %3066 = vmatprep.subr.bf16.mxu0 0
        %3067 = vmatpush1.bf16.msra.mxu0 0
        %3068 = vmatprep.subr.bf16.mxu0 0
        %3069 = vmatpush1.bf16.msra.mxu0 0
        %3070 = vmatprep.subr.bf16.mxu0 0
        %3071 = vmatpush1.bf16.msra.mxu0 0
        %3072 = vmatprep.mubr.bf16.mxu0 0
        %3073 = vmatmul.mubr.bf16.gmra.mrb[0].mxu0 %v3038
        %v3074 = vpop.f32.mrb[0].mxu0
        %v3075 = vadd.f32 0.0, %v3074
        %v3076 = vpop.f32.mrb[0].mxu0
        %v3077 = vpop.f32.mrb[0].mxu0
        %v3078 = vadd.f32 0.0, %v3077
        %v3079 = vpop.f32.mrb[0].mxu0
        %3080 = vdwg.mxu0
        %3081 = vrot.lane.b32.xlu0 %v1048, 104
        %v3082 = vpop.permute.xlu0 %3081
        %v3085 = vsel %vm1254, %v2939, 0
        %3087 = vmatprep.subr.bf16.mxu0 0
        %3088 = vmatpush1.bf16.msra.mxu0 %v3082
        %3089 = vmatprep.subr.bf16.mxu0 0
        %3090 = vmatpush1.bf16.msra.mxu0 0
        %3091 = vmatprep.subr.bf16.mxu0 0
        %3092 = vmatpush1.bf16.msra.mxu0 0
        %3093 = vmatprep.subr.bf16.mxu0 0
        %3094 = vmatpush1.bf16.msra.mxu0 0
        %3095 = vmatprep.subr.bf16.mxu0 0
        %3096 = vmatpush1.bf16.msra.mxu0 0
        %3097 = vmatprep.subr.bf16.mxu0 0
        %3098 = vmatpush1.bf16.msra.mxu0 0
        %3099 = vmatprep.subr.bf16.mxu0 0
        %3100 = vmatpush1.bf16.msra.mxu0 0
        %3101 = vmatprep.subr.bf16.mxu0 0
        %3102 = vmatpush1.bf16.msra.mxu0 0
        %3103 = vmatprep.subr.bf16.mxu0 0
        %3104 = vmatpush1.bf16.msra.mxu0 0
        %3105 = vmatprep.subr.bf16.mxu0 0
        %3106 = vmatpush1.bf16.msra.mxu0 0
        %3107 = vmatprep.subr.bf16.mxu0 0
        %3108 = vmatpush1.bf16.msra.mxu0 0
        %3109 = vmatprep.subr.bf16.mxu0 0
        %3110 = vmatpush1.bf16.msra.mxu0 0
        %3111 = vmatprep.subr.bf16.mxu0 0
        %3112 = vmatpush1.bf16.msra.mxu0 0
        %3113 = vmatprep.subr.bf16.mxu0 0
        %3114 = vmatpush1.bf16.msra.mxu0 0
        %3115 = vmatprep.subr.bf16.mxu0 0
        %3116 = vmatpush1.bf16.msra.mxu0 0
        %3117 = vmatprep.subr.bf16.mxu0 0
        %3118 = vmatpush1.bf16.msra.mxu0 0
        %3119 = vmatprep.mubr.bf16.mxu0 0
        %3120 = vmatmul.mubr.bf16.gmra.mrb[0].mxu0 %v3085
        %v3121 = vpop.f32.mrb[0].mxu0
        %v3122 = vadd.f32 0.0, %v3121
        %v3123 = vpop.f32.mrb[0].mxu0
        %v3124 = vpop.f32.mrb[0].mxu0
        %v3125 = vadd.f32 0.0, %v3124
        %v3126 = vpop.f32.mrb[0].mxu0
        %3127 = vdwg.mxu0
        %3136 = vrot.lane.b32.xlu0 %v2981, 24
        %v3137 = vpop.permute.xlu0 %3136
        %3138 = vrot.lane.b32.xlu0 %v2984, 24
        %v3139 = vpop.permute.xlu0 %3138
        %3140 = vrot.lane.b32.xlu0 %v3028, 24
        %v3141 = vpop.permute.xlu0 %3140
        %3142 = vrot.lane.b32.xlu0 %v3031, 24
        %v3143 = vpop.permute.xlu0 %3142
        %3144 = vrot.lane.b32.xlu0 %v3075, 24
        %v3145 = vpop.permute.xlu0 %3144
        %3146 = vrot.lane.b32.xlu0 %v3078, 24
        %v3147 = vpop.permute.xlu0 %3146
        %3148 = vrot.lane.b32.xlu0 %v3122, 24
        %v3149 = vpop.permute.xlu0 %3148
        %3150 = vrot.lane.b32.xlu0 %v3125, 24
        %v3151 = vpop.permute.xlu0 %3150
        %vm3160 = vcmask 261312
        %3161 = vst.msk [vmem:[#allocation2] sm:$0xff] %vm3160, %v3137
        %3162 = vst.msk [vmem:[#allocation2 + $0x8] sm:$0xff] %vm3160, %v3139
        %3163 = vst.msk [vmem:[#allocation2 + $0x10] sm:$0xff] %vm3160, %v3141
        %3164 = vst.msk [vmem:[#allocation2 + $0x18] sm:$0xff] %vm3160, %v3143
        %3165 = vst.msk [vmem:[#allocation2 + $0x20] sm:$0xff] %vm3160, %v3145
        %3166 = vst.msk [vmem:[#allocation2 + $0x28] sm:$0xff] %vm3160, %v3147
        %3167 = vst.msk [vmem:[#allocation2 + $0x30] sm:$0xff] %vm3160, %v3149
        %3168 = vst.msk [vmem:[#allocation2 + $0x38] sm:$0xff] %vm3160, %v3151
        %v3169 = vld [vmem:[#allocation2] sm:$0xff]
        %v3170 = vld [vmem:[#allocation2 + $0x8] sm:$0xff]
        %v3171 = vld [vmem:[#allocation2 + $0x10] sm:$0xff]
        %v3172 = vld [vmem:[#allocation2 + $0x18] sm:$0xff]
        %v3173 = vld [vmem:[#allocation2 + $0x20] sm:$0xff]
        %v3174 = vld [vmem:[#allocation2 + $0x28] sm:$0xff]
        %v3175 = vld [vmem:[#allocation2 + $0x30] sm:$0xff]
        %v3176 = vld [vmem:[#allocation2 + $0x38] sm:$0xff]
        %v3177 = vpack.c.bf16 %v3170, %v3169
        %v3178 = vpack.c.bf16 %v3172, %v3171
        %v3179 = vpack.c.bf16 %v3174, %v3173
        %v3180 = vpack.c.bf16 %v3176, %v3175
        %v3181 = vld [vmem:[%s9] sm:$0xf]
        %v3182 = vld [vmem:[%s9 + $0x4] sm:$0xf]
        %v3183 = vld [vmem:[%s9 + $0x8] sm:$0xf]
        %v3184 = vld [vmem:[%s9 + $0xc] sm:$0xf]
        %v3185 = vld [vmem:[%s10] sm:$0x1]
        %v3187 = vlaneseq
        %v3188 = vshrl.u32 %v3187, 7
        %v3189 = vsub.s32 0, %v3188
        %v3190 = vrot.slane %v3185, %v3189
        %v3196 = vunpack.c.l.b16 %v3181
        %v3197 = vunpack.c.l.b16 %v3182
        %v3198 = vunpack.c.l.b16 %v3183
        %v3199 = vunpack.c.l.b16 %v3184
        %v3200 = vpack.c.b16 %v3197, %v3196
        %v3201 = vpack.c.b16 %v3199, %v3198
        %v3205 = vsel %vm623, %v3177, 0
        %v3208 = vsel %vm623, %v3178, 0
        %v3211 = vsel %vm623, %v3179, 0
        %v3214 = vsel %vm623, %v3180, 0
        %3216 = vmatprep.subr.bf16.mxu0 0
        %3217 = vmatpush1.bf16.msra.mxu0 %v3200
        %3218 = vmatprep.subr.bf16.mxu0 0
        %3219 = vmatpush1.bf16.msra.mxu0 %v3201
        %3220 = vmatprep.subr.bf16.mxu0 0
        %3221 = vmatpush1.bf16.msra.mxu0 0
        %3222 = vmatprep.subr.bf16.mxu0 0
        %3223 = vmatpush1.bf16.msra.mxu0 0
        %3224 = vmatprep.subr.bf16.mxu0 0
        %3225 = vmatpush1.bf16.msra.mxu0 0
        %3226 = vmatprep.subr.bf16.mxu0 0
        %3227 = vmatpush1.bf16.msra.mxu0 0
        %3228 = vmatprep.subr.bf16.mxu0 0
        %3229 = vmatpush1.bf16.msra.mxu0 0
        %3230 = vmatprep.subr.bf16.mxu0 0
        %3231 = vmatpush1.bf16.msra.mxu0 0
        %3232 = vmatprep.subr.bf16.mxu0 0
        %3233 = vmatpush1.bf16.msra.mxu0 0
        %3234 = vmatprep.subr.bf16.mxu0 0
        %3235 = vmatpush1.bf16.msra.mxu0 0
        %3236 = vmatprep.subr.bf16.mxu0 0
        %3237 = vmatpush1.bf16.msra.mxu0 0
        %3238 = vmatprep.subr.bf16.mxu0 0
        %3239 = vmatpush1.bf16.msra.mxu0 0
        %3240 = vmatprep.subr.bf16.mxu0 0
        %3241 = vmatpush1.bf16.msra.mxu0 0
        %3242 = vmatprep.subr.bf16.mxu0 0
        %3243 = vmatpush1.bf16.msra.mxu0 0
        %3244 = vmatprep.subr.bf16.mxu0 0
        %3245 = vmatpush1.bf16.msra.mxu0 0
        %3246 = vmatprep.subr.bf16.mxu0 0
        %3247 = vmatpush1.bf16.msra.mxu0 0
        %3248 = vmatprep.mubr.bf16.mxu0 0
        %3249 = vmatmul.mubr.bf16.gmra.mrb[0].mxu0 %v3205
        %v3250 = vpop.f32.mrb[0].mxu0
        %v3251 = vadd.f32 %v3190, %v3250
        %v3252 = vpop.f32.mrb[0].mxu0
        %v3253 = vpop.f32.mrb[0].mxu0
        %v3254 = vadd.f32 %v3190, %v3253
        %v3255 = vpop.f32.mrb[0].mxu0
        %3256 = vmatprep.mubr.bf16.mxu0 0
        %3257 = vmatmul.mubr.bf16.gmra.mrb[0].mxu0 %v3208
        %v3258 = vpop.f32.mrb[0].mxu0
        %v3259 = vadd.f32 %v3190, %v3258
        %v3260 = vpop.f32.mrb[0].mxu0
        %v3261 = vpop.f32.mrb[0].mxu0
        %v3262 = vadd.f32 %v3190, %v3261
        %v3263 = vpop.f32.mrb[0].mxu0
        %3264 = vmatprep.mubr.bf16.mxu0 0
        %3265 = vmatmul.mubr.bf16.gmra.mrb[0].mxu0 %v3211
        %v3266 = vpop.f32.mrb[0].mxu0
        %v3267 = vadd.f32 %v3190, %v3266
        %v3268 = vpop.f32.mrb[0].mxu0
        %v3269 = vpop.f32.mrb[0].mxu0
        %v3270 = vadd.f32 %v3190, %v3269
        %v3271 = vpop.f32.mrb[0].mxu0
        %3272 = vmatprep.mubr.bf16.mxu0 0
        %3273 = vmatmul.mubr.bf16.gmra.mrb[0].mxu0 %v3214
        %v3274 = vpop.f32.mrb[0].mxu0
        %v3275 = vadd.f32 %v3190, %v3274
        %v3276 = vpop.f32.mrb[0].mxu0
        %v3277 = vpop.f32.mrb[0].mxu0
        %v3278 = vadd.f32 %v3190, %v3277
        %v3279 = vpop.f32.mrb[0].mxu0
        %3280 = vdwg.mxu0
        %v3281 = vadd.f32 %v613, %v3251
        %v3282 = vadd.f32 %v614, %v3254
        %v3283 = vadd.f32 %v615, %v3259
        %v3284 = vadd.f32 %v616, %v3262
        %v3285 = vadd.f32 %v617, %v3267
        %v3286 = vadd.f32 %v618, %v3270
        %v3287 = vadd.f32 %v619, %v3275
        %v3288 = vadd.f32 %v620, %v3278
        %v3289 = vld [vmem:[%s12] sm:$0x1]
        %v3290 = vld [vmem:[%s13] sm:$0x1]
        %v3291 = vsel %vm623, %v3281, 0.0
        %3292 = vadd.xlane.f32.xlu0 %v3291
        %v3293 = vpop.xlane.xlu0 %3292
        %v3294 = vsel %vm623, %v3282, 0.0
        %3295 = vadd.xlane.f32.xlu0 %v3294
        %v3296 = vpop.xlane.xlu0 %3295
        %v3297 = vsel %vm623, %v3283, 0.0
        %3298 = vadd.xlane.f32.xlu0 %v3297
        %v3299 = vpop.xlane.xlu0 %3298
        %v3300 = vsel %vm623, %v3284, 0.0
        %3301 = vadd.xlane.f32.xlu0 %v3300
        %v3302 = vpop.xlane.xlu0 %3301
        %v3303 = vsel %vm623, %v3285, 0.0
        %3304 = vadd.xlane.f32.xlu0 %v3303
        %v3305 = vpop.xlane.xlu0 %3304
        %v3306 = vsel %vm623, %v3286, 0.0
        %3307 = vadd.xlane.f32.xlu0 %v3306
        %v3308 = vpop.xlane.xlu0 %3307
        %v3309 = vsel %vm623, %v3287, 0.0
        %3310 = vadd.xlane.f32.xlu0 %v3309
        %v3311 = vpop.xlane.xlu0 %3310
        %v3312 = vsel %vm623, %v3288, 0.0
        %3313 = vadd.xlane.f32.xlu0 %v3312
        %v3314 = vpop.xlane.xlu0 %3313
        %v3315 = vmul.f32 %v3293, %v648
        %v3316 = vmul.f32 %v3296, %v648
        %v3317 = vmul.f32 %v3299, %v648
        %v3318 = vmul.f32 %v3302, %v648
        %v3319 = vmul.f32 %v3305, %v648
        %v3320 = vmul.f32 %v3308, %v648
        %v3321 = vmul.f32 %v3311, %v648
        %v3322 = vmul.f32 %v3314, %v648
        %v3323 = vsub.f32 %v3281, %v3315
        %v3324 = vsub.f32 %v3282, %v3316
        %v3325 = vsub.f32 %v3283, %v3317
        %v3326 = vsub.f32 %v3284, %v3318
        %v3327 = vsub.f32 %v3285, %v3319
        %v3328 = vsub.f32 %v3286, %v3320
        %v3329 = vsub.f32 %v3287, %v3321
        %v3330 = vsub.f32 %v3288, %v3322
        %v3331 = vmul.f32 %v3323, %v3323
        %v3332 = vmul.f32 %v3324, %v3324
        %v3333 = vmul.f32 %v3325, %v3325
        %v3334 = vmul.f32 %v3326, %v3326
        %v3335 = vmul.f32 %v3327, %v3327
        %v3336 = vmul.f32 %v3328, %v3328
        %v3337 = vmul.f32 %v3329, %v3329
        %v3338 = vmul.f32 %v3330, %v3330
        %v3339 = vsel %vm623, %v3331, 0.0
        %3340 = vadd.xlane.f32.xlu0 %v3339
        %v3341 = vpop.xlane.xlu0 %3340
        %v3342 = vsel %vm623, %v3332, 0.0
        %3343 = vadd.xlane.f32.xlu0 %v3342
        %v3344 = vpop.xlane.xlu0 %3343
        %v3345 = vsel %vm623, %v3333, 0.0
        %3346 = vadd.xlane.f32.xlu0 %v3345
        %v3347 = vpop.xlane.xlu0 %3346
        %v3348 = vsel %vm623, %v3334, 0.0
        %3349 = vadd.xlane.f32.xlu0 %v3348
        %v3350 = vpop.xlane.xlu0 %3349
        %v3351 = vsel %vm623, %v3335, 0.0
        %3352 = vadd.xlane.f32.xlu0 %v3351
        %v3353 = vpop.xlane.xlu0 %3352
        %v3354 = vsel %vm623, %v3336, 0.0
        %3355 = vadd.xlane.f32.xlu0 %v3354
        %v3356 = vpop.xlane.xlu0 %3355
        %v3357 = vsel %vm623, %v3337, 0.0
        %3358 = vadd.xlane.f32.xlu0 %v3357
        %v3359 = vpop.xlane.xlu0 %3358
        %v3360 = vsel %vm623, %v3338, 0.0
        %3361 = vadd.xlane.f32.xlu0 %v3360
        %v3362 = vpop.xlane.xlu0 %3361
        %v3363 = vmul.f32 %v3341, %v648
        %v3364 = vmul.f32 %v3344, %v648
        %v3365 = vmul.f32 %v3347, %v648
        %v3366 = vmul.f32 %v3350, %v648
        %v3367 = vmul.f32 %v3353, %v648
        %v3368 = vmul.f32 %v3356, %v648
        %v3369 = vmul.f32 %v3359, %v648
        %v3370 = vmul.f32 %v3362, %v648
        %v3371 = vadd.f32 %v3363, 1e-05
        %v3372 = vadd.f32 %v3364, 1e-05
        %v3373 = vadd.f32 %v3365, 1e-05
        %v3374 = vadd.f32 %v3366, 1e-05
        %v3375 = vadd.f32 %v3367, 1e-05
        %v3376 = vadd.f32 %v3368, 1e-05
        %v3377 = vadd.f32 %v3369, 1e-05
        %v3378 = vadd.f32 %v3370, 1e-05
        %v3379 = vrsqrt.pop %v3371
        %v3380 = vrsqrt.pop %v3372
        %v3381 = vrsqrt.pop %v3373
        %v3382 = vrsqrt.pop %v3374
        %v3383 = vrsqrt.pop %v3375
        %v3384 = vrsqrt.pop %v3376
        %v3385 = vrsqrt.pop %v3377
        %v3386 = vrsqrt.pop %v3378
        %v3387 = vmul.f32 %v3323, %v3379
        %v3388 = vmul.f32 %v3324, %v3380
        %v3389 = vmul.f32 %v3325, %v3381
        %v3390 = vmul.f32 %v3326, %v3382
        %v3391 = vmul.f32 %v3327, %v3383
        %v3392 = vmul.f32 %v3328, %v3384
        %v3393 = vmul.f32 %v3329, %v3385
        %v3394 = vmul.f32 %v3330, %v3386
        %v3396 = vlaneseq
        %v3397 = vshrl.u32 %v3396, 7
        %v3398 = vsub.s32 0, %v3397
        %v3399 = vrot.slane %v3289, %v3398
        %v3401 = vmul.f32 %v3387, %v3399
        %v3402 = vmul.f32 %v3388, %v3399
        %v3403 = vmul.f32 %v3389, %v3399
        %v3404 = vmul.f32 %v3390, %v3399
        %v3405 = vmul.f32 %v3391, %v3399
        %v3406 = vmul.f32 %v3392, %v3399
        %v3407 = vmul.f32 %v3393, %v3399
        %v3408 = vmul.f32 %v3394, %v3399
        %v3410 = vlaneseq
        %v3411 = vshrl.u32 %v3410, 7
        %v3412 = vsub.s32 0, %v3411
        %v3413 = vrot.slane %v3290, %v3412
        %v3415 = vadd.f32 %v3401, %v3413
        %v3416 = vadd.f32 %v3402, %v3413
        %v3417 = vadd.f32 %v3403, %v3413
        %v3418 = vadd.f32 %v3404, %v3413
        %v3419 = vadd.f32 %v3405, %v3413
        %v3420 = vadd.f32 %v3406, %v3413
        %v3421 = vadd.f32 %v3407, %v3413
        %v3422 = vadd.f32 %v3408, %v3413
        %v3423 = vpack.c.bf16 %v3416, %v3415
        %v3424 = vpack.c.bf16 %v3418, %v3417
        %v3425 = vpack.c.bf16 %v3420, %v3419
        %v3426 = vpack.c.bf16 %v3422, %v3421
        %v3427 = vld [vmem:[%s14] sm:$0xf]
        %v3428 = vld [vmem:[%s14 + $0x4] sm:$0xf]
        %v3429 = vld [vmem:[%s14 + $0x8] sm:$0xf]
        %v3430 = vld [vmem:[%s14 + $0xc] sm:$0xf]
        %v3431 = vld [vmem:[%s15] sm:$0x1]
        %v3433 = vlaneseq
        %v3434 = vshrl.u32 %v3433, 7
        %v3435 = vsub.s32 0, %v3434
        %v3436 = vrot.slane %v3431, %v3435
        %v3442 = vunpack.c.l.b16 %v3427
        %v3443 = vunpack.c.l.b16 %v3428
        %v3444 = vunpack.c.l.b16 %v3429
        %v3445 = vunpack.c.l.b16 %v3430
        %v3446 = vpack.c.b16 %v3443, %v3442
        %v3447 = vpack.c.b16 %v3445, %v3444
        %v3451 = vsel %vm623, %v3423, 0
        %v3454 = vsel %vm623, %v3424, 0
        %v3457 = vsel %vm623, %v3425, 0
        %v3460 = vsel %vm623, %v3426, 0
        %3462 = vmatprep.subr.bf16.mxu0 0
        %3463 = vmatpush1.bf16.msra.mxu0 %v3446
        %3464 = vmatprep.subr.bf16.mxu0 0
        %3465 = vmatpush1.bf16.msra.mxu0 %v3447
        %3466 = vmatprep.subr.bf16.mxu0 0
        %3467 = vmatpush1.bf16.msra.mxu0 0
        %3468 = vmatprep.subr.bf16.mxu0 0
        %3469 = vmatpush1.bf16.msra.mxu0 0
        %3470 = vmatprep.subr.bf16.mxu0 0
        %3471 = vmatpush1.bf16.msra.mxu0 0
        %3472 = vmatprep.subr.bf16.mxu0 0
        %3473 = vmatpush1.bf16.msra.mxu0 0
        %3474 = vmatprep.subr.bf16.mxu0 0
        %3475 = vmatpush1.bf16.msra.mxu0 0
        %3476 = vmatprep.subr.bf16.mxu0 0
        %3477 = vmatpush1.bf16.msra.mxu0 0
        %3478 = vmatprep.subr.bf16.mxu0 0
        %3479 = vmatpush1.bf16.msra.mxu0 0
        %3480 = vmatprep.subr.bf16.mxu0 0
        %3481 = vmatpush1.bf16.msra.mxu0 0
        %3482 = vmatprep.subr.bf16.mxu0 0
        %3483 = vmatpush1.bf16.msra.mxu0 0
        %3484 = vmatprep.subr.bf16.mxu0 0
        %3485 = vmatpush1.bf16.msra.mxu0 0
        %3486 = vmatprep.subr.bf16.mxu0 0
        %3487 = vmatpush1.bf16.msra.mxu0 0
        %3488 = vmatprep.subr.bf16.mxu0 0
        %3489 = vmatpush1.bf16.msra.mxu0 0
        %3490 = vmatprep.subr.bf16.mxu0 0
        %3491 = vmatpush1.bf16.msra.mxu0 0
        %3492 = vmatprep.subr.bf16.mxu0 0
        %3493 = vmatpush1.bf16.msra.mxu0 0
        %3494 = vmatprep.mubr.bf16.mxu0 0
        %3495 = vmatmul.mubr.bf16.gmra.mrb[0].mxu0 %v3451
        %v3496 = vpop.f32.mrb[0].mxu0
        %v3497 = vadd.f32 %v3436, %v3496
        %v3498 = vpop.f32.mrb[0].mxu0
        %v3499 = vpop.f32.mrb[0].mxu0
        %v3500 = vadd.f32 %v3436, %v3499
        %v3501 = vpop.f32.mrb[0].mxu0
        %3502 = vmatprep.mubr.bf16.mxu0 0
        %3503 = vmatmul.mubr.bf16.gmra.mrb[0].mxu0 %v3454
        %v3504 = vpop.f32.mrb[0].mxu0
        %v3505 = vadd.f32 %v3436, %v3504
        %v3506 = vpop.f32.mrb[0].mxu0
        %v3507 = vpop.f32.mrb[0].mxu0
        %v3508 = vadd.f32 %v3436, %v3507
        %v3509 = vpop.f32.mrb[0].mxu0
        %3510 = vmatprep.mubr.bf16.mxu0 0
        %3511 = vmatmul.mubr.bf16.gmra.mrb[0].mxu0 %v3457
        %v3512 = vpop.f32.mrb[0].mxu0
        %v3513 = vadd.f32 %v3436, %v3512
        %v3514 = vpop.f32.mrb[0].mxu0
        %v3515 = vpop.f32.mrb[0].mxu0
        %v3516 = vadd.f32 %v3436, %v3515
        %v3517 = vpop.f32.mrb[0].mxu0
        %3518 = vmatprep.mubr.bf16.mxu0 0
        %3519 = vmatmul.mubr.bf16.gmra.mrb[0].mxu0 %v3460
        %v3520 = vpop.f32.mrb[0].mxu0
        %v3521 = vadd.f32 %v3436, %v3520
        %v3522 = vpop.f32.mrb[0].mxu0
        %v3523 = vpop.f32.mrb[0].mxu0
        %v3524 = vadd.f32 %v3436, %v3523
        %v3525 = vpop.f32.mrb[0].mxu0
        %3526 = vdwg.mxu0
        %v3527 = vmul.f32 %v3497, 0.5
        %v3528 = vmul.f32 %v3500, 0.5
        %v3529 = vmul.f32 %v3505, 0.5
        %v3530 = vmul.f32 %v3508, 0.5
        %v3531 = vmul.f32 %v3513, 0.5
        %v3532 = vmul.f32 %v3516, 0.5
        %v3533 = vmul.f32 %v3521, 0.5
        %v3534 = vmul.f32 %v3524, 0.5
        %v3535 = vmul.f32 %v3497, 0.044715
        %v3536 = vmul.f32 %v3500, 0.044715
        %v3537 = vmul.f32 %v3505, 0.044715
        %v3538 = vmul.f32 %v3508, 0.044715
        %v3539 = vmul.f32 %v3513, 0.044715
        %v3540 = vmul.f32 %v3516, 0.044715
        %v3541 = vmul.f32 %v3521, 0.044715
        %v3542 = vmul.f32 %v3524, 0.044715
        %v3543 = vmul.f32 %v3535, %v3497
        %v3544 = vmul.f32 %v3536, %v3500
        %v3545 = vmul.f32 %v3537, %v3505
        %v3546 = vmul.f32 %v3538, %v3508
        %v3547 = vmul.f32 %v3539, %v3513
        %v3548 = vmul.f32 %v3540, %v3516
        %v3549 = vmul.f32 %v3541, %v3521
        %v3550 = vmul.f32 %v3542, %v3524
        %v3551 = vmul.f32 %v3543, %v3497
        %v3552 = vmul.f32 %v3544, %v3500
        %v3553 = vmul.f32 %v3545, %v3505
        %v3554 = vmul.f32 %v3546, %v3508
        %v3555 = vmul.f32 %v3547, %v3513
        %v3556 = vmul.f32 %v3548, %v3516
        %v3557 = vmul.f32 %v3549, %v3521
        %v3558 = vmul.f32 %v3550, %v3524
        %v3559 = vadd.f32 %v3497, %v3551
        %v3560 = vadd.f32 %v3500, %v3552
        %v3561 = vadd.f32 %v3505, %v3553
        %v3562 = vadd.f32 %v3508, %v3554
        %v3563 = vadd.f32 %v3513, %v3555
        %v3564 = vadd.f32 %v3516, %v3556
        %v3565 = vadd.f32 %v3521, %v3557
        %v3566 = vadd.f32 %v3524, %v3558
        %v3567 = vmul.f32 %v3559, 0.7978846
        %v3568 = vmul.f32 %v3560, 0.7978846
        %v3569 = vmul.f32 %v3561, 0.7978846
        %v3570 = vmul.f32 %v3562, 0.7978846
        %v3571 = vmul.f32 %v3563, 0.7978846
        %v3572 = vmul.f32 %v3564, 0.7978846
        %v3573 = vmul.f32 %v3565, 0.7978846
        %v3574 = vmul.f32 %v3566, 0.7978846
        %v3575 = vtanh.pop %v3567
        %v3576 = vtanh.pop %v3568
        %v3577 = vtanh.pop %v3569
        %v3578 = vtanh.pop %v3570
        %v3579 = vtanh.pop %v3571
        %v3580 = vtanh.pop %v3572
        %v3581 = vtanh.pop %v3573
        %v3582 = vtanh.pop %v3574
        %v3583 = vadd.f32 %v3575, 1.0
        %v3584 = vadd.f32 %v3576, 1.0
        %v3585 = vadd.f32 %v3577, 1.0
        %v3586 = vadd.f32 %v3578, 1.0
        %v3587 = vadd.f32 %v3579, 1.0
        %v3588 = vadd.f32 %v3580, 1.0
        %v3589 = vadd.f32 %v3581, 1.0
        %v3590 = vadd.f32 %v3582, 1.0
        %v3591 = vmul.f32 %v3527, %v3583
        %v3592 = vmul.f32 %v3528, %v3584
        %v3593 = vmul.f32 %v3529, %v3585
        %v3594 = vmul.f32 %v3530, %v3586
        %v3595 = vmul.f32 %v3531, %v3587
        %v3596 = vmul.f32 %v3532, %v3588
        %v3597 = vmul.f32 %v3533, %v3589
        %v3598 = vmul.f32 %v3534, %v3590
        %v3599 = vpack.c.bf16 %v3592, %v3591
        %v3600 = vpack.c.bf16 %v3594, %v3593
        %v3601 = vpack.c.bf16 %v3596, %v3595
        %v3602 = vpack.c.bf16 %v3598, %v3597
        %v3603 = vld [vmem:[%s16] sm:$0xf]
        %v3604 = vld [vmem:[%s16 + $0x4] sm:$0xf]
        %v3605 = vld [vmem:[%s16 + $0x8] sm:$0xf]
        %v3606 = vld [vmem:[%s16 + $0xc] sm:$0xf]
        %v3607 = vld [vmem:[%s16 + $0x10] sm:$0xf]
        %v3608 = vld [vmem:[%s16 + $0x14] sm:$0xf]
        %v3609 = vld [vmem:[%s16 + $0x18] sm:$0xf]
        %v3610 = vld [vmem:[%s16 + $0x1c] sm:$0xf]
        %v3611 = vld [vmem:[%s16 + $0x20] sm:$0xf]
        %v3612 = vld [vmem:[%s16 + $0x24] sm:$0xf]
        %v3613 = vld [vmem:[%s16 + $0x28] sm:$0xf]
        %v3614 = vld [vmem:[%s16 + $0x2c] sm:$0xf]
        %v3615 = vld [vmem:[%s16 + $0x30] sm:$0xf]
        %v3616 = vld [vmem:[%s16 + $0x34] sm:$0xf]
        %v3617 = vld [vmem:[%s16 + $0x38] sm:$0xf]
        %v3618 = vld [vmem:[%s16 + $0x3c] sm:$0xf]
        %v3619 = vld [vmem:[%s17] sm:$0x1]
        %v3621 = vlaneseq
        %v3622 = vshrl.u32 %v3621, 7
        %v3623 = vsub.s32 0, %v3622
        %v3624 = vrot.slane %v3619, %v3623
        %v3642 = vunpack.c.l.b16 %v3603
        %v3643 = vunpack.c.l.b16 %v3604
        %v3644 = vunpack.c.l.b16 %v3605
        %v3645 = vunpack.c.l.b16 %v3606
        %v3646 = vunpack.c.l.b16 %v3607
        %v3647 = vunpack.c.l.b16 %v3608
        %v3648 = vunpack.c.l.b16 %v3609
        %v3649 = vunpack.c.l.b16 %v3610
        %v3650 = vunpack.c.l.b16 %v3611
        %v3651 = vunpack.c.l.b16 %v3612
        %v3652 = vunpack.c.l.b16 %v3613
        %v3653 = vunpack.c.l.b16 %v3614
        %v3654 = vunpack.c.l.b16 %v3615
        %v3655 = vunpack.c.l.b16 %v3616
        %v3656 = vunpack.c.l.b16 %v3617
        %v3657 = vunpack.c.l.b16 %v3618
        %v3658 = vpack.c.b16 %v3643, %v3642
        %v3659 = vpack.c.b16 %v3645, %v3644
        %v3660 = vpack.c.b16 %v3647, %v3646
        %v3661 = vpack.c.b16 %v3649, %v3648
        %v3662 = vpack.c.b16 %v3651, %v3650
        %v3663 = vpack.c.b16 %v3653, %v3652
        %v3664 = vpack.c.b16 %v3655, %v3654
        %v3665 = vpack.c.b16 %v3657, %v3656
        %3674 = vmatprep.subr.bf16.mxu0 0
        %3675 = vmatpush1.bf16.msra.mxu0 %v3658
        %3676 = vmatprep.subr.bf16.mxu0 0
        %3677 = vmatpush1.bf16.msra.mxu0 %v3659
        %3678 = vmatprep.subr.bf16.mxu0 0
        %3679 = vmatpush1.bf16.msra.mxu0 %v3660
        %3680 = vmatprep.subr.bf16.mxu0 0
        %3681 = vmatpush1.bf16.msra.mxu0 %v3661
        %3682 = vmatprep.subr.bf16.mxu0 0
        %3683 = vmatpush1.bf16.msra.mxu0 %v3662
        %3684 = vmatprep.subr.bf16.mxu0 0
        %3685 = vmatpush1.bf16.msra.mxu0 %v3663
        %3686 = vmatprep.subr.bf16.mxu0 0
        %3687 = vmatpush1.bf16.msra.mxu0 %v3664
        %3688 = vmatprep.subr.bf16.mxu0 0
        %3689 = vmatpush1.bf16.msra.mxu0 %v3665
        %3690 = vmatprep.subr.bf16.mxu0 0
        %3691 = vmatpush1.bf16.msra.mxu0 0
        %3692 = vmatprep.subr.bf16.mxu0 0
        %3693 = vmatpush1.bf16.msra.mxu0 0
        %3694 = vmatprep.subr.bf16.mxu0 0
        %3695 = vmatpush1.bf16.msra.mxu0 0
        %3696 = vmatprep.subr.bf16.mxu0 0
        %3697 = vmatpush1.bf16.msra.mxu0 0
        %3698 = vmatprep.subr.bf16.mxu0 0
        %3699 = vmatpush1.bf16.msra.mxu0 0
        %3700 = vmatprep.subr.bf16.mxu0 0
        %3701 = vmatpush1.bf16.msra.mxu0 0
        %3702 = vmatprep.subr.bf16.mxu0 0
        %3703 = vmatpush1.bf16.msra.mxu0 0
        %3704 = vmatprep.subr.bf16.mxu0 0
        %3705 = vmatpush1.bf16.msra.mxu0 0
        %3706 = vmatprep.mubr.bf16.mxu0 0
        %3707 = vmatmul.mubr.bf16.gmra.mrb[0].mxu0 %v3599
        %v3708 = vpop.f32.mrb[0].mxu0
        %v3709 = vadd.f32 %v3624, %v3708
        %v3710 = vpop.f32.mrb[0].mxu0
        %v3711 = vpop.f32.mrb[0].mxu0
        %v3712 = vadd.f32 %v3624, %v3711
        %v3713 = vpop.f32.mrb[0].mxu0
        %3714 = vmatprep.mubr.bf16.mxu0 0
        %3715 = vmatmul.mubr.bf16.gmra.mrb[0].mxu0 %v3600
        %v3716 = vpop.f32.mrb[0].mxu0
        %v3717 = vadd.f32 %v3624, %v3716
        %v3718 = vpop.f32.mrb[0].mxu0
        %v3719 = vpop.f32.mrb[0].mxu0
        %v3720 = vadd.f32 %v3624, %v3719
        %v3721 = vpop.f32.mrb[0].mxu0
        %3722 = vmatprep.mubr.bf16.mxu0 0
        %3723 = vmatmul.mubr.bf16.gmra.mrb[0].mxu0 %v3601
        %v3724 = vpop.f32.mrb[0].mxu0
        %v3725 = vadd.f32 %v3624, %v3724
        %v3726 = vpop.f32.mrb[0].mxu0
        %v3727 = vpop.f32.mrb[0].mxu0
        %v3728 = vadd.f32 %v3624, %v3727
        %v3729 = vpop.f32.mrb[0].mxu0
        %3730 = vmatprep.mubr.bf16.mxu0 0
        %3731 = vmatmul.mubr.bf16.gmra.mrb[0].mxu0 %v3602
        %v3732 = vpop.f32.mrb[0].mxu0
        %v3733 = vadd.f32 %v3624, %v3732
        %v3734 = vpop.f32.mrb[0].mxu0
        %v3735 = vpop.f32.mrb[0].mxu0
        %v3736 = vadd.f32 %v3624, %v3735
        %v3737 = vpop.f32.mrb[0].mxu0
        %3738 = vdwg.mxu0
        %v3739 = vadd.f32 %v3281, %v3709
        %v3740 = vadd.f32 %v3282, %v3712
        %v3741 = vadd.f32 %v3283, %v3717
        %v3742 = vadd.f32 %v3284, %v3720
        %v3743 = vadd.f32 %v3285, %v3725
        %v3744 = vadd.f32 %v3286, %v3728
        %v3745 = vadd.f32 %v3287, %v3733
        %v3746 = vadd.f32 %v3288, %v3736
        %3747 = vst.msk [vmem:[%s609] sm:$0xff] %vm623, %v3739
        %3748 = vst.msk [vmem:[%s609 + $0x8] sm:$0xff] %vm623, %v3740
        %3749 = vst.msk [vmem:[%s609 + $0x10] sm:$0xff] %vm623, %v3741
        %3750 = vst.msk [vmem:[%s609 + $0x18] sm:$0xff] %vm623, %v3742
        %3751 = vst.msk [vmem:[%s609 + $0x20] sm:$0xff] %vm623, %v3743
        %3752 = vst.msk [vmem:[%s609 + $0x28] sm:$0xff] %vm623, %v3744
        %3753 = vst.msk [vmem:[%s609 + $0x30] sm:$0xff] %vm623, %v3745
        %3754 = vst.msk [vmem:[%s609 + $0x38] sm:$0xff] %vm623, %v3746
        %s3755 = sand.u32 %s427, 1
        %s3756 = scalar_lea.sflag [#allocation5], %s3755
        %s3757 = sand.u32 %s427, 1
        %s3758 = smul.addr %s3757, 64
        %s3759 = scalar_lea.vmem [#allocation8], %s3758
        // Predicated region
        $region101: #{tpu_custom_call.1} parent=91 // pred_check
          %p3760 = pneg %p437
        $region102: #{tpu_custom_call.1} parent=91 // pred_check_branch
          %3762 = sbr.rel (%p3760) target = $region104
        $region103: #{tpu_custom_call.1} parent=91 // pred_region
          %s3763 = smul.u32 4, %s36
          %s3765 = ssub.s32 1024, 1024
          %3766 = vsyncadd %s3756, %s3765
          %s3767 = smul.addr %s3763, 2
          %s3768 = smul.addr %s3767, 128
          %s3769 = scalar_lea.hbm %s18, %s3768
          %s3770 = sshll.u32 %s3759, 4
          %s3771 = int_to_ptr.vmem [resolvable:$true] %s3770
          %3776 = dma.vmem_to_hbm [thread:$0]  %s3771, 1024, %s3769, %s3756, 128, 128, 8
        $region104: #{tpu_custom_call.1} parent=91 // pred_fallthru
          _
      $region92: #{tpu_custom_call.1} parent=5 // pred_fallthru
        _
      %p3777 = scmp.le.s32.totalorder 2, %s31
      // Predicated region
      $region105: #{tpu_custom_call.1} parent=5 // pred_check
        %p3778 = pneg %p3777
      $region106: #{tpu_custom_call.1} parent=5 // pred_check_branch
        %3780 = sbr.rel (%p3778) target = $region108
      $region107: #{tpu_custom_call.1} parent=5 // pred_region
        %s3781 = ssub.s32 %s31, 2
        // Predicated region
        $region109: #{tpu_custom_call.1} parent=107 // pred_check
          %p3782 = pneg %p443
        $region110: #{tpu_custom_call.1} parent=107 // pred_check_branch
          %3784 = sbr.rel (%p3782) target = $region112
        $region111: #{tpu_custom_call.1} parent=107 // pred_region
          %s3785 = sand.u32 %s428, 1
          %s3786 = scalar_lea.sflag [#allocation5], %s3785
          %s3787 = sand.u32 %s428, 1
          %s3788 = smul.addr %s3787, 64
          %s3789 = scalar_lea.vmem [#allocation8], %s3788
          %3790 = dma.done %s3786, 1024
        $region112: #{tpu_custom_call.1} parent=107 // pred_fallthru
          _
      $region108: #{tpu_custom_call.1} parent=5 // pred_fallthru
        _
    $region6: #{tpu_custom_call.1} parent=1 // loop_footer
      %s35 = sadd.s32 1, %s31
    $region7: #{tpu_custom_call.1} parent=1 // loop_footer_branch
      %30 = sbr.rel target = $region3
    $region8: #{tpu_custom_call.1} parent=1 // loop_exit
      _
    %3791 = vsyncpa [#allocation4], 1
    %s3792 = scalar_lea.sflag [#allocation4], 1
    %3793 = vsyncpa %s3792, 1
    %3794 = vsyncpa [#allocation7], 1
    %3795 = vsyncpa [#allocation5], 1
    %s3796 = scalar_lea.sflag [#allocation5], 1
    %3797 = vsyncpa %s3796, 1

// kernel: tpu_custom_call.1
$region0: #{tpu_custom_call.1}
  #allocation0 [shape = 'u32[]', space=smem, size = 0x4, offset = 0x4, fixed_abs, tag = 'smem constant byte address 0x4 - core index']
  #allocation1 [shape = 'u32[144,128]{1,0:T(1,128)}', space=vmem, size = 0x12000, scoped, tag = 'internal scratch']
  #allocation2 [shape = 'f32[64,32]{1,0:T(8,128)}', space=vmem, size = 0x8000, scoped, tag = 'scratch operand']
  %s0 = inlined_call_operand.hbm [shape: f32[8,16,32], index: 0, kind: input, shape index: {}]
  %s1 = inlined_call_operand.vmem [shape: f32[1,32], index: 1, kind: input, shape index: {}]
  %s2 = inlined_call_operand.vmem [shape: f32[1,32], index: 2, kind: input, shape index: {}]
  %s3 = inlined_call_operand.vmem [shape: bf16[32,32], index: 3, kind: input, shape index: {}]
  %s4 = inlined_call_operand.vmem [shape: bf16[32,32], index: 4, kind: input, shape index: {}]
  %s5 = inlined_call_operand.vmem [shape: bf16[32,32], index: 5, kind: input, shape index: {}]
  %s6 = inlined_call_operand.vmem [shape: f32[1,32], index: 6, kind: input, shape index: {}]
  %s7 = inlined_call_operand.vmem [shape: f32[1,32], index: 7, kind: input, shape index: {}]
  %s8 = inlined_call_operand.vmem [shape: f32[1,32], index: 8, kind: input, shape index: {}]
  %s9 = inlined_call_operand.vmem [shape: bf16[32,32], index: 9, kind: input, shape index: {}]
  %s10 = inlined_call_operand.vmem [shape: f32[1,32], index: 10, kind: input, shape index: {}]
  %s11 = inlined_call_operand.hbm [shape: f32[4,4,16,16], index: 11, kind: input, shape index: {}]
  %s12 = inlined_call_operand.vmem [shape: f32[1,32], index: 12, kind: input, shape index: {}]
  %s13 = inlined_call_operand.vmem [shape: f32[1,32], index: 13, kind: input, shape index: {}]
  %s14 = inlined_call_operand.vmem [shape: bf16[32,128], index: 14, kind: input, shape index: {}]
  %s15 = inlined_call_operand.vmem [shape: f32[1,128], index: 15, kind: input, shape index: {}]
  %s16 = inlined_call_operand.vmem [shape: bf16[128,32], index: 16, kind: input, shape index: {}]
  %s17 = inlined_call_operand.vmem [shape: f32[1,32], index: 17, kind: input, shape index: {}]
  %s18 = inlined_call_operand.hbm [shape: f32[8,16,32], index: 18, kind: output, shape index: {}]
  %s19 = sld [smem:[#allocation0]]
  $region113: #{tpu_custom_call.1} parent=0
    _
  %s21 = ssub.s32 1, %s19
  %s22 = scalar_select 0, %s21, %s19
  $region1: #{tpu_custom_call.1} parent=0
    #allocation3 [shape = 'u8[65536]{0}', space=vmem, size = 0x10000, scoped, tag = 'input window, operand 0']
    #allocation4 [shape = 's32[2]{0}', space=sflag, size = 0x8, scoped, tag = 'scoped memory for tpu_custom_call.1']
    #allocation5 [shape = 's32[2]{0}', space=sflag, size = 0x8, scoped, tag = 'scoped memory for tpu_custom_call.1']
    #allocation6 [shape = 'u8[131072]{0}', space=vmem, size = 0x20000, scoped, tag = 'input window, operand 11, single buffered']
    #allocation7 [shape = 's32[1]{0}', space=sflag, size = 0x4, scoped, tag = 'scoped memory for tpu_custom_call.1']
    #allocation8 [shape = 'u8[65536]{0}', space=vmem, size = 0x10000, scoped, tag = 'output window, operand 0']
    %23 = vsyncpa [#allocation4], 0
    %s24 = scalar_lea.sflag [#allocation4], 1
    %25 = vsyncpa %s24, 0
    %26 = vsyncpa [#allocation7], 0
    %27 = vsyncpa [#allocation5], 0
    %s28 = scalar_lea.sflag [#allocation5], 1
    %29 = vsyncpa %s28, 0
    loop: start=0, step=1, limit=4
    $region2: #{tpu_custom_call.1} parent=1 // loop_pre_header
      _
    $region3: #{tpu_custom_call.1} parent=1 // loop_header
      %s31 = sphi 0, %s35
      %p32 = scmp.ge.s32.totalorder %s31, 4
      %s41 = sphi 0, %s43
      %s44 = sphi 0, %s41
      %s45 = sphi 0, %s44
      %s61 = sphi 0, %s45
      %s65 = sphi 0, %s65
      %s67 = sphi 0, %s65
      %s68 = sphi 0, %s67
      %s82 = sphi 0, %s68
      %s86 = sphi 0, %s86
      %s88 = sphi 0, %s86
      %s89 = sphi 0, %s88
      %s103 = sphi 0, %s89
      %s107 = sphi 0, %s107
      %s109 = sphi 0, %s107
      %s110 = sphi 0, %s109
      %s124 = sphi 0, %s110
      %s128 = sphi 0, %s128
      %s130 = sphi 0, %s128
      %s131 = sphi 0, %s130
      %s145 = sphi 0, %s131
      %s149 = sphi 0, %s149
      %s151 = sphi 0, %s149
      %s152 = sphi 0, %s151
      %s166 = sphi 0, %s152
      %s170 = sphi 0, %s170
      %s172 = sphi 0, %s170
      %s173 = sphi 0, %s172
      %s187 = sphi 0, %s173
      %s191 = sphi 0, %s191
      %s193 = sphi 0, %s191
      %s194 = sphi 0, %s193
      %s208 = sphi 0, %s194
      %s212 = sphi 0, %s212
      %s214 = sphi 0, %s212
      %s215 = sphi 0, %s214
      %s229 = sphi 0, %s215
      %s233 = sphi 0, %s233
      %s235 = sphi 0, %s233
      %s236 = sphi 0, %s235
      %s250 = sphi 0, %s236
      %s254 = sphi 0, %s254
      %s256 = sphi 0, %s254
      %s257 = sphi 0, %s256
      %s271 = sphi 0, %s257
      %s275 = sphi 0, %s275
      %s277 = sphi 0, %s275
      %s278 = sphi 0, %s277
      %s292 = sphi 0, %s278
      %s296 = sphi 0, %s296
      %s298 = sphi 0, %s296
      %s299 = sphi 0, %s298
      %s313 = sphi 0, %s299
      %s317 = sphi 0, %s317
      %s319 = sphi 0, %s317
      %s320 = sphi 0, %s319
      %s334 = sphi 0, %s320
      %s338 = sphi 0, %s338
      %s340 = sphi 0, %s338
      %s341 = sphi 0, %s340
      %s355 = sphi 0, %s341
      %s359 = sphi 0, %s359
      %s361 = sphi 0, %s359
      %s362 = sphi 0, %s361
      %s376 = sphi 0, %s362
      %s380 = sphi 0, %s380
      %s382 = sphi 0, %s380
      %s383 = sphi 0, %s382
      %s397 = sphi 0, %s383
      %s401 = sphi 0, %s401
      %s403 = sphi 0, %s401
      %s404 = sphi 0, %s403
      %s418 = sphi 0, %s404
      %s424 = sphi 0, %s426
      %s427 = sphi 0, %s424
      %s428 = sphi 0, %s427
      %s444 = sphi 0, %s428
    $region4: #{tpu_custom_call.1} parent=1 // loop_header_branch
      %34 = sbr.rel (%p32) target = $region8
    $region5: #{tpu_custom_call.1} parent=1 // loop_body
      %s36 = ssub.s32 %s31, 1
      %s37 = ssub.s32 %s31, 2
      %s38 = sadd.s32 %s31, 1
      %s39 = ssub.s32 %s31, %s38
      %p40 = scmp.eq.s32.totalorder %s39, 0
      %s42 = sadd.s32 %s41, 1
      %s43 = scalar_select %p40, %s41, %s42
      %p46 = pneg %p40
      %p47 = scmp.eq.s32.totalorder %s31, 1
      %p48 = por %p46, %p47
      %p49 = scmp.ne.s32.totalorder %s41, %s44
      %p50 = scmp.eq.s32.totalorder %s31, 0
      %p51 = por %p49, %p50
      %p52 = scmp.ne.s32.totalorder %s41, %s44
      %p53 = scmp.eq.s32.totalorder %s36, 1
      %p54 = por %p52, %p53
      %p55 = scmp.ne.s32.totalorder %s44, %s45
      %p56 = scmp.eq.s32.totalorder %s36, 0
      %p57 = por %p55, %p56
      %p58 = scmp.ne.s32.totalorder %s44, %s45
      %p59 = scmp.eq.s32.totalorder %s37, 1
      %p60 = por %p58, %p59
      %p62 = scmp.ne.s32.totalorder %s45, %s61
      %p63 = scmp.eq.s32.totalorder %s37, 0
      %p64 = por %p62, %p63
      %s66 = sadd.s32 %s65, 1
      %p69 = scmp.eq.s32.totalorder %s31, 1
      %p70 = scmp.ne.s32.totalorder %s65, %s67
      %p71 = scmp.eq.s32.totalorder %s31, 0
      %p72 = por %p70, %p71
      %p73 = scmp.ne.s32.totalorder %s65, %s67
      %p74 = scmp.eq.s32.totalorder %s36, 1
      %p75 = por %p73, %p74
      %p76 = scmp.ne.s32.totalorder %s67, %s68
      %p77 = scmp.eq.s32.totalorder %s36, 0
      %p78 = por %p76, %p77
      %p79 = scmp.ne.s32.totalorder %s67, %s68
      %p80 = scmp.eq.s32.totalorder %s37, 1
      %p81 = por %p79, %p80
      %p83 = scmp.ne.s32.totalorder %s68, %s82
      %p84 = scmp.eq.s32.totalorder %s37, 0
      %p85 = por %p83, %p84
      %s87 = sadd.s32 %s86, 1
      %p90 = scmp.eq.s32.totalorder %s31, 1
      %p91 = scmp.ne.s32.totalorder %s86, %s88
      %p92 = scmp.eq.s32.totalorder %s31, 0
      %p93 = por %p91, %p92
      %p94 = scmp.ne.s32.totalorder %s86, %s88
      %p95 = scmp.eq.s32.totalorder %s36, 1
      %p96 = por %p94, %p95
      %p97 = scmp.ne.s32.totalorder %s88, %s89
      %p98 = scmp.eq.s32.totalorder %s36, 0
      %p99 = por %p97, %p98
      %p100 = scmp.ne.s32.totalorder %s88, %s89
      %p101 = scmp.eq.s32.totalorder %s37, 1
      %p102 = por %p100, %p101
      %p104 = scmp.ne.s32.totalorder %s89, %s103
      %p105 = scmp.eq.s32.totalorder %s37, 0
      %p106 = por %p104, %p105
      %s108 = sadd.s32 %s107, 1
      %p111 = scmp.eq.s32.totalorder %s31, 1
      %p112 = scmp.ne.s32.totalorder %s107, %s109
      %p113 = scmp.eq.s32.totalorder %s31, 0
      %p114 = por %p112, %p113
      %p115 = scmp.ne.s32.totalorder %s107, %s109
      %p116 = scmp.eq.s32.totalorder %s36, 1
      %p117 = por %p115, %p116
      %p118 = scmp.ne.s32.totalorder %s109, %s110
      %p119 = scmp.eq.s32.totalorder %s36, 0
      %p120 = por %p118, %p119
      %p121 = scmp.ne.s32.totalorder %s109, %s110
      %p122 = scmp.eq.s32.totalorder %s37, 1
      %p123 = por %p121, %p122
      %p125 = scmp.ne.s32.totalorder %s110, %s124
      %p126 = scmp.eq.s32.totalorder %s37, 0
      %p127 = por %p125, %p126
      %s129 = sadd.s32 %s128, 1
      %p132 = scmp.eq.s32.totalorder %s31, 1
      %p133 = scmp.ne.s32.totalorder %s128, %s130
      %p134 = scmp.eq.s32.totalorder %s31, 0
      %p135 = por %p133, %p134
      %p136 = scmp.ne.s32.totalorder %s128, %s130
      %p137 = scmp.eq.s32.totalorder %s36, 1
      %p138 = por %p136, %p137
      %p139 = scmp.ne.s32.totalorder %s130, %s131
      %p140 = scmp.eq.s32.totalorder %s36, 0
      %p141 = por %p139, %p140
      %p142 = scmp.ne.s32.totalorder %s130, %s131
      %p143 = scmp.eq.s32.totalorder %s37, 1
      %p144 = por %p142, %p143
      %p146 = scmp.ne.s32.totalorder %s131, %s145
      %p147 = scmp.eq.s32.totalorder %s37, 0
      %p148 = por %p146, %p147
      %s150 = sadd.s32 %s149, 1
      %p153 = scmp.eq.s32.totalorder %s31, 1
      %p154 = scmp.ne.s32.totalorder %s149, %s151
      %p155 = scmp.eq.s32.totalorder %s31, 0
      %p156 = por %p154, %p155
      %p157 = scmp.ne.s32.totalorder %s149, %s151
      %p158 = scmp.eq.s32.totalorder %s36, 1
      %p159 = por %p157, %p158
      %p160 = scmp.ne.s32.totalorder %s151, %s152
      %p161 = scmp.eq.s32.totalorder %s36, 0
      %p162 = por %p160, %p161
      %p163 = scmp.ne.s32.totalorder %s151, %s152
      %p164 = scmp.eq.s32.totalorder %s37, 1
      %p165 = por %p163, %p164
      %p167 = scmp.ne.s32.totalorder %s152, %s166
      %p168 = scmp.eq.s32.totalorder %s37, 0
      %p169 = por %p167, %p168
      %s171 = sadd.s32 %s170, 1
      %p174 = scmp.eq.s32.totalorder %s31, 1
      %p175 = scmp.ne.s32.totalorder %s170, %s172
      %p176 = scmp.eq.s32.totalorder %s31, 0
      %p177 = por %p175, %p176
      %p178 = scmp.ne.s32.totalorder %s170, %s172
      %p179 = scmp.eq.s32.totalorder %s36, 1
      %p180 = por %p178, %p179
      %p181 = scmp.ne.s32.totalorder %s172, %s173
      %p182 = scmp.eq.s32.totalorder %s36, 0
      %p183 = por %p181, %p182
      %p184 = scmp.ne.s32.totalorder %s172, %s173
      %p185 = scmp.eq.s32.totalorder %s37, 1
      %p186 = por %p184, %p185
      %p188 = scmp.ne.s32.totalorder %s173, %s187
      %p189 = scmp.eq.s32.totalorder %s37, 0
      %p190 = por %p188, %p189
      %s192 = sadd.s32 %s191, 1
      %p195 = scmp.eq.s32.totalorder %s31, 1
      %p196 = scmp.ne.s32.totalorder %s191, %s193
      %p197 = scmp.eq.s32.totalorder %s31, 0
      %p198 = por %p196, %p197
      %p199 = scmp.ne.s32.totalorder %s191, %s193
      %p200 = scmp.eq.s32.totalorder %s36, 1
      %p201 = por %p199, %p200
      %p202 = scmp.ne.s32.totalorder %s193, %s194
      %p203 = scmp.eq.s32.totalorder %s36, 0
      %p204 = por %p202, %p203
      %p205 = scmp.ne.s32.totalorder %s193, %s194
      %p206 = scmp.eq.s32.totalorder %s37, 1
      %p207 = por %p205, %p206
      %p209 = scmp.ne.s32.totalorder %s194, %s208
      %p210 = scmp.eq.s32.totalorder %s37, 0
      %p211 = por %p209, %p210
      %s213 = sadd.s32 %s212, 1
      %p216 = scmp.eq.s32.totalorder %s31, 1
      %p217 = scmp.ne.s32.totalorder %s212, %s214
      %p218 = scmp.eq.s32.totalorder %s31, 0
      %p219 = por %p217, %p218
      %p220 = scmp.ne.s32.totalorder %s212, %s214
      %p221 = scmp.eq.s32.totalorder %s36, 1
      %p222 = por %p220, %p221
      %p223 = scmp.ne.s32.totalorder %s214, %s215
      %p224 = scmp.eq.s32.totalorder %s36, 0
      %p225 = por %p223, %p224
      %p226 = scmp.ne.s32.totalorder %s214, %s215
      %p227 = scmp.eq.s32.totalorder %s37, 1
      %p228 = por %p226, %p227
      %p230 = scmp.ne.s32.totalorder %s215, %s229
      %p231 = scmp.eq.s32.totalorder %s37, 0
      %p232 = por %p230, %p231
      %s234 = sadd.s32 %s233, 1
      %p237 = scmp.eq.s32.totalorder %s31, 1
      %p238 = scmp.ne.s32.totalorder %s233, %s235
      %p239 = scmp.eq.s32.totalorder %s31, 0
      %p240 = por %p238, %p239
      %p241 = scmp.ne.s32.totalorder %s233, %s235
      %p242 = scmp.eq.s32.totalorder %s36, 1
      %p243 = por %p241, %p242
      %p244 = scmp.ne.s32.totalorder %s235, %s236
      %p245 = scmp.eq.s32.totalorder %s36, 0
      %p246 = por %p244, %p245
      %p247 = scmp.ne.s32.totalorder %s235, %s236
      %p248 = scmp.eq.s32.totalorder %s37, 1
      %p249 = por %p247, %p248
      %p251 = scmp.ne.s32.totalorder %s236, %s250
      %p252 = scmp.eq.s32.totalorder %s37, 0
      %p253 = por %p251, %p252
      %s255 = sadd.s32 %s254, 1
      %p258 = scmp.eq.s32.totalorder %s31, 1
      %p259 = scmp.ne.s32.totalorder %s254, %s256
      %p260 = scmp.eq.s32.totalorder %s31, 0
      %p261 = por %p259, %p260
      %p262 = scmp.ne.s32.totalorder %s254, %s256
      %p263 = scmp.eq.s32.totalorder %s36, 1
      %p264 = por %p262, %p263
      %p265 = scmp.ne.s32.totalorder %s256, %s257
      %p266 = scmp.eq.s32.totalorder %s36, 0
      %p267 = por %p265, %p266
      %p268 = scmp.ne.s32.totalorder %s256, %s257
      %p269 = scmp.eq.s32.totalorder %s37, 1
      %p270 = por %p268, %p269
      %p272 = scmp.ne.s32.totalorder %s257, %s271
      %p273 = scmp.eq.s32.totalorder %s37, 0
      %p274 = por %p272, %p273
      %s276 = sadd.s32 %s275, 1
      %p279 = scmp.eq.s32.totalorder %s31, 1
      %p280 = scmp.ne.s32.totalorder %s275, %s277
      %p281 = scmp.eq.s32.totalorder %s31, 0
      %p282 = por %p280, %p281
      %p283 = scmp.ne.s32.totalorder %s275, %s277
      %p284 = scmp.eq.s32.totalorder %s36, 1
      %p285 = por %p283, %p284
      %p286 = scmp.ne.s32.totalorder %s277, %s278
      %p287 = scmp.eq.s32.totalorder %s36, 0
      %p288 = por %p286, %p287
      %p289 = scmp.ne.s32.totalorder %s277, %s278
      %p290 = scmp.eq.s32.totalorder %s37, 1
      %p291 = por %p289, %p290
      %p293 = scmp.ne.s32.totalorder %s278, %s292
      %p294 = scmp.eq.s32.totalorder %s37, 0
      %p295 = por %p293, %p294
      %s297 = sadd.s32 %s296, 1
      %p300 = scmp.eq.s32.totalorder %s31, 1
      %p301 = scmp.ne.s32.totalorder %s296, %s298
      %p302 = scmp.eq.s32.totalorder %s31, 0
      %p303 = por %p301, %p302
      %p304 = scmp.ne.s32.totalorder %s296, %s298
      %p305 = scmp.eq.s32.totalorder %s36, 1
      %p306 = por %p304, %p305
      %p307 = scmp.ne.s32.totalorder %s298, %s299
      %p308 = scmp.eq.s32.totalorder %s36, 0
      %p309 = por %p307, %p308
      %p310 = scmp.ne.s32.totalorder %s298, %s299
      %p311 = scmp.eq.s32.totalorder %s37, 1
      %p312 = por %p310, %p311
      %p314 = scmp.ne.s32.totalorder %s299, %s313
      %p315 = scmp.eq.s32.totalorder %s37, 0
      %p316 = por %p314, %p315
      %s318 = sadd.s32 %s317, 1
      %p321 = scmp.eq.s32.totalorder %s31, 1
      %p322 = scmp.ne.s32.totalorder %s317, %s319
      %p323 = scmp.eq.s32.totalorder %s31, 0
      %p324 = por %p322, %p323
      %p325 = scmp.ne.s32.totalorder %s317, %s319
      %p326 = scmp.eq.s32.totalorder %s36, 1
      %p327 = por %p325, %p326
      %p328 = scmp.ne.s32.totalorder %s319, %s320
      %p329 = scmp.eq.s32.totalorder %s36, 0
      %p330 = por %p328, %p329
      %p331 = scmp.ne.s32.totalorder %s319, %s320
      %p332 = scmp.eq.s32.totalorder %s37, 1
      %p333 = por %p331, %p332
      %p335 = scmp.ne.s32.totalorder %s320, %s334
      %p336 = scmp.eq.s32.totalorder %s37, 0
      %p337 = por %p335, %p336
      %s339 = sadd.s32 %s338, 1
      %p342 = scmp.eq.s32.totalorder %s31, 1
      %p343 = scmp.ne.s32.totalorder %s338, %s340
      %p344 = scmp.eq.s32.totalorder %s31, 0
      %p345 = por %p343, %p344
      %p346 = scmp.ne.s32.totalorder %s338, %s340
      %p347 = scmp.eq.s32.totalorder %s36, 1
      %p348 = por %p346, %p347
      %p349 = scmp.ne.s32.totalorder %s340, %s341
      %p350 = scmp.eq.s32.totalorder %s36, 0
      %p351 = por %p349, %p350
      %p352 = scmp.ne.s32.totalorder %s340, %s341
      %p353 = scmp.eq.s32.totalorder %s37, 1
      %p354 = por %p352, %p353
      %p356 = scmp.ne.s32.totalorder %s341, %s355
      %p357 = scmp.eq.s32.totalorder %s37, 0
      %p358 = por %p356, %p357
      %s360 = sadd.s32 %s359, 1
      %p363 = scmp.eq.s32.totalorder %s31, 1
      %p364 = scmp.ne.s32.totalorder %s359, %s361
      %p365 = scmp.eq.s32.totalorder %s31, 0
      %p366 = por %p364, %p365
      %p367 = scmp.ne.s32.totalorder %s359, %s361
      %p368 = scmp.eq.s32.totalorder %s36, 1
      %p369 = por %p367, %p368
      %p370 = scmp.ne.s32.totalorder %s361, %s362
      %p371 = scmp.eq.s32.totalorder %s36, 0
      %p372 = por %p370, %p371
      %p373 = scmp.ne.s32.totalorder %s361, %s362
      %p374 = scmp.eq.s32.totalorder %s37, 1
      %p375 = por %p373, %p374
      %p377 = scmp.ne.s32.totalorder %s362, %s376
      %p378 = scmp.eq.s32.totalorder %s37, 0
      %p379 = por %p377, %p378
      %s381 = sadd.s32 %s380, 1
      %p384 = scmp.eq.s32.totalorder %s31, 1
      %p385 = scmp.ne.s32.totalorder %s380, %s382
      %p386 = scmp.eq.s32.totalorder %s31, 0
      %p387 = por %p385, %p386
      %p388 = scmp.ne.s32.totalorder %s380, %s382
      %p389 = scmp.eq.s32.totalorder %s36, 1
      %p390 = por %p388, %p389
      %p391 = scmp.ne.s32.totalorder %s382, %s383
      %p392 = scmp.eq.s32.totalorder %s36, 0
      %p393 = por %p391, %p392
      %p394 = scmp.ne.s32.totalorder %s382, %s383
      %p395 = scmp.eq.s32.totalorder %s37, 1
      %p396 = por %p394, %p395
      %p398 = scmp.ne.s32.totalorder %s383, %s397
      %p399 = scmp.eq.s32.totalorder %s37, 0
      %p400 = por %p398, %p399
      %s402 = sadd.s32 %s401, 1
      %p405 = scmp.eq.s32.totalorder %s31, 1
      %p406 = scmp.ne.s32.totalorder %s401, %s403
      %p407 = scmp.eq.s32.totalorder %s31, 0
      %p408 = por %p406, %p407
      %p409 = scmp.ne.s32.totalorder %s401, %s403
      %p410 = scmp.eq.s32.totalorder %s36, 1
      %p411 = por %p409, %p410
      %p412 = scmp.ne.s32.totalorder %s403, %s404
      %p413 = scmp.eq.s32.totalorder %s36, 0
      %p414 = por %p412, %p413
      %p415 = scmp.ne.s32.totalorder %s403, %s404
      %p416 = scmp.eq.s32.totalorder %s37, 1
      %p417 = por %p415, %p416
      %p419 = scmp.ne.s32.totalorder %s404, %s418
      %p420 = scmp.eq.s32.totalorder %s37, 0
      %p421 = por %p419, %p420
      %s422 = ssub.s32 %s31, %s38
      %p423 = scmp.eq.s32.totalorder %s422, 0
      %s425 = sadd.s32 %s424, 1
      %s426 = scalar_select %p423, %s424, %s425
      %p429 = pneg %p423
      %p430 = scmp.eq.s32.totalorder %s31, 1
      %p431 = por %p429, %p430
      %p432 = scmp.ne.s32.totalorder %s424, %s427
      %p433 = scmp.eq.s32.totalorder %s31, 0
      %p434 = por %p432, %p433
      %p435 = scmp.ne.s32.totalorder %s424, %s427
      %p436 = scmp.eq.s32.totalorder %s36, 1
      %p437 = por %p435, %p436
      %p438 = scmp.ne.s32.totalorder %s427, %s428
      %p439 = scmp.eq.s32.totalorder %s36, 0
      %p440 = por %p438, %p439
      %p441 = scmp.ne.s32.totalorder %s427, %s428
      %p442 = scmp.eq.s32.totalorder %s37, 1
      %p443 = por %p441, %p442
      %p445 = scmp.ne.s32.totalorder %s428, %s444
      %p446 = scmp.eq.s32.totalorder %s37, 0
      %p447 = por %p445, %p446
      %p448 = scmp.le.s32.totalorder 1, %s31
      %p449 = scmp.lt.s32.totalorder %s31, 3
      %p450 = pnand %p448, %p449
      %p451 = pneg %p450
      // Predicated region
      $region9: #{tpu_custom_call.1} parent=5 // pred_check
        _
      $region10: #{tpu_custom_call.1} parent=5 // pred_check_branch
        %453 = sbr.rel (%p450) target = $region12
      $region11: #{tpu_custom_call.1} parent=5 // pred_region
        %s454 = ssub.s32 %s31, 1
        // Predicated region
        $region13: #{tpu_custom_call.1} parent=11 // pred_check
          %p455 = pneg %p78
        $region14: #{tpu_custom_call.1} parent=11 // pred_check_branch
          %457 = sbr.rel (%p455) target = $region16
        $region15: #{tpu_custom_call.1} parent=11 // pred_region
          _
        $region16: #{tpu_custom_call.1} parent=11 // pred_fallthru
          _
        // Predicated region
        $region17: #{tpu_custom_call.1} parent=11 // pred_check
          %p458 = pneg %p99
        $region18: #{tpu_custom_call.1} parent=11 // pred_check_branch
          %460 = sbr.rel (%p458) target = $region20
        $region19: #{tpu_custom_call.1} parent=11 // pred_region
          _
        $region20: #{tpu_custom_call.1} parent=11 // pred_fallthru
          _
        // Predicated region
        $region21: #{tpu_custom_call.1} parent=11 // pred_check
          %p461 = pneg %p120
        $region22: #{tpu_custom_call.1} parent=11 // pred_check_branch
          %463 = sbr.rel (%p461) target = $region24
        $region23: #{tpu_custom_call.1} parent=11 // pred_region
          _
        $region24: #{tpu_custom_call.1} parent=11 // pred_fallthru
          _
        // Predicated region
        $region25: #{tpu_custom_call.1} parent=11 // pred_check
          %p464 = pneg %p141
        $region26: #{tpu_custom_call.1} parent=11 // pred_check_branch
          %466 = sbr.rel (%p464) target = $region28
        $region27: #{tpu_custom_call.1} parent=11 // pred_region
          _
        $region28: #{tpu_custom_call.1} parent=11 // pred_fallthru
          _
        // Predicated region
        $region29: #{tpu_custom_call.1} parent=11 // pred_check
          %p467 = pneg %p162
        $region30: #{tpu_custom_call.1} parent=11 // pred_check_branch
          %469 = sbr.rel (%p467) target = $region32
        $region31: #{tpu_custom_call.1} parent=11 // pred_region
          _
        $region32: #{tpu_custom_call.1} parent=11 // pred_fallthru
          _
        // Predicated region
        $region33: #{tpu_custom_call.1} parent=11 // pred_check
          %p470 = pneg %p183
        $region34: #{tpu_custom_call.1} parent=11 // pred_check_branch
          %472 = sbr.rel (%p470) target = $region36
        $region35: #{tpu_custom_call.1} parent=11 // pred_region
          _
        $region36: #{tpu_custom_call.1} parent=11 // pred_fallthru
          _
        // Predicated region
        $region37: #{tpu_custom_call.1} parent=11 // pred_check
          %p473 = pneg %p204
        $region38: #{tpu_custom_call.1} parent=11 // pred_check_branch
          %475 = sbr.rel (%p473) target = $region40
        $region39: #{tpu_custom_call.1} parent=11 // pred_region
          _
        $region40: #{tpu_custom_call.1} parent=11 // pred_fallthru
          _
        // Predicated region
        $region41: #{tpu_custom_call.1} parent=11 // pred_check
          %p476 = pneg %p225
        $region42: #{tpu_custom_call.1} parent=11 // pred_check_branch
          %478 = sbr.rel (%p476) target = $region44
        $region43: #{tpu_custom_call.1} parent=11 // pred_region
          _
        $region44: #{tpu_custom_call.1} parent=11 // pred_fallthru
          _
        // Predicated region
        $region45: #{tpu_custom_call.1} parent=11 // pred_check
          %p479 = pneg %p246
        $region46: #{tpu_custom_call.1} parent=11 // pred_check_branch
          %481 = sbr.rel (%p479) target = $region48
        $region47: #{tpu_custom_call.1} parent=11 // pred_region
          _
        $region48: #{tpu_custom_call.1} parent=11 // pred_fallthru
          _
        // Predicated region
        $region49: #{tpu_custom_call.1} parent=11 // pred_check
          %p482 = pneg %p267
        $region50: #{tpu_custom_call.1} parent=11 // pred_check_branch
          %484 = sbr.rel (%p482) target = $region52
        $region51: #{tpu_custom_call.1} parent=11 // pred_region
          _
        $region52: #{tpu_custom_call.1} parent=11 // pred_fallthru
          _
        // Predicated region
        $region53: #{tpu_custom_call.1} parent=11 // pred_check
          %p485 = pneg %p288
        $region54: #{tpu_custom_call.1} parent=11 // pred_check_branch
          %487 = sbr.rel (%p485) target = $region56
        $region55: #{tpu_custom_call.1} parent=11 // pred_region
          %s489 = ssub.s32 4096, 4096
          %490 = vsyncadd [#allocation7], %s489
          %s491 = sshll.u32 [#allocation6], 4
          %s492 = int_to_ptr.vmem [resolvable:$true] %s491
          %497 = dma.hbm_to_vmem [thread:$0]  %s11, 4096, %s492, [#allocation7], 128, 128, 8
        $region56: #{tpu_custom_call.1} parent=11 // pred_fallthru
          _
        // Predicated region
        $region57: #{tpu_custom_call.1} parent=11 // pred_check
          %p498 = pneg %p309
        $region58: #{tpu_custom_call.1} parent=11 // pred_check_branch
          %500 = sbr.rel (%p498) target = $region60
        $region59: #{tpu_custom_call.1} parent=11 // pred_region
          _
        $region60: #{tpu_custom_call.1} parent=11 // pred_fallthru
          _
        // Predicated region
        $region61: #{tpu_custom_call.1} parent=11 // pred_check
          %p501 = pneg %p330
        $region62: #{tpu_custom_call.1} parent=11 // pred_check_branch
          %503 = sbr.rel (%p501) target = $region64
        $region63: #{tpu_custom_call.1} parent=11 // pred_region
          _
        $region64: #{tpu_custom_call.1} parent=11 // pred_fallthru
          _
        // Predicated region
        $region65: #{tpu_custom_call.1} parent=11 // pred_check
          %p504 = pneg %p351
        $region66: #{tpu_custom_call.1} parent=11 // pred_check_branch
          %506 = sbr.rel (%p504) target = $region68
        $region67: #{tpu_custom_call.1} parent=11 // pred_region
          _
        $region68: #{tpu_custom_call.1} parent=11 // pred_fallthru
          _
        // Predicated region
        $region69: #{tpu_custom_call.1} parent=11 // pred_check
          %p507 = pneg %p372
        $region70: #{tpu_custom_call.1} parent=11 // pred_check_branch
          %509 = sbr.rel (%p507) target = $region72
        $region71: #{tpu_custom_call.1} parent=11 // pred_region
          _
        $region72: #{tpu_custom_call.1} parent=11 // pred_fallthru
          _
        // Predicated region
        $region73: #{tpu_custom_call.1} parent=11 // pred_check
          %p510 = pneg %p393
        $region74: #{tpu_custom_call.1} parent=11 // pred_check_branch
          %512 = sbr.rel (%p510) target = $region76
        $region75: #{tpu_custom_call.1} parent=11 // pred_region
          _
        $region76: #{tpu_custom_call.1} parent=11 // pred_fallthru
          _
        // Predicated region
        $region77: #{tpu_custom_call.1} parent=11 // pred_check
          %p513 = pneg %p414
        $region78: #{tpu_custom_call.1} parent=11 // pred_check_branch
          %515 = sbr.rel (%p513) target = $region80
        $region79: #{tpu_custom_call.1} parent=11 // pred_region
          _
        $region80: #{tpu_custom_call.1} parent=11 // pred_fallthru
          _
      $region12: #{tpu_custom_call.1} parent=5 // pred_fallthru
        _
      %p516 = scmp.lt.s32.totalorder %s31, 2
      // Predicated region
      $region81: #{tpu_custom_call.1} parent=5 // pred_check
        %p517 = pneg %p516
      $region82: #{tpu_custom_call.1} parent=5 // pred_check_branch
        %519 = sbr.rel (%p517) target = $region84
      $region83: #{tpu_custom_call.1} parent=5 // pred_region
        // Predicated region
        $region85: #{tpu_custom_call.1} parent=83 // pred_check
          %p520 = pneg %p51
        $region86: #{tpu_custom_call.1} parent=83 // pred_check_branch
          %522 = sbr.rel (%p520) target = $region88
        $region87: #{tpu_custom_call.1} parent=83 // pred_region
          %s523 = sand.u32 %s41, 1
          %s524 = scalar_lea.sflag [#allocation4], %s523
          %s525 = sand.u32 %s41, 1
          %s526 = smul.addr %s525, 64
          %s527 = scalar_lea.vmem [#allocation3], %s526
          %s528 = smul.u32 4, %s31
          %s530 = ssub.s32 1024, 1024
          %531 = vsyncadd %s524, %s530
          %s532 = smul.addr %s528, 2
          %s533 = smul.addr %s532, 128
          %s534 = scalar_lea.hbm %s0, %s533
          %s535 = sshll.u32 %s527, 4
          %s536 = int_to_ptr.vmem [resolvable:$true] %s535
          %541 = dma.hbm_to_vmem [thread:$0]  %s534, 1024, %s536, %s524, 128, 128, 8
        $region88: #{tpu_custom_call.1} parent=83 // pred_fallthru
          _
      $region84: #{tpu_custom_call.1} parent=5 // pred_fallthru
        _
      %p542 = scmp.le.s32.totalorder 1, %s31
      %p543 = scmp.lt.s32.totalorder %s31, 3
      %p544 = pnand %p542, %p543
      %p545 = pneg %p544
      // Predicated region
      $region89: #{tpu_custom_call.1} parent=5 // pred_check
        _
      $region90: #{tpu_custom_call.1} parent=5 // pred_check_branch
        %547 = sbr.rel (%p544) target = $region92
      $region91: #{tpu_custom_call.1} parent=5 // pred_region
        %s548 = ssub.s32 %s31, 1
        %s549 = sand.u32 %s44, 1
        %s550 = scalar_lea.sflag [#allocation4], %s549
        %s551 = sand.u32 %s44, 1
        %s552 = smul.addr %s551, 64
        %s553 = scalar_lea.vmem [#allocation3], %s552
        // Predicated region
        $region93: #{tpu_custom_call.1} parent=91 // pred_check
          %p554 = pneg %p57
        $region94: #{tpu_custom_call.1} parent=91 // pred_check_branch
          %556 = sbr.rel (%p554) target = $region96
        $region95: #{tpu_custom_call.1} parent=91 // pred_region
          %557 = dma.done %s550, 1024
        $region96: #{tpu_custom_call.1} parent=91 // pred_fallthru
          _
        // Predicated region
        $region97: #{tpu_custom_call.1} parent=91 // pred_check
          %p558 = pneg %p288
        $region98: #{tpu_custom_call.1} parent=91 // pred_check_branch
          %560 = sbr.rel (%p558) target = $region100
        $region99: #{tpu_custom_call.1} parent=91 // pred_region
          %561 = dma.done [#allocation7], 4096
        $region100: #{tpu_custom_call.1} parent=91 // pred_fallthru
          _
        %s562 = sand.u32 %s44, 1
        %s563 = scalar_lea.sflag [#allocation4], %s562
        %s564 = sand.u32 %s44, 1
        %s565 = smul.addr %s564, 64
        %s566 = scalar_lea.vmem [#allocation3], %s565
        %p567 = pneg %p57
        %p568 = pneg %p54
        %p569 = pneg %p78
        %p570 = pneg %p75
        %p571 = pneg %p99
        %p572 = pneg %p96
        %p573 = pneg %p120
        %p574 = pneg %p117
        %p575 = pneg %p141
        %p576 = pneg %p138
        %p577 = pneg %p162
        %p578 = pneg %p159
        %p579 = pneg %p183
        %p580 = pneg %p180
        %p581 = pneg %p204
        %p582 = pneg %p201
        %p583 = pneg %p225
        %p584 = pneg %p222
        %p585 = pneg %p246
        %p586 = pneg %p243
        %p587 = pneg %p267
        %p588 = pneg %p264
        %p589 = pneg %p288
        %p590 = pneg %p285
        %p591 = pneg %p309
        %p592 = pneg %p306
        %p593 = pneg %p330
        %p594 = pneg %p327
        %p595 = pneg %p351
        %p596 = pneg %p348
        %p597 = pneg %p372
        %p598 = pneg %p369
        %p599 = pneg %p393
        %p600 = pneg %p390
        %p601 = pneg %p414
        %p602 = pneg %p411
        %p603 = pneg %p440
        %p604 = pneg %p437
        %s605 = sand.u32 %s427, 1
        %s606 = scalar_lea.sflag [#allocation5], %s605
        %s607 = sand.u32 %s427, 1
        %s608 = smul.addr %s607, 64
        %s609 = scalar_lea.vmem [#allocation8], %s608
        %s610 = smul.u32 4, %s36
        %s611 = smul.u32 4, %s36
        %v613 = vld [vmem:[%s553] sm:$0xff]
        %v614 = vld [vmem:[%s553 + $0x8] sm:$0xff]
        %v615 = vld [vmem:[%s553 + $0x10] sm:$0xff]
        %v616 = vld [vmem:[%s553 + $0x18] sm:$0xff]
        %v617 = vld [vmem:[%s553 + $0x20] sm:$0xff]
        %v618 = vld [vmem:[%s553 + $0x28] sm:$0xff]
        %v619 = vld [vmem:[%s553 + $0x30] sm:$0xff]
        %v620 = vld [vmem:[%s553 + $0x38] sm:$0xff]
        %v621 = vld [vmem:[%s1] sm:$0x1]
        %v622 = vld [vmem:[%s2] sm:$0x1]
        %vm623 = vcmask 261120
        %v624 = vsel %vm623, %v613, 0.0
        %625 = vadd.xlane.f32.xlu0 %v624
        %v626 = vpop.xlane.xlu0 %625
        %v627 = vsel %vm623, %v614, 0.0
        %628 = vadd.xlane.f32.xlu0 %v627
        %v629 = vpop.xlane.xlu0 %628
        %v630 = vsel %vm623, %v615, 0.0
        %631 = vadd.xlane.f32.xlu0 %v630
        %v632 = vpop.xlane.xlu0 %631
        %v633 = vsel %vm623, %v616, 0.0
        %634 = vadd.xlane.f32.xlu0 %v633
        %v635 = vpop.xlane.xlu0 %634
        %v636 = vsel %vm623, %v617, 0.0
        %637 = vadd.xlane.f32.xlu0 %v636
        %v638 = vpop.xlane.xlu0 %637
        %v639 = vsel %vm623, %v618, 0.0
        %640 = vadd.xlane.f32.xlu0 %v639
        %v641 = vpop.xlane.xlu0 %640
        %v642 = vsel %vm623, %v619, 0.0
        %643 = vadd.xlane.f32.xlu0 %v642
        %v644 = vpop.xlane.xlu0 %643
        %v645 = vsel %vm623, %v620, 0.0
        %646 = vadd.xlane.f32.xlu0 %v645
        %v647 = vpop.xlane.xlu0 %646
        %v648 = vrcp.pop 32.0
        %v649 = vmul.f32 %v626, %v648
        %v650 = vmul.f32 %v629, %v648
        %v651 = vmul.f32 %v632, %v648
        %v652 = vmul.f32 %v635, %v648
        %v653 = vmul.f32 %v638, %v648
        %v654 = vmul.f32 %v641, %v648
        %v655 = vmul.f32 %v644, %v648
        %v656 = vmul.f32 %v647, %v648
        %v657 = vsub.f32 %v613, %v649
        %v658 = vsub.f32 %v614, %v650
        %v659 = vsub.f32 %v615, %v651
        %v660 = vsub.f32 %v616, %v652
        %v661 = vsub.f32 %v617, %v653
        %v662 = vsub.f32 %v618, %v654
        %v663 = vsub.f32 %v619, %v655
        %v664 = vsub.f32 %v620, %v656
        %v665 = vmul.f32 %v657, %v657
        %v666 = vmul.f32 %v658, %v658
        %v667 = vmul.f32 %v659, %v659
        %v668 = vmul.f32 %v660, %v660
        %v669 = vmul.f32 %v661, %v661
        %v670 = vmul.f32 %v662, %v662
        %v671 = vmul.f32 %v663, %v663
        %v672 = vmul.f32 %v664, %v664
        %v673 = vsel %vm623, %v665, 0.0
        %674 = vadd.xlane.f32.xlu0 %v673
        %v675 = vpop.xlane.xlu0 %674
        %v676 = vsel %vm623, %v666, 0.0
        %677 = vadd.xlane.f32.xlu0 %v676
        %v678 = vpop.xlane.xlu0 %677
        %v679 = vsel %vm623, %v667, 0.0
        %680 = vadd.xlane.f32.xlu0 %v679
        %v681 = vpop.xlane.xlu0 %680
        %v682 = vsel %vm623, %v668, 0.0
        %683 = vadd.xlane.f32.xlu0 %v682
        %v684 = vpop.xlane.xlu0 %683
        %v685 = vsel %vm623, %v669, 0.0
        %686 = vadd.xlane.f32.xlu0 %v685
        %v687 = vpop.xlane.xlu0 %686
        %v688 = vsel %vm623, %v670, 0.0
        %689 = vadd.xlane.f32.xlu0 %v688
        %v690 = vpop.xlane.xlu0 %689
        %v691 = vsel %vm623, %v671, 0.0
        %692 = vadd.xlane.f32.xlu0 %v691
        %v693 = vpop.xlane.xlu0 %692
        %v694 = vsel %vm623, %v672, 0.0
        %695 = vadd.xlane.f32.xlu0 %v694
        %v696 = vpop.xlane.xlu0 %695
        %v697 = vmul.f32 %v675, %v648
        %v698 = vmul.f32 %v678, %v648
        %v699 = vmul.f32 %v681, %v648
        %v700 = vmul.f32 %v684, %v648
        %v701 = vmul.f32 %v687, %v648
        %v702 = vmul.f32 %v690, %v648
        %v703 = vmul.f32 %v693, %v648
        %v704 = vmul.f32 %v696, %v648
        %v705 = vadd.f32 %v697, 1e-05
        %v706 = vadd.f32 %v698, 1e-05
        %v707 = vadd.f32 %v699, 1e-05
        %v708 = vadd.f32 %v700, 1e-05
        %v709 = vadd.f32 %v701, 1e-05
        %v710 = vadd.f32 %v702, 1e-05
        %v711 = vadd.f32 %v703, 1e-05
        %v712 = vadd.f32 %v704, 1e-05
        %v713 = vrsqrt.pop %v705
        %v714 = vrsqrt.pop %v706
        %v715 = vrsqrt.pop %v707
        %v716 = vrsqrt.pop %v708
        %v717 = vrsqrt.pop %v709
        %v718 = vrsqrt.pop %v710
        %v719 = vrsqrt.pop %v711
        %v720 = vrsqrt.pop %v712
        %v721 = vmul.f32 %v657, %v713
        %v722 = vmul.f32 %v658, %v714
        %v723 = vmul.f32 %v659, %v715
        %v724 = vmul.f32 %v660, %v716
        %v725 = vmul.f32 %v661, %v717
        %v726 = vmul.f32 %v662, %v718
        %v727 = vmul.f32 %v663, %v719
        %v728 = vmul.f32 %v664, %v720
        %v730 = vlaneseq
        %v731 = vshrl.u32 %v730, 7
        %v732 = vsub.s32 0, %v731
        %v733 = vrot.slane %v621, %v732
        %v735 = vmul.f32 %v721, %v733
        %v736 = vmul.f32 %v722, %v733
        %v737 = vmul.f32 %v723, %v733
        %v738 = vmul.f32 %v724, %v733
        %v739 = vmul.f32 %v725, %v733
        %v740 = vmul.f32 %v726, %v733
        %v741 = vmul.f32 %v727, %v733
        %v742 = vmul.f32 %v728, %v733
        %v744 = vlaneseq
        %v745 = vshrl.u32 %v744, 7
        %v746 = vsub.s32 0, %v745
        %v747 = vrot.slane %v622, %v746
        %v749 = vadd.f32 %v735, %v747
        %v750 = vadd.f32 %v736, %v747
        %v751 = vadd.f32 %v737, %v747
        %v752 = vadd.f32 %v738, %v747
        %v753 = vadd.f32 %v739, %v747
        %v754 = vadd.f32 %v740, %v747
        %v755 = vadd.f32 %v741, %v747
        %v756 = vadd.f32 %v742, %v747
        %v757 = vpack.c.bf16 %v750, %v749
        %v758 = vpack.c.bf16 %v752, %v751
        %v759 = vpack.c.bf16 %v754, %v753
        %v760 = vpack.c.bf16 %v756, %v755
        %v761 = vld [vmem:[%s3] sm:$0xf]
        %v762 = vld [vmem:[%s3 + $0x4] sm:$0xf]
        %v763 = vld [vmem:[%s3 + $0x8] sm:$0xf]
        %v764 = vld [vmem:[%s3 + $0xc] sm:$0xf]
        %v765 = vld [vmem:[%s6] sm:$0x1]
        %v767 = vlaneseq
        %v768 = vshrl.u32 %v767, 7
        %v769 = vsub.s32 0, %v768
        %v770 = vrot.slane %v765, %v769
        %v776 = vunpack.c.l.b16 %v761
        %v777 = vunpack.c.l.b16 %v762
        %v778 = vunpack.c.l.b16 %v763
        %v779 = vunpack.c.l.b16 %v764
        %v780 = vpack.c.b16 %v777, %v776
        %v781 = vpack.c.b16 %v779, %v778
        %v785 = vsel %vm623, %v757, 0
        %v788 = vsel %vm623, %v758, 0
        %v791 = vsel %vm623, %v759, 0
        %v794 = vsel %vm623, %v760, 0
        %796 = vmatprep.subr.bf16.mxu0 0
        %797 = vmatpush1.bf16.msra.mxu0 %v780
        %798 = vmatprep.subr.bf16.mxu0 0
        %799 = vmatpush1.bf16.msra.mxu0 %v781
        %800 = vmatprep.subr.bf16.mxu0 0
        %801 = vmatpush1.bf16.msra.mxu0 0
        %802 = vmatprep.subr.bf16.mxu0 0
        %803 = vmatpush1.bf16.msra.mxu0 0
        %804 = vmatprep.subr.bf16.mxu0 0
        %805 = vmatpush1.bf16.msra.mxu0 0
        %806 = vmatprep.subr.bf16.mxu0 0
        %807 = vmatpush1.bf16.msra.mxu0 0
        %808 = vmatprep.subr.bf16.mxu0 0
        %809 = vmatpush1.bf16.msra.mxu0 0
        %810 = vmatprep.subr.bf16.mxu0 0
        %811 = vmatpush1.bf16.msra.mxu0 0
        %812 = vmatprep.subr.bf16.mxu0 0
        %813 = vmatpush1.bf16.msra.mxu0 0
        %814 = vmatprep.subr.bf16.mxu0 0
        %815 = vmatpush1.bf16.msra.mxu0 0
        %816 = vmatprep.subr.bf16.mxu0 0
        %817 = vmatpush1.bf16.msra.mxu0 0
        %818 = vmatprep.subr.bf16.mxu0 0
        %819 = vmatpush1.bf16.msra.mxu0 0
        %820 = vmatprep.subr.bf16.mxu0 0
        %821 = vmatpush1.bf16.msra.mxu0 0
        %822 = vmatprep.subr.bf16.mxu0 0
        %823 = vmatpush1.bf16.msra.mxu0 0
        %824 = vmatprep.subr.bf16.mxu0 0
        %825 = vmatpush1.bf16.msra.mxu0 0
        %826 = vmatprep.subr.bf16.mxu0 0
        %827 = vmatpush1.bf16.msra.mxu0 0
        %828 = vmatprep.mubr.bf16.mxu0 0
        %829 = vmatmul.mubr.bf16.gmra.mrb[0].mxu0 %v785
        %v830 = vpop.f32.mrb[0].mxu0
        %v831 = vadd.f32 %v770, %v830
        %v832 = vpop.f32.mrb[0].mxu0
        %v833 = vpop.f32.mrb[0].mxu0
        %v834 = vadd.f32 %v770, %v833
        %v835 = vpop.f32.mrb[0].mxu0
        %836 = vmatprep.mubr.bf16.mxu0 0
        %837 = vmatmul.mubr.bf16.gmra.mrb[0].mxu0 %v788
        %v838 = vpop.f32.mrb[0].mxu0
        %v839 = vadd.f32 %v770, %v838
        %v840 = vpop.f32.mrb[0].mxu0
        %v841 = vpop.f32.mrb[0].mxu0
        %v842 = vadd.f32 %v770, %v841
        %v843 = vpop.f32.mrb[0].mxu0
        %844 = vmatprep.mubr.bf16.mxu0 0
        %845 = vmatmul.mubr.bf16.gmra.mrb[0].mxu0 %v791
        %v846 = vpop.f32.mrb[0].mxu0
        %v847 = vadd.f32 %v770, %v846
        %v848 = vpop.f32.mrb[0].mxu0
        %v849 = vpop.f32.mrb[0].mxu0
        %v850 = vadd.f32 %v770, %v849
        %v851 = vpop.f32.mrb[0].mxu0
        %852 = vmatprep.mubr.bf16.mxu0 0
        %853 = vmatmul.mubr.bf16.gmra.mrb[0].mxu0 %v794
        %v854 = vpop.f32.mrb[0].mxu0
        %v855 = vadd.f32 %v770, %v854
        %v856 = vpop.f32.mrb[0].mxu0
        %v857 = vpop.f32.mrb[0].mxu0
        %v858 = vadd.f32 %v770, %v857
        %v859 = vpop.f32.mrb[0].mxu0
        %860 = vdwg.mxu0
        %v861 = vpack.c.bf16 %v834, %v831
        %v862 = vpack.c.bf16 %v842, %v839
        %v863 = vpack.c.bf16 %v850, %v847
        %v864 = vpack.c.bf16 %v858, %v855
        %v865 = vld [vmem:[%s4] sm:$0xf]
        %v866 = vld [vmem:[%s4 + $0x4] sm:$0xf]
        %v867 = vld [vmem:[%s4 + $0x8] sm:$0xf]
        %v868 = vld [vmem:[%s4 + $0xc] sm:$0xf]
        %v869 = vld [vmem:[%s7] sm:$0x1]
        %v871 = vlaneseq
        %v872 = vshrl.u32 %v871, 7
        %v873 = vsub.s32 0, %v872
        %v874 = vrot.slane %v869, %v873
        %v880 = vunpack.c.l.b16 %v865
        %v881 = vunpack.c.l.b16 %v866
        %v882 = vunpack.c.l.b16 %v867
        %v883 = vunpack.c.l.b16 %v868
        %v884 = vpack.c.b16 %v881, %v880
        %v885 = vpack.c.b16 %v883, %v882
        %888 = vmatprep.subr.bf16.mxu0 0
        %889 = vmatpush1.bf16.msra.mxu0 %v884
        %890 = vmatprep.subr.bf16.mxu0 0
        %891 = vmatpush1.bf16.msra.mxu0 %v885
        %892 = vmatprep.subr.bf16.mxu0 0
        %893 = vmatpush1.bf16.msra.mxu0 0
        %894 = vmatprep.subr.bf16.mxu0 0
        %895 = vmatpush1.bf16.msra.mxu0 0
        %896 = vmatprep.subr.bf16.mxu0 0
        %897 = vmatpush1.bf16.msra.mxu0 0
        %898 = vmatprep.subr.bf16.mxu0 0
        %899 = vmatpush1.bf16.msra.mxu0 0
        %900 = vmatprep.subr.bf16.mxu0 0
        %901 = vmatpush1.bf16.msra.mxu0 0
        %902 = vmatprep.subr.bf16.mxu0 0
        %903 = vmatpush1.bf16.msra.mxu0 0
        %904 = vmatprep.subr.bf16.mxu0 0
        %905 = vmatpush1.bf16.msra.mxu0 0
        %906 = vmatprep.subr.bf16.mxu0 0
        %907 = vmatpush1.bf16.msra.mxu0 0
        %908 = vmatprep.subr.bf16.mxu0 0
        %909 = vmatpush1.bf16.msra.mxu0 0
        %910 = vmatprep.subr.bf16.mxu0 0
        %911 = vmatpush1.bf16.msra.mxu0 0
        %912 = vmatprep.subr.bf16.mxu0 0
        %913 = vmatpush1.bf16.msra.mxu0 0
        %914 = vmatprep.subr.bf16.mxu0 0
        %915 = vmatpush1.bf16.msra.mxu0 0
        %916 = vmatprep.subr.bf16.mxu0 0
        %917 = vmatpush1.bf16.msra.mxu0 0
        %918 = vmatprep.subr.bf16.mxu0 0
        %919 = vmatpush1.bf16.msra.mxu0 0
        %920 = vmatprep.mubr.bf16.mxu0 0
        %921 = vmatmul.mubr.bf16.gmra.mrb[0].mxu0 %v785
        %v922 = vpop.f32.mrb[0].mxu0
        %v923 = vadd.f32 %v874, %v922
        %v924 = vpop.f32.mrb[0].mxu0
        %v925 = vpop.f32.mrb[0].mxu0
        %v926 = vadd.f32 %v874, %v925
        %v927 = vpop.f32.mrb[0].mxu0
        %928 = vmatprep.mubr.bf16.mxu0 0
        %929 = vmatmul.mubr.bf16.gmra.mrb[0].mxu0 %v788
        %v930 = vpop.f32.mrb[0].mxu0
        %v931 = vadd.f32 %v874, %v930
        %v932 = vpop.f32.mrb[0].mxu0
        %v933 = vpop.f32.mrb[0].mxu0
        %v934 = vadd.f32 %v874, %v933
        %v935 = vpop.f32.mrb[0].mxu0
        %936 = vmatprep.mubr.bf16.mxu0 0
        %937 = vmatmul.mubr.bf16.gmra.mrb[0].mxu0 %v791
        %v938 = vpop.f32.mrb[0].mxu0
        %v939 = vadd.f32 %v874, %v938
        %v940 = vpop.f32.mrb[0].mxu0
        %v941 = vpop.f32.mrb[0].mxu0
        %v942 = vadd.f32 %v874, %v941
        %v943 = vpop.f32.mrb[0].mxu0
        %944 = vmatprep.mubr.bf16.mxu0 0
        %945 = vmatmul.mubr.bf16.gmra.mrb[0].mxu0 %v794
        %v946 = vpop.f32.mrb[0].mxu0
        %v947 = vadd.f32 %v874, %v946
        %v948 = vpop.f32.mrb[0].mxu0
        %v949 = vpop.f32.mrb[0].mxu0
        %v950 = vadd.f32 %v874, %v949
        %v951 = vpop.f32.mrb[0].mxu0
        %952 = vdwg.mxu0
        %v953 = vpack.c.bf16 %v926, %v923
        %v954 = vpack.c.bf16 %v934, %v931
        %v955 = vpack.c.bf16 %v942, %v939
        %v956 = vpack.c.bf16 %v950, %v947
        %v957 = vld [vmem:[%s5] sm:$0xf]
        %v958 = vld [vmem:[%s5 + $0x4] sm:$0xf]
        %v959 = vld [vmem:[%s5 + $0x8] sm:$0xf]
        %v960 = vld [vmem:[%s5 + $0xc] sm:$0xf]
        %v961 = vld [vmem:[%s8] sm:$0x1]
        %v963 = vlaneseq
        %v964 = vshrl.u32 %v963, 7
        %v965 = vsub.s32 0, %v964
        %v966 = vrot.slane %v961, %v965
        %v972 = vunpack.c.l.b16 %v957
        %v973 = vunpack.c.l.b16 %v958
        %v974 = vunpack.c.l.b16 %v959
        %v975 = vunpack.c.l.b16 %v960
        %v976 = vpack.c.b16 %v973, %v972
        %v977 = vpack.c.b16 %v975, %v974
        %980 = vmatprep.subr.bf16.mxu0 0
        %981 = vmatpush1.bf16.msra.mxu0 %v976
        %982 = vmatprep.subr.bf16.mxu0 0
        %983 = vmatpush1.bf16.msra.mxu0 %v977
        %984 = vmatprep.subr.bf16.mxu0 0
        %985 = vmatpush1.bf16.msra.mxu0 0
        %986 = vmatprep.subr.bf16.mxu0 0
        %987 = vmatpush1.bf16.msra.mxu0 0
        %988 = vmatprep.subr.bf16.mxu0 0
        %989 = vmatpush1.bf16.msra.mxu0 0
        %990 = vmatprep.subr.bf16.mxu0 0
        %991 = vmatpush1.bf16.msra.mxu0 0
        %992 = vmatprep.subr.bf16.mxu0 0
        %993 = vmatpush1.bf16.msra.mxu0 0
        %994 = vmatprep.subr.bf16.mxu0 0
        %995 = vmatpush1.bf16.msra.mxu0 0
        %996 = vmatprep.subr.bf16.mxu0 0
        %997 = vmatpush1.bf16.msra.mxu0 0
        %998 = vmatprep.subr.bf16.mxu0 0
        %999 = vmatpush1.bf16.msra.mxu0 0
        %1000 = vmatprep.subr.bf16.mxu0 0
        %1001 = vmatpush1.bf16.msra.mxu0 0
        %1002 = vmatprep.subr.bf16.mxu0 0
        %1003 = vmatpush1.bf16.msra.mxu0 0
        %1004 = vmatprep.subr.bf16.mxu0 0
        %1005 = vmatpush1.bf16.msra.mxu0 0
        %1006 = vmatprep.subr.bf16.mxu0 0
        %1007 = vmatpush1.bf16.msra.mxu0 0
        %1008 = vmatprep.subr.bf16.mxu0 0
        %1009 = vmatpush1.bf16.msra.mxu0 0
        %1010 = vmatprep.subr.bf16.mxu0 0
        %1011 = vmatpush1.bf16.msra.mxu0 0
        %1012 = vmatprep.mubr.bf16.mxu0 0
        %1013 = vmatmul.mubr.bf16.gmra.mrb[0].mxu0 %v785
        %v1014 = vpop.f32.mrb[0].mxu0
        %v1015 = vadd.f32 %v966, %v1014
        %v1016 = vpop.f32.mrb[0].mxu0
        %v1017 = vpop.f32.mrb[0].mxu0
        %v1018 = vadd.f32 %v966, %v1017
        %v1019 = vpop.f32.mrb[0].mxu0
        %1020 = vmatprep.mubr.bf16.mxu0 0
        %1021 = vmatmul.mubr.bf16.gmra.mrb[0].mxu0 %v788
        %v1022 = vpop.f32.mrb[0].mxu0
        %v1023 = vadd.f32 %v966, %v1022
        %v1024 = vpop.f32.mrb[0].mxu0
        %v1025 = vpop.f32.mrb[0].mxu0
        %v1026 = vadd.f32 %v966, %v1025
        %v1027 = vpop.f32.mrb[0].mxu0
        %1028 = vmatprep.mubr.bf16.mxu0 0
        %1029 = vmatmul.mubr.bf16.gmra.mrb[0].mxu0 %v791
        %v1030 = vpop.f32.mrb[0].mxu0
        %v1031 = vadd.f32 %v966, %v1030
        %v1032 = vpop.f32.mrb[0].mxu0
        %v1033 = vpop.f32.mrb[0].mxu0
        %v1034 = vadd.f32 %v966, %v1033
        %v1035 = vpop.f32.mrb[0].mxu0
        %1036 = vmatprep.mubr.bf16.mxu0 0
        %1037 = vmatmul.mubr.bf16.gmra.mrb[0].mxu0 %v794
        %v1038 = vpop.f32.mrb[0].mxu0
        %v1039 = vadd.f32 %v966, %v1038
        %v1040 = vpop.f32.mrb[0].mxu0
        %v1041 = vpop.f32.mrb[0].mxu0
        %v1042 = vadd.f32 %v966, %v1041
        %v1043 = vpop.f32.mrb[0].mxu0
        %1044 = vdwg.mxu0
        %v1045 = vpack.c.bf16 %v1018, %v1015
        %v1046 = vpack.c.bf16 %v1026, %v1023
        %v1047 = vpack.c.bf16 %v1034, %v1031
        %v1048 = vpack.c.bf16 %v1042, %v1039
        %vm1049 = vcmask 64512
        %v1051 = vsel %vm1049, %v861, 0
        %v1054 = vsel %vm1049, %v953, 0
        %1056 = vmatprep.subr.bf16.mxu0 0
        %1057 = vmatpush1.bf16.xpose.msra.mxu0 %v1054
        %1058 = vmatprep.subr.bf16.mxu0 0
        %1059 = vmatpush1.bf16.xpose.msra.mxu0 0
        %1060 = vmatprep.subr.bf16.mxu0 0
        %1061 = vmatpush1.bf16.xpose.msra.mxu0 0
        %1062 = vmatprep.subr.bf16.mxu0 0
        %1063 = vmatpush1.bf16.xpose.msra.mxu0 0
        %1064 = vmatprep.subr.bf16.mxu0 0
        %1065 = vmatpush1.bf16.xpose.msra.mxu0 0
        %1066 = vmatprep.subr.bf16.mxu0 0
        %1067 = vmatpush1.bf16.xpose.msra.mxu0 0
        %1068 = vmatprep.subr.bf16.mxu0 0
        %1069 = vmatpush1.bf16.xpose.msra.mxu0 0
        %1070 = vmatprep.subr.bf16.mxu0 0
        %1071 = vmatpush1.bf16.xpose.msra.mxu0 0
        %1072 = vmatprep.subr.bf16.mxu0 0
        %1073 = vmatpush1.bf16.xpose.msra.mxu0 0
        %1074 = vmatprep.subr.bf16.mxu0 0
        %1075 = vmatpush1.bf16.xpose.msra.mxu0 0
        %1076 = vmatprep.subr.bf16.mxu0 0
        %1077 = vmatpush1.bf16.xpose.msra.mxu0 0
        %1078 = vmatprep.subr.bf16.mxu0 0
        %1079 = vmatpush1.bf16.xpose.msra.mxu0 0
        %1080 = vmatprep.subr.bf16.mxu0 0
        %1081 = vmatpush1.bf16.xpose.msra.mxu0 0
        %1082 = vmatprep.subr.bf16.mxu0 0
        %1083 = vmatpush1.bf16.xpose.msra.mxu0 0
        %1084 = vmatprep.subr.bf16.mxu0 0
        %1085 = vmatpush1.bf16.xpose.msra.mxu0 0
        %1086 = vmatprep.subr.bf16.mxu0 0
        %1087 = vmatpush1.bf16.xpose.msra.mxu0 0
        %1088 = vmatprep.mubr.bf16.mxu0 0
        %1089 = vmatmul.mubr.bf16.gmra.mrb[0].mxu0 %v1051
        %v1090 = vpop.f32.mrb[0].mxu0
        %v1091 = vadd.f32 0.0, %v1090
        %v1092 = vpop.f32.mrb[0].mxu0
        %v1093 = vpop.f32.mrb[0].mxu0
        %v1094 = vadd.f32 0.0, %v1093
        %v1095 = vpop.f32.mrb[0].mxu0
        %1096 = vdwg.mxu0
        %v1098 = vsel %vm1049, %v862, 0
        %v1101 = vsel %vm1049, %v954, 0
        %1103 = vmatprep.subr.bf16.mxu0 0
        %1104 = vmatpush1.bf16.xpose.msra.mxu0 %v1101
        %1105 = vmatprep.subr.bf16.mxu0 0
        %1106 = vmatpush1.bf16.xpose.msra.mxu0 0
        %1107 = vmatprep.subr.bf16.mxu0 0
        %1108 = vmatpush1.bf16.xpose.msra.mxu0 0
        %1109 = vmatprep.subr.bf16.mxu0 0
        %1110 = vmatpush1.bf16.xpose.msra.mxu0 0
        %1111 = vmatprep.subr.bf16.mxu0 0
        %1112 = vmatpush1.bf16.xpose.msra.mxu0 0
        %1113 = vmatprep.subr.bf16.mxu0 0
        %1114 = vmatpush1.bf16.xpose.msra.mxu0 0
        %1115 = vmatprep.subr.bf16.mxu0 0
        %1116 = vmatpush1.bf16.xpose.msra.mxu0 0
        %1117 = vmatprep.subr.bf16.mxu0 0
        %1118 = vmatpush1.bf16.xpose.msra.mxu0 0
        %1119 = vmatprep.subr.bf16.mxu0 0
        %1120 = vmatpush1.bf16.xpose.msra.mxu0 0
        %1121 = vmatprep.subr.bf16.mxu0 0
        %1122 = vmatpush1.bf16.xpose.msra.mxu0 0
        %1123 = vmatprep.subr.bf16.mxu0 0
        %1124 = vmatpush1.bf16.xpose.msra.mxu0 0
        %1125 = vmatprep.subr.bf16.mxu0 0
        %1126 = vmatpush1.bf16.xpose.msra.mxu0 0
        %1127 = vmatprep.subr.bf16.mxu0 0
        %1128 = vmatpush1.bf16.xpose.msra.mxu0 0
        %1129 = vmatprep.subr.bf16.mxu0 0
        %1130 = vmatpush1.bf16.xpose.msra.mxu0 0
        %1131 = vmatprep.subr.bf16.mxu0 0
        %1132 = vmatpush1.bf16.xpose.msra.mxu0 0
        %1133 = vmatprep.subr.bf16.mxu0 0
        %1134 = vmatpush1.bf16.xpose.msra.mxu0 0
        %1135 = vmatprep.mubr.bf16.mxu0 0
        %1136 = vmatmul.mubr.bf16.gmra.mrb[0].mxu0 %v1098
        %v1137 = vpop.f32.mrb[0].mxu0
        %v1138 = vadd.f32 0.0, %v1137
        %v1139 = vpop.f32.mrb[0].mxu0
        %v1140 = vpop.f32.mrb[0].mxu0
        %v1141 = vadd.f32 0.0, %v1140
        %v1142 = vpop.f32.mrb[0].mxu0
        %1143 = vdwg.mxu0
        %v1145 = vsel %vm1049, %v863, 0
        %v1148 = vsel %vm1049, %v955, 0
        %1150 = vmatprep.subr.bf16.mxu0 0
        %1151 = vmatpush1.bf16.xpose.msra.mxu0 %v1148
        %1152 = vmatprep.subr.bf16.mxu0 0
        %1153 = vmatpush1.bf16.xpose.msra.mxu0 0
        %1154 = vmatprep.subr.bf16.mxu0 0
        %1155 = vmatpush1.bf16.xpose.msra.mxu0 0
        %1156 = vmatprep.subr.bf16.mxu0 0
        %1157 = vmatpush1.bf16.xpose.msra.mxu0 0
        %1158 = vmatprep.subr.bf16.mxu0 0
        %1159 = vmatpush1.bf16.xpose.msra.mxu0 0
        %1160 = vmatprep.subr.bf16.mxu0 0
        %1161 = vmatpush1.bf16.xpose.msra.mxu0 0
        %1162 = vmatprep.subr.bf16.mxu0 0
        %1163 = vmatpush1.bf16.xpose.msra.mxu0 0
        %1164 = vmatprep.subr.bf16.mxu0 0
        %1165 = vmatpush1.bf16.xpose.msra.mxu0 0
        %1166 = vmatprep.subr.bf16.mxu0 0
        %1167 = vmatpush1.bf16.xpose.msra.mxu0 0
        %1168 = vmatprep.subr.bf16.mxu0 0
        %1169 = vmatpush1.bf16.xpose.msra.mxu0 0
        %1170 = vmatprep.subr.bf16.mxu0 0
        %1171 = vmatpush1.bf16.xpose.msra.mxu0 0
        %1172 = vmatprep.subr.bf16.mxu0 0
        %1173 = vmatpush1.bf16.xpose.msra.mxu0 0
        %1174 = vmatprep.subr.bf16.mxu0 0
        %1175 = vmatpush1.bf16.xpose.msra.mxu0 0
        %1176 = vmatprep.subr.bf16.mxu0 0
        %1177 = vmatpush1.bf16.xpose.msra.mxu0 0
        %1178 = vmatprep.subr.bf16.mxu0 0
        %1179 = vmatpush1.bf16.xpose.msra.mxu0 0
        %1180 = vmatprep.subr.bf16.mxu0 0
        %1181 = vmatpush1.bf16.xpose.msra.mxu0 0
        %1182 = vmatprep.mubr.bf16.mxu0 0
        %1183 = vmatmul.mubr.bf16.gmra.mrb[0].mxu0 %v1145
        %v1184 = vpop.f32.mrb[0].mxu0
        %v1185 = vadd.f32 0.0, %v1184
        %v1186 = vpop.f32.mrb[0].mxu0
        %v1187 = vpop.f32.mrb[0].mxu0
        %v1188 = vadd.f32 0.0, %v1187
        %v1189 = vpop.f32.mrb[0].mxu0
        %1190 = vdwg.mxu0
        %v1192 = vsel %vm1049, %v864, 0
        %v1195 = vsel %vm1049, %v956, 0
        %1197 = vmatprep.subr.bf16.mxu0 0
        %1198 = vmatpush1.bf16.xpose.msra.mxu0 %v1195
        %1199 = vmatprep.subr.bf16.mxu0 0
        %1200 = vmatpush1.bf16.xpose.msra.mxu0 0
        %1201 = vmatprep.subr.bf16.mxu0 0
        %1202 = vmatpush1.bf16.xpose.msra.mxu0 0
        %1203 = vmatprep.subr.bf16.mxu0 0
        %1204 = vmatpush1.bf16.xpose.msra.mxu0 0
        %1205 = vmatprep.subr.bf16.mxu0 0
        %1206 = vmatpush1.bf16.xpose.msra.mxu0 0
        %1207 = vmatprep.subr.bf16.mxu0 0
        %1208 = vmatpush1.bf16.xpose.msra.mxu0 0
        %1209 = vmatprep.subr.bf16.mxu0 0
        %1210 = vmatpush1.bf16.xpose.msra.mxu0 0
        %1211 = vmatprep.subr.bf16.mxu0 0
        %1212 = vmatpush1.bf16.xpose.msra.mxu0 0
        %1213 = vmatprep.subr.bf16.mxu0 0
        %1214 = vmatpush1.bf16.xpose.msra.mxu0 0
        %1215 = vmatprep.subr.bf16.mxu0 0
        %1216 = vmatpush1.bf16.xpose.msra.mxu0 0
        %1217 = vmatprep.subr.bf16.mxu0 0
        %1218 = vmatpush1.bf16.xpose.msra.mxu0 0
        %1219 = vmatprep.subr.bf16.mxu0 0
        %1220 = vmatpush1.bf16.xpose.msra.mxu0 0
        %1221 = vmatprep.subr.bf16.mxu0 0
        %1222 = vmatpush1.bf16.xpose.msra.mxu0 0
        %1223 = vmatprep.subr.bf16.mxu0 0
        %1224 = vmatpush1.bf16.xpose.msra.mxu0 0
        %1225 = vmatprep.subr.bf16.mxu0 0
        %1226 = vmatpush1.bf16.xpose.msra.mxu0 0
        %1227 = vmatprep.subr.bf16.mxu0 0
        %1228 = vmatpush1.bf16.xpose.msra.mxu0 0
        %1229 = vmatprep.mubr.bf16.mxu0 0
        %1230 = vmatmul.mubr.bf16.gmra.mrb[0].mxu0 %v1192
        %v1231 = vpop.f32.mrb[0].mxu0
        %v1232 = vadd.f32 0.0, %v1231
        %v1233 = vpop.f32.mrb[0].mxu0
        %v1234 = vpop.f32.mrb[0].mxu0
        %v1235 = vadd.f32 0.0, %v1234
        %v1236 = vpop.f32.mrb[0].mxu0
        %1237 = vdwg.mxu0
        %v1238 = vld [vmem:[#allocation6] sm:$0xff]
        %v1239 = vld [vmem:[#allocation6 + $0x8] sm:$0xff]
        %v1240 = vld [vmem:[#allocation6 + $0x10] sm:$0xff]
        %v1241 = vld [vmem:[#allocation6 + $0x18] sm:$0xff]
        %v1242 = vld [vmem:[#allocation6 + $0x20] sm:$0xff]
        %v1243 = vld [vmem:[#allocation6 + $0x28] sm:$0xff]
        %v1244 = vld [vmem:[#allocation6 + $0x30] sm:$0xff]
        %v1245 = vld [vmem:[#allocation6 + $0x38] sm:$0xff]
        %v1246 = vadd.f32 %v1091, %v1238
        %v1247 = vadd.f32 %v1094, %v1239
        %v1248 = vadd.f32 %v1138, %v1240
        %v1249 = vadd.f32 %v1141, %v1241
        %v1250 = vadd.f32 %v1185, %v1242
        %v1251 = vadd.f32 %v1188, %v1243
        %v1252 = vadd.f32 %v1232, %v1244
        %v1253 = vadd.f32 %v1235, %v1245
        %vm1254 = vcmask 130048
        %v1255 = vsel %vm1254, %v1246, -inf
        %1256 = vmax.xlane.f32.xlu0 %v1255
        %v1257 = vpop.xlane.xlu0 %1256
        %v1258 = vsel %vm1254, %v1247, -inf
        %1259 = vmax.xlane.f32.xlu0 %v1258
        %v1260 = vpop.xlane.xlu0 %1259
        %v1261 = vsel %vm1254, %v1248, -inf
        %1262 = vmax.xlane.f32.xlu0 %v1261
        %v1263 = vpop.xlane.xlu0 %1262
        %v1264 = vsel %vm1254, %v1249, -inf
        %1265 = vmax.xlane.f32.xlu0 %v1264
        %v1266 = vpop.xlane.xlu0 %1265
        %v1267 = vsel %vm1254, %v1250, -inf
        %1268 = vmax.xlane.f32.xlu0 %v1267
        %v1269 = vpop.xlane.xlu0 %1268
        %v1270 = vsel %vm1254, %v1251, -inf
        %1271 = vmax.xlane.f32.xlu0 %v1270
        %v1272 = vpop.xlane.xlu0 %1271
        %v1273 = vsel %vm1254, %v1252, -inf
        %1274 = vmax.xlane.f32.xlu0 %v1273
        %v1275 = vpop.xlane.xlu0 %1274
        %v1276 = vsel %vm1254, %v1253, -inf
        %1277 = vmax.xlane.f32.xlu0 %v1276
        %v1278 = vpop.xlane.xlu0 %1277
        %v1279 = vsub.f32 %v1246, %v1257
        %v1280 = vsub.f32 %v1247, %v1260
        %v1281 = vsub.f32 %v1248, %v1263
        %v1282 = vsub.f32 %v1249, %v1266
        %v1283 = vsub.f32 %v1250, %v1269
        %v1284 = vsub.f32 %v1251, %v1272
        %v1285 = vsub.f32 %v1252, %v1275
        %v1286 = vsub.f32 %v1253, %v1278
        %v1287 = vmul.f32 %v1279, 1.442695
        %v1288 = vpow.pop %v1287
        %v1289 = vmul.f32 %v1280, 1.442695
        %v1290 = vpow.pop %v1289
        %v1291 = vmul.f32 %v1281, 1.442695
        %v1292 = vpow.pop %v1291
        %v1293 = vmul.f32 %v1282, 1.442695
        %v1294 = vpow.pop %v1293
        %v1295 = vmul.f32 %v1283, 1.442695
        %v1296 = vpow.pop %v1295
        %v1297 = vmul.f32 %v1284, 1.442695
        %v1298 = vpow.pop %v1297
        %v1299 = vmul.f32 %v1285, 1.442695
        %v1300 = vpow.pop %v1299
        %v1301 = vmul.f32 %v1286, 1.442695
        %v1302 = vpow.pop %v1301
        %v1303 = vsel %vm1254, %v1288, 0.0
        %1304 = vadd.xlane.f32.xlu0 %v1303
        %v1305 = vpop.xlane.xlu0 %1304
        %v1306 = vsel %vm1254, %v1290, 0.0
        %1307 = vadd.xlane.f32.xlu0 %v1306
        %v1308 = vpop.xlane.xlu0 %1307
        %v1309 = vsel %vm1254, %v1292, 0.0
        %1310 = vadd.xlane.f32.xlu0 %v1309
        %v1311 = vpop.xlane.xlu0 %1310
        %v1312 = vsel %vm1254, %v1294, 0.0
        %1313 = vadd.xlane.f32.xlu0 %v1312
        %v1314 = vpop.xlane.xlu0 %1313
        %v1315 = vsel %vm1254, %v1296, 0.0
        %1316 = vadd.xlane.f32.xlu0 %v1315
        %v1317 = vpop.xlane.xlu0 %1316
        %v1318 = vsel %vm1254, %v1298, 0.0
        %1319 = vadd.xlane.f32.xlu0 %v1318
        %v1320 = vpop.xlane.xlu0 %1319
        %v1321 = vsel %vm1254, %v1300, 0.0
        %1322 = vadd.xlane.f32.xlu0 %v1321
        %v1323 = vpop.xlane.xlu0 %1322
        %v1324 = vsel %vm1254, %v1302, 0.0
        %1325 = vadd.xlane.f32.xlu0 %v1324
        %v1326 = vpop.xlane.xlu0 %1325
        %v1327 = vrcp.pop %v1305
        %v1328 = vrcp.pop %v1308
        %v1329 = vrcp.pop %v1311
        %v1330 = vrcp.pop %v1314
        %v1331 = vrcp.pop %v1317
        %v1332 = vrcp.pop %v1320
        %v1333 = vrcp.pop %v1323
        %v1334 = vrcp.pop %v1326
        %v1335 = vmul.f32 %v1288, %v1327
        %v1336 = vmul.f32 %v1290, %v1328
        %v1337 = vmul.f32 %v1292, %v1329
        %v1338 = vmul.f32 %v1294, %v1330
        %v1339 = vmul.f32 %v1296, %v1331
        %v1340 = vmul.f32 %v1298, %v1332
        %v1341 = vmul.f32 %v1300, %v1333
        %v1342 = vmul.f32 %v1302, %v1334
        %v1343 = vpack.c.bf16 %v1336, %v1335
        %v1344 = vpack.c.bf16 %v1338, %v1337
        %v1345 = vpack.c.bf16 %v1340, %v1339
        %v1346 = vpack.c.bf16 %v1342, %v1341
        %v1348 = vsel %vm1254, %v1343, 0
        %1350 = vmatprep.subr.bf16.mxu0 0
        %1351 = vmatpush1.bf16.msra.mxu0 %v1045
        %1352 = vmatprep.subr.bf16.mxu0 0
        %1353 = vmatpush1.bf16.msra.mxu0 0
        %1354 = vmatprep.subr.bf16.mxu0 0
        %1355 = vmatpush1.bf16.msra.mxu0 0
        %1356 = vmatprep.subr.bf16.mxu0 0
        %1357 = vmatpush1.bf16.msra.mxu0 0
        %1358 = vmatprep.subr.bf16.mxu0 0
        %1359 = vmatpush1.bf16.msra.mxu0 0
        %1360 = vmatprep.subr.bf16.mxu0 0
        %1361 = vmatpush1.bf16.msra.mxu0 0
        %1362 = vmatprep.subr.bf16.mxu0 0
        %1363 = vmatpush1.bf16.msra.mxu0 0
        %1364 = vmatprep.subr.bf16.mxu0 0
        %1365 = vmatpush1.bf16.msra.mxu0 0
        %1366 = vmatprep.subr.bf16.mxu0 0
        %1367 = vmatpush1.bf16.msra.mxu0 0
        %1368 = vmatprep.subr.bf16.mxu0 0
        %1369 = vmatpush1.bf16.msra.mxu0 0
        %1370 = vmatprep.subr.bf16.mxu0 0
        %1371 = vmatpush1.bf16.msra.mxu0 0
        %1372 = vmatprep.subr.bf16.mxu0 0
        %1373 = vmatpush1.bf16.msra.mxu0 0
        %1374 = vmatprep.subr.bf16.mxu0 0
        %1375 = vmatpush1.bf16.msra.mxu0 0
        %1376 = vmatprep.subr.bf16.mxu0 0
        %1377 = vmatpush1.bf16.msra.mxu0 0
        %1378 = vmatprep.subr.bf16.mxu0 0
        %1379 = vmatpush1.bf16.msra.mxu0 0
        %1380 = vmatprep.subr.bf16.mxu0 0
        %1381 = vmatpush1.bf16.msra.mxu0 0
        %1382 = vmatprep.mubr.bf16.mxu0 0
        %1383 = vmatmul.mubr.bf16.gmra.mrb[0].mxu0 %v1348
        %v1384 = vpop.f32.mrb[0].mxu0
        %v1385 = vadd.f32 0.0, %v1384
        %v1386 = vpop.f32.mrb[0].mxu0
        %v1387 = vpop.f32.mrb[0].mxu0
        %v1388 = vadd.f32 0.0, %v1387
        %v1389 = vpop.f32.mrb[0].mxu0
        %1390 = vdwg.mxu0
        %v1392 = vsel %vm1254, %v1344, 0
        %1394 = vmatprep.subr.bf16.mxu0 0
        %1395 = vmatpush1.bf16.msra.mxu0 %v1046
        %1396 = vmatprep.subr.bf16.mxu0 0
        %1397 = vmatpush1.bf16.msra.mxu0 0
        %1398 = vmatprep.subr.bf16.mxu0 0
        %1399 = vmatpush1.bf16.msra.mxu0 0
        %1400 = vmatprep.subr.bf16.mxu0 0
        %1401 = vmatpush1.bf16.msra.mxu0 0
        %1402 = vmatprep.subr.bf16.mxu0 0
        %1403 = vmatpush1.bf16.msra.mxu0 0
        %1404 = vmatprep.subr.bf16.mxu0 0
        %1405 = vmatpush1.bf16.msra.mxu0 0
        %1406 = vmatprep.subr.bf16.mxu0 0
        %1407 = vmatpush1.bf16.msra.mxu0 0
        %1408 = vmatprep.subr.bf16.mxu0 0
        %1409 = vmatpush1.bf16.msra.mxu0 0
        %1410 = vmatprep.subr.bf16.mxu0 0
        %1411 = vmatpush1.bf16.msra.mxu0 0
        %1412 = vmatprep.subr.bf16.mxu0 0
        %1413 = vmatpush1.bf16.msra.mxu0 0
        %1414 = vmatprep.subr.bf16.mxu0 0
        %1415 = vmatpush1.bf16.msra.mxu0 0
        %1416 = vmatprep.subr.bf16.mxu0 0
        %1417 = vmatpush1.bf16.msra.mxu0 0
        %1418 = vmatprep.subr.bf16.mxu0 0
        %1419 = vmatpush1.bf16.msra.mxu0 0
        %1420 = vmatprep.subr.bf16.mxu0 0
        %1421 = vmatpush1.bf16.msra.mxu0 0
        %1422 = vmatprep.subr.bf16.mxu0 0
        %1423 = vmatpush1.bf16.msra.mxu0 0
        %1424 = vmatprep.subr.bf16.mxu0 0
        %1425 = vmatpush1.bf16.msra.mxu0 0
        %1426 = vmatprep.mubr.bf16.mxu0 0
        %1427 = vmatmul.mubr.bf16.gmra.mrb[0].mxu0 %v1392
        %v1428 = vpop.f32.mrb[0].mxu0
        %v1429 = vadd.f32 0.0, %v1428
        %v1430 = vpop.f32.mrb[0].mxu0
        %v1431 = vpop.f32.mrb[0].mxu0
        %v1432 = vadd.f32 0.0, %v1431
        %v1433 = vpop.f32.mrb[0].mxu0
        %1434 = vdwg.mxu0
        %v1436 = vsel %vm1254, %v1345, 0
        %1438 = vmatprep.subr.bf16.mxu0 0
        %1439 = vmatpush1.bf16.msra.mxu0 %v1047
        %1440 = vmatprep.subr.bf16.mxu0 0
        %1441 = vmatpush1.bf16.msra.mxu0 0
        %1442 = vmatprep.subr.bf16.mxu0 0
        %1443 = vmatpush1.bf16.msra.mxu0 0
        %1444 = vmatprep.subr.bf16.mxu0 0
        %1445 = vmatpush1.bf16.msra.mxu0 0
        %1446 = vmatprep.subr.bf16.mxu0 0
        %1447 = vmatpush1.bf16.msra.mxu0 0
        %1448 = vmatprep.subr.bf16.mxu0 0
        %1449 = vmatpush1.bf16.msra.mxu0 0
        %1450 = vmatprep.subr.bf16.mxu0 0
        %1451 = vmatpush1.bf16.msra.mxu0 0
        %1452 = vmatprep.subr.bf16.mxu0 0
        %1453 = vmatpush1.bf16.msra.mxu0 0
        %1454 = vmatprep.subr.bf16.mxu0 0
        %1455 = vmatpush1.bf16.msra.mxu0 0
        %1456 = vmatprep.subr.bf16.mxu0 0
        %1457 = vmatpush1.bf16.msra.mxu0 0
        %1458 = vmatprep.subr.bf16.mxu0 0
        %1459 = vmatpush1.bf16.msra.mxu0 0
        %1460 = vmatprep.subr.bf16.mxu0 0
        %1461 = vmatpush1.bf16.msra.mxu0 0
        %1462 = vmatprep.subr.bf16.mxu0 0
        %1463 = vmatpush1.bf16.msra.mxu0 0
        %1464 = vmatprep.subr.bf16.mxu0 0
        %1465 = vmatpush1.bf16.msra.mxu0 0
        %1466 = vmatprep.subr.bf16.mxu0 0
        %1467 = vmatpush1.bf16.msra.mxu0 0
        %1468 = vmatprep.subr.bf16.mxu0 0
        %1469 = vmatpush1.bf16.msra.mxu0 0
        %1470 = vmatprep.mubr.bf16.mxu0 0
        %1471 = vmatmul.mubr.bf16.gmra.mrb[0].mxu0 %v1436
        %v1472 = vpop.f32.mrb[0].mxu0
        %v1473 = vadd.f32 0.0, %v1472
        %v1474 = vpop.f32.mrb[0].mxu0
        %v1475 = vpop.f32.mrb[0].mxu0
        %v1476 = vadd.f32 0.0, %v1475
        %v1477 = vpop.f32.mrb[0].mxu0
        %1478 = vdwg.mxu0
        %v1480 = vsel %vm1254, %v1346, 0
        %1482 = vmatprep.subr.bf16.mxu0 0
        %1483 = vmatpush1.bf16.msra.mxu0 %v1048
        %1484 = vmatprep.subr.bf16.mxu0 0
        %1485 = vmatpush1.bf16.msra.mxu0 0
        %1486 = vmatprep.subr.bf16.mxu0 0
        %1487 = vmatpush1.bf16.msra.mxu0 0
        %1488 = vmatprep.subr.bf16.mxu0 0
        %1489 = vmatpush1.bf16.msra.mxu0 0
        %1490 = vmatprep.subr.bf16.mxu0 0
        %1491 = vmatpush1.bf16.msra.mxu0 0
        %1492 = vmatprep.subr.bf16.mxu0 0
        %1493 = vmatpush1.bf16.msra.mxu0 0
        %1494 = vmatprep.subr.bf16.mxu0 0
        %1495 = vmatpush1.bf16.msra.mxu0 0
        %1496 = vmatprep.subr.bf16.mxu0 0
        %1497 = vmatpush1.bf16.msra.mxu0 0
        %1498 = vmatprep.subr.bf16.mxu0 0
        %1499 = vmatpush1.bf16.msra.mxu0 0
        %1500 = vmatprep.subr.bf16.mxu0 0
        %1501 = vmatpush1.bf16.msra.mxu0 0
        %1502 = vmatprep.subr.bf16.mxu0 0
        %1503 = vmatpush1.bf16.msra.mxu0 0
        %1504 = vmatprep.subr.bf16.mxu0 0
        %1505 = vmatpush1.bf16.msra.mxu0 0
        %1506 = vmatprep.subr.bf16.mxu0 0
        %1507 = vmatpush1.bf16.msra.mxu0 0
        %1508 = vmatprep.subr.bf16.mxu0 0
        %1509 = vmatpush1.bf16.msra.mxu0 0
        %1510 = vmatprep.subr.bf16.mxu0 0
        %1511 = vmatpush1.bf16.msra.mxu0 0
        %1512 = vmatprep.subr.bf16.mxu0 0
        %1513 = vmatpush1.bf16.msra.mxu0 0
        %1514 = vmatprep.mubr.bf16.mxu0 0
        %1515 = vmatmul.mubr.bf16.gmra.mrb[0].mxu0 %v1480
        %v1516 = vpop.f32.mrb[0].mxu0
        %v1517 = vadd.f32 0.0, %v1516
        %v1518 = vpop.f32.mrb[0].mxu0
        %v1519 = vpop.f32.mrb[0].mxu0
        %v1520 = vadd.f32 0.0, %v1519
        %v1521 = vpop.f32.mrb[0].mxu0
        %1522 = vdwg.mxu0
        %1523 = vst.msk [vmem:[#allocation2] sm:$0xff] %vm1049, %v1385
        %1524 = vst.msk [vmem:[#allocation2 + $0x8] sm:$0xff] %vm1049, %v1388
        %1525 = vst.msk [vmem:[#allocation2 + $0x10] sm:$0xff] %vm1049, %v1429
        %1526 = vst.msk [vmem:[#allocation2 + $0x18] sm:$0xff] %vm1049, %v1432
        %1527 = vst.msk [vmem:[#allocation2 + $0x20] sm:$0xff] %vm1049, %v1473
        %1528 = vst.msk [vmem:[#allocation2 + $0x28] sm:$0xff] %vm1049, %v1476
        %1529 = vst.msk [vmem:[#allocation2 + $0x30] sm:$0xff] %vm1049, %v1517
        %1530 = vst.msk [vmem:[#allocation2 + $0x38] sm:$0xff] %vm1049, %v1520
        %1532 = vrot.lane.b32.xlu0 %v861, 120
        %v1533 = vpop.permute.xlu0 %1532
        %1535 = vrot.lane.b32.xlu0 %v953, 120
        %v1536 = vpop.permute.xlu0 %1535
        %v1538 = vsel %vm1049, %v1533, 0
        %v1541 = vsel %vm1049, %v1536, 0
        %1543 = vmatprep.subr.bf16.mxu0 0
        %1544 = vmatpush1.bf16.xpose.msra.mxu0 %v1541
        %1545 = vmatprep.subr.bf16.mxu0 0
        %1546 = vmatpush1.bf16.xpose.msra.mxu0 0
        %1547 = vmatprep.subr.bf16.mxu0 0
        %1548 = vmatpush1.bf16.xpose.msra.mxu0 0
        %1549 = vmatprep.subr.bf16.mxu0 0
        %1550 = vmatpush1.bf16.xpose.msra.mxu0 0
        %1551 = vmatprep.subr.bf16.mxu0 0
        %1552 = vmatpush1.bf16.xpose.msra.mxu0 0
        %1553 = vmatprep.subr.bf16.mxu0 0
        %1554 = vmatpush1.bf16.xpose.msra.mxu0 0
        %1555 = vmatprep.subr.bf16.mxu0 0
        %1556 = vmatpush1.bf16.xpose.msra.mxu0 0
        %1557 = vmatprep.subr.bf16.mxu0 0
        %1558 = vmatpush1.bf16.xpose.msra.mxu0 0
        %1559 = vmatprep.subr.bf16.mxu0 0
        %1560 = vmatpush1.bf16.xpose.msra.mxu0 0
        %1561 = vmatprep.subr.bf16.mxu0 0
        %1562 = vmatpush1.bf16.xpose.msra.mxu0 0
        %1563 = vmatprep.subr.bf16.mxu0 0
        %1564 = vmatpush1.bf16.xpose.msra.mxu0 0
        %1565 = vmatprep.subr.bf16.mxu0 0
        %1566 = vmatpush1.bf16.xpose.msra.mxu0 0
        %1567 = vmatprep.subr.bf16.mxu0 0
        %1568 = vmatpush1.bf16.xpose.msra.mxu0 0
        %1569 = vmatprep.subr.bf16.mxu0 0
        %1570 = vmatpush1.bf16.xpose.msra.mxu0 0
        %1571 = vmatprep.subr.bf16.mxu0 0
        %1572 = vmatpush1.bf16.xpose.msra.mxu0 0
        %1573 = vmatprep.subr.bf16.mxu0 0
        %1574 = vmatpush1.bf16.xpose.msra.mxu0 0
        %1575 = vmatprep.mubr.bf16.mxu0 0
        %1576 = vmatmul.mubr.bf16.gmra.mrb[0].mxu0 %v1538
        %v1577 = vpop.f32.mrb[0].mxu0
        %v1578 = vadd.f32 0.0, %v1577
        %v1579 = vpop.f32.mrb[0].mxu0
        %v1580 = vpop.f32.mrb[0].mxu0
        %v1581 = vadd.f32 0.0, %v1580
        %v1582 = vpop.f32.mrb[0].mxu0
        %1583 = vdwg.mxu0
        %1585 = vrot.lane.b32.xlu0 %v862, 120
        %v1586 = vpop.permute.xlu0 %1585
        %1588 = vrot.lane.b32.xlu0 %v954, 120
        %v1589 = vpop.permute.xlu0 %1588
        %v1591 = vsel %vm1049, %v1586, 0
        %v1594 = vsel %vm1049, %v1589, 0
        %1596 = vmatprep.subr.bf16.mxu0 0
        %1597 = vmatpush1.bf16.xpose.msra.mxu0 %v1594
        %1598 = vmatprep.subr.bf16.mxu0 0
        %1599 = vmatpush1.bf16.xpose.msra.mxu0 0
        %1600 = vmatprep.subr.bf16.mxu0 0
        %1601 = vmatpush1.bf16.xpose.msra.mxu0 0
        %1602 = vmatprep.subr.bf16.mxu0 0
        %1603 = vmatpush1.bf16.xpose.msra.mxu0 0
        %1604 = vmatprep.subr.bf16.mxu0 0
        %1605 = vmatpush1.bf16.xpose.msra.mxu0 0
        %1606 = vmatprep.subr.bf16.mxu0 0
        %1607 = vmatpush1.bf16.xpose.msra.mxu0 0
        %1608 = vmatprep.subr.bf16.mxu0 0
        %1609 = vmatpush1.bf16.xpose.msra.mxu0 0
        %1610 = vmatprep.subr.bf16.mxu0 0
        %1611 = vmatpush1.bf16.xpose.msra.mxu0 0
        %1612 = vmatprep.subr.bf16.mxu0 0
        %1613 = vmatpush1.bf16.xpose.msra.mxu0 0
        %1614 = vmatprep.subr.bf16.mxu0 0
        %1615 = vmatpush1.bf16.xpose.msra.mxu0 0
        %1616 = vmatprep.subr.bf16.mxu0 0
        %1617 = vmatpush1.bf16.xpose.msra.mxu0 0
        %1618 = vmatprep.subr.bf16.mxu0 0
        %1619 = vmatpush1.bf16.xpose.msra.mxu0 0
        %1620 = vmatprep.subr.bf16.mxu0 0
        %1621 = vmatpush1.bf16.xpose.msra.mxu0 0
        %1622 = vmatprep.subr.bf16.mxu0 0
        %1623 = vmatpush1.bf16.xpose.msra.mxu0 0
        %1624 = vmatprep.subr.bf16.mxu0 0
        %1625 = vmatpush1.bf16.xpose.msra.mxu0 0
        %1626 = vmatprep.subr.bf16.mxu0 0
        %1627 = vmatpush1.bf16.xpose.msra.mxu0 0
        %1628 = vmatprep.mubr.bf16.mxu0 0
        %1629 = vmatmul.mubr.bf16.gmra.mrb[0].mxu0 %v1591
        %v1630 = vpop.f32.mrb[0].mxu0
        %v1631 = vadd.f32 0.0, %v1630
        %v1632 = vpop.f32.mrb[0].mxu0
        %v1633 = vpop.f32.mrb[0].mxu0
        %v1634 = vadd.f32 0.0, %v1633
        %v1635 = vpop.f32.mrb[0].mxu0
        %1636 = vdwg.mxu0
        %1638 = vrot.lane.b32.xlu0 %v863, 120
        %v1639 = vpop.permute.xlu0 %1638
        %1641 = vrot.lane.b32.xlu0 %v955, 120
        %v1642 = vpop.permute.xlu0 %1641
        %v1644 = vsel %vm1049, %v1639, 0
        %v1647 = vsel %vm1049, %v1642, 0
        %1649 = vmatprep.subr.bf16.mxu0 0
        %1650 = vmatpush1.bf16.xpose.msra.mxu0 %v1647
        %1651 = vmatprep.subr.bf16.mxu0 0
        %1652 = vmatpush1.bf16.xpose.msra.mxu0 0
        %1653 = vmatprep.subr.bf16.mxu0 0
        %1654 = vmatpush1.bf16.xpose.msra.mxu0 0
        %1655 = vmatprep.subr.bf16.mxu0 0
        %1656 = vmatpush1.bf16.xpose.msra.mxu0 0
        %1657 = vmatprep.subr.bf16.mxu0 0
        %1658 = vmatpush1.bf16.xpose.msra.mxu0 0
        %1659 = vmatprep.subr.bf16.mxu0 0
        %1660 = vmatpush1.bf16.xpose.msra.mxu0 0
        %1661 = vmatprep.subr.bf16.mxu0 0
        %1662 = vmatpush1.bf16.xpose.msra.mxu0 0
        %1663 = vmatprep.subr.bf16.mxu0 0
        %1664 = vmatpush1.bf16.xpose.msra.mxu0 0
        %1665 = vmatprep.subr.bf16.mxu0 0
        %1666 = vmatpush1.bf16.xpose.msra.mxu0 0
        %1667 = vmatprep.subr.bf16.mxu0 0
        %1668 = vmatpush1.bf16.xpose.msra.mxu0 0
        %1669 = vmatprep.subr.bf16.mxu0 0
        %1670 = vmatpush1.bf16.xpose.msra.mxu0 0
        %1671 = vmatprep.subr.bf16.mxu0 0
        %1672 = vmatpush1.bf16.xpose.msra.mxu0 0
        %1673 = vmatprep.subr.bf16.mxu0 0
        %1674 = vmatpush1.bf16.xpose.msra.mxu0 0
        %1675 = vmatprep.subr.bf16.mxu0 0
        %1676 = vmatpush1.bf16.xpose.msra.mxu0 0
        %1677 = vmatprep.subr.bf16.mxu0 0
        %1678 = vmatpush1.bf16.xpose.msra.mxu0 0
        %1679 = vmatprep.subr.bf16.mxu0 0
        %1680 = vmatpush1.bf16.xpose.msra.mxu0 0
        %1681 = vmatprep.mubr.bf16.mxu0 0
        %1682 = vmatmul.mubr.bf16.gmra.mrb[0].mxu0 %v1644
        %v1683 = vpop.f32.mrb[0].mxu0
        %v1684 = vadd.f32 0.0, %v1683
        %v1685 = vpop.f32.mrb[0].mxu0
        %v1686 = vpop.f32.mrb[0].mxu0
        %v1687 = vadd.f32 0.0, %v1686
        %v1688 = vpop.f32.mrb[0].mxu0
        %1689 = vdwg.mxu0
        %1691 = vrot.lane.b32.xlu0 %v864, 120
        %v1692 = vpop.permute.xlu0 %1691
        %1694 = vrot.lane.b32.xlu0 %v956, 120
        %v1695 = vpop.permute.xlu0 %1694
        %v1697 = vsel %vm1049, %v1692, 0
        %v1700 = vsel %vm1049, %v1695, 0
        %1702 = vmatprep.subr.bf16.mxu0 0
        %1703 = vmatpush1.bf16.xpose.msra.mxu0 %v1700
        %1704 = vmatprep.subr.bf16.mxu0 0
        %1705 = vmatpush1.bf16.xpose.msra.mxu0 0
        %1706 = vmatprep.subr.bf16.mxu0 0
        %1707 = vmatpush1.bf16.xpose.msra.mxu0 0
        %1708 = vmatprep.subr.bf16.mxu0 0
        %1709 = vmatpush1.bf16.xpose.msra.mxu0 0
        %1710 = vmatprep.subr.bf16.mxu0 0
        %1711 = vmatpush1.bf16.xpose.msra.mxu0 0
        %1712 = vmatprep.subr.bf16.mxu0 0
        %1713 = vmatpush1.bf16.xpose.msra.mxu0 0
        %1714 = vmatprep.subr.bf16.mxu0 0
        %1715 = vmatpush1.bf16.xpose.msra.mxu0 0
        %1716 = vmatprep.subr.bf16.mxu0 0
        %1717 = vmatpush1.bf16.xpose.msra.mxu0 0
        %1718 = vmatprep.subr.bf16.mxu0 0
        %1719 = vmatpush1.bf16.xpose.msra.mxu0 0
        %1720 = vmatprep.subr.bf16.mxu0 0
        %1721 = vmatpush1.bf16.xpose.msra.mxu0 0
        %1722 = vmatprep.subr.bf16.mxu0 0
        %1723 = vmatpush1.bf16.xpose.msra.mxu0 0
        %1724 = vmatprep.subr.bf16.mxu0 0
        %1725 = vmatpush1.bf16.xpose.msra.mxu0 0
        %1726 = vmatprep.subr.bf16.mxu0 0
        %1727 = vmatpush1.bf16.xpose.msra.mxu0 0
        %1728 = vmatprep.subr.bf16.mxu0 0
        %1729 = vmatpush1.bf16.xpose.msra.mxu0 0
        %1730 = vmatprep.subr.bf16.mxu0 0
        %1731 = vmatpush1.bf16.xpose.msra.mxu0 0
        %1732 = vmatprep.subr.bf16.mxu0 0
        %1733 = vmatpush1.bf16.xpose.msra.mxu0 0
        %1734 = vmatprep.mubr.bf16.mxu0 0
        %1735 = vmatmul.mubr.bf16.gmra.mrb[0].mxu0 %v1697
        %v1736 = vpop.f32.mrb[0].mxu0
        %v1737 = vadd.f32 0.0, %v1736
        %v1738 = vpop.f32.mrb[0].mxu0
        %v1739 = vpop.f32.mrb[0].mxu0
        %v1740 = vadd.f32 0.0, %v1739
        %v1741 = vpop.f32.mrb[0].mxu0
        %1742 = vdwg.mxu0
        %s1743 = scalar_lea.vmem [#allocation6], 64
        %v1744 = vld [vmem:[%s1743] sm:$0xff]
        %v1745 = vld [vmem:[%s1743 + $0x8] sm:$0xff]
        %v1746 = vld [vmem:[%s1743 + $0x10] sm:$0xff]
        %v1747 = vld [vmem:[%s1743 + $0x18] sm:$0xff]
        %v1748 = vld [vmem:[%s1743 + $0x20] sm:$0xff]
        %v1749 = vld [vmem:[%s1743 + $0x28] sm:$0xff]
        %v1750 = vld [vmem:[%s1743 + $0x30] sm:$0xff]
        %v1751 = vld [vmem:[%s1743 + $0x38] sm:$0xff]
        %v1752 = vadd.f32 %v1578, %v1744
        %v1753 = vadd.f32 %v1581, %v1745
        %v1754 = vadd.f32 %v1631, %v1746
        %v1755 = vadd.f32 %v1634, %v1747
        %v1756 = vadd.f32 %v1684, %v1748
        %v1757 = vadd.f32 %v1687, %v1749
        %v1758 = vadd.f32 %v1737, %v1750
        %v1759 = vadd.f32 %v1740, %v1751
        %v1760 = vsel %vm1254, %v1752, -inf
        %1761 = vmax.xlane.f32.xlu0 %v1760
        %v1762 = vpop.xlane.xlu0 %1761
        %v1763 = vsel %vm1254, %v1753, -inf
        %1764 = vmax.xlane.f32.xlu0 %v1763
        %v1765 = vpop.xlane.xlu0 %1764
        %v1766 = vsel %vm1254, %v1754, -inf
        %1767 = vmax.xlane.f32.xlu0 %v1766
        %v1768 = vpop.xlane.xlu0 %1767
        %v1769 = vsel %vm1254, %v1755, -inf
        %1770 = vmax.xlane.f32.xlu0 %v1769
        %v1771 = vpop.xlane.xlu0 %1770
        %v1772 = vsel %vm1254, %v1756, -inf
        %1773 = vmax.xlane.f32.xlu0 %v1772
        %v1774 = vpop.xlane.xlu0 %1773
        %v1775 = vsel %vm1254, %v1757, -inf
        %1776 = vmax.xlane.f32.xlu0 %v1775
        %v1777 = vpop.xlane.xlu0 %1776
        %v1778 = vsel %vm1254, %v1758, -inf
        %1779 = vmax.xlane.f32.xlu0 %v1778
        %v1780 = vpop.xlane.xlu0 %1779
        %v1781 = vsel %vm1254, %v1759, -inf
        %1782 = vmax.xlane.f32.xlu0 %v1781
        %v1783 = vpop.xlane.xlu0 %1782
        %v1784 = vsub.f32 %v1752, %v1762
        %v1785 = vsub.f32 %v1753, %v1765
        %v1786 = vsub.f32 %v1754, %v1768
        %v1787 = vsub.f32 %v1755, %v1771
        %v1788 = vsub.f32 %v1756, %v1774
        %v1789 = vsub.f32 %v1757, %v1777
        %v1790 = vsub.f32 %v1758, %v1780
        %v1791 = vsub.f32 %v1759, %v1783
        %v1792 = vmul.f32 %v1784, 1.442695
        %v1793 = vpow.pop %v1792
        %v1794 = vmul.f32 %v1785, 1.442695
        %v1795 = vpow.pop %v1794
        %v1796 = vmul.f32 %v1786, 1.442695
        %v1797 = vpow.pop %v1796
        %v1798 = vmul.f32 %v1787, 1.442695
        %v1799 = vpow.pop %v1798
        %v1800 = vmul.f32 %v1788, 1.442695
        %v1801 = vpow.pop %v1800
        %v1802 = vmul.f32 %v1789, 1.442695
        %v1803 = vpow.pop %v1802
        %v1804 = vmul.f32 %v1790, 1.442695
        %v1805 = vpow.pop %v1804
        %v1806 = vmul.f32 %v1791, 1.442695
        %v1807 = vpow.pop %v1806
        %v1808 = vsel %vm1254, %v1793, 0.0
        %1809 = vadd.xlane.f32.xlu0 %v1808
        %v1810 = vpop.xlane.xlu0 %1809
        %v1811 = vsel %vm1254, %v1795, 0.0
        %1812 = vadd.xlane.f32.xlu0 %v1811
        %v1813 = vpop.xlane.xlu0 %1812
        %v1814 = vsel %vm1254, %v1797, 0.0
        %1815 = vadd.xlane.f32.xlu0 %v1814
        %v1816 = vpop.xlane.xlu0 %1815
        %v1817 = vsel %vm1254, %v1799, 0.0
        %1818 = vadd.xlane.f32.xlu0 %v1817
        %v1819 = vpop.xlane.xlu0 %1818
        %v1820 = vsel %vm1254, %v1801, 0.0
        %1821 = vadd.xlane.f32.xlu0 %v1820
        %v1822 = vpop.xlane.xlu0 %1821
        %v1823 = vsel %vm1254, %v1803, 0.0
        %1824 = vadd.xlane.f32.xlu0 %v1823
        %v1825 = vpop.xlane.xlu0 %1824
        %v1826 = vsel %vm1254, %v1805, 0.0
        %1827 = vadd.xlane.f32.xlu0 %v1826
        %v1828 = vpop.xlane.xlu0 %1827
        %v1829 = vsel %vm1254, %v1807, 0.0
        %1830 = vadd.xlane.f32.xlu0 %v1829
        %v1831 = vpop.xlane.xlu0 %1830
        %v1832 = vrcp.pop %v1810
        %v1833 = vrcp.pop %v1813
        %v1834 = vrcp.pop %v1816
        %v1835 = vrcp.pop %v1819
        %v1836 = vrcp.pop %v1822
        %v1837 = vrcp.pop %v1825
        %v1838 = vrcp.pop %v1828
        %v1839 = vrcp.pop %v1831
        %v1840 = vmul.f32 %v1793, %v1832
        %v1841 = vmul.f32 %v1795, %v1833
        %v1842 = vmul.f32 %v1797, %v1834
        %v1843 = vmul.f32 %v1799, %v1835
        %v1844 = vmul.f32 %v1801, %v1836
        %v1845 = vmul.f32 %v1803, %v1837
        %v1846 = vmul.f32 %v1805, %v1838
        %v1847 = vmul.f32 %v1807, %v1839
        %v1848 = vpack.c.bf16 %v1841, %v1840
        %v1849 = vpack.c.bf16 %v1843, %v1842
        %v1850 = vpack.c.bf16 %v1845, %v1844
        %v1851 = vpack.c.bf16 %v1847, %v1846
        %1853 = vrot.lane.b32.xlu0 %v1045, 120
        %v1854 = vpop.permute.xlu0 %1853
        %v1857 = vsel %vm1254, %v1848, 0
        %1859 = vmatprep.subr.bf16.mxu0 0
        %1860 = vmatpush1.bf16.msra.mxu0 %v1854
        %1861 = vmatprep.subr.bf16.mxu0 0
        %1862 = vmatpush1.bf16.msra.mxu0 0
        %1863 = vmatprep.subr.bf16.mxu0 0
        %1864 = vmatpush1.bf16.msra.mxu0 0
        %1865 = vmatprep.subr.bf16.mxu0 0
        %1866 = vmatpush1.bf16.msra.mxu0 0
        %1867 = vmatprep.subr.bf16.mxu0 0
        %1868 = vmatpush1.bf16.msra.mxu0 0
        %1869 = vmatprep.subr.bf16.mxu0 0
        %1870 = vmatpush1.bf16.msra.mxu0 0
        %1871 = vmatprep.subr.bf16.mxu0 0
        %1872 = vmatpush1.bf16.msra.mxu0 0
        %1873 = vmatprep.subr.bf16.mxu0 0
        %1874 = vmatpush1.bf16.msra.mxu0 0
        %1875 = vmatprep.subr.bf16.mxu0 0
        %1876 = vmatpush1.bf16.msra.mxu0 0
        %1877 = vmatprep.subr.bf16.mxu0 0
        %1878 = vmatpush1.bf16.msra.mxu0 0
        %1879 = vmatprep.subr.bf16.mxu0 0
        %1880 = vmatpush1.bf16.msra.mxu0 0
        %1881 = vmatprep.subr.bf16.mxu0 0
        %1882 = vmatpush1.bf16.msra.mxu0 0
        %1883 = vmatprep.subr.bf16.mxu0 0
        %1884 = vmatpush1.bf16.msra.mxu0 0
        %1885 = vmatprep.subr.bf16.mxu0 0
        %1886 = vmatpush1.bf16.msra.mxu0 0
        %1887 = vmatprep.subr.bf16.mxu0 0
        %1888 = vmatpush1.bf16.msra.mxu0 0
        %1889 = vmatprep.subr.bf16.mxu0 0
        %1890 = vmatpush1.bf16.msra.mxu0 0
        %1891 = vmatprep.mubr.bf16.mxu0 0
        %1892 = vmatmul.mubr.bf16.gmra.mrb[0].mxu0 %v1857
        %v1893 = vpop.f32.mrb[0].mxu0
        %v1894 = vadd.f32 0.0, %v1893
        %v1895 = vpop.f32.mrb[0].mxu0
        %v1896 = vpop.f32.mrb[0].mxu0
        %v1897 = vadd.f32 0.0, %v1896
        %v1898 = vpop.f32.mrb[0].mxu0
        %1899 = vdwg.mxu0
        %1901 = vrot.lane.b32.xlu0 %v1046, 120
        %v1902 = vpop.permute.xlu0 %1901
        %v1905 = vsel %vm1254, %v1849, 0
        %1907 = vmatprep.subr.bf16.mxu0 0
        %1908 = vmatpush1.bf16.msra.mxu0 %v1902
        %1909 = vmatprep.subr.bf16.mxu0 0
        %1910 = vmatpush1.bf16.msra.mxu0 0
        %1911 = vmatprep.subr.bf16.mxu0 0
        %1912 = vmatpush1.bf16.msra.mxu0 0
        %1913 = vmatprep.subr.bf16.mxu0 0
        %1914 = vmatpush1.bf16.msra.mxu0 0
        %1915 = vmatprep.subr.bf16.mxu0 0
        %1916 = vmatpush1.bf16.msra.mxu0 0
        %1917 = vmatprep.subr.bf16.mxu0 0
        %1918 = vmatpush1.bf16.msra.mxu0 0
        %1919 = vmatprep.subr.bf16.mxu0 0
        %1920 = vmatpush1.bf16.msra.mxu0 0
        %1921 = vmatprep.subr.bf16.mxu0 0
        %1922 = vmatpush1.bf16.msra.mxu0 0
        %1923 = vmatprep.subr.bf16.mxu0 0
        %1924 = vmatpush1.bf16.msra.mxu0 0
        %1925 = vmatprep.subr.bf16.mxu0 0
        %1926 = vmatpush1.bf16.msra.mxu0 0
        %1927 = vmatprep.subr.bf16.mxu0 0
        %1928 = vmatpush1.bf16.msra.mxu0 0
        %1929 = vmatprep.subr.bf16.mxu0 0
        %1930 = vmatpush1.bf16.msra.mxu0 0
        %1931 = vmatprep.subr.bf16.mxu0 0
        %1932 = vmatpush1.bf16.msra.mxu0 0
        %1933 = vmatprep.subr.bf16.mxu0 0
        %1934 = vmatpush1.bf16.msra.mxu0 0
        %1935 = vmatprep.subr.bf16.mxu0 0
        %1936 = vmatpush1.bf16.msra.mxu0 0
        %1937 = vmatprep.subr.bf16.mxu0 0
        %1938 = vmatpush1.bf16.msra.mxu0 0
        %1939 = vmatprep.mubr.bf16.mxu0 0
        %1940 = vmatmul.mubr.bf16.gmra.mrb[0].mxu0 %v1905
        %v1941 = vpop.f32.mrb[0].mxu0
        %v1942 = vadd.f32 0.0, %v1941
        %v1943 = vpop.f32.mrb[0].mxu0
        %v1944 = vpop.f32.mrb[0].mxu0
        %v1945 = vadd.f32 0.0, %v1944
        %v1946 = vpop.f32.mrb[0].mxu0
        %1947 = vdwg.mxu0
        %1949 = vrot.lane.b32.xlu0 %v1047, 120
        %v1950 = vpop.permute.xlu0 %1949
        %v1953 = vsel %vm1254, %v1850, 0
        %1955 = vmatprep.subr.bf16.mxu0 0
        %1956 = vmatpush1.bf16.msra.mxu0 %v1950
        %1957 = vmatprep.subr.bf16.mxu0 0
        %1958 = vmatpush1.bf16.msra.mxu0 0
        %1959 = vmatprep.subr.bf16.mxu0 0
        %1960 = vmatpush1.bf16.msra.mxu0 0
        %1961 = vmatprep.subr.bf16.mxu0 0
        %1962 = vmatpush1.bf16.msra.mxu0 0
        %1963 = vmatprep.subr.bf16.mxu0 0
        %1964 = vmatpush1.bf16.msra.mxu0 0
        %1965 = vmatprep.subr.bf16.mxu0 0
        %1966 = vmatpush1.bf16.msra.mxu0 0
        %1967 = vmatprep.subr.bf16.mxu0 0
        %1968 = vmatpush1.bf16.msra.mxu0 0
        %1969 = vmatprep.subr.bf16.mxu0 0
        %1970 = vmatpush1.bf16.msra.mxu0 0
        %1971 = vmatprep.subr.bf16.mxu0 0
        %1972 = vmatpush1.bf16.msra.mxu0 0
        %1973 = vmatprep.subr.bf16.mxu0 0
        %1974 = vmatpush1.bf16.msra.mxu0 0
        %1975 = vmatprep.subr.bf16.mxu0 0
        %1976 = vmatpush1.bf16.msra.mxu0 0
        %1977 = vmatprep.subr.bf16.mxu0 0
        %1978 = vmatpush1.bf16.msra.mxu0 0
        %1979 = vmatprep.subr.bf16.mxu0 0
        %1980 = vmatpush1.bf16.msra.mxu0 0
        %1981 = vmatprep.subr.bf16.mxu0 0
        %1982 = vmatpush1.bf16.msra.mxu0 0
        %1983 = vmatprep.subr.bf16.mxu0 0
        %1984 = vmatpush1.bf16.msra.mxu0 0
        %1985 = vmatprep.subr.bf16.mxu0 0
        %1986 = vmatpush1.bf16.msra.mxu0 0
        %1987 = vmatprep.mubr.bf16.mxu0 0
        %1988 = vmatmul.mubr.bf16.gmra.mrb[0].mxu0 %v1953
        %v1989 = vpop.f32.mrb[0].mxu0
        %v1990 = vadd.f32 0.0, %v1989
        %v1991 = vpop.f32.mrb[0].mxu0
        %v1992 = vpop.f32.mrb[0].mxu0
        %v1993 = vadd.f32 0.0, %v1992
        %v1994 = vpop.f32.mrb[0].mxu0
        %1995 = vdwg.mxu0
        %1997 = vrot.lane.b32.xlu0 %v1048, 120
        %v1998 = vpop.permute.xlu0 %1997
        %v2001 = vsel %vm1254, %v1851, 0
        %2003 = vmatprep.subr.bf16.mxu0 0
        %2004 = vmatpush1.bf16.msra.mxu0 %v1998
        %2005 = vmatprep.subr.bf16.mxu0 0
        %2006 = vmatpush1.bf16.msra.mxu0 0
        %2007 = vmatprep.subr.bf16.mxu0 0
        %2008 = vmatpush1.bf16.msra.mxu0 0
        %2009 = vmatprep.subr.bf16.mxu0 0
        %2010 = vmatpush1.bf16.msra.mxu0 0
        %2011 = vmatprep.subr.bf16.mxu0 0
        %2012 = vmatpush1.bf16.msra.mxu0 0
        %2013 = vmatprep.subr.bf16.mxu0 0
        %2014 = vmatpush1.bf16.msra.mxu0 0
        %2015 = vmatprep.subr.bf16.mxu0 0
        %2016 = vmatpush1.bf16.msra.mxu0 0
        %2017 = vmatprep.subr.bf16.mxu0 0
        %2018 = vmatpush1.bf16.msra.mxu0 0
        %2019 = vmatprep.subr.bf16.mxu0 0
        %2020 = vmatpush1.bf16.msra.mxu0 0
        %2021 = vmatprep.subr.bf16.mxu0 0
        %2022 = vmatpush1.bf16.msra.mxu0 0
        %2023 = vmatprep.subr.bf16.mxu0 0
        %2024 = vmatpush1.bf16.msra.mxu0 0
        %2025 = vmatprep.subr.bf16.mxu0 0
        %2026 = vmatpush1.bf16.msra.mxu0 0
        %2027 = vmatprep.subr.bf16.mxu0 0
        %2028 = vmatpush1.bf16.msra.mxu0 0
        %2029 = vmatprep.subr.bf16.mxu0 0
        %2030 = vmatpush1.bf16.msra.mxu0 0
        %2031 = vmatprep.subr.bf16.mxu0 0
        %2032 = vmatpush1.bf16.msra.mxu0 0
        %2033 = vmatprep.subr.bf16.mxu0 0
        %2034 = vmatpush1.bf16.msra.mxu0 0
        %2035 = vmatprep.mubr.bf16.mxu0 0
        %2036 = vmatmul.mubr.bf16.gmra.mrb[0].mxu0 %v2001
        %v2037 = vpop.f32.mrb[0].mxu0
        %v2038 = vadd.f32 0.0, %v2037
        %v2039 = vpop.f32.mrb[0].mxu0
        %v2040 = vpop.f32.mrb[0].mxu0
        %v2041 = vadd.f32 0.0, %v2040
        %v2042 = vpop.f32.mrb[0].mxu0
        %2043 = vdwg.mxu0
        %2052 = vrot.lane.b32.xlu0 %v1894, 8
        %v2053 = vpop.permute.xlu0 %2052
        %2054 = vrot.lane.b32.xlu0 %v1897, 8
        %v2055 = vpop.permute.xlu0 %2054
        %2056 = vrot.lane.b32.xlu0 %v1942, 8
        %v2057 = vpop.permute.xlu0 %2056
        %2058 = vrot.lane.b32.xlu0 %v1945, 8
        %v2059 = vpop.permute.xlu0 %2058
        %2060 = vrot.lane.b32.xlu0 %v1990, 8
        %v2061 = vpop.permute.xlu0 %2060
        %2062 = vrot.lane.b32.xlu0 %v1993, 8
        %v2063 = vpop.permute.xlu0 %2062
        %2064 = vrot.lane.b32.xlu0 %v2038, 8
        %v2065 = vpop.permute.xlu0 %2064
        %2066 = vrot.lane.b32.xlu0 %v2041, 8
        %v2067 = vpop.permute.xlu0 %2066
        %vm2076 = vcmask 130112
        %2077 = vst.msk [vmem:[#allocation2] sm:$0xff] %vm2076, %v2053
        %2078 = vst.msk [vmem:[#allocation2 + $0x8] sm:$0xff] %vm2076, %v2055
        %2079 = vst.msk [vmem:[#allocation2 + $0x10] sm:$0xff] %vm2076, %v2057
        %2080 = vst.msk [vmem:[#allocation2 + $0x18] sm:$0xff] %vm2076, %v2059
        %2081 = vst.msk [vmem:[#allocation2 + $0x20] sm:$0xff] %vm2076, %v2061
        %2082 = vst.msk [vmem:[#allocation2 + $0x28] sm:$0xff] %vm2076, %v2063
        %2083 = vst.msk [vmem:[#allocation2 + $0x30] sm:$0xff] %vm2076, %v2065
        %2084 = vst.msk [vmem:[#allocation2 + $0x38] sm:$0xff] %vm2076, %v2067
        %2085 = vrot.lane.b32.xlu0 %v861, 112
        %v2086 = vpop.permute.xlu0 %2085
        %2087 = vrot.lane.b32.xlu0 %v953, 112
        %v2088 = vpop.permute.xlu0 %2087
        %v2090 = vsel %vm1049, %v2086, 0
        %v2093 = vsel %vm1049, %v2088, 0
        %2095 = vmatprep.subr.bf16.mxu0 0
        %2096 = vmatpush1.bf16.xpose.msra.mxu0 %v2093
        %2097 = vmatprep.subr.bf16.mxu0 0
        %2098 = vmatpush1.bf16.xpose.msra.mxu0 0
        %2099 = vmatprep.subr.bf16.mxu0 0
        %2100 = vmatpush1.bf16.xpose.msra.mxu0 0
        %2101 = vmatprep.subr.bf16.mxu0 0
        %2102 = vmatpush1.bf16.xpose.msra.mxu0 0
        %2103 = vmatprep.subr.bf16.mxu0 0
        %2104 = vmatpush1.bf16.xpose.msra.mxu0 0
        %2105 = vmatprep.subr.bf16.mxu0 0
        %2106 = vmatpush1.bf16.xpose.msra.mxu0 0
        %2107 = vmatprep.subr.bf16.mxu0 0
        %2108 = vmatpush1.bf16.xpose.msra.mxu0 0
        %2109 = vmatprep.subr.bf16.mxu0 0
        %2110 = vmatpush1.bf16.xpose.msra.mxu0 0
        %2111 = vmatprep.subr.bf16.mxu0 0
        %2112 = vmatpush1.bf16.xpose.msra.mxu0 0
        %2113 = vmatprep.subr.bf16.mxu0 0
        %2114 = vmatpush1.bf16.xpose.msra.mxu0 0
        %2115 = vmatprep.subr.bf16.mxu0 0
        %2116 = vmatpush1.bf16.xpose.msra.mxu0 0
        %2117 = vmatprep.subr.bf16.mxu0 0
        %2118 = vmatpush1.bf16.xpose.msra.mxu0 0
        %2119 = vmatprep.subr.bf16.mxu0 0
        %2120 = vmatpush1.bf16.xpose.msra.mxu0 0
        %2121 = vmatprep.subr.bf16.mxu0 0
        %2122 = vmatpush1.bf16.xpose.msra.mxu0 0
        %2123 = vmatprep.subr.bf16.mxu0 0
        %2124 = vmatpush1.bf16.xpose.msra.mxu0 0
        %2125 = vmatprep.subr.bf16.mxu0 0
        %2126 = vmatpush1.bf16.xpose.msra.mxu0 0
        %2127 = vmatprep.mubr.bf16.mxu0 0
        %2128 = vmatmul.mubr.bf16.gmra.mrb[0].mxu0 %v2090
        %v2129 = vpop.f32.mrb[0].mxu0
        %v2130 = vadd.f32 0.0, %v2129
        %v2131 = vpop.f32.mrb[0].mxu0
        %v2132 = vpop.f32.mrb[0].mxu0
        %v2133 = vadd.f32 0.0, %v2132
        %v2134 = vpop.f32.mrb[0].mxu0
        %2135 = vdwg.mxu0
        %2136 = vrot.lane.b32.xlu0 %v862, 112
        %v2137 = vpop.permute.xlu0 %2136
        %2138 = vrot.lane.b32.xlu0 %v954, 112
        %v2139 = vpop.permute.xlu0 %2138
        %v2141 = vsel %vm1049, %v2137, 0
        %v2144 = vsel %vm1049, %v2139, 0
        %2146 = vmatprep.subr.bf16.mxu0 0
        %2147 = vmatpush1.bf16.xpose.msra.mxu0 %v2144
        %2148 = vmatprep.subr.bf16.mxu0 0
        %2149 = vmatpush1.bf16.xpose.msra.mxu0 0
        %2150 = vmatprep.subr.bf16.mxu0 0
        %2151 = vmatpush1.bf16.xpose.msra.mxu0 0
        %2152 = vmatprep.subr.bf16.mxu0 0
        %2153 = vmatpush1.bf16.xpose.msra.mxu0 0
        %2154 = vmatprep.subr.bf16.mxu0 0
        %2155 = vmatpush1.bf16.xpose.msra.mxu0 0
        %2156 = vmatprep.subr.bf16.mxu0 0
        %2157 = vmatpush1.bf16.xpose.msra.mxu0 0
        %2158 = vmatprep.subr.bf16.mxu0 0
        %2159 = vmatpush1.bf16.xpose.msra.mxu0 0
        %2160 = vmatprep.subr.bf16.mxu0 0
        %2161 = vmatpush1.bf16.xpose.msra.mxu0 0
        %2162 = vmatprep.subr.bf16.mxu0 0
        %2163 = vmatpush1.bf16.xpose.msra.mxu0 0
        %2164 = vmatprep.subr.bf16.mxu0 0
        %2165 = vmatpush1.bf16.xpose.msra.mxu0 0
        %2166 = vmatprep.subr.bf16.mxu0 0
        %2167 = vmatpush1.bf16.xpose.msra.mxu0 0
        %2168 = vmatprep.subr.bf16.mxu0 0
        %2169 = vmatpush1.bf16.xpose.msra.mxu0 0
        %2170 = vmatprep.subr.bf16.mxu0 0
        %2171 = vmatpush1.bf16.xpose.msra.mxu0 0
        %2172 = vmatprep.subr.bf16.mxu0 0
        %2173 = vmatpush1.bf16.xpose.msra.mxu0 0
        %2174 = vmatprep.subr.bf16.mxu0 0
        %2175 = vmatpush1.bf16.xpose.msra.mxu0 0
        %2176 = vmatprep.subr.bf16.mxu0 0
        %2177 = vmatpush1.bf16.xpose.msra.mxu0 0
        %2178 = vmatprep.mubr.bf16.mxu0 0
        %2179 = vmatmul.mubr.bf16.gmra.mrb[0].mxu0 %v2141
        %v2180 = vpop.f32.mrb[0].mxu0
        %v2181 = vadd.f32 0.0, %v2180
        %v2182 = vpop.f32.mrb[0].mxu0
        %v2183 = vpop.f32.mrb[0].mxu0
        %v2184 = vadd.f32 0.0, %v2183
        %v2185 = vpop.f32.mrb[0].mxu0
        %2186 = vdwg.mxu0
        %2187 = vrot.lane.b32.xlu0 %v863, 112
        %v2188 = vpop.permute.xlu0 %2187
        %2189 = vrot.lane.b32.xlu0 %v955, 112
        %v2190 = vpop.permute.xlu0 %2189
        %v2192 = vsel %vm1049, %v2188, 0
        %v2195 = vsel %vm1049, %v2190, 0
        %2197 = vmatprep.subr.bf16.mxu0 0
        %2198 = vmatpush1.bf16.xpose.msra.mxu0 %v2195
        %2199 = vmatprep.subr.bf16.mxu0 0
        %2200 = vmatpush1.bf16.xpose.msra.mxu0 0
        %2201 = vmatprep.subr.bf16.mxu0 0
        %2202 = vmatpush1.bf16.xpose.msra.mxu0 0
        %2203 = vmatprep.subr.bf16.mxu0 0
        %2204 = vmatpush1.bf16.xpose.msra.mxu0 0
        %2205 = vmatprep.subr.bf16.mxu0 0
        %2206 = vmatpush1.bf16.xpose.msra.mxu0 0
        %2207 = vmatprep.subr.bf16.mxu0 0
        %2208 = vmatpush1.bf16.xpose.msra.mxu0 0
        %2209 = vmatprep.subr.bf16.mxu0 0
        %2210 = vmatpush1.bf16.xpose.msra.mxu0 0
        %2211 = vmatprep.subr.bf16.mxu0 0
        %2212 = vmatpush1.bf16.xpose.msra.mxu0 0
        %2213 = vmatprep.subr.bf16.mxu0 0
        %2214 = vmatpush1.bf16.xpose.msra.mxu0 0
        %2215 = vmatprep.subr.bf16.mxu0 0
        %2216 = vmatpush1.bf16.xpose.msra.mxu0 0
        %2217 = vmatprep.subr.bf16.mxu0 0
        %2218 = vmatpush1.bf16.xpose.msra.mxu0 0
        %2219 = vmatprep.subr.bf16.mxu0 0
        %2220 = vmatpush1.bf16.xpose.msra.mxu0 0
        %2221 = vmatprep.subr.bf16.mxu0 0
        %2222 = vmatpush1.bf16.xpose.msra.mxu0 0
        %2223 = vmatprep.subr.bf16.mxu0 0
        %2224 = vmatpush1.bf16.xpose.msra.mxu0 0
        %2225 = vmatprep.subr.bf16.mxu0 0
        %2226 = vmatpush1.bf16.xpose.msra.mxu0 0
        %2227 = vmatprep.subr.bf16.mxu0 0
        %2228 = vmatpush1.bf16.xpose.msra.mxu0 0
        %2229 = vmatprep.mubr.bf16.mxu0 0
        %2230 = vmatmul.mubr.bf16.gmra.mrb[0].mxu0 %v2192
        %v2231 = vpop.f32.mrb[0].mxu0
        %v2232 = vadd.f32 0.0, %v2231
        %v2233 = vpop.f32.mrb[0].mxu0
        %v2234 = vpop.f32.mrb[0].mxu0
        %v2235 = vadd.f32 0.0, %v2234
        %v2236 = vpop.f32.mrb[0].mxu0
        %2237 = vdwg.mxu0
        %2238 = vrot.lane.b32.xlu0 %v864, 112
        %v2239 = vpop.permute.xlu0 %2238
        %2240 = vrot.lane.b32.xlu0 %v956, 112
        %v2241 = vpop.permute.xlu0 %2240
        %v2243 = vsel %vm1049, %v2239, 0
        %v2246 = vsel %vm1049, %v2241, 0
        %2248 = vmatprep.subr.bf16.mxu0 0
        %2249 = vmatpush1.bf16.xpose.msra.mxu0 %v2246
        %2250 = vmatprep.subr.bf16.mxu0 0
        %2251 = vmatpush1.bf16.xpose.msra.mxu0 0
        %2252 = vmatprep.subr.bf16.mxu0 0
        %2253 = vmatpush1.bf16.xpose.msra.mxu0 0
        %2254 = vmatprep.subr.bf16.mxu0 0
        %2255 = vmatpush1.bf16.xpose.msra.mxu0 0
        %2256 = vmatprep.subr.bf16.mxu0 0
        %2257 = vmatpush1.bf16.xpose.msra.mxu0 0
        %2258 = vmatprep.subr.bf16.mxu0 0
        %2259 = vmatpush1.bf16.xpose.msra.mxu0 0
        %2260 = vmatprep.subr.bf16.mxu0 0
        %2261 = vmatpush1.bf16.xpose.msra.mxu0 0
        %2262 = vmatprep.subr.bf16.mxu0 0
        %2263 = vmatpush1.bf16.xpose.msra.mxu0 0
        %2264 = vmatprep.subr.bf16.mxu0 0
        %2265 = vmatpush1.bf16.xpose.msra.mxu0 0
        %2266 = vmatprep.subr.bf16.mxu0 0
        %2267 = vmatpush1.bf16.xpose.msra.mxu0 0
        %2268 = vmatprep.subr.bf16.mxu0 0
        %2269 = vmatpush1.bf16.xpose.msra.mxu0 0
        %2270 = vmatprep.subr.bf16.mxu0 0
        %2271 = vmatpush1.bf16.xpose.msra.mxu0 0
        %2272 = vmatprep.subr.bf16.mxu0 0
        %2273 = vmatpush1.bf16.xpose.msra.mxu0 0
        %2274 = vmatprep.subr.bf16.mxu0 0
        %2275 = vmatpush1.bf16.xpose.msra.mxu0 0
        %2276 = vmatprep.subr.bf16.mxu0 0
        %2277 = vmatpush1.bf16.xpose.msra.mxu0 0
        %2278 = vmatprep.subr.bf16.mxu0 0
        %2279 = vmatpush1.bf16.xpose.msra.mxu0 0
        %2280 = vmatprep.mubr.bf16.mxu0 0
        %2281 = vmatmul.mubr.bf16.gmra.mrb[0].mxu0 %v2243
        %v2282 = vpop.f32.mrb[0].mxu0
        %v2283 = vadd.f32 0.0, %v2282
        %v2284 = vpop.f32.mrb[0].mxu0
        %v2285 = vpop.f32.mrb[0].mxu0
        %v2286 = vadd.f32 0.0, %v2285
        %v2287 = vpop.f32.mrb[0].mxu0
        %2288 = vdwg.mxu0
        %s2289 = scalar_lea.vmem [#allocation6], 128
        %v2290 = vld [vmem:[%s2289] sm:$0xff]
        %v2291 = vld [vmem:[%s2289 + $0x8] sm:$0xff]
        %v2292 = vld [vmem:[%s2289 + $0x10] sm:$0xff]
        %v2293 = vld [vmem:[%s2289 + $0x18] sm:$0xff]
        %v2294 = vld [vmem:[%s2289 + $0x20] sm:$0xff]
        %v2295 = vld [vmem:[%s2289 + $0x28] sm:$0xff]
        %v2296 = vld [vmem:[%s2289 + $0x30] sm:$0xff]
        %v2297 = vld [vmem:[%s2289 + $0x38] sm:$0xff]
        %v2298 = vadd.f32 %v2130, %v2290
        %v2299 = vadd.f32 %v2133, %v2291
        %v2300 = vadd.f32 %v2181, %v2292
        %v2301 = vadd.f32 %v2184, %v2293
        %v2302 = vadd.f32 %v2232, %v2294
        %v2303 = vadd.f32 %v2235, %v2295
        %v2304 = vadd.f32 %v2283, %v2296
        %v2305 = vadd.f32 %v2286, %v2297
        %v2306 = vsel %vm1254, %v2298, -inf
        %2307 = vmax.xlane.f32.xlu0 %v2306
        %v2308 = vpop.xlane.xlu0 %2307
        %v2309 = vsel %vm1254, %v2299, -inf
        %2310 = vmax.xlane.f32.xlu0 %v2309
        %v2311 = vpop.xlane.xlu0 %2310
        %v2312 = vsel %vm1254, %v2300, -inf
        %2313 = vmax.xlane.f32.xlu0 %v2312
        %v2314 = vpop.xlane.xlu0 %2313
        %v2315 = vsel %vm1254, %v2301, -inf
        %2316 = vmax.xlane.f32.xlu0 %v2315
        %v2317 = vpop.xlane.xlu0 %2316
        %v2318 = vsel %vm1254, %v2302, -inf
        %2319 = vmax.xlane.f32.xlu0 %v2318
        %v2320 = vpop.xlane.xlu0 %2319
        %v2321 = vsel %vm1254, %v2303, -inf
        %2322 = vmax.xlane.f32.xlu0 %v2321
        %v2323 = vpop.xlane.xlu0 %2322
        %v2324 = vsel %vm1254, %v2304, -inf
        %2325 = vmax.xlane.f32.xlu0 %v2324
        %v2326 = vpop.xlane.xlu0 %2325
        %v2327 = vsel %vm1254, %v2305, -inf
        %2328 = vmax.xlane.f32.xlu0 %v2327
        %v2329 = vpop.xlane.xlu0 %2328
        %v2330 = vsub.f32 %v2298, %v2308
        %v2331 = vsub.f32 %v2299, %v2311
        %v2332 = vsub.f32 %v2300, %v2314
        %v2333 = vsub.f32 %v2301, %v2317
        %v2334 = vsub.f32 %v2302, %v2320
        %v2335 = vsub.f32 %v2303, %v2323
        %v2336 = vsub.f32 %v2304, %v2326
        %v2337 = vsub.f32 %v2305, %v2329
        %v2338 = vmul.f32 %v2330, 1.442695
        %v2339 = vpow.pop %v2338
        %v2340 = vmul.f32 %v2331, 1.442695
        %v2341 = vpow.pop %v2340
        %v2342 = vmul.f32 %v2332, 1.442695
        %v2343 = vpow.pop %v2342
        %v2344 = vmul.f32 %v2333, 1.442695
        %v2345 = vpow.pop %v2344
        %v2346 = vmul.f32 %v2334, 1.442695
        %v2347 = vpow.pop %v2346
        %v2348 = vmul.f32 %v2335, 1.442695
        %v2349 = vpow.pop %v2348
        %v2350 = vmul.f32 %v2336, 1.442695
        %v2351 = vpow.pop %v2350
        %v2352 = vmul.f32 %v2337, 1.442695
        %v2353 = vpow.pop %v2352
        %v2354 = vsel %vm1254, %v2339, 0.0
        %2355 = vadd.xlane.f32.xlu0 %v2354
        %v2356 = vpop.xlane.xlu0 %2355
        %v2357 = vsel %vm1254, %v2341, 0.0
        %2358 = vadd.xlane.f32.xlu0 %v2357
        %v2359 = vpop.xlane.xlu0 %2358
        %v2360 = vsel %vm1254, %v2343, 0.0
        %2361 = vadd.xlane.f32.xlu0 %v2360
        %v2362 = vpop.xlane.xlu0 %2361
        %v2363 = vsel %vm1254, %v2345, 0.0
        %2364 = vadd.xlane.f32.xlu0 %v2363
        %v2365 = vpop.xlane.xlu0 %2364
        %v2366 = vsel %vm1254, %v2347, 0.0
        %2367 = vadd.xlane.f32.xlu0 %v2366
        %v2368 = vpop.xlane.xlu0 %2367
        %v2369 = vsel %vm1254, %v2349, 0.0
        %2370 = vadd.xlane.f32.xlu0 %v2369
        %v2371 = vpop.xlane.xlu0 %2370
        %v2372 = vsel %vm1254, %v2351, 0.0
        %2373 = vadd.xlane.f32.xlu0 %v2372
        %v2374 = vpop.xlane.xlu0 %2373
        %v2375 = vsel %vm1254, %v2353, 0.0
        %2376 = vadd.xlane.f32.xlu0 %v2375
        %v2377 = vpop.xlane.xlu0 %2376
        %v2378 = vrcp.pop %v2356
        %v2379 = vrcp.pop %v2359
        %v2380 = vrcp.pop %v2362
        %v2381 = vrcp.pop %v2365
        %v2382 = vrcp.pop %v2368
        %v2383 = vrcp.pop %v2371
        %v2384 = vrcp.pop %v2374
        %v2385 = vrcp.pop %v2377
        %v2386 = vmul.f32 %v2339, %v2378
        %v2387 = vmul.f32 %v2341, %v2379
        %v2388 = vmul.f32 %v2343, %v2380
        %v2389 = vmul.f32 %v2345, %v2381
        %v2390 = vmul.f32 %v2347, %v2382
        %v2391 = vmul.f32 %v2349, %v2383
        %v2392 = vmul.f32 %v2351, %v2384
        %v2393 = vmul.f32 %v2353, %v2385
        %v2394 = vpack.c.bf16 %v2387, %v2386
        %v2395 = vpack.c.bf16 %v2389, %v2388
        %v2396 = vpack.c.bf16 %v2391, %v2390
        %v2397 = vpack.c.bf16 %v2393, %v2392
        %2398 = vrot.lane.b32.xlu0 %v1045, 112
        %v2399 = vpop.permute.xlu0 %2398
        %v2402 = vsel %vm1254, %v2394, 0
        %2404 = vmatprep.subr.bf16.mxu0 0
        %2405 = vmatpush1.bf16.msra.mxu0 %v2399
        %2406 = vmatprep.subr.bf16.mxu0 0
        %2407 = vmatpush1.bf16.msra.mxu0 0
        %2408 = vmatprep.subr.bf16.mxu0 0
        %2409 = vmatpush1.bf16.msra.mxu0 0
        %2410 = vmatprep.subr.bf16.mxu0 0
        %2411 = vmatpush1.bf16.msra.mxu0 0
        %2412 = vmatprep.subr.bf16.mxu0 0
        %2413 = vmatpush1.bf16.msra.mxu0 0
        %2414 = vmatprep.subr.bf16.mxu0 0
        %2415 = vmatpush1.bf16.msra.mxu0 0
        %2416 = vmatprep.subr.bf16.mxu0 0
        %2417 = vmatpush1.bf16.msra.mxu0 0
        %2418 = vmatprep.subr.bf16.mxu0 0
        %2419 = vmatpush1.bf16.msra.mxu0 0
        %2420 = vmatprep.subr.bf16.mxu0 0
        %2421 = vmatpush1.bf16.msra.mxu0 0
        %2422 = vmatprep.subr.bf16.mxu0 0
        %2423 = vmatpush1.bf16.msra.mxu0 0
        %2424 = vmatprep.subr.bf16.mxu0 0
        %2425 = vmatpush1.bf16.msra.mxu0 0
        %2426 = vmatprep.subr.bf16.mxu0 0
        %2427 = vmatpush1.bf16.msra.mxu0 0
        %2428 = vmatprep.subr.bf16.mxu0 0
        %2429 = vmatpush1.bf16.msra.mxu0 0
        %2430 = vmatprep.subr.bf16.mxu0 0
        %2431 = vmatpush1.bf16.msra.mxu0 0
        %2432 = vmatprep.subr.bf16.mxu0 0
        %2433 = vmatpush1.bf16.msra.mxu0 0
        %2434 = vmatprep.subr.bf16.mxu0 0
        %2435 = vmatpush1.bf16.msra.mxu0 0
        %2436 = vmatprep.mubr.bf16.mxu0 0
        %2437 = vmatmul.mubr.bf16.gmra.mrb[0].mxu0 %v2402
        %v2438 = vpop.f32.mrb[0].mxu0
        %v2439 = vadd.f32 0.0, %v2438
        %v2440 = vpop.f32.mrb[0].mxu0
        %v2441 = vpop.f32.mrb[0].mxu0
        %v2442 = vadd.f32 0.0, %v2441
        %v2443 = vpop.f32.mrb[0].mxu0
        %2444 = vdwg.mxu0
        %2445 = vrot.lane.b32.xlu0 %v1046, 112
        %v2446 = vpop.permute.xlu0 %2445
        %v2449 = vsel %vm1254, %v2395, 0
        %2451 = vmatprep.subr.bf16.mxu0 0
        %2452 = vmatpush1.bf16.msra.mxu0 %v2446
        %2453 = vmatprep.subr.bf16.mxu0 0
        %2454 = vmatpush1.bf16.msra.mxu0 0
        %2455 = vmatprep.subr.bf16.mxu0 0
        %2456 = vmatpush1.bf16.msra.mxu0 0
        %2457 = vmatprep.subr.bf16.mxu0 0
        %2458 = vmatpush1.bf16.msra.mxu0 0
        %2459 = vmatprep.subr.bf16.mxu0 0
        %2460 = vmatpush1.bf16.msra.mxu0 0
        %2461 = vmatprep.subr.bf16.mxu0 0
        %2462 = vmatpush1.bf16.msra.mxu0 0
        %2463 = vmatprep.subr.bf16.mxu0 0
        %2464 = vmatpush1.bf16.msra.mxu0 0
        %2465 = vmatprep.subr.bf16.mxu0 0
        %2466 = vmatpush1.bf16.msra.mxu0 0
        %2467 = vmatprep.subr.bf16.mxu0 0
        %2468 = vmatpush1.bf16.msra.mxu0 0
        %2469 = vmatprep.subr.bf16.mxu0 0
        %2470 = vmatpush1.bf16.msra.mxu0 0
        %2471 = vmatprep.subr.bf16.mxu0 0
        %2472 = vmatpush1.bf16.msra.mxu0 0
        %2473 = vmatprep.subr.bf16.mxu0 0
        %2474 = vmatpush1.bf16.msra.mxu0 0
        %2475 = vmatprep.subr.bf16.mxu0 0
        %2476 = vmatpush1.bf16.msra.mxu0 0
        %2477 = vmatprep.subr.bf16.mxu0 0
        %2478 = vmatpush1.bf16.msra.mxu0 0
        %2479 = vmatprep.subr.bf16.mxu0 0
        %2480 = vmatpush1.bf16.msra.mxu0 0
        %2481 = vmatprep.subr.bf16.mxu0 0
        %2482 = vmatpush1.bf16.msra.mxu0 0
        %2483 = vmatprep.mubr.bf16.mxu0 0
        %2484 = vmatmul.mubr.bf16.gmra.mrb[0].mxu0 %v2449
        %v2485 = vpop.f32.mrb[0].mxu0
        %v2486 = vadd.f32 0.0, %v2485
        %v2487 = vpop.f32.mrb[0].mxu0
        %v2488 = vpop.f32.mrb[0].mxu0
        %v2489 = vadd.f32 0.0, %v2488
        %v2490 = vpop.f32.mrb[0].mxu0
        %2491 = vdwg.mxu0
        %2492 = vrot.lane.b32.xlu0 %v1047, 112
        %v2493 = vpop.permute.xlu0 %2492
        %v2496 = vsel %vm1254, %v2396, 0
        %2498 = vmatprep.subr.bf16.mxu0 0
        %2499 = vmatpush1.bf16.msra.mxu0 %v2493
        %2500 = vmatprep.subr.bf16.mxu0 0
        %2501 = vmatpush1.bf16.msra.mxu0 0
        %2502 = vmatprep.subr.bf16.mxu0 0
        %2503 = vmatpush1.bf16.msra.mxu0 0
        %2504 = vmatprep.subr.bf16.mxu0 0
        %2505 = vmatpush1.bf16.msra.mxu0 0
        %2506 = vmatprep.subr.bf16.mxu0 0
        %2507 = vmatpush1.bf16.msra.mxu0 0
        %2508 = vmatprep.subr.bf16.mxu0 0
        %2509 = vmatpush1.bf16.msra.mxu0 0
        %2510 = vmatprep.subr.bf16.mxu0 0
        %2511 = vmatpush1.bf16.msra.mxu0 0
        %2512 = vmatprep.subr.bf16.mxu0 0
        %2513 = vmatpush1.bf16.msra.mxu0 0
        %2514 = vmatprep.subr.bf16.mxu0 0
        %2515 = vmatpush1.bf16.msra.mxu0 0
        %2516 = vmatprep.subr.bf16.mxu0 0
        %2517 = vmatpush1.bf16.msra.mxu0 0
        %2518 = vmatprep.subr.bf16.mxu0 0
        %2519 = vmatpush1.bf16.msra.mxu0 0
        %2520 = vmatprep.subr.bf16.mxu0 0
        %2521 = vmatpush1.bf16.msra.mxu0 0
        %2522 = vmatprep.subr.bf16.mxu0 0
        %2523 = vmatpush1.bf16.msra.mxu0 0
        %2524 = vmatprep.subr.bf16.mxu0 0
        %2525 = vmatpush1.bf16.msra.mxu0 0
        %2526 = vmatprep.subr.bf16.mxu0 0
        %2527 = vmatpush1.bf16.msra.mxu0 0
        %2528 = vmatprep.subr.bf16.mxu0 0
        %2529 = vmatpush1.bf16.msra.mxu0 0
        %2530 = vmatprep.mubr.bf16.mxu0 0
        %2531 = vmatmul.mubr.bf16.gmra.mrb[0].mxu0 %v2496
        %v2532 = vpop.f32.mrb[0].mxu0
        %v2533 = vadd.f32 0.0, %v2532
        %v2534 = vpop.f32.mrb[0].mxu0
        %v2535 = vpop.f32.mrb[0].mxu0
        %v2536 = vadd.f32 0.0, %v2535
        %v2537 = vpop.f32.mrb[0].mxu0
        %2538 = vdwg.mxu0
        %2539 = vrot.lane.b32.xlu0 %v1048, 112
        %v2540 = vpop.permute.xlu0 %2539
        %v2543 = vsel %vm1254, %v2397, 0
        %2545 = vmatprep.subr.bf16.mxu0 0
        %2546 = vmatpush1.bf16.msra.mxu0 %v2540
        %2547 = vmatprep.subr.bf16.mxu0 0
        %2548 = vmatpush1.bf16.msra.mxu0 0
        %2549 = vmatprep.subr.bf16.mxu0 0
        %2550 = vmatpush1.bf16.msra.mxu0 0
        %2551 = vmatprep.subr.bf16.mxu0 0
        %2552 = vmatpush1.bf16.msra.mxu0 0
        %2553 = vmatprep.subr.bf16.mxu0 0
        %2554 = vmatpush1.bf16.msra.mxu0 0
        %2555 = vmatprep.subr.bf16.mxu0 0
        %2556 = vmatpush1.bf16.msra.mxu0 0
        %2557 = vmatprep.subr.bf16.mxu0 0
        %2558 = vmatpush1.bf16.msra.mxu0 0
        %2559 = vmatprep.subr.bf16.mxu0 0
        %2560 = vmatpush1.bf16.msra.mxu0 0
        %2561 = vmatprep.subr.bf16.mxu0 0
        %2562 = vmatpush1.bf16.msra.mxu0 0
        %2563 = vmatprep.subr.bf16.mxu0 0
        %2564 = vmatpush1.bf16.msra.mxu0 0
        %2565 = vmatprep.subr.bf16.mxu0 0
        %2566 = vmatpush1.bf16.msra.mxu0 0
        %2567 = vmatprep.subr.bf16.mxu0 0
        %2568 = vmatpush1.bf16.msra.mxu0 0
        %2569 = vmatprep.subr.bf16.mxu0 0
        %2570 = vmatpush1.bf16.msra.mxu0 0
        %2571 = vmatprep.subr.bf16.mxu0 0
        %2572 = vmatpush1.bf16.msra.mxu0 0
        %2573 = vmatprep.subr.bf16.mxu0 0
        %2574 = vmatpush1.bf16.msra.mxu0 0
        %2575 = vmatprep.subr.bf16.mxu0 0
        %2576 = vmatpush1.bf16.msra.mxu0 0
        %2577 = vmatprep.mubr.bf16.mxu0 0
        %2578 = vmatmul.mubr.bf16.gmra.mrb[0].mxu0 %v2543
        %v2579 = vpop.f32.mrb[0].mxu0
        %v2580 = vadd.f32 0.0, %v2579
        %v2581 = vpop.f32.mrb[0].mxu0
        %v2582 = vpop.f32.mrb[0].mxu0
        %v2583 = vadd.f32 0.0, %v2582
        %v2584 = vpop.f32.mrb[0].mxu0
        %2585 = vdwg.mxu0
        %2594 = vrot.lane.b32.xlu0 %v2439, 16
        %v2595 = vpop.permute.xlu0 %2594
        %2596 = vrot.lane.b32.xlu0 %v2442, 16
        %v2597 = vpop.permute.xlu0 %2596
        %2598 = vrot.lane.b32.xlu0 %v2486, 16
        %v2599 = vpop.permute.xlu0 %2598
        %2600 = vrot.lane.b32.xlu0 %v2489, 16
        %v2601 = vpop.permute.xlu0 %2600
        %2602 = vrot.lane.b32.xlu0 %v2533, 16
        %v2603 = vpop.permute.xlu0 %2602
        %2604 = vrot.lane.b32.xlu0 %v2536, 16
        %v2605 = vpop.permute.xlu0 %2604
        %2606 = vrot.lane.b32.xlu0 %v2580, 16
        %v2607 = vpop.permute.xlu0 %2606
        %2608 = vrot.lane.b32.xlu0 %v2583, 16
        %v2609 = vpop.permute.xlu0 %2608
        %vm2618 = vcmask 195712
        %2619 = vst.msk [vmem:[#allocation2] sm:$0xff] %vm2618, %v2595
        %2620 = vst.msk [vmem:[#allocation2 + $0x8] sm:$0xff] %vm2618, %v2597
        %2621 = vst.msk [vmem:[#allocation2 + $0x10] sm:$0xff] %vm2618, %v2599
        %2622 = vst.msk [vmem:[#allocation2 + $0x18] sm:$0xff] %vm2618, %v2601
        %2623 = vst.msk [vmem:[#allocation2 + $0x20] sm:$0xff] %vm2618, %v2603
        %2624 = vst.msk [vmem:[#allocation2 + $0x28] sm:$0xff] %vm2618, %v2605
        %2625 = vst.msk [vmem:[#allocation2 + $0x30] sm:$0xff] %vm2618, %v2607
        %2626 = vst.msk [vmem:[#allocation2 + $0x38] sm:$0xff] %vm2618, %v2609
        %2627 = vrot.lane.b32.xlu0 %v861, 104
        %v2628 = vpop.permute.xlu0 %2627
        %2629 = vrot.lane.b32.xlu0 %v953, 104
        %v2630 = vpop.permute.xlu0 %2629
        %v2632 = vsel %vm1049, %v2628, 0
        %v2635 = vsel %vm1049, %v2630, 0
        %2637 = vmatprep.subr.bf16.mxu0 0
        %2638 = vmatpush1.bf16.xpose.msra.mxu0 %v2635
        %2639 = vmatprep.subr.bf16.mxu0 0
        %2640 = vmatpush1.bf16.xpose.msra.mxu0 0
        %2641 = vmatprep.subr.bf16.mxu0 0
        %2642 = vmatpush1.bf16.xpose.msra.mxu0 0
        %2643 = vmatprep.subr.bf16.mxu0 0
        %2644 = vmatpush1.bf16.xpose.msra.mxu0 0
        %2645 = vmatprep.subr.bf16.mxu0 0
        %2646 = vmatpush1.bf16.xpose.msra.mxu0 0
        %2647 = vmatprep.subr.bf16.mxu0 0
        %2648 = vmatpush1.bf16.xpose.msra.mxu0 0
        %2649 = vmatprep.subr.bf16.mxu0 0
        %2650 = vmatpush1.bf16.xpose.msra.mxu0 0
        %2651 = vmatprep.subr.bf16.mxu0 0
        %2652 = vmatpush1.bf16.xpose.msra.mxu0 0
        %2653 = vmatprep.subr.bf16.mxu0 0
        %2654 = vmatpush1.bf16.xpose.msra.mxu0 0
        %2655 = vmatprep.subr.bf16.mxu0 0
        %2656 = vmatpush1.bf16.xpose.msra.mxu0 0
        %2657 = vmatprep.subr.bf16.mxu0 0
        %2658 = vmatpush1.bf16.xpose.msra.mxu0 0
        %2659 = vmatprep.subr.bf16.mxu0 0
        %2660 = vmatpush1.bf16.xpose.msra.mxu0 0
        %2661 = vmatprep.subr.bf16.mxu0 0
        %2662 = vmatpush1.bf16.xpose.msra.mxu0 0
        %2663 = vmatprep.subr.bf16.mxu0 0
        %2664 = vmatpush1.bf16.xpose.msra.mxu0 0
        %2665 = vmatprep.subr.bf16.mxu0 0
        %2666 = vmatpush1.bf16.xpose.msra.mxu0 0
        %2667 = vmatprep.subr.bf16.mxu0 0
        %2668 = vmatpush1.bf16.xpose.msra.mxu0 0
        %2669 = vmatprep.mubr.bf16.mxu0 0
        %2670 = vmatmul.mubr.bf16.gmra.mrb[0].mxu0 %v2632
        %v2671 = vpop.f32.mrb[0].mxu0
        %v2672 = vadd.f32 0.0, %v2671
        %v2673 = vpop.f32.mrb[0].mxu0
        %v2674 = vpop.f32.mrb[0].mxu0
        %v2675 = vadd.f32 0.0, %v2674
        %v2676 = vpop.f32.mrb[0].mxu0
        %2677 = vdwg.mxu0
        %2678 = vrot.lane.b32.xlu0 %v862, 104
        %v2679 = vpop.permute.xlu0 %2678
        %2680 = vrot.lane.b32.xlu0 %v954, 104
        %v2681 = vpop.permute.xlu0 %2680
        %v2683 = vsel %vm1049, %v2679, 0
        %v2686 = vsel %vm1049, %v2681, 0
        %2688 = vmatprep.subr.bf16.mxu0 0
        %2689 = vmatpush1.bf16.xpose.msra.mxu0 %v2686
        %2690 = vmatprep.subr.bf16.mxu0 0
        %2691 = vmatpush1.bf16.xpose.msra.mxu0 0
        %2692 = vmatprep.subr.bf16.mxu0 0
        %2693 = vmatpush1.bf16.xpose.msra.mxu0 0
        %2694 = vmatprep.subr.bf16.mxu0 0
        %2695 = vmatpush1.bf16.xpose.msra.mxu0 0
        %2696 = vmatprep.subr.bf16.mxu0 0
        %2697 = vmatpush1.bf16.xpose.msra.mxu0 0
        %2698 = vmatprep.subr.bf16.mxu0 0
        %2699 = vmatpush1.bf16.xpose.msra.mxu0 0
        %2700 = vmatprep.subr.bf16.mxu0 0
        %2701 = vmatpush1.bf16.xpose.msra.mxu0 0
        %2702 = vmatprep.subr.bf16.mxu0 0
        %2703 = vmatpush1.bf16.xpose.msra.mxu0 0
        %2704 = vmatprep.subr.bf16.mxu0 0
        %2705 = vmatpush1.bf16.xpose.msra.mxu0 0
        %2706 = vmatprep.subr.bf16.mxu0 0
        %2707 = vmatpush1.bf16.xpose.msra.mxu0 0
        %2708 = vmatprep.subr.bf16.mxu0 0
        %2709 = vmatpush1.bf16.xpose.msra.mxu0 0
        %2710 = vmatprep.subr.bf16.mxu0 0
        %2711 = vmatpush1.bf16.xpose.msra.mxu0 0
        %2712 = vmatprep.subr.bf16.mxu0 0
        %2713 = vmatpush1.bf16.xpose.msra.mxu0 0
        %2714 = vmatprep.subr.bf16.mxu0 0
        %2715 = vmatpush1.bf16.xpose.msra.mxu0 0
        %2716 = vmatprep.subr.bf16.mxu0 0
        %2717 = vmatpush1.bf16.xpose.msra.mxu0 0
        %2718 = vmatprep.subr.bf16.mxu0 0
        %2719 = vmatpush1.bf16.xpose.msra.mxu0 0
        %2720 = vmatprep.mubr.bf16.mxu0 0
        %2721 = vmatmul.mubr.bf16.gmra.mrb[0].mxu0 %v2683
        %v2722 = vpop.f32.mrb[0].mxu0
        %v2723 = vadd.f32 0.0, %v2722
        %v2724 = vpop.f32.mrb[0].mxu0
        %v2725 = vpop.f32.mrb[0].mxu0
        %v2726 = vadd.f32 0.0, %v2725
        %v2727 = vpop.f32.mrb[0].mxu0
        %2728 = vdwg.mxu0
        %2729 = vrot.lane.b32.xlu0 %v863, 104
        %v2730 = vpop.permute.xlu0 %2729
        %2731 = vrot.lane.b32.xlu0 %v955, 104
        %v2732 = vpop.permute.xlu0 %2731
        %v2734 = vsel %vm1049, %v2730, 0
        %v2737 = vsel %vm1049, %v2732, 0
        %2739 = vmatprep.subr.bf16.mxu0 0
        %2740 = vmatpush1.bf16.xpose.msra.mxu0 %v2737
        %2741 = vmatprep.subr.bf16.mxu0 0
        %2742 = vmatpush1.bf16.xpose.msra.mxu0 0
        %2743 = vmatprep.subr.bf16.mxu0 0
        %2744 = vmatpush1.bf16.xpose.msra.mxu0 0
        %2745 = vmatprep.subr.bf16.mxu0 0
        %2746 = vmatpush1.bf16.xpose.msra.mxu0 0
        %2747 = vmatprep.subr.bf16.mxu0 0
        %2748 = vmatpush1.bf16.xpose.msra.mxu0 0
        %2749 = vmatprep.subr.bf16.mxu0 0
        %2750 = vmatpush1.bf16.xpose.msra.mxu0 0
        %2751 = vmatprep.subr.bf16.mxu0 0
        %2752 = vmatpush1.bf16.xpose.msra.mxu0 0
        %2753 = vmatprep.subr.bf16.mxu0 0
        %2754 = vmatpush1.bf16.xpose.msra.mxu0 0
        %2755 = vmatprep.subr.bf16.mxu0 0
        %2756 = vmatpush1.bf16.xpose.msra.mxu0 0
        %2757 = vmatprep.subr.bf16.mxu0 0
        %2758 = vmatpush1.bf16.xpose.msra.mxu0 0
        %2759 = vmatprep.subr.bf16.mxu0 0
        %2760 = vmatpush1.bf16.xpose.msra.mxu0 0
        %2761 = vmatprep.subr.bf16.mxu0 0
        %2762 = vmatpush1.bf16.xpose.msra.mxu0 0
        %2763 = vmatprep.subr.bf16.mxu0 0
        %2764 = vmatpush1.bf16.xpose.msra.mxu0 0
        %2765 = vmatprep.subr.bf16.mxu0 0
        %2766 = vmatpush1.bf16.xpose.msra.mxu0 0
        %2767 = vmatprep.subr.bf16.mxu0 0
        %2768 = vmatpush1.bf16.xpose.msra.mxu0 0
        %2769 = vmatprep.subr.bf16.mxu0 0
        %2770 = vmatpush1.bf16.xpose.msra.mxu0 0
        %2771 = vmatprep.mubr.bf16.mxu0 0
        %2772 = vmatmul.mubr.bf16.gmra.mrb[0].mxu0 %v2734
        %v2773 = vpop.f32.mrb[0].mxu0
        %v2774 = vadd.f32 0.0, %v2773
        %v2775 = vpop.f32.mrb[0].mxu0
        %v2776 = vpop.f32.mrb[0].mxu0
        %v2777 = vadd.f32 0.0, %v2776
        %v2778 = vpop.f32.mrb[0].mxu0
        %2779 = vdwg.mxu0
        %2780 = vrot.lane.b32.xlu0 %v864, 104
        %v2781 = vpop.permute.xlu0 %2780
        %2782 = vrot.lane.b32.xlu0 %v956, 104
        %v2783 = vpop.permute.xlu0 %2782
        %v2785 = vsel %vm1049, %v2781, 0
        %v2788 = vsel %vm1049, %v2783, 0
        %2790 = vmatprep.subr.bf16.mxu0 0
        %2791 = vmatpush1.bf16.xpose.msra.mxu0 %v2788
        %2792 = vmatprep.subr.bf16.mxu0 0
        %2793 = vmatpush1.bf16.xpose.msra.mxu0 0
        %2794 = vmatprep.subr.bf16.mxu0 0
        %2795 = vmatpush1.bf16.xpose.msra.mxu0 0
        %2796 = vmatprep.subr.bf16.mxu0 0
        %2797 = vmatpush1.bf16.xpose.msra.mxu0 0
        %2798 = vmatprep.subr.bf16.mxu0 0
        %2799 = vmatpush1.bf16.xpose.msra.mxu0 0
        %2800 = vmatprep.subr.bf16.mxu0 0
        %2801 = vmatpush1.bf16.xpose.msra.mxu0 0
        %2802 = vmatprep.subr.bf16.mxu0 0
        %2803 = vmatpush1.bf16.xpose.msra.mxu0 0
        %2804 = vmatprep.subr.bf16.mxu0 0
        %2805 = vmatpush1.bf16.xpose.msra.mxu0 0
        %2806 = vmatprep.subr.bf16.mxu0 0
        %2807 = vmatpush1.bf16.xpose.msra.mxu0 0
        %2808 = vmatprep.subr.bf16.mxu0 0
        %2809 = vmatpush1.bf16.xpose.msra.mxu0 0
        %2810 = vmatprep.subr.bf16.mxu0 0
        %2811 = vmatpush1.bf16.xpose.msra.mxu0 0
        %2812 = vmatprep.subr.bf16.mxu0 0
        %2813 = vmatpush1.bf16.xpose.msra.mxu0 0
        %2814 = vmatprep.subr.bf16.mxu0 0
        %2815 = vmatpush1.bf16.xpose.msra.mxu0 0
        %2816 = vmatprep.subr.bf16.mxu0 0
        %2817 = vmatpush1.bf16.xpose.msra.mxu0 0
        %2818 = vmatprep.subr.bf16.mxu0 0
        %2819 = vmatpush1.bf16.xpose.msra.mxu0 0
        %2820 = vmatprep.subr.bf16.mxu0 0
        %2821 = vmatpush1.bf16.xpose.msra.mxu0 0
        %2822 = vmatprep.mubr.bf16.mxu0 0
        %2823 = vmatmul.mubr.bf16.gmra.mrb[0].mxu0 %v2785
        %v2824 = vpop.f32.mrb[0].mxu0
        %v2825 = vadd.f32 0.0, %v2824
        %v2826 = vpop.f32.mrb[0].mxu0
        %v2827 = vpop.f32.mrb[0].mxu0
        %v2828 = vadd.f32 0.0, %v2827
        %v2829 = vpop.f32.mrb[0].mxu0
        %2830 = vdwg.mxu0
        %s2831 = scalar_lea.vmem [#allocation6], 192
        %v2832 = vld [vmem:[%s2831] sm:$0xff]
        %v2833 = vld [vmem:[%s2831 + $0x8] sm:$0xff]
        %v2834 = vld [vmem:[%s2831 + $0x10] sm:$0xff]
        %v2835 = vld [vmem:[%s2831 + $0x18] sm:$0xff]
        %v2836 = vld [vmem:[%s2831 + $0x20] sm:$0xff]
        %v2837 = vld [vmem:[%s2831 + $0x28] sm:$0xff]
        %v2838 = vld [vmem:[%s2831 + $0x30] sm:$0xff]
        %v2839 = vld [vmem:[%s2831 + $0x38] sm:$0xff]
        %v2840 = vadd.f32 %v2672, %v2832
        %v2841 = vadd.f32 %v2675, %v2833
        %v2842 = vadd.f32 %v2723, %v2834
        %v2843 = vadd.f32 %v2726, %v2835
        %v2844 = vadd.f32 %v2774, %v2836
        %v2845 = vadd.f32 %v2777, %v2837
        %v2846 = vadd.f32 %v2825, %v2838
        %v2847 = vadd.f32 %v2828, %v2839
        %v2848 = vsel %vm1254, %v2840, -inf
        %2849 = vmax.xlane.f32.xlu0 %v2848
        %v2850 = vpop.xlane.xlu0 %2849
        %v2851 = vsel %vm1254, %v2841, -inf
        %2852 = vmax.xlane.f32.xlu0 %v2851
        %v2853 = vpop.xlane.xlu0 %2852
        %v2854 = vsel %vm1254, %v2842, -inf
        %2855 = vmax.xlane.f32.xlu0 %v2854
        %v2856 = vpop.xlane.xlu0 %2855
        %v2857 = vsel %vm1254, %v2843, -inf
        %2858 = vmax.xlane.f32.xlu0 %v2857
        %v2859 = vpop.xlane.xlu0 %2858
        %v2860 = vsel %vm1254, %v2844, -inf
        %2861 = vmax.xlane.f32.xlu0 %v2860
        %v2862 = vpop.xlane.xlu0 %2861
        %v2863 = vsel %vm1254, %v2845, -inf
        %2864 = vmax.xlane.f32.xlu0 %v2863
        %v2865 = vpop.xlane.xlu0 %2864
        %v2866 = vsel %vm1254, %v2846, -inf
        %2867 = vmax.xlane.f32.xlu0 %v2866
        %v2868 = vpop.xlane.xlu0 %2867
        %v2869 = vsel %vm1254, %v2847, -inf
        %2870 = vmax.xlane.f32.xlu0 %v2869
        %v2871 = vpop.xlane.xlu0 %2870
        %v2872 = vsub.f32 %v2840, %v2850
        %v2873 = vsub.f32 %v2841, %v2853
        %v2874 = vsub.f32 %v2842, %v2856
        %v2875 = vsub.f32 %v2843, %v2859
        %v2876 = vsub.f32 %v2844, %v2862
        %v2877 = vsub.f32 %v2845, %v2865
        %v2878 = vsub.f32 %v2846, %v2868
        %v2879 = vsub.f32 %v2847, %v2871
        %v2880 = vmul.f32 %v2872, 1.442695
        %v2881 = vpow.pop %v2880
        %v2882 = vmul.f32 %v2873, 1.442695
        %v2883 = vpow.pop %v2882
        %v2884 = vmul.f32 %v2874, 1.442695
        %v2885 = vpow.pop %v2884
        %v2886 = vmul.f32 %v2875, 1.442695
        %v2887 = vpow.pop %v2886
        %v2888 = vmul.f32 %v2876, 1.442695
        %v2889 = vpow.pop %v2888
        %v2890 = vmul.f32 %v2877, 1.442695
        %v2891 = vpow.pop %v2890
        %v2892 = vmul.f32 %v2878, 1.442695
        %v2893 = vpow.pop %v2892
        %v2894 = vmul.f32 %v2879, 1.442695
        %v2895 = vpow.pop %v2894
        %v2896 = vsel %vm1254, %v2881, 0.0
        %2897 = vadd.xlane.f32.xlu0 %v2896
        %v2898 = vpop.xlane.xlu0 %2897
        %v2899 = vsel %vm1254, %v2883, 0.0
        %2900 = vadd.xlane.f32.xlu0 %v2899
        %v2901 = vpop.xlane.xlu0 %2900
        %v2902 = vsel %vm1254, %v2885, 0.0
        %2903 = vadd.xlane.f32.xlu0 %v2902
        %v2904 = vpop.xlane.xlu0 %2903
        %v2905 = vsel %vm1254, %v2887, 0.0
        %2906 = vadd.xlane.f32.xlu0 %v2905
        %v2907 = vpop.xlane.xlu0 %2906
        %v2908 = vsel %vm1254, %v2889, 0.0
        %2909 = vadd.xlane.f32.xlu0 %v2908
        %v2910 = vpop.xlane.xlu0 %2909
        %v2911 = vsel %vm1254, %v2891, 0.0
        %2912 = vadd.xlane.f32.xlu0 %v2911
        %v2913 = vpop.xlane.xlu0 %2912
        %v2914 = vsel %vm1254, %v2893, 0.0
        %2915 = vadd.xlane.f32.xlu0 %v2914
        %v2916 = vpop.xlane.xlu0 %2915
        %v2917 = vsel %vm1254, %v2895, 0.0
        %2918 = vadd.xlane.f32.xlu0 %v2917
        %v2919 = vpop.xlane.xlu0 %2918
        %v2920 = vrcp.pop %v2898
        %v2921 = vrcp.pop %v2901
        %v2922 = vrcp.pop %v2904
        %v2923 = vrcp.pop %v2907
        %v2924 = vrcp.pop %v2910
        %v2925 = vrcp.pop %v2913
        %v2926 = vrcp.pop %v2916
        %v2927 = vrcp.pop %v2919
        %v2928 = vmul.f32 %v2881, %v2920
        %v2929 = vmul.f32 %v2883, %v2921
        %v2930 = vmul.f32 %v2885, %v2922
        %v2931 = vmul.f32 %v2887, %v2923
        %v2932 = vmul.f32 %v2889, %v2924
        %v2933 = vmul.f32 %v2891, %v2925
        %v2934 = vmul.f32 %v2893, %v2926
        %v2935 = vmul.f32 %v2895, %v2927
        %v2936 = vpack.c.bf16 %v2929, %v2928
        %v2937 = vpack.c.bf16 %v2931, %v2930
        %v2938 = vpack.c.bf16 %v2933, %v2932
        %v2939 = vpack.c.bf16 %v2935, %v2934
        %2940 = vrot.lane.b32.xlu0 %v1045, 104
        %v2941 = vpop.permute.xlu0 %2940
        %v2944 = vsel %vm1254, %v2936, 0
        %2946 = vmatprep.subr.bf16.mxu0 0
        %2947 = vmatpush1.bf16.msra.mxu0 %v2941
        %2948 = vmatprep.subr.bf16.mxu0 0
        %2949 = vmatpush1.bf16.msra.mxu0 0
        %2950 = vmatprep.subr.bf16.mxu0 0
        %2951 = vmatpush1.bf16.msra.mxu0 0
        %2952 = vmatprep.subr.bf16.mxu0 0
        %2953 = vmatpush1.bf16.msra.mxu0 0
        %2954 = vmatprep.subr.bf16.mxu0 0
        %2955 = vmatpush1.bf16.msra.mxu0 0
        %2956 = vmatprep.subr.bf16.mxu0 0
        %2957 = vmatpush1.bf16.msra.mxu0 0
        %2958 = vmatprep.subr.bf16.mxu0 0
        %2959 = vmatpush1.bf16.msra.mxu0 0
        %2960 = vmatprep.subr.bf16.mxu0 0
        %2961 = vmatpush1.bf16.msra.mxu0 0
        %2962 = vmatprep.subr.bf16.mxu0 0
        %2963 = vmatpush1.bf16.msra.mxu0 0
        %2964 = vmatprep.subr.bf16.mxu0 0
        %2965 = vmatpush1.bf16.msra.mxu0 0
        %2966 = vmatprep.subr.bf16.mxu0 0
        %2967 = vmatpush1.bf16.msra.mxu0 0
        %2968 = vmatprep.subr.bf16.mxu0 0
        %2969 = vmatpush1.bf16.msra.mxu0 0
        %2970 = vmatprep.subr.bf16.mxu0 0
        %2971 = vmatpush1.bf16.msra.mxu0 0
        %2972 = vmatprep.subr.bf16.mxu0 0
        %2973 = vmatpush1.bf16.msra.mxu0 0
        %2974 = vmatprep.subr.bf16.mxu0 0
        %2975 = vmatpush1.bf16.msra.mxu0 0
        %2976 = vmatprep.subr.bf16.mxu0 0
        %2977 = vmatpush1.bf16.msra.mxu0 0
        %2978 = vmatprep.mubr.bf16.mxu0 0
        %2979 = vmatmul.mubr.bf16.gmra.mrb[0].mxu0 %v2944
        %v2980 = vpop.f32.mrb[0].mxu0
        %v2981 = vadd.f32 0.0, %v2980
        %v2982 = vpop.f32.mrb[0].mxu0
        %v2983 = vpop.f32.mrb[0].mxu0
        %v2984 = vadd.f32 0.0, %v2983
        %v2985 = vpop.f32.mrb[0].mxu0
        %2986 = vdwg.mxu0
        %2987 = vrot.lane.b32.xlu0 %v1046, 104
        %v2988 = vpop.permute.xlu0 %2987
        %v2991 = vsel %vm1254, %v2937, 0
        %2993 = vmatprep.subr.bf16.mxu0 0
        %2994 = vmatpush1.bf16.msra.mxu0 %v2988
        %2995 = vmatprep.subr.bf16.mxu0 0
        %2996 = vmatpush1.bf16.msra.mxu0 0
        %2997 = vmatprep.subr.bf16.mxu0 0
        %2998 = vmatpush1.bf16.msra.mxu0 0
        %2999 = vmatprep.subr.bf16.mxu0 0
        %3000 = vmatpush1.bf16.msra.mxu0 0
        %3001 = vmatprep.subr.bf16.mxu0 0
        %3002 = vmatpush1.bf16.msra.mxu0 0
        %3003 = vmatprep.subr.bf16.mxu0 0
        %3004 = vmatpush1.bf16.msra.mxu0 0
        %3005 = vmatprep.subr.bf16.mxu0 0
        %3006 = vmatpush1.bf16.msra.mxu0 0
        %3007 = vmatprep.subr.bf16.mxu0 0
        %3008 = vmatpush1.bf16.msra.mxu0 0
        %3009 = vmatprep.subr.bf16.mxu0 0
        %3010 = vmatpush1.bf16.msra.mxu0 0
        %3011 = vmatprep.subr.bf16.mxu0 0
        %3012 = vmatpush1.bf16.msra.mxu0 0
        %3013 = vmatprep.subr.bf16.mxu0 0
        %3014 = vmatpush1.bf16.msra.mxu0 0
        %3015 = vmatprep.subr.bf16.mxu0 0
        %3016 = vmatpush1.bf16.msra.mxu0 0
        %3017 = vmatprep.subr.bf16.mxu0 0
        %3018 = vmatpush1.bf16.msra.mxu0 0
        %3019 = vmatprep.subr.bf16.mxu0 0
        %3020 = vmatpush1.bf16.msra.mxu0 0
        %3021 = vmatprep.subr.bf16.mxu0 0
        %3022 = vmatpush1.bf16.msra.mxu0 0
        %3023 = vmatprep.subr.bf16.mxu0 0
        %3024 = vmatpush1.bf16.msra.mxu0 0
        %3025 = vmatprep.mubr.bf16.mxu0 0
        %3026 = vmatmul.mubr.bf16.gmra.mrb[0].mxu0 %v2991
        %v3027 = vpop.f32.mrb[0].mxu0
        %v3028 = vadd.f32 0.0, %v3027
        %v3029 = vpop.f32.mrb[0].mxu0
        %v3030 = vpop.f32.mrb[0].mxu0
        %v3031 = vadd.f32 0.0, %v3030
        %v3032 = vpop.f32.mrb[0].mxu0
        %3033 = vdwg.mxu0
        %3034 = vrot.lane.b32.xlu0 %v1047, 104
        %v3035 = vpop.permute.xlu0 %3034
        %v3038 = vsel %vm1254, %v2938, 0
        %3040 = vmatprep.subr.bf16.mxu0 0
        %3041 = vmatpush1.bf16.msra.mxu0 %v3035
        %3042 = vmatprep.subr.bf16.mxu0 0
        %3043 = vmatpush1.bf16.msra.mxu0 0
        %3044 = vmatprep.subr.bf16.mxu0 0
        %3045 = vmatpush1.bf16.msra.mxu0 0
        %3046 = vmatprep.subr.bf16.mxu0 0
        %3047 = vmatpush1.bf16.msra.mxu0 0
        %3048 = vmatprep.subr.bf16.mxu0 0
        %3049 = vmatpush1.bf16.msra.mxu0 0
        %3050 = vmatprep.subr.bf16.mxu0 0
        %3051 = vmatpush1.bf16.msra.mxu0 0
        %3052 = vmatprep.subr.bf16.mxu0 0
        %3053 = vmatpush1.bf16.msra.mxu0 0
        %3054 = vmatprep.subr.bf16.mxu0 0
        %3055 = vmatpush1.bf16.msra.mxu0 0
        %3056 = vmatprep.subr.bf16.mxu0 0
        %3057 = vmatpush1.bf16.msra.mxu0 0
        %3058 = vmatprep.subr.bf16.mxu0 0
        %3059 = vmatpush1.bf16.msra.mxu0 0
        %3060 = vmatprep.subr.bf16.mxu0 0
        %3061 = vmatpush1.bf16.msra.mxu0 0
        %3062 = vmatprep.subr.bf16.mxu0 0
        %3063 = vmatpush1.bf16.msra.mxu0 0
        %3064 = vmatprep.subr.bf16.mxu0 0
        %3065 = vmatpush1.bf16.msra.mxu0 0
        %3066 = vmatprep.subr.bf16.mxu0 0
        %3067 = vmatpush1.bf16.msra.mxu0 0
        %3068 = vmatprep.subr.bf16.mxu0 0
        %3069 = vmatpush1.bf16.msra.mxu0 0
        %3070 = vmatprep.subr.bf16.mxu0 0
        %3071 = vmatpush1.bf16.msra.mxu0 0
        %3072 = vmatprep.mubr.bf16.mxu0 0
        %3073 = vmatmul.mubr.bf16.gmra.mrb[0].mxu0 %v3038
        %v3074 = vpop.f32.mrb[0].mxu0
        %v3075 = vadd.f32 0.0, %v3074
        %v3076 = vpop.f32.mrb[0].mxu0
        %v3077 = vpop.f32.mrb[0].mxu0
        %v3078 = vadd.f32 0.0, %v3077
        %v3079 = vpop.f32.mrb[0].mxu0
        %3080 = vdwg.mxu0
        %3081 = vrot.lane.b32.xlu0 %v1048, 104
        %v3082 = vpop.permute.xlu0 %3081
        %v3085 = vsel %vm1254, %v2939, 0
        %3087 = vmatprep.subr.bf16.mxu0 0
        %3088 = vmatpush1.bf16.msra.mxu0 %v3082
        %3089 = vmatprep.subr.bf16.mxu0 0
        %3090 = vmatpush1.bf16.msra.mxu0 0
        %3091 = vmatprep.subr.bf16.mxu0 0
        %3092 = vmatpush1.bf16.msra.mxu0 0
        %3093 = vmatprep.subr.bf16.mxu0 0
        %3094 = vmatpush1.bf16.msra.mxu0 0
        %3095 = vmatprep.subr.bf16.mxu0 0
        %3096 = vmatpush1.bf16.msra.mxu0 0
        %3097 = vmatprep.subr.bf16.mxu0 0
        %3098 = vmatpush1.bf16.msra.mxu0 0
        %3099 = vmatprep.subr.bf16.mxu0 0
        %3100 = vmatpush1.bf16.msra.mxu0 0
        %3101 = vmatprep.subr.bf16.mxu0 0
        %3102 = vmatpush1.bf16.msra.mxu0 0
        %3103 = vmatprep.subr.bf16.mxu0 0
        %3104 = vmatpush1.bf16.msra.mxu0 0
        %3105 = vmatprep.subr.bf16.mxu0 0
        %3106 = vmatpush1.bf16.msra.mxu0 0
        %3107 = vmatprep.subr.bf16.mxu0 0
        %3108 = vmatpush1.bf16.msra.mxu0 0
        %3109 = vmatprep.subr.bf16.mxu0 0
        %3110 = vmatpush1.bf16.msra.mxu0 0
        %3111 = vmatprep.subr.bf16.mxu0 0
        %3112 = vmatpush1.bf16.msra.mxu0 0
        %3113 = vmatprep.subr.bf16.mxu0 0
        %3114 = vmatpush1.bf16.msra.mxu0 0
        %3115 = vmatprep.subr.bf16.mxu0 0
        %3116 = vmatpush1.bf16.msra.mxu0 0
        %3117 = vmatprep.subr.bf16.mxu0 0
        %3118 = vmatpush1.bf16.msra.mxu0 0
        %3119 = vmatprep.mubr.bf16.mxu0 0
        %3120 = vmatmul.mubr.bf16.gmra.mrb[0].mxu0 %v3085
        %v3121 = vpop.f32.mrb[0].mxu0
        %v3122 = vadd.f32 0.0, %v3121
        %v3123 = vpop.f32.mrb[0].mxu0
        %v3124 = vpop.f32.mrb[0].mxu0
        %v3125 = vadd.f32 0.0, %v3124
        %v3126 = vpop.f32.mrb[0].mxu0
        %3127 = vdwg.mxu0
        %3136 = vrot.lane.b32.xlu0 %v2981, 24
        %v3137 = vpop.permute.xlu0 %3136
        %3138 = vrot.lane.b32.xlu0 %v2984, 24
        %v3139 = vpop.permute.xlu0 %3138
        %3140 = vrot.lane.b32.xlu0 %v3028, 24
        %v3141 = vpop.permute.xlu0 %3140
        %3142 = vrot.lane.b32.xlu0 %v3031, 24
        %v3143 = vpop.permute.xlu0 %3142
        %3144 = vrot.lane.b32.xlu0 %v3075, 24
        %v3145 = vpop.permute.xlu0 %3144
        %3146 = vrot.lane.b32.xlu0 %v3078, 24
        %v3147 = vpop.permute.xlu0 %3146
        %3148 = vrot.lane.b32.xlu0 %v3122, 24
        %v3149 = vpop.permute.xlu0 %3148
        %3150 = vrot.lane.b32.xlu0 %v3125, 24
        %v3151 = vpop.permute.xlu0 %3150
        %vm3160 = vcmask 261312
        %3161 = vst.msk [vmem:[#allocation2] sm:$0xff] %vm3160, %v3137
        %3162 = vst.msk [vmem:[#allocation2 + $0x8] sm:$0xff] %vm3160, %v3139
        %3163 = vst.msk [vmem:[#allocation2 + $0x10] sm:$0xff] %vm3160, %v3141
        %3164 = vst.msk [vmem:[#allocation2 + $0x18] sm:$0xff] %vm3160, %v3143
        %3165 = vst.msk [vmem:[#allocation2 + $0x20] sm:$0xff] %vm3160, %v3145
        %3166 = vst.msk [vmem:[#allocation2 + $0x28] sm:$0xff] %vm3160, %v3147
        %3167 = vst.msk [vmem:[#allocation2 + $0x30] sm:$0xff] %vm3160, %v3149
        %3168 = vst.msk [vmem:[#allocation2 + $0x38] sm:$0xff] %vm3160, %v3151
        %v3169 = vld [vmem:[#allocation2] sm:$0xff]
        %v3170 = vld [vmem:[#allocation2 + $0x8] sm:$0xff]
        %v3171 = vld [vmem:[#allocation2 + $0x10] sm:$0xff]
        %v3172 = vld [vmem:[#allocation2 + $0x18] sm:$0xff]
        %v3173 = vld [vmem:[#allocation2 + $0x20] sm:$0xff]
        %v3174 = vld [vmem:[#allocation2 + $0x28] sm:$0xff]
        %v3175 = vld [vmem:[#allocation2 + $0x30] sm:$0xff]
        %v3176 = vld [vmem:[#allocation2 + $0x38] sm:$0xff]
        %v3177 = vpack.c.bf16 %v3170, %v3169
        %v3178 = vpack.c.bf16 %v3172, %v3171
        %v3179 = vpack.c.bf16 %v3174, %v3173
        %v3180 = vpack.c.bf16 %v3176, %v3175
        %v3181 = vld [vmem:[%s9] sm:$0xf]
        %v3182 = vld [vmem:[%s9 + $0x4] sm:$0xf]
        %v3183 = vld [vmem:[%s9 + $0x8] sm:$0xf]
        %v3184 = vld [vmem:[%s9 + $0xc] sm:$0xf]
        %v3185 = vld [vmem:[%s10] sm:$0x1]
        %v3187 = vlaneseq
        %v3188 = vshrl.u32 %v3187, 7
        %v3189 = vsub.s32 0, %v3188
        %v3190 = vrot.slane %v3185, %v3189
        %v3196 = vunpack.c.l.b16 %v3181
        %v3197 = vunpack.c.l.b16 %v3182
        %v3198 = vunpack.c.l.b16 %v3183
        %v3199 = vunpack.c.l.b16 %v3184
        %v3200 = vpack.c.b16 %v3197, %v3196
        %v3201 = vpack.c.b16 %v3199, %v3198
        %v3205 = vsel %vm623, %v3177, 0
        %v3208 = vsel %vm623, %v3178, 0
        %v3211 = vsel %vm623, %v3179, 0
        %v3214 = vsel %vm623, %v3180, 0
        %3216 = vmatprep.subr.bf16.mxu0 0
        %3217 = vmatpush1.bf16.msra.mxu0 %v3200
        %3218 = vmatprep.subr.bf16.mxu0 0
        %3219 = vmatpush1.bf16.msra.mxu0 %v3201
        %3220 = vmatprep.subr.bf16.mxu0 0
        %3221 = vmatpush1.bf16.msra.mxu0 0
        %3222 = vmatprep.subr.bf16.mxu0 0
        %3223 = vmatpush1.bf16.msra.mxu0 0
        %3224 = vmatprep.subr.bf16.mxu0 0
        %3225 = vmatpush1.bf16.msra.mxu0 0
        %3226 = vmatprep.subr.bf16.mxu0 0
        %3227 = vmatpush1.bf16.msra.mxu0 0
        %3228 = vmatprep.subr.bf16.mxu0 0
        %3229 = vmatpush1.bf16.msra.mxu0 0
        %3230 = vmatprep.subr.bf16.mxu0 0
        %3231 = vmatpush1.bf16.msra.mxu0 0
        %3232 = vmatprep.subr.bf16.mxu0 0
        %3233 = vmatpush1.bf16.msra.mxu0 0
        %3234 = vmatprep.subr.bf16.mxu0 0
        %3235 = vmatpush1.bf16.msra.mxu0 0
        %3236 = vmatprep.subr.bf16.mxu0 0
        %3237 = vmatpush1.bf16.msra.mxu0 0
        %3238 = vmatprep.subr.bf16.mxu0 0
        %3239 = vmatpush1.bf16.msra.mxu0 0
        %3240 = vmatprep.subr.bf16.mxu0 0
        %3241 = vmatpush1.bf16.msra.mxu0 0
        %3242 = vmatprep.subr.bf16.mxu0 0
        %3243 = vmatpush1.bf16.msra.mxu0 0
        %3244 = vmatprep.subr.bf16.mxu0 0
        %3245 = vmatpush1.bf16.msra.mxu0 0
        %3246 = vmatprep.subr.bf16.mxu0 0
        %3247 = vmatpush1.bf16.msra.mxu0 0
        %3248 = vmatprep.mubr.bf16.mxu0 0
        %3249 = vmatmul.mubr.bf16.gmra.mrb[0].mxu0 %v3205
        %v3250 = vpop.f32.mrb[0].mxu0
        %v3251 = vadd.f32 %v3190, %v3250
        %v3252 = vpop.f32.mrb[0].mxu0
        %v3253 = vpop.f32.mrb[0].mxu0
        %v3254 = vadd.f32 %v3190, %v3253
        %v3255 = vpop.f32.mrb[0].mxu0
        %3256 = vmatprep.mubr.bf16.mxu0 0
        %3257 = vmatmul.mubr.bf16.gmra.mrb[0].mxu0 %v3208
        %v3258 = vpop.f32.mrb[0].mxu0
        %v3259 = vadd.f32 %v3190, %v3258
        %v3260 = vpop.f32.mrb[0].mxu0
        %v3261 = vpop.f32.mrb[0].mxu0
        %v3262 = vadd.f32 %v3190, %v3261
        %v3263 = vpop.f32.mrb[0].mxu0
        %3264 = vmatprep.mubr.bf16.mxu0 0
        %3265 = vmatmul.mubr.bf16.gmra.mrb[0].mxu0 %v3211
        %v3266 = vpop.f32.mrb[0].mxu0
        %v3267 = vadd.f32 %v3190, %v3266
        %v3268 = vpop.f32.mrb[0].mxu0
        %v3269 = vpop.f32.mrb[0].mxu0
        %v3270 = vadd.f32 %v3190, %v3269
        %v3271 = vpop.f32.mrb[0].mxu0
        %3272 = vmatprep.mubr.bf16.mxu0 0
        %3273 = vmatmul.mubr.bf16.gmra.mrb[0].mxu0 %v3214
        %v3274 = vpop.f32.mrb[0].mxu0
        %v3275 = vadd.f32 %v3190, %v3274
        %v3276 = vpop.f32.mrb[0].mxu0
        %v3277 = vpop.f32.mrb[0].mxu0
        %v3278 = vadd.f32 %v3190, %v3277
        %v3279 = vpop.f32.mrb[0].mxu0
        %3280 = vdwg.mxu0
        %v3281 = vadd.f32 %v613, %v3251
        %v3282 = vadd.f32 %v614, %v3254
        %v3283 = vadd.f32 %v615, %v3259
        %v3284 = vadd.f32 %v616, %v3262
        %v3285 = vadd.f32 %v617, %v3267
        %v3286 = vadd.f32 %v618, %v3270
        %v3287 = vadd.f32 %v619, %v3275
        %v3288 = vadd.f32 %v620, %v3278
        %v3289 = vld [vmem:[%s12] sm:$0x1]
        %v3290 = vld [vmem:[%s13] sm:$0x1]
        %v3291 = vsel %vm623, %v3281, 0.0
        %3292 = vadd.xlane.f32.xlu0 %v3291
        %v3293 = vpop.xlane.xlu0 %3292
        %v3294 = vsel %vm623, %v3282, 0.0
        %3295 = vadd.xlane.f32.xlu0 %v3294
        %v3296 = vpop.xlane.xlu0 %3295
        %v3297 = vsel %vm623, %v3283, 0.0
        %3298 = vadd.xlane.f32.xlu0 %v3297
        %v3299 = vpop.xlane.xlu0 %3298
        %v3300 = vsel %vm623, %v3284, 0.0
        %3301 = vadd.xlane.f32.xlu0 %v3300
        %v3302 = vpop.xlane.xlu0 %3301
        %v3303 = vsel %vm623, %v3285, 0.0
        %3304 = vadd.xlane.f32.xlu0 %v3303
        %v3305 = vpop.xlane.xlu0 %3304
        %v3306 = vsel %vm623, %v3286, 0.0
        %3307 = vadd.xlane.f32.xlu0 %v3306
        %v3308 = vpop.xlane.xlu0 %3307
        %v3309 = vsel %vm623, %v3287, 0.0
        %3310 = vadd.xlane.f32.xlu0 %v3309
        %v3311 = vpop.xlane.xlu0 %3310
        %v3312 = vsel %vm623, %v3288, 0.0
        %3313 = vadd.xlane.f32.xlu0 %v3312
        %v3314 = vpop.xlane.xlu0 %3313
        %v3315 = vmul.f32 %v3293, %v648
        %v3316 = vmul.f32 %v3296, %v648
        %v3317 = vmul.f32 %v3299, %v648
        %v3318 = vmul.f32 %v3302, %v648
        %v3319 = vmul.f32 %v3305, %v648
        %v3320 = vmul.f32 %v3308, %v648
        %v3321 = vmul.f32 %v3311, %v648
        %v3322 = vmul.f32 %v3314, %v648
        %v3323 = vsub.f32 %v3281, %v3315
        %v3324 = vsub.f32 %v3282, %v3316
        %v3325 = vsub.f32 %v3283, %v3317
        %v3326 = vsub.f32 %v3284, %v3318
        %v3327 = vsub.f32 %v3285, %v3319
        %v3328 = vsub.f32 %v3286, %v3320
        %v3329 = vsub.f32 %v3287, %v3321
        %v3330 = vsub.f32 %v3288, %v3322
        %v3331 = vmul.f32 %v3323, %v3323
        %v3332 = vmul.f32 %v3324, %v3324
        %v3333 = vmul.f32 %v3325, %v3325
        %v3334 = vmul.f32 %v3326, %v3326
        %v3335 = vmul.f32 %v3327, %v3327
        %v3336 = vmul.f32 %v3328, %v3328
        %v3337 = vmul.f32 %v3329, %v3329
        %v3338 = vmul.f32 %v3330, %v3330
        %v3339 = vsel %vm623, %v3331, 0.0
        %3340 = vadd.xlane.f32.xlu0 %v3339
        %v3341 = vpop.xlane.xlu0 %3340
        %v3342 = vsel %vm623, %v3332, 0.0
        %3343 = vadd.xlane.f32.xlu0 %v3342
        %v3344 = vpop.xlane.xlu0 %3343
        %v3345 = vsel %vm623, %v3333, 0.0
        %3346 = vadd.xlane.f32.xlu0 %v3345
        %v3347 = vpop.xlane.xlu0 %3346
        %v3348 = vsel %vm623, %v3334, 0.0
        %3349 = vadd.xlane.f32.xlu0 %v3348
        %v3350 = vpop.xlane.xlu0 %3349
        %v3351 = vsel %vm623, %v3335, 0.0
        %3352 = vadd.xlane.f32.xlu0 %v3351
        %v3353 = vpop.xlane.xlu0 %3352
        %v3354 = vsel %vm623, %v3336, 0.0
        %3355 = vadd.xlane.f32.xlu0 %v3354
        %v3356 = vpop.xlane.xlu0 %3355
        %v3357 = vsel %vm623, %v3337, 0.0
        %3358 = vadd.xlane.f32.xlu0 %v3357
        %v3359 = vpop.xlane.xlu0 %3358
        %v3360 = vsel %vm623, %v3338, 0.0
        %3361 = vadd.xlane.f32.xlu0 %v3360
        %v3362 = vpop.xlane.xlu0 %3361
        %v3363 = vmul.f32 %v3341, %v648
        %v3364 = vmul.f32 %v3344, %v648
        %v3365 = vmul.f32 %v3347, %v648
        %v3366 = vmul.f32 %v3350, %v648
        %v3367 = vmul.f32 %v3353, %v648
        %v3368 = vmul.f32 %v3356, %v648
        %v3369 = vmul.f32 %v3359, %v648
        %v3370 = vmul.f32 %v3362, %v648
        %v3371 = vadd.f32 %v3363, 1e-05
        %v3372 = vadd.f32 %v3364, 1e-05
        %v3373 = vadd.f32 %v3365, 1e-05
        %v3374 = vadd.f32 %v3366, 1e-05
        %v3375 = vadd.f32 %v3367, 1e-05
        %v3376 = vadd.f32 %v3368, 1e-05
        %v3377 = vadd.f32 %v3369, 1e-05
        %v3378 = vadd.f32 %v3370, 1e-05
        %v3379 = vrsqrt.pop %v3371
        %v3380 = vrsqrt.pop %v3372
        %v3381 = vrsqrt.pop %v3373
        %v3382 = vrsqrt.pop %v3374
        %v3383 = vrsqrt.pop %v3375
        %v3384 = vrsqrt.pop %v3376
        %v3385 = vrsqrt.pop %v3377
        %v3386 = vrsqrt.pop %v3378
        %v3387 = vmul.f32 %v3323, %v3379
        %v3388 = vmul.f32 %v3324, %v3380
        %v3389 = vmul.f32 %v3325, %v3381
        %v3390 = vmul.f32 %v3326, %v3382
        %v3391 = vmul.f32 %v3327, %v3383
        %v3392 = vmul.f32 %v3328, %v3384
        %v3393 = vmul.f32 %v3329, %v3385
        %v3394 = vmul.f32 %v3330, %v3386
        %v3396 = vlaneseq
        %v3397 = vshrl.u32 %v3396, 7
        %v3398 = vsub.s32 0, %v3397
        %v3399 = vrot.slane %v3289, %v3398
        %v3401 = vmul.f32 %v3387, %v3399
        %v3402 = vmul.f32 %v3388, %v3399
        %v3403 = vmul.f32 %v3389, %v3399
        %v3404 = vmul.f32 %v3390, %v3399
        %v3405 = vmul.f32 %v3391, %v3399
        %v3406 = vmul.f32 %v3392, %v3399
        %v3407 = vmul.f32 %v3393, %v3399
        %v3408 = vmul.f32 %v3394, %v3399
        %v3410 = vlaneseq
        %v3411 = vshrl.u32 %v3410, 7
        %v3412 = vsub.s32 0, %v3411
        %v3413 = vrot.slane %v3290, %v3412
        %v3415 = vadd.f32 %v3401, %v3413
        %v3416 = vadd.f32 %v3402, %v3413
        %v3417 = vadd.f32 %v3403, %v3413
        %v3418 = vadd.f32 %v3404, %v3413
        %v3419 = vadd.f32 %v3405, %v3413
        %v3420 = vadd.f32 %v3406, %v3413
        %v3421 = vadd.f32 %v3407, %v3413
        %v3422 = vadd.f32 %v3408, %v3413
        %v3423 = vpack.c.bf16 %v3416, %v3415
        %v3424 = vpack.c.bf16 %v3418, %v3417
        %v3425 = vpack.c.bf16 %v3420, %v3419
        %v3426 = vpack.c.bf16 %v3422, %v3421
        %v3427 = vld [vmem:[%s14] sm:$0xf]
        %v3428 = vld [vmem:[%s14 + $0x4] sm:$0xf]
        %v3429 = vld [vmem:[%s14 + $0x8] sm:$0xf]
        %v3430 = vld [vmem:[%s14 + $0xc] sm:$0xf]
        %v3431 = vld [vmem:[%s15] sm:$0x1]
        %v3433 = vlaneseq
        %v3434 = vshrl.u32 %v3433, 7
        %v3435 = vsub.s32 0, %v3434
        %v3436 = vrot.slane %v3431, %v3435
        %v3442 = vunpack.c.l.b16 %v3427
        %v3443 = vunpack.c.l.b16 %v3428
        %v3444 = vunpack.c.l.b16 %v3429
        %v3445 = vunpack.c.l.b16 %v3430
        %v3446 = vpack.c.b16 %v3443, %v3442
        %v3447 = vpack.c.b16 %v3445, %v3444
        %v3451 = vsel %vm623, %v3423, 0
        %v3454 = vsel %vm623, %v3424, 0
        %v3457 = vsel %vm623, %v3425, 0
        %v3460 = vsel %vm623, %v3426, 0
        %3462 = vmatprep.subr.bf16.mxu0 0
        %3463 = vmatpush1.bf16.msra.mxu0 %v3446
        %3464 = vmatprep.subr.bf16.mxu0 0
        %3465 = vmatpush1.bf16.msra.mxu0 %v3447
        %3466 = vmatprep.subr.bf16.mxu0 0
        %3467 = vmatpush1.bf16.msra.mxu0 0
        %3468 = vmatprep.subr.bf16.mxu0 0
        %3469 = vmatpush1.bf16.msra.mxu0 0
        %3470 = vmatprep.subr.bf16.mxu0 0
        %3471 = vmatpush1.bf16.msra.mxu0 0
        %3472 = vmatprep.subr.bf16.mxu0 0
        %3473 = vmatpush1.bf16.msra.mxu0 0
        %3474 = vmatprep.subr.bf16.mxu0 0
        %3475 = vmatpush1.bf16.msra.mxu0 0
        %3476 = vmatprep.subr.bf16.mxu0 0
        %3477 = vmatpush1.bf16.msra.mxu0 0
        %3478 = vmatprep.subr.bf16.mxu0 0
        %3479 = vmatpush1.bf16.msra.mxu0 0
        %3480 = vmatprep.subr.bf16.mxu0 0
        %3481 = vmatpush1.bf16.msra.mxu0 0
        %3482 = vmatprep.subr.bf16.mxu0 0
        %3483 = vmatpush1.bf16.msra.mxu0 0
        %3484 = vmatprep.subr.bf16.mxu0 0
        %3485 = vmatpush1.bf16.msra.mxu0 0
        %3486 = vmatprep.subr.bf16.mxu0 0
        %3487 = vmatpush1.bf16.msra.mxu0 0
        %3488 = vmatprep.subr.bf16.mxu0 0
        %3489 = vmatpush1.bf16.msra.mxu0 0
        %3490 = vmatprep.subr.bf16.mxu0 0
        %3491 = vmatpush1.bf16.msra.mxu0 0
        %3492 = vmatprep.subr.bf16.mxu0 0
        %3493 = vmatpush1.bf16.msra.mxu0 0
        %3494 = vmatprep.mubr.bf16.mxu0 0
        %3495 = vmatmul.mubr.bf16.gmra.mrb[0].mxu0 %v3451
        %v3496 = vpop.f32.mrb[0].mxu0
        %v3497 = vadd.f32 %v3436, %v3496
        %v3498 = vpop.f32.mrb[0].mxu0
        %v3499 = vpop.f32.mrb[0].mxu0
        %v3500 = vadd.f32 %v3436, %v3499
        %v3501 = vpop.f32.mrb[0].mxu0
        %3502 = vmatprep.mubr.bf16.mxu0 0
        %3503 = vmatmul.mubr.bf16.gmra.mrb[0].mxu0 %v3454
        %v3504 = vpop.f32.mrb[0].mxu0
        %v3505 = vadd.f32 %v3436, %v3504
        %v3506 = vpop.f32.mrb[0].mxu0
        %v3507 = vpop.f32.mrb[0].mxu0
        %v3508 = vadd.f32 %v3436, %v3507
        %v3509 = vpop.f32.mrb[0].mxu0
        %3510 = vmatprep.mubr.bf16.mxu0 0
        %3511 = vmatmul.mubr.bf16.gmra.mrb[0].mxu0 %v3457
        %v3512 = vpop.f32.mrb[0].mxu0
        %v3513 = vadd.f32 %v3436, %v3512
        %v3514 = vpop.f32.mrb[0].mxu0
        %v3515 = vpop.f32.mrb[0].mxu0
        %v3516 = vadd.f32 %v3436, %v3515
        %v3517 = vpop.f32.mrb[0].mxu0
        %3518 = vmatprep.mubr.bf16.mxu0 0
        %3519 = vmatmul.mubr.bf16.gmra.mrb[0].mxu0 %v3460
        %v3520 = vpop.f32.mrb[0].mxu0
        %v3521 = vadd.f32 %v3436, %v3520
        %v3522 = vpop.f32.mrb[0].mxu0
        %v3523 = vpop.f32.mrb[0].mxu0
        %v3524 = vadd.f32 %v3436, %v3523
        %v3525 = vpop.f32.mrb[0].mxu0
        %3526 = vdwg.mxu0
        %v3527 = vmul.f32 %v3497, 0.5
        %v3528 = vmul.f32 %v3500, 0.5
        %v3529 = vmul.f32 %v3505, 0.5
        %v3530 = vmul.f32 %v3508, 0.5
        %v3531 = vmul.f32 %v3513, 0.5
        %v3532 = vmul.f32 %v3516, 0.5
        %v3533 = vmul.f32 %v3521, 0.5
        %v3534 = vmul.f32 %v3524, 0.5
        %v3535 = vmul.f32 %v3497, 0.044715
        %v3536 = vmul.f32 %v3500, 0.044715
        %v3537 = vmul.f32 %v3505, 0.044715
        %v3538 = vmul.f32 %v3508, 0.044715
        %v3539 = vmul.f32 %v3513, 0.044715
        %v3540 = vmul.f32 %v3516, 0.044715
        %v3541 = vmul.f32 %v3521, 0.044715
        %v3542 = vmul.f32 %v3524, 0.044715
        %v3543 = vmul.f32 %v3535, %v3497
        %v3544 = vmul.f32 %v3536, %v3500
        %v3545 = vmul.f32 %v3537, %v3505
        %v3546 = vmul.f32 %v3538, %v3508
        %v3547 = vmul.f32 %v3539, %v3513
        %v3548 = vmul.f32 %v3540, %v3516
        %v3549 = vmul.f32 %v3541, %v3521
        %v3550 = vmul.f32 %v3542, %v3524
        %v3551 = vmul.f32 %v3543, %v3497
        %v3552 = vmul.f32 %v3544, %v3500
        %v3553 = vmul.f32 %v3545, %v3505
        %v3554 = vmul.f32 %v3546, %v3508
        %v3555 = vmul.f32 %v3547, %v3513
        %v3556 = vmul.f32 %v3548, %v3516
        %v3557 = vmul.f32 %v3549, %v3521
        %v3558 = vmul.f32 %v3550, %v3524
        %v3559 = vadd.f32 %v3497, %v3551
        %v3560 = vadd.f32 %v3500, %v3552
        %v3561 = vadd.f32 %v3505, %v3553
        %v3562 = vadd.f32 %v3508, %v3554
        %v3563 = vadd.f32 %v3513, %v3555
        %v3564 = vadd.f32 %v3516, %v3556
        %v3565 = vadd.f32 %v3521, %v3557
        %v3566 = vadd.f32 %v3524, %v3558
        %v3567 = vmul.f32 %v3559, 0.7978846
        %v3568 = vmul.f32 %v3560, 0.7978846
        %v3569 = vmul.f32 %v3561, 0.7978846
        %v3570 = vmul.f32 %v3562, 0.7978846
        %v3571 = vmul.f32 %v3563, 0.7978846
        %v3572 = vmul.f32 %v3564, 0.7978846
        %v3573 = vmul.f32 %v3565, 0.7978846
        %v3574 = vmul.f32 %v3566, 0.7978846
        %v3575 = vtanh.pop %v3567
        %v3576 = vtanh.pop %v3568
        %v3577 = vtanh.pop %v3569
        %v3578 = vtanh.pop %v3570
        %v3579 = vtanh.pop %v3571
        %v3580 = vtanh.pop %v3572
        %v3581 = vtanh.pop %v3573
        %v3582 = vtanh.pop %v3574
        %v3583 = vadd.f32 %v3575, 1.0
        %v3584 = vadd.f32 %v3576, 1.0
        %v3585 = vadd.f32 %v3577, 1.0
        %v3586 = vadd.f32 %v3578, 1.0
        %v3587 = vadd.f32 %v3579, 1.0
        %v3588 = vadd.f32 %v3580, 1.0
        %v3589 = vadd.f32 %v3581, 1.0
        %v3590 = vadd.f32 %v3582, 1.0
        %v3591 = vmul.f32 %v3527, %v3583
        %v3592 = vmul.f32 %v3528, %v3584
        %v3593 = vmul.f32 %v3529, %v3585
        %v3594 = vmul.f32 %v3530, %v3586
        %v3595 = vmul.f32 %v3531, %v3587
        %v3596 = vmul.f32 %v3532, %v3588
        %v3597 = vmul.f32 %v3533, %v3589
        %v3598 = vmul.f32 %v3534, %v3590
        %v3599 = vpack.c.bf16 %v3592, %v3591
        %v3600 = vpack.c.bf16 %v3594, %v3593
        %v3601 = vpack.c.bf16 %v3596, %v3595
        %v3602 = vpack.c.bf16 %v3598, %v3597
        %v3603 = vld [vmem:[%s16] sm:$0xf]
        %v3604 = vld [vmem:[%s16 + $0x4] sm:$0xf]
        %v3605 = vld [vmem:[%s16 + $0x8] sm:$0xf]
        %v3606 = vld [vmem:[%s16 + $0xc] sm:$0xf]
        %v3607 = vld [vmem:[%s16 + $0x10] sm:$0xf]
        %v3608 = vld [vmem:[%s16 + $0x14] sm:$0xf]
        %v3609 = vld [vmem:[%s16 + $0x18] sm:$0xf]
        %v3610 = vld [vmem:[%s16 + $0x1c] sm:$0xf]
        %v3611 = vld [vmem:[%s16 + $0x20] sm:$0xf]
        %v3612 = vld [vmem:[%s16 + $0x24] sm:$0xf]
        %v3613 = vld [vmem:[%s16 + $0x28] sm:$0xf]
        %v3614 = vld [vmem:[%s16 + $0x2c] sm:$0xf]
        %v3615 = vld [vmem:[%s16 + $0x30] sm:$0xf]
        %v3616 = vld [vmem:[%s16 + $0x34] sm:$0xf]
        %v3617 = vld [vmem:[%s16 + $0x38] sm:$0xf]
        %v3618 = vld [vmem:[%s16 + $0x3c] sm:$0xf]
        %v3619 = vld [vmem:[%s17] sm:$0x1]
        %v3621 = vlaneseq
        %v3622 = vshrl.u32 %v3621, 7
        %v3623 = vsub.s32 0, %v3622
        %v3624 = vrot.slane %v3619, %v3623
        %v3642 = vunpack.c.l.b16 %v3603
        %v3643 = vunpack.c.l.b16 %v3604
        %v3644 = vunpack.c.l.b16 %v3605
        %v3645 = vunpack.c.l.b16 %v3606
        %v3646 = vunpack.c.l.b16 %v3607
        %v3647 = vunpack.c.l.b16 %v3608
        %v3648 = vunpack.c.l.b16 %v3609
        %v3649 = vunpack.c.l.b16 %v3610
        %v3650 = vunpack.c.l.b16 %v3611
        %v3651 = vunpack.c.l.b16 %v3612
        %v3652 = vunpack.c.l.b16 %v3613
        %v3653 = vunpack.c.l.b16 %v3614
        %v3654 = vunpack.c.l.b16 %v3615
        %v3655 = vunpack.c.l.b16 %v3616
        %v3656 = vunpack.c.l.b16 %v3617
        %v3657 = vunpack.c.l.b16 %v3618
        %v3658 = vpack.c.b16 %v3643, %v3642
        %v3659 = vpack.c.b16 %v3645, %v3644
        %v3660 = vpack.c.b16 %v3647, %v3646
        %v3661 = vpack.c.b16 %v3649, %v3648
        %v3662 = vpack.c.b16 %v3651, %v3650
        %v3663 = vpack.c.b16 %v3653, %v3652
        %v3664 = vpack.c.b16 %v3655, %v3654
        %v3665 = vpack.c.b16 %v3657, %v3656
        %3674 = vmatprep.subr.bf16.mxu0 0
        %3675 = vmatpush1.bf16.msra.mxu0 %v3658
        %3676 = vmatprep.subr.bf16.mxu0 0
        %3677 = vmatpush1.bf16.msra.mxu0 %v3659
        %3678 = vmatprep.subr.bf16.mxu0 0
        %3679 = vmatpush1.bf16.msra.mxu0 %v3660
        %3680 = vmatprep.subr.bf16.mxu0 0
        %3681 = vmatpush1.bf16.msra.mxu0 %v3661
        %3682 = vmatprep.subr.bf16.mxu0 0
        %3683 = vmatpush1.bf16.msra.mxu0 %v3662
        %3684 = vmatprep.subr.bf16.mxu0 0
        %3685 = vmatpush1.bf16.msra.mxu0 %v3663
        %3686 = vmatprep.subr.bf16.mxu0 0
        %3687 = vmatpush1.bf16.msra.mxu0 %v3664
        %3688 = vmatprep.subr.bf16.mxu0 0
        %3689 = vmatpush1.bf16.msra.mxu0 %v3665
        %3690 = vmatprep.subr.bf16.mxu0 0
        %3691 = vmatpush1.bf16.msra.mxu0 0
        %3692 = vmatprep.subr.bf16.mxu0 0
        %3693 = vmatpush1.bf16.msra.mxu0 0
        %3694 = vmatprep.subr.bf16.mxu0 0
        %3695 = vmatpush1.bf16.msra.mxu0 0
        %3696 = vmatprep.subr.bf16.mxu0 0
        %3697 = vmatpush1.bf16.msra.mxu0 0
        %3698 = vmatprep.subr.bf16.mxu0 0
        %3699 = vmatpush1.bf16.msra.mxu0 0
        %3700 = vmatprep.subr.bf16.mxu0 0
        %3701 = vmatpush1.bf16.msra.mxu0 0
        %3702 = vmatprep.subr.bf16.mxu0 0
        %3703 = vmatpush1.bf16.msra.mxu0 0
        %3704 = vmatprep.subr.bf16.mxu0 0
        %3705 = vmatpush1.bf16.msra.mxu0 0
        %3706 = vmatprep.mubr.bf16.mxu0 0
        %3707 = vmatmul.mubr.bf16.gmra.mrb[0].mxu0 %v3599
        %v3708 = vpop.f32.mrb[0].mxu0
        %v3709 = vadd.f32 %v3624, %v3708
        %v3710 = vpop.f32.mrb[0].mxu0
        %v3711 = vpop.f32.mrb[0].mxu0
        %v3712 = vadd.f32 %v3624, %v3711
        %v3713 = vpop.f32.mrb[0].mxu0
        %3714 = vmatprep.mubr.bf16.mxu0 0
        %3715 = vmatmul.mubr.bf16.gmra.mrb[0].mxu0 %v3600
        %v3716 = vpop.f32.mrb[0].mxu0
        %v3717 = vadd.f32 %v3624, %v3716
        %v3718 = vpop.f32.mrb[0].mxu0
        %v3719 = vpop.f32.mrb[0].mxu0
        %v3720 = vadd.f32 %v3624, %v3719
        %v3721 = vpop.f32.mrb[0].mxu0
        %3722 = vmatprep.mubr.bf16.mxu0 0
        %3723 = vmatmul.mubr.bf16.gmra.mrb[0].mxu0 %v3601
        %v3724 = vpop.f32.mrb[0].mxu0
        %v3725 = vadd.f32 %v3624, %v3724
        %v3726 = vpop.f32.mrb[0].mxu0
        %v3727 = vpop.f32.mrb[0].mxu0
        %v3728 = vadd.f32 %v3624, %v3727
        %v3729 = vpop.f32.mrb[0].mxu0
        %3730 = vmatprep.mubr.bf16.mxu0 0
        %3731 = vmatmul.mubr.bf16.gmra.mrb[0].mxu0 %v3602
        %v3732 = vpop.f32.mrb[0].mxu0
        %v3733 = vadd.f32 %v3624, %v3732
        %v3734 = vpop.f32.mrb[0].mxu0
        %v3735 = vpop.f32.mrb[0].mxu0
        %v3736 = vadd.f32 %v3624, %v3735
        %v3737 = vpop.f32.mrb[0].mxu0
        %3738 = vdwg.mxu0
        %v3739 = vadd.f32 %v3281, %v3709
        %v3740 = vadd.f32 %v3282, %v3712
        %v3741 = vadd.f32 %v3283, %v3717
        %v3742 = vadd.f32 %v3284, %v3720
        %v3743 = vadd.f32 %v3285, %v3725
        %v3744 = vadd.f32 %v3286, %v3728
        %v3745 = vadd.f32 %v3287, %v3733
        %v3746 = vadd.f32 %v3288, %v3736
        %3747 = vst.msk [vmem:[%s609] sm:$0xff] %vm623, %v3739
        %3748 = vst.msk [vmem:[%s609 + $0x8] sm:$0xff] %vm623, %v3740
        %3749 = vst.msk [vmem:[%s609 + $0x10] sm:$0xff] %vm623, %v3741
        %3750 = vst.msk [vmem:[%s609 + $0x18] sm:$0xff] %vm623, %v3742
        %3751 = vst.msk [vmem:[%s609 + $0x20] sm:$0xff] %vm623, %v3743
        %3752 = vst.msk [vmem:[%s609 + $0x28] sm:$0xff] %vm623, %v3744
        %3753 = vst.msk [vmem:[%s609 + $0x30] sm:$0xff] %vm623, %v3745
        %3754 = vst.msk [vmem:[%s609 + $0x38] sm:$0xff] %vm623, %v3746
        %s3755 = sand.u32 %s427, 1
        %s3756 = scalar_lea.sflag [#allocation5], %s3755
        %s3757 = sand.u32 %s427, 1
        %s3758 = smul.addr %s3757, 64
        %s3759 = scalar_lea.vmem [#allocation8], %s3758
        // Predicated region
        $region101: #{tpu_custom_call.1} parent=91 // pred_check
          %p3760 = pneg %p437
        $region102: #{tpu_custom_call.1} parent=91 // pred_check_branch
          %3762 = sbr.rel (%p3760) target = $region104
        $region103: #{tpu_custom_call.1} parent=91 // pred_region
          %s3763 = smul.u32 4, %s36
          %s3765 = ssub.s32 1024, 1024
          %3766 = vsyncadd %s3756, %s3765
          %s3767 = smul.addr %s3763, 2
          %s3768 = smul.addr %s3767, 128
          %s3769 = scalar_lea.hbm %s18, %s3768
          %s3770 = sshll.u32 %s3759, 4
          %s3771 = int_to_ptr.vmem [resolvable:$true] %s3770
          %3776 = dma.vmem_to_hbm [thread:$0]  %s3771, 1024, %s3769, %s3756, 128, 128, 8
        $region104: #{tpu_custom_call.1} parent=91 // pred_fallthru
          _
      $region92: #{tpu_custom_call.1} parent=5 // pred_fallthru
        _
      %p3777 = scmp.le.s32.totalorder 2, %s31
      // Predicated region
      $region105: #{tpu_custom_call.1} parent=5 // pred_check
        %p3778 = pneg %p3777
      $region106: #{tpu_custom_call.1} parent=5 // pred_check_branch
        %3780 = sbr.rel (%p3778) target = $region108
      $region107: #{tpu_custom_call.1} parent=5 // pred_region
        %s3781 = ssub.s32 %s31, 2
        // Predicated region
        $region109: #{tpu_custom_call.1} parent=107 // pred_check
          %p3782 = pneg %p443
        $region110: #{tpu_custom_call.1} parent=107 // pred_check_branch
          %3784 = sbr.rel (%p3782) target = $region112
        $region111: #{tpu_custom_call.1} parent=107 // pred_region
          %s3785 = sand.u32 %s428, 1
          %s3786 = scalar_lea.sflag [#allocation5], %s3785
          %s3787 = sand.u32 %s428, 1
          %s3788 = smul.addr %s3787, 64
          %s3789 = scalar_lea.vmem [#allocation8], %s3788
          %3790 = dma.done %s3786, 1024
        $region112: #{tpu_custom_call.1} parent=107 // pred_fallthru
          _
      $region108: #{tpu_custom_call.1} parent=5 // pred_fallthru
        _
    $region6: #{tpu_custom_call.1} parent=1 // loop_footer
      %s35 = sadd.s32 1, %s31
    $region7: #{tpu_custom_call.1} parent=1 // loop_footer_branch
      %30 = sbr.rel target = $region3
    $region8: #{tpu_custom_call.1} parent=1 // loop_exit
      _
    %3791 = vsyncpa [#allocation4], 1
    %s3792 = scalar_lea.sflag [#allocation4], 1
    %3793 = vsyncpa %s3792, 1
    %3794 = vsyncpa [#allocation7], 1
    %3795 = vsyncpa [#allocation5], 1
    %s3796 = scalar_lea.sflag [#allocation5], 1
    %3797 = vsyncpa %s3796, 1

</llo_original>
